<compile_context>
chip_gen: v7x
topology: tpu7x:2x2x1
jax: 0.10.0
libtpu: 0.0.40
codegen_flags: <defaults>
</compile_context>

<pallas_src>
import functools

import jax
import jax.numpy as jnp
from jax.experimental import pallas as pl
from jax.experimental.pallas import tpu as pltpu


# --------------------------------------------------------------------------
# Kernel 1: TransformerEncoder (seq_len == 1) on attr & obj word embeddings
# --------------------------------------------------------------------------
def _layer_norm(y, g, b, eps=1e-5):
    m = jnp.mean(y, axis=-1, keepdims=True)
    v = jnp.mean((y - m) ** 2, axis=-1, keepdims=True)
    return (y - m) * jax.lax.rsqrt(v + eps) * g + b


def word_emb_encoder_kernel(
    wemb_ref,                          # (2, tn, E) bf16
    wv_ref, bv_ref, wo_ref, bo_ref,    # (2, E, E) bf16 / (2, 1, E) f32
    g1_ref, be1_ref,                   # (2, 1, E) f32
    wf1_ref, bf1_ref, wf2_ref, bf2_ref,  # (2, E, F) bf16 / (2, 1, F) f32 / ...
    g2_ref, be2_ref,                   # (2, 1, E) f32
    emb_ref,                           # (2, tn, E) bf16  (out)
):
    f32, bf16 = jnp.float32, jnp.bfloat16
    for g in range(2):                 # g=0: attr encoder, g=1: obj encoder
        e_bf = wemb_ref[g]             # (tn, E) bf16
        e = e_bf.astype(f32)
        # seq_len == 1  =>  softmax(QK^T) == 1  =>  attention == out_proj(V).
        v = jnp.dot(e_bf, wv_ref[g], preferred_element_type=f32) + bv_ref[g]
        attn = jnp.dot(v.astype(bf16), wo_ref[g],
                       preferred_element_type=f32) + bo_ref[g]
        hn = _layer_norm(e + attn, g1_ref[g], be1_ref[g])
        ffn = jnp.dot(hn.astype(bf16), wf1_ref[g],
                      preferred_element_type=f32) + bf1_ref[g]
        ffn = jnp.maximum(ffn, 0.0)
        ffn = jnp.dot(ffn.astype(bf16), wf2_ref[g],
                      preferred_element_type=f32) + bf2_ref[g]
        out = _layer_norm(hn + ffn, g2_ref[g], be2_ref[g])
        emb_ref[g] = out.astype(bf16)


# --------------------------------------------------------------------------
# Kernel 2: VARM conv+pool (streamed over spatial blocks) + MLP heads + scores
# --------------------------------------------------------------------------
def feats_scores_kernel(
    x_ref,                       # (tb, ts, C) bf16
    wc_ref, bc_ref,              # (C, 2C) bf16, (1, 2C) f32
    hw1_ref, hb1_ref,            # (3, C, HID) bf16, (3, 1, HID) f32
    hw2_ref, hb2_ref,            # (3, HID, E) bf16, (3, 1, E) f32
    emb_ref,                     # (2, Npad, E) bf16  (from kernel 1)
    pair_e_ref,                  # (E, Pp) bf16
    sattr_ref, sobj_ref, spair_ref,   # (tb, Npad) / (tb, Npad) / (tb, Pp) f32
    acc_varm, acc_pool,          # VMEM scratch: (tb, 2C) f32, (tb, C) f32
    *, s_total,
):
    f32, bf16 = jnp.float32, jnp.bfloat16
    s = pl.program_id(1)

    @pl.when(s == 0)
    def _():
        acc_varm[...] = jnp.zeros_like(acc_varm)
        acc_pool[...] = jnp.zeros_like(acc_pool)

    xb = x_ref[...]                                  # (tb, ts, C) bf16
    tb, ts, C = xb.shape
    # fused attr/obj VARM 1x1-conv (+ bias, ReLU), accumulated for global pool
    conv = jnp.dot(xb.reshape(tb * ts, C), wc_ref[...],
                   preferred_element_type=f32)
    conv = jnp.maximum(conv + bc_ref[...], 0.0).reshape(tb, ts, 2 * C)
    acc_varm[...] += jnp.sum(conv, axis=1)
    acc_pool[...] += jnp.sum(xb.astype(f32), axis=1)  # adaptive_avg_pool2d(1)

    @pl.when(s == pl.num_programs(1) - 1)
    def _():
        inv_s = 1.0 / s_total
        pooled = acc_varm[...] * inv_s               # (tb, 2C)
        pair_pool = acc_pool[...] * inv_s            # (tb, C)
        head_in = (pooled[:, :C], pooled[:, C:], pair_pool)   # attr, obj, pair
        feats = []
        for g in range(3):
            h = jnp.dot(head_in[g].astype(bf16), hw1_ref[g],
                        preferred_element_type=f32)
            h = jnp.maximum(h + hb1_ref[g], 0.0)
            f = jnp.dot(h.astype(bf16), hw2_ref[g],
                        preferred_element_type=f32)
            f = jnp.maximum(f + hb2_ref[g], 0.0)
            feats.append(f.astype(bf16))             # (tb, E)
        sattr_ref[...] = jnp.einsum('be,ne->bn', feats[0], emb_ref[0],
                                    preferred_element_type=f32)
        sobj_ref[...] = jnp.einsum('be,ne->bn', feats[1], emb_ref[1],
                                   preferred_element_type=f32)
        spair_ref[...] = jnp.dot(feats[2], pair_e_ref[...],
                                 preferred_element_type=f32)


# --------------------------------------------------------------------------
# One-time parameter packing (hoisted out of the per-call path)
# --------------------------------------------------------------------------
def pack_lvar_params(params, attr_idx_per_pair, obj_idx_per_pair):
    f32, bf16 = jnp.float32, jnp.bfloat16
    A = params["attr_word_emb"].shape[0]
    O = params["obj_word_emb"].shape[0]
    P = params["pairs_embedder"].shape[0]
    Npad = -(-max(A, O, 1) // 128) * 128            # lane-dense score width
    Pp = -(-max(P, 1) // 128) * 128

    wc_cat = jnp.concatenate([params["attr_extractor"]["wc"],
                              params["obj_extractor"]["wc"]], axis=1).astype(bf16)
    bc_cat = jnp.concatenate([params["attr_extractor"]["bc"],
                              params["obj_extractor"]["bc"]], axis=1).astype(f32)

    heads = [params["attr_head"], params["obj_head"], params["pair_head"]]
    hw1 = jnp.stack([h["w1"] for h in heads]).astype(bf16)
    hb1 = jnp.stack([h["b1"] for h in heads]).astype(f32)
    hw2 = jnp.stack([h["w2"] for h in heads]).astype(bf16)
    hb2 = jnp.stack([h["b2"] for h in heads]).astype(f32)

    def pad_rows(a, n):
        return jnp.pad(a, ((0, n - a.shape[0]), (0, 0)))

    wemb = jnp.stack([pad_rows(params["attr_word_emb"], Npad),
                      pad_rows(params["obj_word_emb"], Npad)]).astype(bf16)

    trs = [params["trans_attr"], params["trans_obj"]]

    def tstack(name, cast_bf16=False):
        a = jnp.stack([t[name] for t in trs])
        return a.astype(bf16) if cast_bf16 else a.astype(f32)

    # val pair_embed == pairs_embedder weights (compositional init), lane-padded
    pair_e = jnp.pad(params["pairs_embedder"].T,
                     ((0, 0), (0, Pp - P))).astype(bf16)

    return dict(
        wc=wc_cat, bc=bc_cat, hw1=hw1, hb1=hb1, hw2=hw2, hb2=hb2,
        wemb=wemb,
        wv=tstack("wv", True), bv=tstack("bv"),
        wo=tstack("wo", True), bo=tstack("bo"),
        g1=tstack("g1"), be1=tstack("be1"),
        wf1=tstack("wf1", True), bf1=tstack("bf1"),
        wf2=tstack("wf2", True), bf2=tstack("bf2"),
        g2=tstack("g2"), be2=tstack("be2"),
        pair_e=pair_e,
        attr_idx=jnp.asarray(attr_idx_per_pair, jnp.int32),
        obj_idx=jnp.asarray(obj_idx_per_pair, jnp.int32),
    )


# --------------------------------------------------------------------------
# Helpers
# --------------------------------------------------------------------------
def _pick_ts(s):
    """Largest multiple-of-16 divisor of s that is <= 128, else full s."""
    best = None
    for cand in range(16, min(s, 128) + 1, 16):
        if s % cand == 0:
            best = cand
    return best if best is not None else s


def _vmem_limit(*items):
    """Explicit scoped-VMEM budget from the operand set (bytes or arrays)."""
    total = 0
    for it in items:
        if isinstance(it, int):
            total += it
        else:
            total += it.size * jnp.dtype(it.dtype).itemsize
    total = 2 * total + (4 << 20)                    # double-buffer + headroom
    return int(min(max(total, 32 << 20), 100 << 20))


# --------------------------------------------------------------------------
# val_forward: two pallas_calls + exact per-pair gather / alpha blend
# --------------------------------------------------------------------------
def _lvar_val_forward(packed, x_nchw, alpha):
    f32, bf16 = jnp.float32, jnp.bfloat16
    B, C, H, W = x_nchw.shape
    S = H * W
    Npad, E = packed["wemb"].shape[1], packed["wemb"].shape[2]
    Pp = packed["pair_e"].shape[1]
    P = packed["attr_idx"].shape[0]

    # ---- kernel 1: word-embedding transformer encoders -------------------
    tparams = [packed[k] for k in ("wv", "bv", "wo", "bo", "g1", "be1",
                                   "wf1", "bf1", "wf2", "bf2", "g2", "be2")]
    tn = 128
    emb = pl.pallas_call(
        word_emb_encoder_kernel,
        out_shape=jax.ShapeDtypeStruct((2, Npad, E), bf16),
        grid=(Npad // tn,),
        in_specs=[pl.BlockSpec((2, tn, E), lambda n: (0, n, 0))]
                 + [pl.BlockSpec(p.shape, lambda n, nd=p.ndim: (0,) * nd)
                    for p in tparams],
        out_specs=pl.BlockSpec((2, tn, E), lambda n: (0, n, 0)),
        compiler_params=pltpu.CompilerParams(
            dimension_semantics=("parallel",),
            vmem_limit_bytes=_vmem_limit(packed["wemb"], *tparams,
                                         2 * Npad * E * 2)),
    )(packed["wemb"], *tparams)

    # ---- kernel 2: VARM conv/pool + heads + scores ------------------------
    Bpad = -(-B // 8) * 8
    tb = 8
    ts = _pick_ts(S)

    x = jnp.transpose(x_nchw, (0, 2, 3, 1)).reshape(B, S, C).astype(bf16)
    x = jnp.pad(x, ((0, Bpad - B), (0, 0), (0, 0)))

    wparams = (packed["wc"], packed["bc"], packed["hw1"], packed["hb1"],
               packed["hw2"], packed["hb2"], emb, packed["pair_e"])
    w_specs = [pl.BlockSpec(w.shape, lambda b, s, nd=w.ndim: (0,) * nd)
               for w in wparams]

    x_block_bytes = tb * ts * C * 2
    out_bytes = tb * (2 * Npad + Pp) * 4
    scratch_bytes = tb * 3 * C * 4

    kernel = functools.partial(feats_scores_kernel, s_total=float(S))
    s_attr, s_obj, s_pair = pl.pallas_call(
        kernel,
        out_shape=(jax.ShapeDtypeStruct((Bpad, Npad), f32),
                   jax.ShapeDtypeStruct((Bpad, Npad), f32),
                   jax.ShapeDtypeStruct((Bpad, Pp), f32)),
        grid=(Bpad // tb, S // ts),
        in_specs=[pl.BlockSpec((tb, ts, C), lambda b, s: (b, s, 0))] + w_specs,
        out_specs=(pl.BlockSpec((tb, Npad), lambda b, s: (b, 0)),
                   pl.BlockSpec((tb, Npad), lambda b, s: (b, 0)),
                   pl.BlockSpec((tb, Pp), lambda b, s: (b, 0))),
        scratch_shapes=[pltpu.VMEM((tb, 2 * C), f32),
                        pltpu.VMEM((tb, C), f32)],
        compiler_params=pltpu.CompilerParams(
            dimension_semantics=("parallel", "arbitrary"),
            vmem_limit_bytes=_vmem_limit(x_block_bytes, out_bytes,
                                         scratch_bytes, *wparams)),
    )(x, *wparams)

    # ---- exact per-pair gather + alpha blend (wrapper, no dense one-hots) --
    attr_p = jnp.take(s_attr[:B], packed["attr_idx"], axis=1)   # (B, P)
    obj_p = jnp.take(s_obj[:B], packed["obj_idx"], axis=1)      # (B, P)
    pair_p = s_pair[:B, :P]                                     # (B, P)
    scores = pair_p * alpha + (attr_p + obj_p) * (1.0 - alpha)
    return None, scores


lvar_val_forward = jax.jit(_lvar_val_forward)


# --------------------------------------------------------------------------
# Parameter init (deterministic, synthetic)
# --------------------------------------------------------------------------
def _mat(key, shape, scale=0.05):
    return (scale * jax.random.normal(key, shape)).astype(jnp.float32)


def init_mlp(key, in_dim, hid_dim, out_dim):
    k1, k2 = jax.random.split(key)
    return dict(w1=_mat(k1, (in_dim, hid_dim)),
                b1=jnp.zeros((1, hid_dim), jnp.float32),
                w2=_mat(k2, (hid_dim, out_dim)),
                b2=jnp.zeros((1, out_dim), jnp.float32))


def init_transformer(key, d_model, ffn_dim):
    ks = jax.random.split(key, 4)
    return dict(
        wv=_mat(ks[0], (d_model, d_model)), bv=jnp.zeros((1, d_model), jnp.float32),
        wo=_mat(ks[1], (d_model, d_model)), bo=jnp.zeros((1, d_model), jnp.float32),
        g1=jnp.ones((1, d_model), jnp.float32), be1=jnp.zeros((1, d_model), jnp.float32),
        wf1=_mat(ks[2], (d_model, ffn_dim)), bf1=jnp.zeros((1, ffn_dim), jnp.float32),
        wf2=_mat(ks[3], (ffn_dim, d_model)), bf2=jnp.zeros((1, d_model), jnp.float32),
        g2=jnp.ones((1, d_model), jnp.float32), be2=jnp.zeros((1, d_model), jnp.float32),
    )


def init_varm(key, c):
    return dict(wc=_mat(key, (c, c)), bc=jnp.zeros((1, c), jnp.float32))


# --------------------------------------------------------------------------
if __name__ == "__main__":
    key = jax.random.PRNGKey(0)
    ks = jax.random.split(key, 10)

    # Small synthetic config (dataset.feat_dim -> C, args.emb_dim -> E).
    B, C, H, W = 2, 128, 16, 16
    E, FFN = 128, 256
    NUM_ATTRS, NUM_OBJS, NUM_PAIRS = 5, 7, 12
    ALPHA = 0.8

    # deterministic pair -> (attr, obj) mapping (dataset.pairs order)
    attr_idx_per_pair = jnp.array([p % NUM_ATTRS for p in range(NUM_PAIRS)], jnp.int32)
    obj_idx_per_pair = jnp.array([(3 * p + 1) % NUM_OBJS for p in range(NUM_PAIRS)], jnp.int32)

    # word embeddings (stand-in for load_word_embeddings)
    attr_word_emb = _mat(ks[0], (NUM_ATTRS, E), scale=1.0)
    obj_word_emb = _mat(ks[1], (NUM_OBJS, E), scale=1.0)
    pairs_embedder = (attr_word_emb[attr_idx_per_pair] + obj_word_emb[obj_idx_per_pair]) / 2.0

    params = dict(
        attr_extractor=init_varm(ks[2], C),
        obj_extractor=init_varm(ks[3], C),
        attr_head=init_mlp(ks[4], C, C, E),
        obj_head=init_mlp(ks[5], C, C, E),
        pair_head=init_mlp(ks[6], C, C, E),
        trans_attr=init_transformer(ks[7], E, FFN),
        trans_obj=init_transformer(ks[8], E, FFN),
        attr_word_emb=attr_word_emb,
        obj_word_emb=obj_word_emb,
        pairs_embedder=pairs_embedder,
    )

    x = jax.random.normal(ks[9], (B, C, H, W), jnp.float32)   # NCHW, like PyTorch

    packed = pack_lvar_params(params, attr_idx_per_pair, obj_idx_per_pair)
    _, scores = lvar_val_forward(packed, x, ALPHA)
    scores = jax.block_until_ready(scores)

    assert scores.shape == (B, NUM_PAIRS) and scores.dtype == jnp.float32
    assert bool(jnp.all(jnp.isfinite(scores)))
    print("KERNEL_OK")
</pallas_src>

<mosaic_0001>
module attributes {stable_mosaic.version = 11 : i64} {
  func.func @feats_scores_kernel(%arg0: i32, %arg1: i32, %arg2: memref<8x128x128xbf16, #tpu.memory_space<vmem>>, %arg3: memref<128x256xbf16, #tpu.memory_space<vmem>>, %arg4: memref<1x256xf32, #tpu.memory_space<vmem>>, %arg5: memref<3x128x128xbf16, #tpu.memory_space<vmem>>, %arg6: memref<3x1x128xf32, #tpu.memory_space<vmem>>, %arg7: memref<3x128x128xbf16, #tpu.memory_space<vmem>>, %arg8: memref<3x1x128xf32, #tpu.memory_space<vmem>>, %arg9: memref<2x128x128xbf16, #tpu.memory_space<vmem>>, %arg10: memref<128x128xbf16, #tpu.memory_space<vmem>>, %arg11: memref<8x128xf32, #tpu.memory_space<vmem>>, %arg12: memref<8x128xf32, #tpu.memory_space<vmem>>, %arg13: memref<8x128xf32, #tpu.memory_space<vmem>>, %arg14: memref<8x256xf32, #tpu.memory_space<vmem>>, %arg15: memref<8x128xf32, #tpu.memory_space<vmem>>) attributes {dimension_semantics = [#tpu.dimension_semantics<parallel>, #tpu.dimension_semantics<arbitrary>], iteration_bounds = array<i64: 1, 2>, scalar_prefetch = 0 : i64, scratch_operands = 2 : i64, tpu.core_type = #tpu.core_type<tc>, window_params = [{transform_indices = @transform_0, window_bounds = array<i64: 8, 128, 128>}, {pipeline_mode = #tpu.pipeline_mode<synchronous>, transform_indices = @transform_1, window_bounds = array<i64: 128, 256>}, {pipeline_mode = #tpu.pipeline_mode<synchronous>, transform_indices = @transform_2, window_bounds = array<i64: 1, 256>}, {pipeline_mode = #tpu.pipeline_mode<synchronous>, transform_indices = @transform_3, window_bounds = array<i64: 3, 128, 128>}, {pipeline_mode = #tpu.pipeline_mode<synchronous>, transform_indices = @transform_4, window_bounds = array<i64: 3, 1, 128>}, {pipeline_mode = #tpu.pipeline_mode<synchronous>, transform_indices = @transform_5, window_bounds = array<i64: 3, 128, 128>}, {pipeline_mode = #tpu.pipeline_mode<synchronous>, transform_indices = @transform_6, window_bounds = array<i64: 3, 1, 128>}, {pipeline_mode = #tpu.pipeline_mode<synchronous>, transform_indices = @transform_7, window_bounds = array<i64: 2, 128, 128>}, {pipeline_mode = #tpu.pipeline_mode<synchronous>, transform_indices = @transform_8, window_bounds = array<i64: 128, 128>}, {transform_indices = @transform_9, window_bounds = array<i64: 8, 128>}, {transform_indices = @transform_10, window_bounds = array<i64: 8, 128>}, {transform_indices = @transform_11, window_bounds = array<i64: 8, 128>}]} {
    %c0_i32 = arith.constant 0 : i32
    %0 = arith.cmpi eq, %arg1, %c0_i32 : i32
    %1 = arith.extui %0 : i1 to i32
    %c0_i32_0 = arith.constant 0 : i32
    %2 = arith.cmpi ne, %1, %c0_i32_0 : i32
    scf.if %2 {
      %cst_19 = arith.constant 0.000000e+00 : f32
      %25 = vector.broadcast %cst_19 : f32 to vector<8x256xf32>
      %c0_20 = arith.constant 0 : index
      %c0_21 = arith.constant 0 : index
      %26 = vector.load %arg14[%c0_20, %c0_21] : memref<8x256xf32, #tpu.memory_space<vmem>>, vector<8x256xf32>
      tpu.vector_store %arg14[%c0_20, %c0_21], %25 {strides = array<i32>} : memref<8x256xf32, #tpu.memory_space<vmem>>, vector<8x256xf32>,
      %cst_22 = arith.constant 0.000000e+00 : f32
      %27 = vector.broadcast %cst_22 : f32 to vector<8x128xf32>
      %c0_23 = arith.constant 0 : index
      %c0_24 = arith.constant 0 : index
      %28 = vector.load %arg15[%c0_23, %c0_24] : memref<8x128xf32, #tpu.memory_space<vmem>>, vector<8x128xf32>
      tpu.vector_store %arg15[%c0_23, %c0_24], %27 {strides = array<i32>} : memref<8x128xf32, #tpu.memory_space<vmem>>, vector<8x128xf32>,
    } else {
    }
    %c0 = arith.constant 0 : index
    %c0_1 = arith.constant 0 : index
    %c0_2 = arith.constant 0 : index
    %3 = vector.load %arg2[%c0, %c0_1, %c0_2] : memref<8x128x128xbf16, #tpu.memory_space<vmem>>, vector<8x128x128xbf16>
    %4 = vector.shape_cast %3 : vector<8x128x128xbf16> to vector<1024x128xbf16>
    %c0_3 = arith.constant 0 : index
    %c0_4 = arith.constant 0 : index
    %5 = vector.load %arg3[%c0_3, %c0_4] : memref<128x256xbf16, #tpu.memory_space<vmem>>, vector<128x256xbf16>
    %cst = arith.constant dense<0.000000e+00> : vector<1024x256xf32>
    %6 = tpu.matmul %4, %5, %cst {dimension_numbers = #tpu.dot_dimension_numbers<[1], [0], [0], [1], [0, 0, 1, 1], [], []>} : vector<1024x128xbf16>, vector<128x256xbf16>, vector<1024x256xf32> -> vector<1024x256xf32>
    %c0_5 = arith.constant 0 : index
    %c0_6 = arith.constant 0 : index
    %7 = vector.load %arg4[%c0_5, %c0_6] : memref<1x256xf32, #tpu.memory_space<vmem>>, vector<1x256xf32>
    %8 = vector.broadcast %7 : vector<1x256xf32> to vector<1024x256xf32>
    %9 = arith.addf %6, %8 : vector<1024x256xf32>
    %cst_7 = arith.constant 0.000000e+00 : f32
    %10 = vector.broadcast %cst_7 : f32 to vector<1024x256xf32>
    %11 = arith.maximumf %9, %10 : vector<1024x256xf32>
    %12 = vector.shape_cast %11 : vector<1024x256xf32> to vector<8x128x256xf32>
    %c0_8 = arith.constant 0 : index
    %c0_9 = arith.constant 0 : index
    %13 = vector.load %arg14[%c0_8, %c0_9] : memref<8x256xf32, #tpu.memory_space<vmem>>, vector<8x256xf32>
    %cst_10 = arith.constant dense<0.000000e+00> : vector<8x256xf32>
    %14 = vector.multi_reduction <add>, %12, %cst_10 [1] : vector<8x128x256xf32> to vector<8x256xf32>
    %15 = arith.addf %13, %14 : vector<8x256xf32>
    %c0_11 = arith.constant 0 : index
    %c0_12 = arith.constant 0 : index
    %16 = vector.load %arg14[%c0_11, %c0_12] : memref<8x256xf32, #tpu.memory_space<vmem>>, vector<8x256xf32>
    tpu.vector_store %arg14[%c0_11, %c0_12], %15 {strides = array<i32>} : memref<8x256xf32, #tpu.memory_space<vmem>>, vector<8x256xf32>,
    %c0_13 = arith.constant 0 : index
    %c0_14 = arith.constant 0 : index
    %17 = vector.load %arg15[%c0_13, %c0_14] : memref<8x128xf32, #tpu.memory_space<vmem>>, vector<8x128xf32>
    %18 = arith.extf %3 : vector<8x128x128xbf16> to vector<8x128x128xf32>
    %cst_15 = arith.constant dense<0.000000e+00> : vector<8x128xf32>
    %19 = vector.multi_reduction <add>, %18, %cst_15 [1] : vector<8x128x128xf32> to vector<8x128xf32>
    %20 = arith.addf %17, %19 : vector<8x128xf32>
    %c0_16 = arith.constant 0 : index
    %c0_17 = arith.constant 0 : index
    %21 = vector.load %arg15[%c0_16, %c0_17] : memref<8x128xf32, #tpu.memory_space<vmem>>, vector<8x128xf32>
    tpu.vector_store %arg15[%c0_16, %c0_17], %20 {strides = array<i32>} : memref<8x128xf32, #tpu.memory_space<vmem>>, vector<8x128xf32>,
    %c1_i32 = arith.constant 1 : i32
    %22 = arith.cmpi eq, %arg1, %c1_i32 : i32
    %23 = arith.extui %22 : i1 to i32
    %c0_i32_18 = arith.constant 0 : i32
    %24 = arith.cmpi ne, %23, %c0_i32_18 : i32
    scf.if %24 {
      %c0_19 = arith.constant 0 : index
      %c0_20 = arith.constant 0 : index
      %25 = vector.load %arg14[%c0_19, %c0_20] : memref<8x256xf32, #tpu.memory_space<vmem>>, vector<8x256xf32>
      %cst_21 = arith.constant 3.906250e-03 : f32
      %26 = vector.broadcast %cst_21 : f32 to vector<8x256xf32>
      %27 = arith.mulf %25, %26 : vector<8x256xf32>
      %c0_22 = arith.constant 0 : index
      %c0_23 = arith.constant 0 : index
      %28 = vector.load %arg15[%c0_22, %c0_23] : memref<8x128xf32, #tpu.memory_space<vmem>>, vector<8x128xf32>
      %cst_24 = arith.constant 3.906250e-03 : f32
      %29 = vector.broadcast %cst_24 : f32 to vector<8x128xf32>
      %30 = arith.mulf %28, %29 : vector<8x128xf32>
      %31 = vector.extract_strided_slice %27 {offsets = [0, 0], sizes = [8, 128], strides = [1, 1]} : vector<8x256xf32> to vector<8x128xf32>
      %32 = vector.extract_strided_slice %27 {offsets = [0, 128], sizes = [8, 128], strides = [1, 1]} : vector<8x256xf32> to vector<8x128xf32>
      %33 = arith.truncf %31 : vector<8x128xf32> to vector<8x128xbf16>
      %c0_25 = arith.constant 0 : index
      %c0_26 = arith.constant 0 : index
      %c0_27 = arith.constant 0 : index
      %34 = vector.load %arg5[%c0_25, %c0_26, %c0_27] : memref<3x128x128xbf16, #tpu.memory_space<vmem>>, vector<1x128x128xbf16>
      %35 = vector.shape_cast %34 : vector<1x128x128xbf16> to vector<128x128xbf16>
      %cst_28 = arith.constant dense<0.000000e+00> : vector<8x128xf32>
      %36 = tpu.matmul %33, %35, %cst_28 {dimension_numbers = #tpu.dot_dimension_numbers<[1], [0], [0], [1], [0, 0, 1, 1], [], []>} : vector<8x128xbf16>, vector<128x128xbf16>, vector<8x128xf32> -> vector<8x128xf32>
      %c0_29 = arith.constant 0 : index
      %c0_30 = arith.constant 0 : index
      %c0_31 = arith.constant 0 : index
      %37 = vector.load %arg6[%c0_29, %c0_30, %c0_31] : memref<3x1x128xf32, #tpu.memory_space<vmem>>, vector<1x1x128xf32>
      %38 = vector.shape_cast %37 : vector<1x1x128xf32> to vector<1x128xf32>
      %39 = vector.broadcast %38 : vector<1x128xf32> to vector<8x128xf32>
      %40 = arith.addf %36, %39 : vector<8x128xf32>
      %cst_32 = arith.constant 0.000000e+00 : f32
      %41 = vector.broadcast %cst_32 : f32 to vector<8x128xf32>
      %42 = arith.maximumf %40, %41 : vector<8x128xf32>
      %43 = arith.truncf %42 : vector<8x128xf32> to vector<8x128xbf16>
      %c0_33 = arith.constant 0 : index
      %c0_34 = arith.constant 0 : index
      %c0_35 = arith.constant 0 : index
      %44 = vector.load %arg7[%c0_33, %c0_34, %c0_35] : memref<3x128x128xbf16, #tpu.memory_space<vmem>>, vector<1x128x128xbf16>
      %45 = vector.shape_cast %44 : vector<1x128x128xbf16> to vector<128x128xbf16>
      %cst_36 = arith.constant dense<0.000000e+00> : vector<8x128xf32>
      %46 = tpu.matmul %43, %45, %cst_36 {dimension_numbers = #tpu.dot_dimension_numbers<[1], [0], [0], [1], [0, 0, 1, 1], [], []>} : vector<8x128xbf16>, vector<128x128xbf16>, vector<8x128xf32> -> vector<8x128xf32>
      %c0_37 = arith.constant 0 : index
      %c0_38 = arith.constant 0 : index
      %c0_39 = arith.constant 0 : index
      %47 = vector.load %arg8[%c0_37, %c0_38, %c0_39] : memref<3x1x128xf32, #tpu.memory_space<vmem>>, vector<1x1x128xf32>
      %48 = vector.shape_cast %47 : vector<1x1x128xf32> to vector<1x128xf32>
      %49 = vector.broadcast %48 : vector<1x128xf32> to vector<8x128xf32>
      %50 = arith.addf %46, %49 : vector<8x128xf32>
      %cst_40 = arith.constant 0.000000e+00 : f32
      %51 = vector.broadcast %cst_40 : f32 to vector<8x128xf32>
      %52 = arith.maximumf %50, %51 : vector<8x128xf32>
      %53 = arith.truncf %52 : vector<8x128xf32> to vector<8x128xbf16>
      %54 = arith.truncf %32 : vector<8x128xf32> to vector<8x128xbf16>
      %c1 = arith.constant 1 : index
      %c0_41 = arith.constant 0 : index
      %c0_42 = arith.constant 0 : index
      %55 = vector.load %arg5[%c1, %c0_41, %c0_42] : memref<3x128x128xbf16, #tpu.memory_space<vmem>>, vector<1x128x128xbf16>
      %56 = vector.shape_cast %55 : vector<1x128x128xbf16> to vector<128x128xbf16>
      %cst_43 = arith.constant dense<0.000000e+00> : vector<8x128xf32>
      %57 = tpu.matmul %54, %56, %cst_43 {dimension_numbers = #tpu.dot_dimension_numbers<[1], [0], [0], [1], [0, 0, 1, 1], [], []>} : vector<8x128xbf16>, vector<128x128xbf16>, vector<8x128xf32> -> vector<8x128xf32>
      %c1_44 = arith.constant 1 : index
      %c0_45 = arith.constant 0 : index
      %c0_46 = arith.constant 0 : index
      %58 = vector.load %arg6[%c1_44, %c0_45, %c0_46] : memref<3x1x128xf32, #tpu.memory_space<vmem>>, vector<1x1x128xf32>
      %59 = vector.shape_cast %58 : vector<1x1x128xf32> to vector<1x128xf32>
      %60 = vector.broadcast %59 : vector<1x128xf32> to vector<8x128xf32>
      %61 = arith.addf %57, %60 : vector<8x128xf32>
      %cst_47 = arith.constant 0.000000e+00 : f32
      %62 = vector.broadcast %cst_47 : f32 to vector<8x128xf32>
      %63 = arith.maximumf %61, %62 : vector<8x128xf32>
      %64 = arith.truncf %63 : vector<8x128xf32> to vector<8x128xbf16>
      %c1_48 = arith.constant 1 : index
      %c0_49 = arith.constant 0 : index
      %c0_50 = arith.constant 0 : index
      %65 = vector.load %arg7[%c1_48, %c0_49, %c0_50] : memref<3x128x128xbf16, #tpu.memory_space<vmem>>, vector<1x128x128xbf16>
      %66 = vector.shape_cast %65 : vector<1x128x128xbf16> to vector<128x128xbf16>
      %cst_51 = arith.constant dense<0.000000e+00> : vector<8x128xf32>
      %67 = tpu.matmul %64, %66, %cst_51 {dimension_numbers = #tpu.dot_dimension_numbers<[1], [0], [0], [1], [0, 0, 1, 1], [], []>} : vector<8x128xbf16>, vector<128x128xbf16>, vector<8x128xf32> -> vector<8x128xf32>
      %c1_52 = arith.constant 1 : index
      %c0_53 = arith.constant 0 : index
      %c0_54 = arith.constant 0 : index
      %68 = vector.load %arg8[%c1_52, %c0_53, %c0_54] : memref<3x1x128xf32, #tpu.memory_space<vmem>>, vector<1x1x128xf32>
      %69 = vector.shape_cast %68 : vector<1x1x128xf32> to vector<1x128xf32>
      %70 = vector.broadcast %69 : vector<1x128xf32> to vector<8x128xf32>
      %71 = arith.addf %67, %70 : vector<8x128xf32>
      %cst_55 = arith.constant 0.000000e+00 : f32
      %72 = vector.broadcast %cst_55 : f32 to vector<8x128xf32>
      %73 = arith.maximumf %71, %72 : vector<8x128xf32>
      %74 = arith.truncf %73 : vector<8x128xf32> to vector<8x128xbf16>
      %75 = arith.truncf %30 : vector<8x128xf32> to vector<8x128xbf16>
      %c2 = arith.constant 2 : index
      %c0_56 = arith.constant 0 : index
      %c0_57 = arith.constant 0 : index
      %76 = vector.load %arg5[%c2, %c0_56, %c0_57] : memref<3x128x128xbf16, #tpu.memory_space<vmem>>, vector<1x128x128xbf16>
      %77 = vector.shape_cast %76 : vector<1x128x128xbf16> to vector<128x128xbf16>
      %cst_58 = arith.constant dense<0.000000e+00> : vector<8x128xf32>
      %78 = tpu.matmul %75, %77, %cst_58 {dimension_numbers = #tpu.dot_dimension_numbers<[1], [0], [0], [1], [0, 0, 1, 1], [], []>} : vector<8x128xbf16>, vector<128x128xbf16>, vector<8x128xf32> -> vector<8x128xf32>
      %c2_59 = arith.constant 2 : index
      %c0_60 = arith.constant 0 : index
      %c0_61 = arith.constant 0 : index
      %79 = vector.load %arg6[%c2_59, %c0_60, %c0_61] : memref<3x1x128xf32, #tpu.memory_space<vmem>>, vector<1x1x128xf32>
      %80 = vector.shape_cast %79 : vector<1x1x128xf32> to vector<1x128xf32>
      %81 = vector.broadcast %80 : vector<1x128xf32> to vector<8x128xf32>
      %82 = arith.addf %78, %81 : vector<8x128xf32>
      %cst_62 = arith.constant 0.000000e+00 : f32
      %83 = vector.broadcast %cst_62 : f32 to vector<8x128xf32>
      %84 = arith.maximumf %82, %83 : vector<8x128xf32>
      %85 = arith.truncf %84 : vector<8x128xf32> to vector<8x128xbf16>
      %c2_63 = arith.constant 2 : index
      %c0_64 = arith.constant 0 : index
      %c0_65 = arith.constant 0 : index
      %86 = vector.load %arg7[%c2_63, %c0_64, %c0_65] : memref<3x128x128xbf16, #tpu.memory_space<vmem>>, vector<1x128x128xbf16>
      %87 = vector.shape_cast %86 : vector<1x128x128xbf16> to vector<128x128xbf16>
      %cst_66 = arith.constant dense<0.000000e+00> : vector<8x128xf32>
      %88 = tpu.matmul %85, %87, %cst_66 {dimension_numbers = #tpu.dot_dimension_numbers<[1], [0], [0], [1], [0, 0, 1, 1], [], []>} : vector<8x128xbf16>, vector<128x128xbf16>, vector<8x128xf32> -> vector<8x128xf32>
      %c2_67 = arith.constant 2 : index
      %c0_68 = arith.constant 0 : index
      %c0_69 = arith.constant 0 : index
      %89 = vector.load %arg8[%c2_67, %c0_68, %c0_69] : memref<3x1x128xf32, #tpu.memory_space<vmem>>, vector<1x1x128xf32>
      %90 = vector.shape_cast %89 : vector<1x1x128xf32> to vector<1x128xf32>
      %91 = vector.broadcast %90 : vector<1x128xf32> to vector<8x128xf32>
      %92 = arith.addf %88, %91 : vector<8x128xf32>
      %cst_70 = arith.constant 0.000000e+00 : f32
      %93 = vector.broadcast %cst_70 : f32 to vector<8x128xf32>
      %94 = arith.maximumf %92, %93 : vector<8x128xf32>
      %95 = arith.truncf %94 : vector<8x128xf32> to vector<8x128xbf16>
      %c0_71 = arith.constant 0 : index
      %c0_72 = arith.constant 0 : index
      %c0_73 = arith.constant 0 : index
      %96 = vector.load %arg9[%c0_71, %c0_72, %c0_73] : memref<2x128x128xbf16, #tpu.memory_space<vmem>>, vector<1x128x128xbf16>
      %97 = vector.shape_cast %96 : vector<1x128x128xbf16> to vector<128x128xbf16>
      "tpu.trace_start"() <{level = 10 : i32, message = "be,ne->bn"}> : () -> ()
      %cst_74 = arith.constant dense<0.000000e+00> : vector<8x128xf32>
      %98 = tpu.matmul %53, %97, %cst_74 {dimension_numbers = #tpu.dot_dimension_numbers<[1], [1], [0], [0], [0, 0, 1, 0], [], []>} : vector<8x128xbf16>, vector<128x128xbf16>, vector<8x128xf32> -> vector<8x128xf32>
      "tpu.trace_stop"() : () -> ()
      %c0_75 = arith.constant 0 : index
      %c0_76 = arith.constant 0 : index
      %99 = vector.load %arg11[%c0_75, %c0_76] : memref<8x128xf32, #tpu.memory_space<vmem>>, vector<8x128xf32>
      tpu.vector_store %arg11[%c0_75, %c0_76], %98 {strides = array<i32>} : memref<8x128xf32, #tpu.memory_space<vmem>>, vector<8x128xf32>,
      %c1_77 = arith.constant 1 : index
      %c0_78 = arith.constant 0 : index
      %c0_79 = arith.constant 0 : index
      %100 = vector.load %arg9[%c1_77, %c0_78, %c0_79] : memref<2x128x128xbf16, #tpu.memory_space<vmem>>, vector<1x128x128xbf16>
      %101 = vector.shape_cast %100 : vector<1x128x128xbf16> to vector<128x128xbf16>
      "tpu.trace_start"() <{level = 10 : i32, message = "be,ne->bn"}> : () -> ()
      %cst_80 = arith.constant dense<0.000000e+00> : vector<8x128xf32>
      %102 = tpu.matmul %74, %101, %cst_80 {dimension_numbers = #tpu.dot_dimension_numbers<[1], [1], [0], [0], [0, 0, 1, 0], [], []>} : vector<8x128xbf16>, vector<128x128xbf16>, vector<8x128xf32> -> vector<8x128xf32>
      "tpu.trace_stop"() : () -> ()
      %c0_81 = arith.constant 0 : index
      %c0_82 = arith.constant 0 : index
      %103 = vector.load %arg12[%c0_81, %c0_82] : memref<8x128xf32, #tpu.memory_space<vmem>>, vector<8x128xf32>
      tpu.vector_store %arg12[%c0_81, %c0_82], %102 {strides = array<i32>} : memref<8x128xf32, #tpu.memory_space<vmem>>, vector<8x128xf32>,
      %c0_83 = arith.constant 0 : index
      %c0_84 = arith.constant 0 : index
      %104 = vector.load %arg10[%c0_83, %c0_84] : memref<128x128xbf16, #tpu.memory_space<vmem>>, vector<128x128xbf16>
      %cst_85 = arith.constant dense<0.000000e+00> : vector<8x128xf32>
      %105 = tpu.matmul %95, %104, %cst_85 {dimension_numbers = #tpu.dot_dimension_numbers<[1], [0], [0], [1], [0, 0, 1, 1], [], []>} : vector<8x128xbf16>, vector<128x128xbf16>, vector<8x128xf32> -> vector<8x128xf32>
      %c0_86 = arith.constant 0 : index
      %c0_87 = arith.constant 0 : index
      %106 = vector.load %arg13[%c0_86, %c0_87] : memref<8x128xf32, #tpu.memory_space<vmem>>, vector<8x128xf32>
      tpu.vector_store %arg13[%c0_86, %c0_87], %105 {strides = array<i32>} : memref<8x128xf32, #tpu.memory_space<vmem>>, vector<8x128xf32>,
    } else {
    }
    return
  }
  func.func @transform_0(%arg0: i32, %arg1: i32) -> (i32, i32, i32) {
    %c0_i32 = arith.constant 0 : i32
    %c0_i32_0 = arith.constant 0 : i32
    return %arg0, %arg1, %c0_i32 : i32, i32, i32
  }
  func.func @transform_1(%arg0: i32, %arg1: i32) -> (i32, i32) {
    %c0_i32 = arith.constant 0 : i32
    %c0_i32_0 = arith.constant 0 : i32
    %c0_i32_1 = arith.constant 0 : i32
    return %c0_i32, %c0_i32_0 : i32, i32
  }
  func.func @transform_2(%arg0: i32, %arg1: i32) -> (i32, i32) {
    %c0_i32 = arith.constant 0 : i32
    %c0_i32_0 = arith.constant 0 : i32
    %c0_i32_1 = arith.constant 0 : i32
    return %c0_i32, %c0_i32_0 : i32, i32
  }
  func.func @transform_3(%arg0: i32, %arg1: i32) -> (i32, i32, i32) {
    %c0_i32 = arith.constant 0 : i32
    %c0_i32_0 = arith.constant 0 : i32
    %c0_i32_1 = arith.constant 0 : i32
    %c0_i32_2 = arith.constant 0 : i32
    return %c0_i32, %c0_i32_0, %c0_i32_1 : i32, i32, i32
  }
  func.func @transform_4(%arg0: i32, %arg1: i32) -> (i32, i32, i32) {
    %c0_i32 = arith.constant 0 : i32
    %c0_i32_0 = arith.constant 0 : i32
    %c0_i32_1 = arith.constant 0 : i32
    %c0_i32_2 = arith.constant 0 : i32
    return %c0_i32, %c0_i32_0, %c0_i32_1 : i32, i32, i32
  }
  func.func @transform_5(%arg0: i32, %arg1: i32) -> (i32, i32, i32) {
    %c0_i32 = arith.constant 0 : i32
    %c0_i32_0 = arith.constant 0 : i32
    %c0_i32_1 = arith.constant 0 : i32
    %c0_i32_2 = arith.constant 0 : i32
    return %c0_i32, %c0_i32_0, %c0_i32_1 : i32, i32, i32
  }
  func.func @transform_6(%arg0: i32, %arg1: i32) -> (i32, i32, i32) {
    %c0_i32 = arith.constant 0 : i32
    %c0_i32_0 = arith.constant 0 : i32
    %c0_i32_1 = arith.constant 0 : i32
    %c0_i32_2 = arith.constant 0 : i32
    return %c0_i32, %c0_i32_0, %c0_i32_1 : i32, i32, i32
  }
  func.func @transform_7(%arg0: i32, %arg1: i32) -> (i32, i32, i32) {
    %c0_i32 = arith.constant 0 : i32
    %c0_i32_0 = arith.constant 0 : i32
    %c0_i32_1 = arith.constant 0 : i32
    %c0_i32_2 = arith.constant 0 : i32
    return %c0_i32, %c0_i32_0, %c0_i32_1 : i32, i32, i32
  }
  func.func @transform_8(%arg0: i32, %arg1: i32) -> (i32, i32) {
    %c0_i32 = arith.constant 0 : i32
    %c0_i32_0 = arith.constant 0 : i32
    %c0_i32_1 = arith.constant 0 : i32
    return %c0_i32, %c0_i32_0 : i32, i32
  }
  func.func @transform_9(%arg0: i32, %arg1: i32) -> (i32, i32) {
    %c0_i32 = arith.constant 0 : i32
    %c0_i32_0 = arith.constant 0 : i32
    return %arg0, %c0_i32 : i32, i32
  }
  func.func @transform_10(%arg0: i32, %arg1: i32) -> (i32, i32) {
    %c0_i32 = arith.constant 0 : i32
    %c0_i32_0 = arith.constant 0 : i32
    return %arg0, %c0_i32 : i32, i32
  }
  func.func @transform_11(%arg0: i32, %arg1: i32) -> (i32, i32) {
    %c0_i32 = arith.constant 0 : i32
    %c0_i32_0 = arith.constant 0 : i32
    return %arg0, %c0_i32 : i32, i32
  }
}

module attributes {stable_mosaic.version = 11 : i64} {
  func.func @word_emb_encoder_kernel(%arg0: i32, %arg1: memref<2x128x128xbf16, #tpu.memory_space<vmem>>, %arg2: memref<2x128x128xbf16, #tpu.memory_space<vmem>>, %arg3: memref<2x1x128xf32, #tpu.memory_space<vmem>>, %arg4: memref<2x128x128xbf16, #tpu.memory_space<vmem>>, %arg5: memref<2x1x128xf32, #tpu.memory_space<vmem>>, %arg6: memref<2x1x128xf32, #tpu.memory_space<vmem>>, %arg7: memref<2x1x128xf32, #tpu.memory_space<vmem>>, %arg8: memref<2x128x256xbf16, #tpu.memory_space<vmem>>, %arg9: memref<2x1x256xf32, #tpu.memory_space<vmem>>, %arg10: memref<2x256x128xbf16, #tpu.memory_space<vmem>>, %arg11: memref<2x1x128xf32, #tpu.memory_space<vmem>>, %arg12: memref<2x1x128xf32, #tpu.memory_space<vmem>>, %arg13: memref<2x1x128xf32, #tpu.memory_space<vmem>>, %arg14: memref<2x128x128xbf16, #tpu.memory_space<vmem>>) attributes {dimension_semantics = [#tpu.dimension_semantics<parallel>], iteration_bounds = array<i64: 1>, scalar_prefetch = 0 : i64, scratch_operands = 0 : i64, tpu.core_type = #tpu.core_type<tc>, window_params = [{transform_indices = @transform_0, window_bounds = array<i64: 2, 128, 128>}, {pipeline_mode = #tpu.pipeline_mode<synchronous>, transform_indices = @transform_1, window_bounds = array<i64: 2, 128, 128>}, {pipeline_mode = #tpu.pipeline_mode<synchronous>, transform_indices = @transform_2, window_bounds = array<i64: 2, 1, 128>}, {pipeline_mode = #tpu.pipeline_mode<synchronous>, transform_indices = @transform_3, window_bounds = array<i64: 2, 128, 128>}, {pipeline_mode = #tpu.pipeline_mode<synchronous>, transform_indices = @transform_4, window_bounds = array<i64: 2, 1, 128>}, {pipeline_mode = #tpu.pipeline_mode<synchronous>, transform_indices = @transform_5, window_bounds = array<i64: 2, 1, 128>}, {pipeline_mode = #tpu.pipeline_mode<synchronous>, transform_indices = @transform_6, window_bounds = array<i64: 2, 1, 128>}, {pipeline_mode = #tpu.pipeline_mode<synchronous>, transform_indices = @transform_7, window_bounds = array<i64: 2, 128, 256>}, {pipeline_mode = #tpu.pipeline_mode<synchronous>, transform_indices = @transform_8, window_bounds = array<i64: 2, 1, 256>}, {pipeline_mode = #tpu.pipeline_mode<synchronous>, transform_indices = @transform_9, window_bounds = array<i64: 2, 256, 128>}, {pipeline_mode = #tpu.pipeline_mode<synchronous>, transform_indices = @transform_10, window_bounds = array<i64: 2, 1, 128>}, {pipeline_mode = #tpu.pipeline_mode<synchronous>, transform_indices = @transform_11, window_bounds = array<i64: 2, 1, 128>}, {pipeline_mode = #tpu.pipeline_mode<synchronous>, transform_indices = @transform_12, window_bounds = array<i64: 2, 1, 128>}, {transform_indices = @transform_13, window_bounds = array<i64: 2, 128, 128>}]} {
    %c0 = arith.constant 0 : index
    %c0_0 = arith.constant 0 : index
    %c0_1 = arith.constant 0 : index
    %0 = vector.load %arg1[%c0, %c0_0, %c0_1] : memref<2x128x128xbf16, #tpu.memory_space<vmem>>, vector<1x128x128xbf16>
    %1 = vector.shape_cast %0 : vector<1x128x128xbf16> to vector<128x128xbf16>
    %2 = arith.extf %1 : vector<128x128xbf16> to vector<128x128xf32>
    %c0_2 = arith.constant 0 : index
    %c0_3 = arith.constant 0 : index
    %c0_4 = arith.constant 0 : index
    %3 = vector.load %arg2[%c0_2, %c0_3, %c0_4] : memref<2x128x128xbf16, #tpu.memory_space<vmem>>, vector<1x128x128xbf16>
    %4 = vector.shape_cast %3 : vector<1x128x128xbf16> to vector<128x128xbf16>
    %cst = arith.constant dense<0.000000e+00> : vector<128x128xf32>
    %5 = tpu.matmul %1, %4, %cst {dimension_numbers = #tpu.dot_dimension_numbers<[1], [0], [0], [1], [0, 0, 1, 1], [], []>} : vector<128x128xbf16>, vector<128x128xbf16>, vector<128x128xf32> -> vector<128x128xf32>
    %c0_5 = arith.constant 0 : index
    %c0_6 = arith.constant 0 : index
    %c0_7 = arith.constant 0 : index
    %6 = vector.load %arg3[%c0_5, %c0_6, %c0_7] : memref<2x1x128xf32, #tpu.memory_space<vmem>>, vector<1x1x128xf32>
    %7 = vector.shape_cast %6 : vector<1x1x128xf32> to vector<1x128xf32>
    %8 = vector.broadcast %7 : vector<1x128xf32> to vector<128x128xf32>
    %9 = arith.addf %5, %8 : vector<128x128xf32>
    %10 = arith.truncf %9 : vector<128x128xf32> to vector<128x128xbf16>
    %c0_8 = arith.constant 0 : index
    %c0_9 = arith.constant 0 : index
    %c0_10 = arith.constant 0 : index
    %11 = vector.load %arg4[%c0_8, %c0_9, %c0_10] : memref<2x128x128xbf16, #tpu.memory_space<vmem>>, vector<1x128x128xbf16>
    %12 = vector.shape_cast %11 : vector<1x128x128xbf16> to vector<128x128xbf16>
    %cst_11 = arith.constant dense<0.000000e+00> : vector<128x128xf32>
    %13 = tpu.matmul %10, %12, %cst_11 {dimension_numbers = #tpu.dot_dimension_numbers<[1], [0], [0], [1], [0, 0, 1, 1], [], []>} : vector<128x128xbf16>, vector<128x128xbf16>, vector<128x128xf32> -> vector<128x128xf32>
    %c0_12 = arith.constant 0 : index
    %c0_13 = arith.constant 0 : index
    %c0_14 = arith.constant 0 : index
    %14 = vector.load %arg5[%c0_12, %c0_13, %c0_14] : memref<2x1x128xf32, #tpu.memory_space<vmem>>, vector<1x1x128xf32>
    %15 = vector.shape_cast %14 : vector<1x1x128xf32> to vector<1x128xf32>
    %16 = vector.broadcast %15 : vector<1x128xf32> to vector<128x128xf32>
    %17 = arith.addf %13, %16 : vector<128x128xf32>
    %18 = arith.addf %2, %17 : vector<128x128xf32>
    %c0_15 = arith.constant 0 : index
    %c0_16 = arith.constant 0 : index
    %c0_17 = arith.constant 0 : index
    %19 = vector.load %arg6[%c0_15, %c0_16, %c0_17] : memref<2x1x128xf32, #tpu.memory_space<vmem>>, vector<1x1x128xf32>
    %20 = vector.shape_cast %19 : vector<1x1x128xf32> to vector<1x128xf32>
    %c0_18 = arith.constant 0 : index
    %c0_19 = arith.constant 0 : index
    %c0_20 = arith.constant 0 : index
    %21 = vector.load %arg7[%c0_18, %c0_19, %c0_20] : memref<2x1x128xf32, #tpu.memory_space<vmem>>, vector<1x1x128xf32>
    %22 = vector.shape_cast %21 : vector<1x1x128xf32> to vector<1x128xf32>
    %cst_21 = arith.constant dense<0.000000e+00> : vector<128xf32>
    %23 = vector.multi_reduction <add>, %18, %cst_21 [1] : vector<128x128xf32> to vector<128xf32>
    %24 = vector.shape_cast %23 : vector<128xf32> to vector<128x1xf32>
    %cst_22 = arith.constant 1.280000e+02 : f32
    %25 = vector.broadcast %cst_22 : f32 to vector<128x1xf32>
    %26 = arith.divf %24, %25 : vector<128x1xf32>
    %27 = vector.broadcast %26 : vector<128x1xf32> to vector<128x128xf32>
    %28 = arith.subf %18, %27 : vector<128x128xf32>
    %29 = arith.mulf %28, %28 : vector<128x128xf32>
    %cst_23 = arith.constant dense<0.000000e+00> : vector<128xf32>
    %30 = vector.multi_reduction <add>, %29, %cst_23 [1] : vector<128x128xf32> to vector<128xf32>
    %31 = vector.shape_cast %30 : vector<128xf32> to vector<128x1xf32>
    %cst_24 = arith.constant 1.280000e+02 : f32
    %32 = vector.broadcast %cst_24 : f32 to vector<128x1xf32>
    %33 = arith.divf %31, %32 : vector<128x1xf32>
    %34 = vector.broadcast %26 : vector<128x1xf32> to vector<128x128xf32>
    %35 = arith.subf %18, %34 : vector<128x128xf32>
    %cst_25 = arith.constant 9.99999974E-6 : f32
    %36 = vector.broadcast %cst_25 : f32 to vector<128x1xf32>
    %37 = arith.addf %33, %36 : vector<128x1xf32>
    %38 = math.rsqrt %37 : vector<128x1xf32>
    %39 = vector.broadcast %38 : vector<128x1xf32> to vector<128x128xf32>
    %40 = arith.mulf %35, %39 : vector<128x128xf32>
    %41 = vector.broadcast %20 : vector<1x128xf32> to vector<128x128xf32>
    %42 = arith.mulf %40, %41 : vector<128x128xf32>
    %43 = vector.broadcast %22 : vector<1x128xf32> to vector<128x128xf32>
    %44 = arith.addf %42, %43 : vector<128x128xf32>
    %45 = arith.truncf %44 : vector<128x128xf32> to vector<128x128xbf16>
    %c0_26 = arith.constant 0 : index
    %c0_27 = arith.constant 0 : index
    %c0_28 = arith.constant 0 : index
    %46 = vector.load %arg8[%c0_26, %c0_27, %c0_28] : memref<2x128x256xbf16, #tpu.memory_space<vmem>>, vector<1x128x256xbf16>
    %47 = vector.shape_cast %46 : vector<1x128x256xbf16> to vector<128x256xbf16>
    %cst_29 = arith.constant dense<0.000000e+00> : vector<128x256xf32>
    %48 = tpu.matmul %45, %47, %cst_29 {dimension_numbers = #tpu.dot_dimension_numbers<[1], [0], [0], [1], [0, 0, 1, 1], [], []>} : vector<128x128xbf16>, vector<128x256xbf16>, vector<128x256xf32> -> vector<128x256xf32>
    %c0_30 = arith.constant 0 : index
    %c0_31 = arith.constant 0 : index
    %c0_32 = arith.constant 0 : index
    %49 = vector.load %arg9[%c0_30, %c0_31, %c0_32] : memref<2x1x256xf32, #tpu.memory_space<vmem>>, vector<1x1x256xf32>
    %50 = vector.shape_cast %49 : vector<1x1x256xf32> to vector<1x256xf32>
    %51 = vector.broadcast %50 : vector<1x256xf32> to vector<128x256xf32>
    %52 = arith.addf %48, %51 : vector<128x256xf32>
    %cst_33 = arith.constant 0.000000e+00 : f32
    %53 = vector.broadcast %cst_33 : f32 to vector<128x256xf32>
    %54 = arith.maximumf %52, %53 : vector<128x256xf32>
    %55 = arith.truncf %54 : vector<128x256xf32> to vector<128x256xbf16>
    %c0_34 = arith.constant 0 : index
    %c0_35 = arith.constant 0 : index
    %c0_36 = arith.constant 0 : index
    %56 = vector.load %arg10[%c0_34, %c0_35, %c0_36] : memref<2x256x128xbf16, #tpu.memory_space<vmem>>, vector<1x256x128xbf16>
    %57 = vector.shape_cast %56 : vector<1x256x128xbf16> to vector<256x128xbf16>
    %cst_37 = arith.constant dense<0.000000e+00> : vector<128x128xf32>
    %58 = tpu.matmul %55, %57, %cst_37 {dimension_numbers = #tpu.dot_dimension_numbers<[1], [0], [0], [1], [0, 0, 1, 1], [], []>} : vector<128x256xbf16>, vector<256x128xbf16>, vector<128x128xf32> -> vector<128x128xf32>
    %c0_38 = arith.constant 0 : index
    %c0_39 = arith.constant 0 : index
    %c0_40 = arith.constant 0 : index
    %59 = vector.load %arg11[%c0_38, %c0_39, %c0_40] : memref<2x1x128xf32, #tpu.memory_space<vmem>>, vector<1x1x128xf32>
    %60 = vector.shape_cast %59 : vector<1x1x128xf32> to vector<1x128xf32>
    %61 = vector.broadcast %60 : vector<1x128xf32> to vector<128x128xf32>
    %62 = arith.addf %58, %61 : vector<128x128xf32>
    %63 = arith.addf %44, %62 : vector<128x128xf32>
    %c0_41 = arith.constant 0 : index
    %c0_42 = arith.constant 0 : index
    %c0_43 = arith.constant 0 : index
    %64 = vector.load %arg12[%c0_41, %c0_42, %c0_43] : memref<2x1x128xf32, #tpu.memory_space<vmem>>, vector<1x1x128xf32>
    %65 = vector.shape_cast %64 : vector<1x1x128xf32> to vector<1x128xf32>
    %c0_44 = arith.constant 0 : index
    %c0_45 = arith.constant 0 : index
    %c0_46 = arith.constant 0 : index
    %66 = vector.load %arg13[%c0_44, %c0_45, %c0_46] : memref<2x1x128xf32, #tpu.memory_space<vmem>>, vector<1x1x128xf32>
    %67 = vector.shape_cast %66 : vector<1x1x128xf32> to vector<1x128xf32>
    %cst_47 = arith.constant dense<0.000000e+00> : vector<128xf32>
    %68 = vector.multi_reduction <add>, %63, %cst_47 [1] : vector<128x128xf32> to vector<128xf32>
    %69 = vector.shape_cast %68 : vector<128xf32> to vector<128x1xf32>
    %cst_48 = arith.constant 1.280000e+02 : f32
    %70 = vector.broadcast %cst_48 : f32 to vector<128x1xf32>
    %71 = arith.divf %69, %70 : vector<128x1xf32>
    %72 = vector.broadcast %71 : vector<128x1xf32> to vector<128x128xf32>
    %73 = arith.subf %63, %72 : vector<128x128xf32>
    %74 = arith.mulf %73, %73 : vector<128x128xf32>
    %cst_49 = arith.constant dense<0.000000e+00> : vector<128xf32>
    %75 = vector.multi_reduction <add>, %74, %cst_49 [1] : vector<128x128xf32> to vector<128xf32>
    %76 = vector.shape_cast %75 : vector<128xf32> to vector<128x1xf32>
    %cst_50 = arith.constant 1.280000e+02 : f32
    %77 = vector.broadcast %cst_50 : f32 to vector<128x1xf32>
    %78 = arith.divf %76, %77 : vector<128x1xf32>
    %79 = vector.broadcast %71 : vector<128x1xf32> to vector<128x128xf32>
    %80 = arith.subf %63, %79 : vector<128x128xf32>
    %cst_51 = arith.constant 9.99999974E-6 : f32
    %81 = vector.broadcast %cst_51 : f32 to vector<128x1xf32>
    %82 = arith.addf %78, %81 : vector<128x1xf32>
    %83 = math.rsqrt %82 : vector<128x1xf32>
    %84 = vector.broadcast %83 : vector<128x1xf32> to vector<128x128xf32>
    %85 = arith.mulf %80, %84 : vector<128x128xf32>
    %86 = vector.broadcast %65 : vector<1x128xf32> to vector<128x128xf32>
    %87 = arith.mulf %85, %86 : vector<128x128xf32>
    %88 = vector.broadcast %67 : vector<1x128xf32> to vector<128x128xf32>
    %89 = arith.addf %87, %88 : vector<128x128xf32>
    %90 = arith.truncf %89 : vector<128x128xf32> to vector<128x128xbf16>
    %c0_52 = arith.constant 0 : index
    %c0_53 = arith.constant 0 : index
    %c0_54 = arith.constant 0 : index
    %91 = vector.load %arg14[%c0_52, %c0_53, %c0_54] : memref<2x128x128xbf16, #tpu.memory_space<vmem>>, vector<1x128x128xbf16>
    %92 = vector.shape_cast %91 : vector<1x128x128xbf16> to vector<128x128xbf16>
    %93 = vector.shape_cast %90 : vector<128x128xbf16> to vector<1x128x128xbf16>
    tpu.vector_store %arg14[%c0_52, %c0_53, %c0_54], %93 {strides = array<i32>} : memref<2x128x128xbf16, #tpu.memory_space<vmem>>, vector<1x128x128xbf16>,
    %c1 = arith.constant 1 : index
    %c0_55 = arith.constant 0 : index
    %c0_56 = arith.constant 0 : index
    %94 = vector.load %arg1[%c1, %c0_55, %c0_56] : memref<2x128x128xbf16, #tpu.memory_space<vmem>>, vector<1x128x128xbf16>
    %95 = vector.shape_cast %94 : vector<1x128x128xbf16> to vector<128x128xbf16>
    %96 = arith.extf %95 : vector<128x128xbf16> to vector<128x128xf32>
    %c1_57 = arith.constant 1 : index
    %c0_58 = arith.constant 0 : index
    %c0_59 = arith.constant 0 : index
    %97 = vector.load %arg2[%c1_57, %c0_58, %c0_59] : memref<2x128x128xbf16, #tpu.memory_space<vmem>>, vector<1x128x128xbf16>
    %98 = vector.shape_cast %97 : vector<1x128x128xbf16> to vector<128x128xbf16>
    %cst_60 = arith.constant dense<0.000000e+00> : vector<128x128xf32>
    %99 = tpu.matmul %95, %98, %cst_60 {dimension_numbers = #tpu.dot_dimension_numbers<[1], [0], [0], [1], [0, 0, 1, 1], [], []>} : vector<128x128xbf16>, vector<128x128xbf16>, vector<128x128xf32> -> vector<128x128xf32>
    %c1_61 = arith.constant 1 : index
    %c0_62 = arith.constant 0 : index
    %c0_63 = arith.constant 0 : index
    %100 = vector.load %arg3[%c1_61, %c0_62, %c0_63] : memref<2x1x128xf32, #tpu.memory_space<vmem>>, vector<1x1x128xf32>
    %101 = vector.shape_cast %100 : vector<1x1x128xf32> to vector<1x128xf32>
    %102 = vector.broadcast %101 : vector<1x128xf32> to vector<128x128xf32>
    %103 = arith.addf %99, %102 : vector<128x128xf32>
    %104 = arith.truncf %103 : vector<128x128xf32> to vector<128x128xbf16>
    %c1_64 = arith.constant 1 : index
    %c0_65 = arith.constant 0 : index
    %c0_66 = arith.constant 0 : index
    %105 = vector.load %arg4[%c1_64, %c0_65, %c0_66] : memref<2x128x128xbf16, #tpu.memory_space<vmem>>, vector<1x128x128xbf16>
    %106 = vector.shape_cast %105 : vector<1x128x128xbf16> to vector<128x128xbf16>
    %cst_67 = arith.constant dense<0.000000e+00> : vector<128x128xf32>
    %107 = tpu.matmul %104, %106, %cst_67 {dimension_numbers = #tpu.dot_dimension_numbers<[1], [0], [0], [1], [0, 0, 1, 1], [], []>} : vector<128x128xbf16>, vector<128x128xbf16>, vector<128x128xf32> -> vector<128x128xf32>
    %c1_68 = arith.constant 1 : index
    %c0_69 = arith.constant 0 : index
    %c0_70 = arith.constant 0 : index
    %108 = vector.load %arg5[%c1_68, %c0_69, %c0_70] : memref<2x1x128xf32, #tpu.memory_space<vmem>>, vector<1x1x128xf32>
    %109 = vector.shape_cast %108 : vector<1x1x128xf32> to vector<1x128xf32>
    %110 = vector.broadcast %109 : vector<1x128xf32> to vector<128x128xf32>
    %111 = arith.addf %107, %110 : vector<128x128xf32>
    %112 = arith.addf %96, %111 : vector<128x128xf32>
    %c1_71 = arith.constant 1 : index
    %c0_72 = arith.constant 0 : index
    %c0_73 = arith.constant 0 : index
    %113 = vector.load %arg6[%c1_71, %c0_72, %c0_73] : memref<2x1x128xf32, #tpu.memory_space<vmem>>, vector<1x1x128xf32>
    %114 = vector.shape_cast %113 : vector<1x1x128xf32> to vector<1x128xf32>
    %c1_74 = arith.constant 1 : index
    %c0_75 = arith.constant 0 : index
    %c0_76 = arith.constant 0 : index
    %115 = vector.load %arg7[%c1_74, %c0_75, %c0_76] : memref<2x1x128xf32, #tpu.memory_space<vmem>>, vector<1x1x128xf32>
    %116 = vector.shape_cast %115 : vector<1x1x128xf32> to vector<1x128xf32>
    %cst_77 = arith.constant dense<0.000000e+00> : vector<128xf32>
    %117 = vector.multi_reduction <add>, %112, %cst_77 [1] : vector<128x128xf32> to vector<128xf32>
    %118 = vector.shape_cast %117 : vector<128xf32> to vector<128x1xf32>
    %cst_78 = arith.constant 1.280000e+02 : f32
    %119 = vector.broadcast %cst_78 : f32 to vector<128x1xf32>
    %120 = arith.divf %118, %119 : vector<128x1xf32>
    %121 = vector.broadcast %120 : vector<128x1xf32> to vector<128x128xf32>
    %122 = arith.subf %112, %121 : vector<128x128xf32>
    %123 = arith.mulf %122, %122 : vector<128x128xf32>
    %cst_79 = arith.constant dense<0.000000e+00> : vector<128xf32>
    %124 = vector.multi_reduction <add>, %123, %cst_79 [1] : vector<128x128xf32> to vector<128xf32>
    %125 = vector.shape_cast %124 : vector<128xf32> to vector<128x1xf32>
    %cst_80 = arith.constant 1.280000e+02 : f32
    %126 = vector.broadcast %cst_80 : f32 to vector<128x1xf32>
    %127 = arith.divf %125, %126 : vector<128x1xf32>
    %128 = vector.broadcast %120 : vector<128x1xf32> to vector<128x128xf32>
    %129 = arith.subf %112, %128 : vector<128x128xf32>
    %cst_81 = arith.constant 9.99999974E-6 : f32
    %130 = vector.broadcast %cst_81 : f32 to vector<128x1xf32>
    %131 = arith.addf %127, %130 : vector<128x1xf32>
    %132 = math.rsqrt %131 : vector<128x1xf32>
    %133 = vector.broadcast %132 : vector<128x1xf32> to vector<128x128xf32>
    %134 = arith.mulf %129, %133 : vector<128x128xf32>
    %135 = vector.broadcast %114 : vector<1x128xf32> to vector<128x128xf32>
    %136 = arith.mulf %134, %135 : vector<128x128xf32>
    %137 = vector.broadcast %116 : vector<1x128xf32> to vector<128x128xf32>
    %138 = arith.addf %136, %137 : vector<128x128xf32>
    %139 = arith.truncf %138 : vector<128x128xf32> to vector<128x128xbf16>
    %c1_82 = arith.constant 1 : index
    %c0_83 = arith.constant 0 : index
    %c0_84 = arith.constant 0 : index
    %140 = vector.load %arg8[%c1_82, %c0_83, %c0_84] : memref<2x128x256xbf16, #tpu.memory_space<vmem>>, vector<1x128x256xbf16>
    %141 = vector.shape_cast %140 : vector<1x128x256xbf16> to vector<128x256xbf16>
    %cst_85 = arith.constant dense<0.000000e+00> : vector<128x256xf32>
    %142 = tpu.matmul %139, %141, %cst_85 {dimension_numbers = #tpu.dot_dimension_numbers<[1], [0], [0], [1], [0, 0, 1, 1], [], []>} : vector<128x128xbf16>, vector<128x256xbf16>, vector<128x256xf32> -> vector<128x256xf32>
    %c1_86 = arith.constant 1 : index
    %c0_87 = arith.constant 0 : index
    %c0_88 = arith.constant 0 : index
    %143 = vector.load %arg9[%c1_86, %c0_87, %c0_88] : memref<2x1x256xf32, #tpu.memory_space<vmem>>, vector<1x1x256xf32>
    %144 = vector.shape_cast %143 : vector<1x1x256xf32> to vector<1x256xf32>
    %145 = vector.broadcast %144 : vector<1x256xf32> to vector<128x256xf32>
    %146 = arith.addf %142, %145 : vector<128x256xf32>
    %cst_89 = arith.constant 0.000000e+00 : f32
    %147 = vector.broadcast %cst_89 : f32 to vector<128x256xf32>
    %148 = arith.maximumf %146, %147 : vector<128x256xf32>
    %149 = arith.truncf %148 : vector<128x256xf32> to vector<128x256xbf16>
    %c1_90 = arith.constant 1 : index
    %c0_91 = arith.constant 0 : index
    %c0_92 = arith.constant 0 : index
    %150 = vector.load %arg10[%c1_90, %c0_91, %c0_92] : memref<2x256x128xbf16, #tpu.memory_space<vmem>>, vector<1x256x128xbf16>
    %151 = vector.shape_cast %150 : vector<1x256x128xbf16> to vector<256x128xbf16>
    %cst_93 = arith.constant dense<0.000000e+00> : vector<128x128xf32>
    %152 = tpu.matmul %149, %151, %cst_93 {dimension_numbers = #tpu.dot_dimension_numbers<[1], [0], [0], [1], [0, 0, 1, 1], [], []>} : vector<128x256xbf16>, vector<256x128xbf16>, vector<128x128xf32> -> vector<128x128xf32>
    %c1_94 = arith.constant 1 : index
    %c0_95 = arith.constant 0 : index
    %c0_96 = arith.constant 0 : index
    %153 = vector.load %arg11[%c1_94, %c0_95, %c0_96] : memref<2x1x128xf32, #tpu.memory_space<vmem>>, vector<1x1x128xf32>
    %154 = vector.shape_cast %153 : vector<1x1x128xf32> to vector<1x128xf32>
    %155 = vector.broadcast %154 : vector<1x128xf32> to vector<128x128xf32>
    %156 = arith.addf %152, %155 : vector<128x128xf32>
    %157 = arith.addf %138, %156 : vector<128x128xf32>
    %c1_97 = arith.constant 1 : index
    %c0_98 = arith.constant 0 : index
    %c0_99 = arith.constant 0 : index
    %158 = vector.load %arg12[%c1_97, %c0_98, %c0_99] : memref<2x1x128xf32, #tpu.memory_space<vmem>>, vector<1x1x128xf32>
    %159 = vector.shape_cast %158 : vector<1x1x128xf32> to vector<1x128xf32>
    %c1_100 = arith.constant 1 : index
    %c0_101 = arith.constant 0 : index
    %c0_102 = arith.constant 0 : index
    %160 = vector.load %arg13[%c1_100, %c0_101, %c0_102] : memref<2x1x128xf32, #tpu.memory_space<vmem>>, vector<1x1x128xf32>
    %161 = vector.shape_cast %160 : vector<1x1x128xf32> to vector<1x128xf32>
    %cst_103 = arith.constant dense<0.000000e+00> : vector<128xf32>
    %162 = vector.multi_reduction <add>, %157, %cst_103 [1] : vector<128x128xf32> to vector<128xf32>
    %163 = vector.shape_cast %162 : vector<128xf32> to vector<128x1xf32>
    %cst_104 = arith.constant 1.280000e+02 : f32
    %164 = vector.broadcast %cst_104 : f32 to vector<128x1xf32>
    %165 = arith.divf %163, %164 : vector<128x1xf32>
    %166 = vector.broadcast %165 : vector<128x1xf32> to vector<128x128xf32>
    %167 = arith.subf %157, %166 : vector<128x128xf32>
    %168 = arith.mulf %167, %167 : vector<128x128xf32>
    %cst_105 = arith.constant dense<0.000000e+00> : vector<128xf32>
    %169 = vector.multi_reduction <add>, %168, %cst_105 [1] : vector<128x128xf32> to vector<128xf32>
    %170 = vector.shape_cast %169 : vector<128xf32> to vector<128x1xf32>
    %cst_106 = arith.constant 1.280000e+02 : f32
    %171 = vector.broadcast %cst_106 : f32 to vector<128x1xf32>
    %172 = arith.divf %170, %171 : vector<128x1xf32>
    %173 = vector.broadcast %165 : vector<128x1xf32> to vector<128x128xf32>
    %174 = arith.subf %157, %173 : vector<128x128xf32>
    %cst_107 = arith.constant 9.99999974E-6 : f32
    %175 = vector.broadcast %cst_107 : f32 to vector<128x1xf32>
    %176 = arith.addf %172, %175 : vector<128x1xf32>
    %177 = math.rsqrt %176 : vector<128x1xf32>
    %178 = vector.broadcast %177 : vector<128x1xf32> to vector<128x128xf32>
    %179 = arith.mulf %174, %178 : vector<128x128xf32>
    %180 = vector.broadcast %159 : vector<1x128xf32> to vector<128x128xf32>
    %181 = arith.mulf %179, %180 : vector<128x128xf32>
    %182 = vector.broadcast %161 : vector<1x128xf32> to vector<128x128xf32>
    %183 = arith.addf %181, %182 : vector<128x128xf32>
    %184 = arith.truncf %183 : vector<128x128xf32> to vector<128x128xbf16>
    %c1_108 = arith.constant 1 : index
    %c0_109 = arith.constant 0 : index
    %c0_110 = arith.constant 0 : index
    %185 = vector.load %arg14[%c1_108, %c0_109, %c0_110] : memref<2x128x128xbf16, #tpu.memory_space<vmem>>, vector<1x128x128xbf16>
    %186 = vector.shape_cast %185 : vector<1x128x128xbf16> to vector<128x128xbf16>
    %187 = vector.shape_cast %184 : vector<128x128xbf16> to vector<1x128x128xbf16>
    tpu.vector_store %arg14[%c1_108, %c0_109, %c0_110], %187 {strides = array<i32>} : memref<2x128x128xbf16, #tpu.memory_space<vmem>>, vector<1x128x128xbf16>,
    return
  }
  func.func @transform_0(%arg0: i32) -> (i32, i32, i32) {
    %c0_i32 = arith.constant 0 : i32
    %c0_i32_0 = arith.constant 0 : i32
    %c0_i32_1 = arith.constant 0 : i32
    return %c0_i32, %arg0, %c0_i32_0 : i32, i32, i32
  }
  func.func @transform_1(%arg0: i32) -> (i32, i32, i32) {
    %c0_i32 = arith.constant 0 : i32
    %c0_i32_0 = arith.constant 0 : i32
    %c0_i32_1 = arith.constant 0 : i32
    %c0_i32_2 = arith.constant 0 : i32
    return %c0_i32, %c0_i32_0, %c0_i32_1 : i32, i32, i32
  }
  func.func @transform_2(%arg0: i32) -> (i32, i32, i32) {
    %c0_i32 = arith.constant 0 : i32
    %c0_i32_0 = arith.constant 0 : i32
    %c0_i32_1 = arith.constant 0 : i32
    %c0_i32_2 = arith.constant 0 : i32
    return %c0_i32, %c0_i32_0, %c0_i32_1 : i32, i32, i32
  }
  func.func @transform_3(%arg0: i32) -> (i32, i32, i32) {
    %c0_i32 = arith.constant 0 : i32
    %c0_i32_0 = arith.constant 0 : i32
    %c0_i32_1 = arith.constant 0 : i32
    %c0_i32_2 = arith.constant 0 : i32
    return %c0_i32, %c0_i32_0, %c0_i32_1 : i32, i32, i32
  }
  func.func @transform_4(%arg0: i32) -> (i32, i32, i32) {
    %c0_i32 = arith.constant 0 : i32
    %c0_i32_0 = arith.constant 0 : i32
    %c0_i32_1 = arith.constant 0 : i32
    %c0_i32_2 = arith.constant 0 : i32
    return %c0_i32, %c0_i32_0, %c0_i32_1 : i32, i32, i32
  }
  func.func @transform_5(%arg0: i32) -> (i32, i32, i32) {
    %c0_i32 = arith.constant 0 : i32
    %c0_i32_0 = arith.constant 0 : i32
    %c0_i32_1 = arith.constant 0 : i32
    %c0_i32_2 = arith.constant 0 : i32
    return %c0_i32, %c0_i32_0, %c0_i32_1 : i32, i32, i32
  }
  func.func @transform_6(%arg0: i32) -> (i32, i32, i32) {
    %c0_i32 = arith.constant 0 : i32
    %c0_i32_0 = arith.constant 0 : i32
    %c0_i32_1 = arith.constant 0 : i32
    %c0_i32_2 = arith.constant 0 : i32
    return %c0_i32, %c0_i32_0, %c0_i32_1 : i32, i32, i32
  }
  func.func @transform_7(%arg0: i32) -> (i32, i32, i32) {
    %c0_i32 = arith.constant 0 : i32
    %c0_i32_0 = arith.constant 0 : i32
    %c0_i32_1 = arith.constant 0 : i32
    %c0_i32_2 = arith.constant 0 : i32
    return %c0_i32, %c0_i32_0, %c0_i32_1 : i32, i32, i32
  }
  func.func @transform_8(%arg0: i32) -> (i32, i32, i32) {
    %c0_i32 = arith.constant 0 : i32
    %c0_i32_0 = arith.constant 0 : i32
    %c0_i32_1 = arith.constant 0 : i32
    %c0_i32_2 = arith.constant 0 : i32
    return %c0_i32, %c0_i32_0, %c0_i32_1 : i32, i32, i32
  }
  func.func @transform_9(%arg0: i32) -> (i32, i32, i32) {
    %c0_i32 = arith.constant 0 : i32
    %c0_i32_0 = arith.constant 0 : i32
    %c0_i32_1 = arith.constant 0 : i32
    %c0_i32_2 = arith.constant 0 : i32
    return %c0_i32, %c0_i32_0, %c0_i32_1 : i32, i32, i32
  }
  func.func @transform_10(%arg0: i32) -> (i32, i32, i32) {
    %c0_i32 = arith.constant 0 : i32
    %c0_i32_0 = arith.constant 0 : i32
    %c0_i32_1 = arith.constant 0 : i32
    %c0_i32_2 = arith.constant 0 : i32
    return %c0_i32, %c0_i32_0, %c0_i32_1 : i32, i32, i32
  }
  func.func @transform_11(%arg0: i32) -> (i32, i32, i32) {
    %c0_i32 = arith.constant 0 : i32
    %c0_i32_0 = arith.constant 0 : i32
    %c0_i32_1 = arith.constant 0 : i32
    %c0_i32_2 = arith.constant 0 : i32
    return %c0_i32, %c0_i32_0, %c0_i32_1 : i32, i32, i32
  }
  func.func @transform_12(%arg0: i32) -> (i32, i32, i32) {
    %c0_i32 = arith.constant 0 : i32
    %c0_i32_0 = arith.constant 0 : i32
    %c0_i32_1 = arith.constant 0 : i32
    %c0_i32_2 = arith.constant 0 : i32
    return %c0_i32, %c0_i32_0, %c0_i32_1 : i32, i32, i32
  }
  func.func @transform_13(%arg0: i32) -> (i32, i32, i32) {
    %c0_i32 = arith.constant 0 : i32
    %c0_i32_0 = arith.constant 0 : i32
    %c0_i32_1 = arith.constant 0 : i32
    return %c0_i32, %arg0, %c0_i32_0 : i32, i32, i32
  }
}

</mosaic_0001>

<llo_original>
// kernel: _lvar_val_forward.3
$region0: #{_lvar_val_forward.3}
  #allocation0 [shape = 'u32[]', space=smem, size = 0x4, offset = 0x4, fixed_abs, tag = 'smem constant byte address 0x4 - core index']
  #allocation1 [shape = 'u32[144,128]{1,0:T(1,128)}', space=vmem, size = 0x12000, scoped, tag = 'internal scratch']
  #allocation2 [shape = 'f32[8,256]{1,0:T(8,128)}', space=vmem, size = 0x2000, scoped, tag = 'scratch operand']
  #allocation3 [shape = 'f32[8,128]{1,0:T(8,128)}', space=vmem, size = 0x1000, scoped, tag = 'scratch operand']
  %s0 = inlined_call_operand.vmem [shape: bf16[8,256,128], index: 0, kind: input, shape index: {}]
  %s1 = inlined_call_operand.vmem [shape: bf16[128,256], index: 1, kind: input, shape index: {}]
  %s2 = inlined_call_operand.vmem [shape: f32[1,256], index: 2, kind: input, shape index: {}]
  %s3 = inlined_call_operand.vmem [shape: bf16[3,128,128], index: 3, kind: input, shape index: {}]
  %s4 = inlined_call_operand.vmem [shape: f32[3,1,128], index: 4, kind: input, shape index: {}]
  %s5 = inlined_call_operand.vmem [shape: bf16[3,128,128], index: 5, kind: input, shape index: {}]
  %s6 = inlined_call_operand.vmem [shape: f32[3,1,128], index: 6, kind: input, shape index: {}]
  %s7 = inlined_call_operand.vmem [shape: bf16[2,128,128], index: 7, kind: input, shape index: {}]
  %s8 = inlined_call_operand.vmem [shape: bf16[128,128], index: 8, kind: input, shape index: {}]
  %s9 = inlined_call_operand.vmem [shape: f32[8,128], index: 9, kind: output, shape index: {0}]
  %s10 = inlined_call_operand.vmem [shape: f32[8,128], index: 10, kind: output, shape index: {1}]
  %s11 = inlined_call_operand.vmem [shape: f32[8,128], index: 11, kind: output, shape index: {2}]
  %12 = xla_tuple %s9, %s10, %s11
  %s13 = sld [smem:[#allocation0]]
  $region134: #{_lvar_val_forward.3} parent=0
    _
  %s15 = ssub.s32 1, %s13
  %s16 = scalar_select 0, %s15, %s13
  $region1: #{_lvar_val_forward.3} parent=0
    #allocation4 [shape = 'u8[524288]{0}', space=vmem, size = 0x80000, scoped, tag = 'input window, operand 0']
    loop: start=0, step=1, limit=4
    $region2: #{_lvar_val_forward.3} parent=1 // loop_pre_header
      _
    $region3: #{_lvar_val_forward.3} parent=1 // loop_header
      %s18 = sphi 0, %s22
      %p19 = scmp.ge.s32.totalorder %s18, 4
      %s25 = sphi 0, %s37
      %s26 = sphi 0, %s33
      %s27 = sphi 0, %s25
      %s28 = sphi 0, %s26
      %s29 = sphi 0, %s27
      %s30 = sphi 0, %s28
      %s42 = sphi 0, %s44
      %s45 = sphi 0, %s42
      %s46 = sphi 0, %s45
      %s62 = sphi 0, %s46
      %s66 = sphi 0, %s66
      %s68 = sphi 0, %s66
      %s69 = sphi 0, %s68
      %s83 = sphi 0, %s69
      %s87 = sphi 0, %s87
      %s89 = sphi 0, %s87
      %s90 = sphi 0, %s89
      %s104 = sphi 0, %s90
      %s108 = sphi 0, %s108
      %s110 = sphi 0, %s108
      %s111 = sphi 0, %s110
      %s125 = sphi 0, %s111
      %s129 = sphi 0, %s129
      %s131 = sphi 0, %s129
      %s132 = sphi 0, %s131
      %s146 = sphi 0, %s132
      %s150 = sphi 0, %s150
      %s152 = sphi 0, %s150
      %s153 = sphi 0, %s152
      %s167 = sphi 0, %s153
      %s171 = sphi 0, %s171
      %s173 = sphi 0, %s171
      %s174 = sphi 0, %s173
      %s188 = sphi 0, %s174
      %s192 = sphi 0, %s192
      %s194 = sphi 0, %s192
      %s195 = sphi 0, %s194
      %s209 = sphi 0, %s195
      %s213 = sphi 0, %s213
      %s215 = sphi 0, %s213
      %s216 = sphi 0, %s215
      %s230 = sphi 0, %s216
      %s236 = sphi 0, %s238
      %s239 = sphi 0, %s236
      %s240 = sphi 0, %s239
      %s256 = sphi 0, %s240
      %s262 = sphi 0, %s264
      %s265 = sphi 0, %s262
      %s266 = sphi 0, %s265
      %s282 = sphi 0, %s266
      %s288 = sphi 0, %s290
      %s291 = sphi 0, %s288
      %s292 = sphi 0, %s291
      %s308 = sphi 0, %s292
    $region4: #{_lvar_val_forward.3} parent=1 // loop_header_branch
      %21 = sbr.rel (%p19) target = $region8
    $region5: #{_lvar_val_forward.3} parent=1 // loop_body
      %s23 = ssub.s32 %s18, 1
      %s24 = ssub.s32 %s18, 2
      %s31 = sadd.s32 1, %s26
      %p32 = scmp.ge.s32.totalorder %s31, 2
      %s33 = scalar_select %p32, 0, %s31
      %s34 = sadd.s32 1, %s25
      %s35 = scalar_select %p32, %s34, %s25
      %p36 = scmp.ge.s32.totalorder %s35, 1
      %s37 = scalar_select %p36, 0, %s35
      %s38 = ssub.s32 %s25, %s37
      %s39 = ssub.s32 %s26, %s33
      %s40 = sor.u32 %s38, %s39
      %p41 = scmp.eq.s32.totalorder %s40, 0
      %s43 = sadd.s32 %s42, 1
      %s44 = scalar_select %p41, %s42, %s43
      %p47 = pneg %p41
      %p48 = scmp.eq.s32.totalorder %s18, 1
      %p49 = por %p47, %p48
      %p50 = scmp.ne.s32.totalorder %s42, %s45
      %p51 = scmp.eq.s32.totalorder %s18, 0
      %p52 = por %p50, %p51
      %p53 = scmp.ne.s32.totalorder %s42, %s45
      %p54 = scmp.eq.s32.totalorder %s23, 1
      %p55 = por %p53, %p54
      %p56 = scmp.ne.s32.totalorder %s45, %s46
      %p57 = scmp.eq.s32.totalorder %s23, 0
      %p58 = por %p56, %p57
      %p59 = scmp.ne.s32.totalorder %s45, %s46
      %p60 = scmp.eq.s32.totalorder %s24, 1
      %p61 = por %p59, %p60
      %p63 = scmp.ne.s32.totalorder %s46, %s62
      %p64 = scmp.eq.s32.totalorder %s24, 0
      %p65 = por %p63, %p64
      %s67 = sadd.s32 %s66, 1
      %p70 = scmp.eq.s32.totalorder %s18, 1
      %p71 = scmp.ne.s32.totalorder %s66, %s68
      %p72 = scmp.eq.s32.totalorder %s18, 0
      %p73 = por %p71, %p72
      %p74 = scmp.ne.s32.totalorder %s66, %s68
      %p75 = scmp.eq.s32.totalorder %s23, 1
      %p76 = por %p74, %p75
      %p77 = scmp.ne.s32.totalorder %s68, %s69
      %p78 = scmp.eq.s32.totalorder %s23, 0
      %p79 = por %p77, %p78
      %p80 = scmp.ne.s32.totalorder %s68, %s69
      %p81 = scmp.eq.s32.totalorder %s24, 1
      %p82 = por %p80, %p81
      %p84 = scmp.ne.s32.totalorder %s69, %s83
      %p85 = scmp.eq.s32.totalorder %s24, 0
      %p86 = por %p84, %p85
      %s88 = sadd.s32 %s87, 1
      %p91 = scmp.eq.s32.totalorder %s18, 1
      %p92 = scmp.ne.s32.totalorder %s87, %s89
      %p93 = scmp.eq.s32.totalorder %s18, 0
      %p94 = por %p92, %p93
      %p95 = scmp.ne.s32.totalorder %s87, %s89
      %p96 = scmp.eq.s32.totalorder %s23, 1
      %p97 = por %p95, %p96
      %p98 = scmp.ne.s32.totalorder %s89, %s90
      %p99 = scmp.eq.s32.totalorder %s23, 0
      %p100 = por %p98, %p99
      %p101 = scmp.ne.s32.totalorder %s89, %s90
      %p102 = scmp.eq.s32.totalorder %s24, 1
      %p103 = por %p101, %p102
      %p105 = scmp.ne.s32.totalorder %s90, %s104
      %p106 = scmp.eq.s32.totalorder %s24, 0
      %p107 = por %p105, %p106
      %s109 = sadd.s32 %s108, 1
      %p112 = scmp.eq.s32.totalorder %s18, 1
      %p113 = scmp.ne.s32.totalorder %s108, %s110
      %p114 = scmp.eq.s32.totalorder %s18, 0
      %p115 = por %p113, %p114
      %p116 = scmp.ne.s32.totalorder %s108, %s110
      %p117 = scmp.eq.s32.totalorder %s23, 1
      %p118 = por %p116, %p117
      %p119 = scmp.ne.s32.totalorder %s110, %s111
      %p120 = scmp.eq.s32.totalorder %s23, 0
      %p121 = por %p119, %p120
      %p122 = scmp.ne.s32.totalorder %s110, %s111
      %p123 = scmp.eq.s32.totalorder %s24, 1
      %p124 = por %p122, %p123
      %p126 = scmp.ne.s32.totalorder %s111, %s125
      %p127 = scmp.eq.s32.totalorder %s24, 0
      %p128 = por %p126, %p127
      %s130 = sadd.s32 %s129, 1
      %p133 = scmp.eq.s32.totalorder %s18, 1
      %p134 = scmp.ne.s32.totalorder %s129, %s131
      %p135 = scmp.eq.s32.totalorder %s18, 0
      %p136 = por %p134, %p135
      %p137 = scmp.ne.s32.totalorder %s129, %s131
      %p138 = scmp.eq.s32.totalorder %s23, 1
      %p139 = por %p137, %p138
      %p140 = scmp.ne.s32.totalorder %s131, %s132
      %p141 = scmp.eq.s32.totalorder %s23, 0
      %p142 = por %p140, %p141
      %p143 = scmp.ne.s32.totalorder %s131, %s132
      %p144 = scmp.eq.s32.totalorder %s24, 1
      %p145 = por %p143, %p144
      %p147 = scmp.ne.s32.totalorder %s132, %s146
      %p148 = scmp.eq.s32.totalorder %s24, 0
      %p149 = por %p147, %p148
      %s151 = sadd.s32 %s150, 1
      %p154 = scmp.eq.s32.totalorder %s18, 1
      %p155 = scmp.ne.s32.totalorder %s150, %s152
      %p156 = scmp.eq.s32.totalorder %s18, 0
      %p157 = por %p155, %p156
      %p158 = scmp.ne.s32.totalorder %s150, %s152
      %p159 = scmp.eq.s32.totalorder %s23, 1
      %p160 = por %p158, %p159
      %p161 = scmp.ne.s32.totalorder %s152, %s153
      %p162 = scmp.eq.s32.totalorder %s23, 0
      %p163 = por %p161, %p162
      %p164 = scmp.ne.s32.totalorder %s152, %s153
      %p165 = scmp.eq.s32.totalorder %s24, 1
      %p166 = por %p164, %p165
      %p168 = scmp.ne.s32.totalorder %s153, %s167
      %p169 = scmp.eq.s32.totalorder %s24, 0
      %p170 = por %p168, %p169
      %s172 = sadd.s32 %s171, 1
      %p175 = scmp.eq.s32.totalorder %s18, 1
      %p176 = scmp.ne.s32.totalorder %s171, %s173
      %p177 = scmp.eq.s32.totalorder %s18, 0
      %p178 = por %p176, %p177
      %p179 = scmp.ne.s32.totalorder %s171, %s173
      %p180 = scmp.eq.s32.totalorder %s23, 1
      %p181 = por %p179, %p180
      %p182 = scmp.ne.s32.totalorder %s173, %s174
      %p183 = scmp.eq.s32.totalorder %s23, 0
      %p184 = por %p182, %p183
      %p185 = scmp.ne.s32.totalorder %s173, %s174
      %p186 = scmp.eq.s32.totalorder %s24, 1
      %p187 = por %p185, %p186
      %p189 = scmp.ne.s32.totalorder %s174, %s188
      %p190 = scmp.eq.s32.totalorder %s24, 0
      %p191 = por %p189, %p190
      %s193 = sadd.s32 %s192, 1
      %p196 = scmp.eq.s32.totalorder %s18, 1
      %p197 = scmp.ne.s32.totalorder %s192, %s194
      %p198 = scmp.eq.s32.totalorder %s18, 0
      %p199 = por %p197, %p198
      %p200 = scmp.ne.s32.totalorder %s192, %s194
      %p201 = scmp.eq.s32.totalorder %s23, 1
      %p202 = por %p200, %p201
      %p203 = scmp.ne.s32.totalorder %s194, %s195
      %p204 = scmp.eq.s32.totalorder %s23, 0
      %p205 = por %p203, %p204
      %p206 = scmp.ne.s32.totalorder %s194, %s195
      %p207 = scmp.eq.s32.totalorder %s24, 1
      %p208 = por %p206, %p207
      %p210 = scmp.ne.s32.totalorder %s195, %s209
      %p211 = scmp.eq.s32.totalorder %s24, 0
      %p212 = por %p210, %p211
      %s214 = sadd.s32 %s213, 1
      %p217 = scmp.eq.s32.totalorder %s18, 1
      %p218 = scmp.ne.s32.totalorder %s213, %s215
      %p219 = scmp.eq.s32.totalorder %s18, 0
      %p220 = por %p218, %p219
      %p221 = scmp.ne.s32.totalorder %s213, %s215
      %p222 = scmp.eq.s32.totalorder %s23, 1
      %p223 = por %p221, %p222
      %p224 = scmp.ne.s32.totalorder %s215, %s216
      %p225 = scmp.eq.s32.totalorder %s23, 0
      %p226 = por %p224, %p225
      %p227 = scmp.ne.s32.totalorder %s215, %s216
      %p228 = scmp.eq.s32.totalorder %s24, 1
      %p229 = por %p227, %p228
      %p231 = scmp.ne.s32.totalorder %s216, %s230
      %p232 = scmp.eq.s32.totalorder %s24, 0
      %p233 = por %p231, %p232
      %s234 = ssub.s32 %s25, %s37
      %p235 = scmp.eq.s32.totalorder %s234, 0
      %s237 = sadd.s32 %s236, 1
      %s238 = scalar_select %p235, %s236, %s237
      %p241 = pneg %p235
      %p242 = scmp.eq.s32.totalorder %s18, 1
      %p243 = por %p241, %p242
      %p244 = scmp.ne.s32.totalorder %s236, %s239
      %p245 = scmp.eq.s32.totalorder %s18, 0
      %p246 = por %p244, %p245
      %p247 = scmp.ne.s32.totalorder %s236, %s239
      %p248 = scmp.eq.s32.totalorder %s23, 1
      %p249 = por %p247, %p248
      %p250 = scmp.ne.s32.totalorder %s239, %s240
      %p251 = scmp.eq.s32.totalorder %s23, 0
      %p252 = por %p250, %p251
      %p253 = scmp.ne.s32.totalorder %s239, %s240
      %p254 = scmp.eq.s32.totalorder %s24, 1
      %p255 = por %p253, %p254
      %p257 = scmp.ne.s32.totalorder %s240, %s256
      %p258 = scmp.eq.s32.totalorder %s24, 0
      %p259 = por %p257, %p258
      %s260 = ssub.s32 %s25, %s37
      %p261 = scmp.eq.s32.totalorder %s260, 0
      %s263 = sadd.s32 %s262, 1
      %s264 = scalar_select %p261, %s262, %s263
      %p267 = pneg %p261
      %p268 = scmp.eq.s32.totalorder %s18, 1
      %p269 = por %p267, %p268
      %p270 = scmp.ne.s32.totalorder %s262, %s265
      %p271 = scmp.eq.s32.totalorder %s18, 0
      %p272 = por %p270, %p271
      %p273 = scmp.ne.s32.totalorder %s262, %s265
      %p274 = scmp.eq.s32.totalorder %s23, 1
      %p275 = por %p273, %p274
      %p276 = scmp.ne.s32.totalorder %s265, %s266
      %p277 = scmp.eq.s32.totalorder %s23, 0
      %p278 = por %p276, %p277
      %p279 = scmp.ne.s32.totalorder %s265, %s266
      %p280 = scmp.eq.s32.totalorder %s24, 1
      %p281 = por %p279, %p280
      %p283 = scmp.ne.s32.totalorder %s266, %s282
      %p284 = scmp.eq.s32.totalorder %s24, 0
      %p285 = por %p283, %p284
      %s286 = ssub.s32 %s25, %s37
      %p287 = scmp.eq.s32.totalorder %s286, 0
      %s289 = sadd.s32 %s288, 1
      %s290 = scalar_select %p287, %s288, %s289
      %p293 = pneg %p287
      %p294 = scmp.eq.s32.totalorder %s18, 1
      %p295 = por %p293, %p294
      %p296 = scmp.ne.s32.totalorder %s288, %s291
      %p297 = scmp.eq.s32.totalorder %s18, 0
      %p298 = por %p296, %p297
      %p299 = scmp.ne.s32.totalorder %s288, %s291
      %p300 = scmp.eq.s32.totalorder %s23, 1
      %p301 = por %p299, %p300
      %p302 = scmp.ne.s32.totalorder %s291, %s292
      %p303 = scmp.eq.s32.totalorder %s23, 0
      %p304 = por %p302, %p303
      %p305 = scmp.ne.s32.totalorder %s291, %s292
      %p306 = scmp.eq.s32.totalorder %s24, 1
      %p307 = por %p305, %p306
      %p309 = scmp.ne.s32.totalorder %s292, %s308
      %p310 = scmp.eq.s32.totalorder %s24, 0
      %p311 = por %p309, %p310
      %p312 = scmp.le.s32.totalorder 1, %s18
      %p313 = scmp.lt.s32.totalorder %s18, 3
      %p314 = pnand %p312, %p313
      %p315 = pneg %p314
      // Predicated region
      $region9: #{_lvar_val_forward.3} parent=5 // pred_check
        _
      $region10: #{_lvar_val_forward.3} parent=5 // pred_check_branch
        %317 = sbr.rel (%p314) target = $region12
      $region11: #{_lvar_val_forward.3} parent=5 // pred_region
        %s318 = ssub.s32 %s18, 1
        // Predicated region
        $region13: #{_lvar_val_forward.3} parent=11 // pred_check
          %p319 = pneg %p79
        $region14: #{_lvar_val_forward.3} parent=11 // pred_check_branch
          %321 = sbr.rel (%p319) target = $region16
        $region15: #{_lvar_val_forward.3} parent=11 // pred_region
          _
        $region16: #{_lvar_val_forward.3} parent=11 // pred_fallthru
          _
        // Predicated region
        $region17: #{_lvar_val_forward.3} parent=11 // pred_check
          %p322 = pneg %p100
        $region18: #{_lvar_val_forward.3} parent=11 // pred_check_branch
          %324 = sbr.rel (%p322) target = $region20
        $region19: #{_lvar_val_forward.3} parent=11 // pred_region
          _
        $region20: #{_lvar_val_forward.3} parent=11 // pred_fallthru
          _
        // Predicated region
        $region21: #{_lvar_val_forward.3} parent=11 // pred_check
          %p325 = pneg %p121
        $region22: #{_lvar_val_forward.3} parent=11 // pred_check_branch
          %327 = sbr.rel (%p325) target = $region24
        $region23: #{_lvar_val_forward.3} parent=11 // pred_region
          _
        $region24: #{_lvar_val_forward.3} parent=11 // pred_fallthru
          _
        // Predicated region
        $region25: #{_lvar_val_forward.3} parent=11 // pred_check
          %p328 = pneg %p142
        $region26: #{_lvar_val_forward.3} parent=11 // pred_check_branch
          %330 = sbr.rel (%p328) target = $region28
        $region27: #{_lvar_val_forward.3} parent=11 // pred_region
          _
        $region28: #{_lvar_val_forward.3} parent=11 // pred_fallthru
          _
        // Predicated region
        $region29: #{_lvar_val_forward.3} parent=11 // pred_check
          %p331 = pneg %p163
        $region30: #{_lvar_val_forward.3} parent=11 // pred_check_branch
          %333 = sbr.rel (%p331) target = $region32
        $region31: #{_lvar_val_forward.3} parent=11 // pred_region
          _
        $region32: #{_lvar_val_forward.3} parent=11 // pred_fallthru
          _
        // Predicated region
        $region33: #{_lvar_val_forward.3} parent=11 // pred_check
          %p334 = pneg %p184
        $region34: #{_lvar_val_forward.3} parent=11 // pred_check_branch
          %336 = sbr.rel (%p334) target = $region36
        $region35: #{_lvar_val_forward.3} parent=11 // pred_region
          _
        $region36: #{_lvar_val_forward.3} parent=11 // pred_fallthru
          _
        // Predicated region
        $region37: #{_lvar_val_forward.3} parent=11 // pred_check
          %p337 = pneg %p205
        $region38: #{_lvar_val_forward.3} parent=11 // pred_check_branch
          %339 = sbr.rel (%p337) target = $region40
        $region39: #{_lvar_val_forward.3} parent=11 // pred_region
          _
        $region40: #{_lvar_val_forward.3} parent=11 // pred_fallthru
          _
        // Predicated region
        $region41: #{_lvar_val_forward.3} parent=11 // pred_check
          %p340 = pneg %p226
        $region42: #{_lvar_val_forward.3} parent=11 // pred_check_branch
          %342 = sbr.rel (%p340) target = $region44
        $region43: #{_lvar_val_forward.3} parent=11 // pred_region
          _
        $region44: #{_lvar_val_forward.3} parent=11 // pred_fallthru
          _
      $region12: #{_lvar_val_forward.3} parent=5 // pred_fallthru
        _
      %p343 = scmp.lt.s32.totalorder %s18, 2
      // Predicated region
      $region45: #{_lvar_val_forward.3} parent=5 // pred_check
        %p344 = pneg %p343
      $region46: #{_lvar_val_forward.3} parent=5 // pred_check_branch
        %346 = sbr.rel (%p344) target = $region48
      $region47: #{_lvar_val_forward.3} parent=5 // pred_region
        // Predicated region
        $region49: #{_lvar_val_forward.3} parent=47 // pred_check
          %p347 = pneg %p52
        $region50: #{_lvar_val_forward.3} parent=47 // pred_check_branch
          %349 = sbr.rel (%p347) target = $region52
        $region51: #{_lvar_val_forward.3} parent=47 // pred_region
          %s350 = sand.u32 %s42, 1
          %s351 = sand.u32 %s42, 1
          %s352 = smul.addr %s351, 512
          %s353 = scalar_lea.vmem [#allocation4], %s352
          %s354 = smul.u32 8, %s25
          %s355 = smul.u32 16, %s26
          %s356 = smul.addr %s354, 32
          %s357 = sadd.s32 %s355, %s356
          %s358 = smul.addr %s357, 4
          %s359 = scalar_lea.vmem %s0, %s358
          // Predicated region
          $region53: #{_lvar_val_forward.3} parent=51 // pred_check
            _
          $region54: #{_lvar_val_forward.3} parent=51 // pred_check_branch
            %361 = sbr.rel (0) target = $region56
          $region55: #{_lvar_val_forward.3} parent=51 // pred_region
            // Predicated region
            $region57: #{_lvar_val_forward.3} parent=55 // pred_check
              _
            $region58: #{_lvar_val_forward.3} parent=55 // pred_check_branch
              %363 = sbr.rel target = $region60
            $region59: #{_lvar_val_forward.3} parent=55 // pred_region
              // Predicated region
              $region72: #{_lvar_val_forward.3} parent=59 // pred_check
                _
              $region73: #{_lvar_val_forward.3} parent=59 // pred_check_branch
                %632 = sbr.rel (0) target = $region75
              $region74: #{_lvar_val_forward.3} parent=59 // pred_region
                loop: start=0, step=1, limit=1
                $region76: #{_lvar_val_forward.3} parent=74 // loop_pre_header
                  _
                $region77: #{_lvar_val_forward.3} parent=74 // loop_header
                  %s634 = sphi 0, %s638
                  %p635 = scmp.ge.s32.totalorder %s634, 1
                  %s639 = sphi %s359, %s359
                  %s640 = sphi %s353, %s353
                $region78: #{_lvar_val_forward.3} parent=74 // loop_header_branch
                  %637 = sbr.rel (%p635) target = $region82
                $region79: #{_lvar_val_forward.3} parent=74 // loop_body
                  _
                $region80: #{_lvar_val_forward.3} parent=74 // loop_footer
                  %s638 = sadd.s32 1, %s634
                $region81: #{_lvar_val_forward.3} parent=74 // loop_footer_branch
                  %633 = sbr.rel target = $region77
                $region82: #{_lvar_val_forward.3} parent=74 // loop_exit
                  _
                loop: start=0, step=1, limit=1
                $region83: #{_lvar_val_forward.3} parent=74 // loop_pre_header
                  _
                $region84: #{_lvar_val_forward.3} parent=74 // loop_header
                  %s643 = sphi 0, %s647
                  %p644 = scmp.ge.s32.totalorder %s643, 1
                  %s648 = sphi %s359, %s359
                  %s649 = sphi %s353, %s353
                $region85: #{_lvar_val_forward.3} parent=74 // loop_header_branch
                  %646 = sbr.rel (%p644) target = $region89
                $region86: #{_lvar_val_forward.3} parent=74 // loop_body
                  %v650 = vld [vmem:[%s648] sm:$0xf]
                  %651 = vst [vmem:[%s649] sm:$0xf] %v650
                  %v652 = vld [vmem:[%s648 + $0x4] sm:$0xf]
                  %653 = vst [vmem:[%s649 + $0x4] sm:$0xf] %v652
                  %v654 = vld [vmem:[%s648 + $0x8] sm:$0xf]
                  %655 = vst [vmem:[%s649 + $0x8] sm:$0xf] %v654
                  %v656 = vld [vmem:[%s648 + $0xc] sm:$0xf]
                  %657 = vst [vmem:[%s649 + $0xc] sm:$0xf] %v656
                  %v658 = vld [vmem:[%s648 + $0x10] sm:$0xf]
                  %659 = vst [vmem:[%s649 + $0x10] sm:$0xf] %v658
                  %v660 = vld [vmem:[%s648 + $0x14] sm:$0xf]
                  %661 = vst [vmem:[%s649 + $0x14] sm:$0xf] %v660
                  %v662 = vld [vmem:[%s648 + $0x18] sm:$0xf]
                  %663 = vst [vmem:[%s649 + $0x18] sm:$0xf] %v662
                  %v664 = vld [vmem:[%s648 + $0x1c] sm:$0xf]
                  %665 = vst [vmem:[%s649 + $0x1c] sm:$0xf] %v664
                  %v666 = vld [vmem:[%s648 + $0x20] sm:$0xf]
                  %667 = vst [vmem:[%s649 + $0x20] sm:$0xf] %v666
                  %v668 = vld [vmem:[%s648 + $0x24] sm:$0xf]
                  %669 = vst [vmem:[%s649 + $0x24] sm:$0xf] %v668
                  %v670 = vld [vmem:[%s648 + $0x28] sm:$0xf]
                  %671 = vst [vmem:[%s649 + $0x28] sm:$0xf] %v670
                  %v672 = vld [vmem:[%s648 + $0x2c] sm:$0xf]
                  %673 = vst [vmem:[%s649 + $0x2c] sm:$0xf] %v672
                  %v674 = vld [vmem:[%s648 + $0x30] sm:$0xf]
                  %675 = vst [vmem:[%s649 + $0x30] sm:$0xf] %v674
                  %v676 = vld [vmem:[%s648 + $0x34] sm:$0xf]
                  %677 = vst [vmem:[%s649 + $0x34] sm:$0xf] %v676
                  %v678 = vld [vmem:[%s648 + $0x38] sm:$0xf]
                  %679 = vst [vmem:[%s649 + $0x38] sm:$0xf] %v678
                  %v680 = vld [vmem:[%s648 + $0x3c] sm:$0xf]
                  %681 = vst [vmem:[%s649 + $0x3c] sm:$0xf] %v680
                  %v682 = vld [vmem:[%s648 + $0x80] sm:$0xf]
                  %683 = vst [vmem:[%s649 + $0x40] sm:$0xf] %v682
                  %v684 = vld [vmem:[%s648 + $0x84] sm:$0xf]
                  %685 = vst [vmem:[%s649 + $0x44] sm:$0xf] %v684
                  %v686 = vld [vmem:[%s648 + $0x88] sm:$0xf]
                  %687 = vst [vmem:[%s649 + $0x48] sm:$0xf] %v686
                  %v688 = vld [vmem:[%s648 + $0x8c] sm:$0xf]
                  %689 = vst [vmem:[%s649 + $0x4c] sm:$0xf] %v688
                  %v690 = vld [vmem:[%s648 + $0x90] sm:$0xf]
                  %691 = vst [vmem:[%s649 + $0x50] sm:$0xf] %v690
                  %v692 = vld [vmem:[%s648 + $0x94] sm:$0xf]
                  %693 = vst [vmem:[%s649 + $0x54] sm:$0xf] %v692
                  %v694 = vld [vmem:[%s648 + $0x98] sm:$0xf]
                  %695 = vst [vmem:[%s649 + $0x58] sm:$0xf] %v694
                  %v696 = vld [vmem:[%s648 + $0x9c] sm:$0xf]
                  %697 = vst [vmem:[%s649 + $0x5c] sm:$0xf] %v696
                  %v698 = vld [vmem:[%s648 + $0xa0] sm:$0xf]
                  %699 = vst [vmem:[%s649 + $0x60] sm:$0xf] %v698
                  %v700 = vld [vmem:[%s648 + $0xa4] sm:$0xf]
                  %701 = vst [vmem:[%s649 + $0x64] sm:$0xf] %v700
                  %v702 = vld [vmem:[%s648 + $0xa8] sm:$0xf]
                  %703 = vst [vmem:[%s649 + $0x68] sm:$0xf] %v702
                  %v704 = vld [vmem:[%s648 + $0xac] sm:$0xf]
                  %705 = vst [vmem:[%s649 + $0x6c] sm:$0xf] %v704
                  %v706 = vld [vmem:[%s648 + $0xb0] sm:$0xf]
                  %707 = vst [vmem:[%s649 + $0x70] sm:$0xf] %v706
                  %v708 = vld [vmem:[%s648 + $0xb4] sm:$0xf]
                  %709 = vst [vmem:[%s649 + $0x74] sm:$0xf] %v708
                  %v710 = vld [vmem:[%s648 + $0xb8] sm:$0xf]
                  %711 = vst [vmem:[%s649 + $0x78] sm:$0xf] %v710
                  %v712 = vld [vmem:[%s648 + $0xbc] sm:$0xf]
                  %713 = vst [vmem:[%s649 + $0x7c] sm:$0xf] %v712
                  %v714 = vld [vmem:[%s648 + $0x100] sm:$0xf]
                  %715 = vst [vmem:[%s649 + $0x80] sm:$0xf] %v714
                  %v716 = vld [vmem:[%s648 + $0x104] sm:$0xf]
                  %717 = vst [vmem:[%s649 + $0x84] sm:$0xf] %v716
                  %v718 = vld [vmem:[%s648 + $0x108] sm:$0xf]
                  %719 = vst [vmem:[%s649 + $0x88] sm:$0xf] %v718
                  %v720 = vld [vmem:[%s648 + $0x10c] sm:$0xf]
                  %721 = vst [vmem:[%s649 + $0x8c] sm:$0xf] %v720
                  %v722 = vld [vmem:[%s648 + $0x110] sm:$0xf]
                  %723 = vst [vmem:[%s649 + $0x90] sm:$0xf] %v722
                  %v724 = vld [vmem:[%s648 + $0x114] sm:$0xf]
                  %725 = vst [vmem:[%s649 + $0x94] sm:$0xf] %v724
                  %v726 = vld [vmem:[%s648 + $0x118] sm:$0xf]
                  %727 = vst [vmem:[%s649 + $0x98] sm:$0xf] %v726
                  %v728 = vld [vmem:[%s648 + $0x11c] sm:$0xf]
                  %729 = vst [vmem:[%s649 + $0x9c] sm:$0xf] %v728
                  %v730 = vld [vmem:[%s648 + $0x120] sm:$0xf]
                  %731 = vst [vmem:[%s649 + $0xa0] sm:$0xf] %v730
                  %v732 = vld [vmem:[%s648 + $0x124] sm:$0xf]
                  %733 = vst [vmem:[%s649 + $0xa4] sm:$0xf] %v732
                  %v734 = vld [vmem:[%s648 + $0x128] sm:$0xf]
                  %735 = vst [vmem:[%s649 + $0xa8] sm:$0xf] %v734
                  %v736 = vld [vmem:[%s648 + $0x12c] sm:$0xf]
                  %737 = vst [vmem:[%s649 + $0xac] sm:$0xf] %v736
                  %v738 = vld [vmem:[%s648 + $0x130] sm:$0xf]
                  %739 = vst [vmem:[%s649 + $0xb0] sm:$0xf] %v738
                  %v740 = vld [vmem:[%s648 + $0x134] sm:$0xf]
                  %741 = vst [vmem:[%s649 + $0xb4] sm:$0xf] %v740
                  %v742 = vld [vmem:[%s648 + $0x138] sm:$0xf]
                  %743 = vst [vmem:[%s649 + $0xb8] sm:$0xf] %v742
                  %v744 = vld [vmem:[%s648 + $0x13c] sm:$0xf]
                  %745 = vst [vmem:[%s649 + $0xbc] sm:$0xf] %v744
                  %v746 = vld [vmem:[%s648 + $0x180] sm:$0xf]
                  %747 = vst [vmem:[%s649 + $0xc0] sm:$0xf] %v746
                  %v748 = vld [vmem:[%s648 + $0x184] sm:$0xf]
                  %749 = vst [vmem:[%s649 + $0xc4] sm:$0xf] %v748
                  %v750 = vld [vmem:[%s648 + $0x188] sm:$0xf]
                  %751 = vst [vmem:[%s649 + $0xc8] sm:$0xf] %v750
                  %v752 = vld [vmem:[%s648 + $0x18c] sm:$0xf]
                  %753 = vst [vmem:[%s649 + $0xcc] sm:$0xf] %v752
                  %v754 = vld [vmem:[%s648 + $0x190] sm:$0xf]
                  %755 = vst [vmem:[%s649 + $0xd0] sm:$0xf] %v754
                  %v756 = vld [vmem:[%s648 + $0x194] sm:$0xf]
                  %757 = vst [vmem:[%s649 + $0xd4] sm:$0xf] %v756
                  %v758 = vld [vmem:[%s648 + $0x198] sm:$0xf]
                  %759 = vst [vmem:[%s649 + $0xd8] sm:$0xf] %v758
                  %v760 = vld [vmem:[%s648 + $0x19c] sm:$0xf]
                  %761 = vst [vmem:[%s649 + $0xdc] sm:$0xf] %v760
                  %v762 = vld [vmem:[%s648 + $0x1a0] sm:$0xf]
                  %763 = vst [vmem:[%s649 + $0xe0] sm:$0xf] %v762
                  %v764 = vld [vmem:[%s648 + $0x1a4] sm:$0xf]
                  %765 = vst [vmem:[%s649 + $0xe4] sm:$0xf] %v764
                  %v766 = vld [vmem:[%s648 + $0x1a8] sm:$0xf]
                  %767 = vst [vmem:[%s649 + $0xe8] sm:$0xf] %v766
                  %v768 = vld [vmem:[%s648 + $0x1ac] sm:$0xf]
                  %769 = vst [vmem:[%s649 + $0xec] sm:$0xf] %v768
                  %v770 = vld [vmem:[%s648 + $0x1b0] sm:$0xf]
                  %771 = vst [vmem:[%s649 + $0xf0] sm:$0xf] %v770
                  %v772 = vld [vmem:[%s648 + $0x1b4] sm:$0xf]
                  %773 = vst [vmem:[%s649 + $0xf4] sm:$0xf] %v772
                  %v774 = vld [vmem:[%s648 + $0x1b8] sm:$0xf]
                  %775 = vst [vmem:[%s649 + $0xf8] sm:$0xf] %v774
                  %v776 = vld [vmem:[%s648 + $0x1bc] sm:$0xf]
                  %777 = vst [vmem:[%s649 + $0xfc] sm:$0xf] %v776
                  %v778 = vld [vmem:[%s648 + $0x200] sm:$0xf]
                  %779 = vst [vmem:[%s649 + $0x100] sm:$0xf] %v778
                  %v780 = vld [vmem:[%s648 + $0x204] sm:$0xf]
                  %781 = vst [vmem:[%s649 + $0x104] sm:$0xf] %v780
                  %v782 = vld [vmem:[%s648 + $0x208] sm:$0xf]
                  %783 = vst [vmem:[%s649 + $0x108] sm:$0xf] %v782
                  %v784 = vld [vmem:[%s648 + $0x20c] sm:$0xf]
                  %785 = vst [vmem:[%s649 + $0x10c] sm:$0xf] %v784
                  %v786 = vld [vmem:[%s648 + $0x210] sm:$0xf]
                  %787 = vst [vmem:[%s649 + $0x110] sm:$0xf] %v786
                  %v788 = vld [vmem:[%s648 + $0x214] sm:$0xf]
                  %789 = vst [vmem:[%s649 + $0x114] sm:$0xf] %v788
                  %v790 = vld [vmem:[%s648 + $0x218] sm:$0xf]
                  %791 = vst [vmem:[%s649 + $0x118] sm:$0xf] %v790
                  %v792 = vld [vmem:[%s648 + $0x21c] sm:$0xf]
                  %793 = vst [vmem:[%s649 + $0x11c] sm:$0xf] %v792
                  %v794 = vld [vmem:[%s648 + $0x220] sm:$0xf]
                  %795 = vst [vmem:[%s649 + $0x120] sm:$0xf] %v794
                  %v796 = vld [vmem:[%s648 + $0x224] sm:$0xf]
                  %797 = vst [vmem:[%s649 + $0x124] sm:$0xf] %v796
                  %v798 = vld [vmem:[%s648 + $0x228] sm:$0xf]
                  %799 = vst [vmem:[%s649 + $0x128] sm:$0xf] %v798
                  %v800 = vld [vmem:[%s648 + $0x22c] sm:$0xf]
                  %801 = vst [vmem:[%s649 + $0x12c] sm:$0xf] %v800
                  %v802 = vld [vmem:[%s648 + $0x230] sm:$0xf]
                  %803 = vst [vmem:[%s649 + $0x130] sm:$0xf] %v802
                  %v804 = vld [vmem:[%s648 + $0x234] sm:$0xf]
                  %805 = vst [vmem:[%s649 + $0x134] sm:$0xf] %v804
                  %v806 = vld [vmem:[%s648 + $0x238] sm:$0xf]
                  %807 = vst [vmem:[%s649 + $0x138] sm:$0xf] %v806
                  %v808 = vld [vmem:[%s648 + $0x23c] sm:$0xf]
                  %809 = vst [vmem:[%s649 + $0x13c] sm:$0xf] %v808
                  %v810 = vld [vmem:[%s648 + $0x280] sm:$0xf]
                  %811 = vst [vmem:[%s649 + $0x140] sm:$0xf] %v810
                  %v812 = vld [vmem:[%s648 + $0x284] sm:$0xf]
                  %813 = vst [vmem:[%s649 + $0x144] sm:$0xf] %v812
                  %v814 = vld [vmem:[%s648 + $0x288] sm:$0xf]
                  %815 = vst [vmem:[%s649 + $0x148] sm:$0xf] %v814
                  %v816 = vld [vmem:[%s648 + $0x28c] sm:$0xf]
                  %817 = vst [vmem:[%s649 + $0x14c] sm:$0xf] %v816
                  %v818 = vld [vmem:[%s648 + $0x290] sm:$0xf]
                  %819 = vst [vmem:[%s649 + $0x150] sm:$0xf] %v818
                  %v820 = vld [vmem:[%s648 + $0x294] sm:$0xf]
                  %821 = vst [vmem:[%s649 + $0x154] sm:$0xf] %v820
                  %v822 = vld [vmem:[%s648 + $0x298] sm:$0xf]
                  %823 = vst [vmem:[%s649 + $0x158] sm:$0xf] %v822
                  %v824 = vld [vmem:[%s648 + $0x29c] sm:$0xf]
                  %825 = vst [vmem:[%s649 + $0x15c] sm:$0xf] %v824
                  %v826 = vld [vmem:[%s648 + $0x2a0] sm:$0xf]
                  %827 = vst [vmem:[%s649 + $0x160] sm:$0xf] %v826
                  %v828 = vld [vmem:[%s648 + $0x2a4] sm:$0xf]
                  %829 = vst [vmem:[%s649 + $0x164] sm:$0xf] %v828
                  %v830 = vld [vmem:[%s648 + $0x2a8] sm:$0xf]
                  %831 = vst [vmem:[%s649 + $0x168] sm:$0xf] %v830
                  %v832 = vld [vmem:[%s648 + $0x2ac] sm:$0xf]
                  %833 = vst [vmem:[%s649 + $0x16c] sm:$0xf] %v832
                  %v834 = vld [vmem:[%s648 + $0x2b0] sm:$0xf]
                  %835 = vst [vmem:[%s649 + $0x170] sm:$0xf] %v834
                  %v836 = vld [vmem:[%s648 + $0x2b4] sm:$0xf]
                  %837 = vst [vmem:[%s649 + $0x174] sm:$0xf] %v836
                  %v838 = vld [vmem:[%s648 + $0x2b8] sm:$0xf]
                  %839 = vst [vmem:[%s649 + $0x178] sm:$0xf] %v838
                  %v840 = vld [vmem:[%s648 + $0x2bc] sm:$0xf]
                  %841 = vst [vmem:[%s649 + $0x17c] sm:$0xf] %v840
                  %v842 = vld [vmem:[%s648 + $0x300] sm:$0xf]
                  %843 = vst [vmem:[%s649 + $0x180] sm:$0xf] %v842
                  %v844 = vld [vmem:[%s648 + $0x304] sm:$0xf]
                  %845 = vst [vmem:[%s649 + $0x184] sm:$0xf] %v844
                  %v846 = vld [vmem:[%s648 + $0x308] sm:$0xf]
                  %847 = vst [vmem:[%s649 + $0x188] sm:$0xf] %v846
                  %v848 = vld [vmem:[%s648 + $0x30c] sm:$0xf]
                  %849 = vst [vmem:[%s649 + $0x18c] sm:$0xf] %v848
                  %v850 = vld [vmem:[%s648 + $0x310] sm:$0xf]
                  %851 = vst [vmem:[%s649 + $0x190] sm:$0xf] %v850
                  %v852 = vld [vmem:[%s648 + $0x314] sm:$0xf]
                  %853 = vst [vmem:[%s649 + $0x194] sm:$0xf] %v852
                  %v854 = vld [vmem:[%s648 + $0x318] sm:$0xf]
                  %855 = vst [vmem:[%s649 + $0x198] sm:$0xf] %v854
                  %v856 = vld [vmem:[%s648 + $0x31c] sm:$0xf]
                  %857 = vst [vmem:[%s649 + $0x19c] sm:$0xf] %v856
                  %v858 = vld [vmem:[%s648 + $0x320] sm:$0xf]
                  %859 = vst [vmem:[%s649 + $0x1a0] sm:$0xf] %v858
                  %v860 = vld [vmem:[%s648 + $0x324] sm:$0xf]
                  %861 = vst [vmem:[%s649 + $0x1a4] sm:$0xf] %v860
                  %v862 = vld [vmem:[%s648 + $0x328] sm:$0xf]
                  %863 = vst [vmem:[%s649 + $0x1a8] sm:$0xf] %v862
                  %v864 = vld [vmem:[%s648 + $0x32c] sm:$0xf]
                  %865 = vst [vmem:[%s649 + $0x1ac] sm:$0xf] %v864
                  %v866 = vld [vmem:[%s648 + $0x330] sm:$0xf]
                  %867 = vst [vmem:[%s649 + $0x1b0] sm:$0xf] %v866
                  %v868 = vld [vmem:[%s648 + $0x334] sm:$0xf]
                  %869 = vst [vmem:[%s649 + $0x1b4] sm:$0xf] %v868
                  %v870 = vld [vmem:[%s648 + $0x338] sm:$0xf]
                  %871 = vst [vmem:[%s649 + $0x1b8] sm:$0xf] %v870
                  %v872 = vld [vmem:[%s648 + $0x33c] sm:$0xf]
                  %873 = vst [vmem:[%s649 + $0x1bc] sm:$0xf] %v872
                  %v874 = vld [vmem:[%s648 + $0x380] sm:$0xf]
                  %875 = vst [vmem:[%s649 + $0x1c0] sm:$0xf] %v874
                  %v876 = vld [vmem:[%s648 + $0x384] sm:$0xf]
                  %877 = vst [vmem:[%s649 + $0x1c4] sm:$0xf] %v876
                  %v878 = vld [vmem:[%s648 + $0x388] sm:$0xf]
                  %879 = vst [vmem:[%s649 + $0x1c8] sm:$0xf] %v878
                  %v880 = vld [vmem:[%s648 + $0x38c] sm:$0xf]
                  %881 = vst [vmem:[%s649 + $0x1cc] sm:$0xf] %v880
                  %v882 = vld [vmem:[%s648 + $0x390] sm:$0xf]
                  %883 = vst [vmem:[%s649 + $0x1d0] sm:$0xf] %v882
                  %v884 = vld [vmem:[%s648 + $0x394] sm:$0xf]
                  %885 = vst [vmem:[%s649 + $0x1d4] sm:$0xf] %v884
                  %v886 = vld [vmem:[%s648 + $0x398] sm:$0xf]
                  %887 = vst [vmem:[%s649 + $0x1d8] sm:$0xf] %v886
                  %v888 = vld [vmem:[%s648 + $0x39c] sm:$0xf]
                  %889 = vst [vmem:[%s649 + $0x1dc] sm:$0xf] %v888
                  %v890 = vld [vmem:[%s648 + $0x3a0] sm:$0xf]
                  %891 = vst [vmem:[%s649 + $0x1e0] sm:$0xf] %v890
                  %v892 = vld [vmem:[%s648 + $0x3a4] sm:$0xf]
                  %893 = vst [vmem:[%s649 + $0x1e4] sm:$0xf] %v892
                  %v894 = vld [vmem:[%s648 + $0x3a8] sm:$0xf]
                  %895 = vst [vmem:[%s649 + $0x1e8] sm:$0xf] %v894
                  %v896 = vld [vmem:[%s648 + $0x3ac] sm:$0xf]
                  %897 = vst [vmem:[%s649 + $0x1ec] sm:$0xf] %v896
                  %v898 = vld [vmem:[%s648 + $0x3b0] sm:$0xf]
                  %899 = vst [vmem:[%s649 + $0x1f0] sm:$0xf] %v898
                  %v900 = vld [vmem:[%s648 + $0x3b4] sm:$0xf]
                  %901 = vst [vmem:[%s649 + $0x1f4] sm:$0xf] %v900
                  %v902 = vld [vmem:[%s648 + $0x3b8] sm:$0xf]
                  %903 = vst [vmem:[%s649 + $0x1f8] sm:$0xf] %v902
                  %v904 = vld [vmem:[%s648 + $0x3bc] sm:$0xf]
                  %905 = vst [vmem:[%s649 + $0x1fc] sm:$0xf] %v904
                $region87: #{_lvar_val_forward.3} parent=74 // loop_footer
                  %s647 = sadd.s32 1, %s643
                $region88: #{_lvar_val_forward.3} parent=74 // loop_footer_branch
                  %642 = sbr.rel target = $region84
                $region89: #{_lvar_val_forward.3} parent=74 // loop_exit
                  _
              $region75: #{_lvar_val_forward.3} parent=59 // pred_fallthru
                _
            $region60: #{_lvar_val_forward.3} parent=55 // pred_fallthru
              _
            // Predicated region
            $region61: #{_lvar_val_forward.3} parent=55 // pred_check
              _
            $region62: #{_lvar_val_forward.3} parent=55 // pred_check_branch
              %365 = sbr.rel (0) target = $region64
            $region63: #{_lvar_val_forward.3} parent=55 // pred_region
              loop: start=0, step=1, limit=1
              $region65: #{_lvar_val_forward.3} parent=63 // loop_pre_header
                _
              $region66: #{_lvar_val_forward.3} parent=63 // loop_header
                %s368 = sphi 0, %s372
                %p369 = scmp.ge.s32.totalorder %s368, 1
                %s373 = sphi %s359, %s359
                %s374 = sphi %s353, %s353
              $region67: #{_lvar_val_forward.3} parent=63 // loop_header_branch
                %371 = sbr.rel (%p369) target = $region71
              $region68: #{_lvar_val_forward.3} parent=63 // loop_body
                %v375 = vld [vmem:[%s373] sm:$0xf]
                %376 = vst [vmem:[%s374] sm:$0xf] %v375
                %v377 = vld [vmem:[%s373 + $0x4] sm:$0xf]
                %378 = vst [vmem:[%s374 + $0x4] sm:$0xf] %v377
                %v379 = vld [vmem:[%s373 + $0x8] sm:$0xf]
                %380 = vst [vmem:[%s374 + $0x8] sm:$0xf] %v379
                %v381 = vld [vmem:[%s373 + $0xc] sm:$0xf]
                %382 = vst [vmem:[%s374 + $0xc] sm:$0xf] %v381
                %v383 = vld [vmem:[%s373 + $0x10] sm:$0xf]
                %384 = vst [vmem:[%s374 + $0x10] sm:$0xf] %v383
                %v385 = vld [vmem:[%s373 + $0x14] sm:$0xf]
                %386 = vst [vmem:[%s374 + $0x14] sm:$0xf] %v385
                %v387 = vld [vmem:[%s373 + $0x18] sm:$0xf]
                %388 = vst [vmem:[%s374 + $0x18] sm:$0xf] %v387
                %v389 = vld [vmem:[%s373 + $0x1c] sm:$0xf]
                %390 = vst [vmem:[%s374 + $0x1c] sm:$0xf] %v389
                %v391 = vld [vmem:[%s373 + $0x20] sm:$0xf]
                %392 = vst [vmem:[%s374 + $0x20] sm:$0xf] %v391
                %v393 = vld [vmem:[%s373 + $0x24] sm:$0xf]
                %394 = vst [vmem:[%s374 + $0x24] sm:$0xf] %v393
                %v395 = vld [vmem:[%s373 + $0x28] sm:$0xf]
                %396 = vst [vmem:[%s374 + $0x28] sm:$0xf] %v395
                %v397 = vld [vmem:[%s373 + $0x2c] sm:$0xf]
                %398 = vst [vmem:[%s374 + $0x2c] sm:$0xf] %v397
                %v399 = vld [vmem:[%s373 + $0x30] sm:$0xf]
                %400 = vst [vmem:[%s374 + $0x30] sm:$0xf] %v399
                %v401 = vld [vmem:[%s373 + $0x34] sm:$0xf]
                %402 = vst [vmem:[%s374 + $0x34] sm:$0xf] %v401
                %v403 = vld [vmem:[%s373 + $0x38] sm:$0xf]
                %404 = vst [vmem:[%s374 + $0x38] sm:$0xf] %v403
                %v405 = vld [vmem:[%s373 + $0x3c] sm:$0xf]
                %406 = vst [vmem:[%s374 + $0x3c] sm:$0xf] %v405
                %v407 = vld [vmem:[%s373 + $0x80] sm:$0xf]
                %408 = vst [vmem:[%s374 + $0x40] sm:$0xf] %v407
                %v409 = vld [vmem:[%s373 + $0x84] sm:$0xf]
                %410 = vst [vmem:[%s374 + $0x44] sm:$0xf] %v409
                %v411 = vld [vmem:[%s373 + $0x88] sm:$0xf]
                %412 = vst [vmem:[%s374 + $0x48] sm:$0xf] %v411
                %v413 = vld [vmem:[%s373 + $0x8c] sm:$0xf]
                %414 = vst [vmem:[%s374 + $0x4c] sm:$0xf] %v413
                %v415 = vld [vmem:[%s373 + $0x90] sm:$0xf]
                %416 = vst [vmem:[%s374 + $0x50] sm:$0xf] %v415
                %v417 = vld [vmem:[%s373 + $0x94] sm:$0xf]
                %418 = vst [vmem:[%s374 + $0x54] sm:$0xf] %v417
                %v419 = vld [vmem:[%s373 + $0x98] sm:$0xf]
                %420 = vst [vmem:[%s374 + $0x58] sm:$0xf] %v419
                %v421 = vld [vmem:[%s373 + $0x9c] sm:$0xf]
                %422 = vst [vmem:[%s374 + $0x5c] sm:$0xf] %v421
                %v423 = vld [vmem:[%s373 + $0xa0] sm:$0xf]
                %424 = vst [vmem:[%s374 + $0x60] sm:$0xf] %v423
                %v425 = vld [vmem:[%s373 + $0xa4] sm:$0xf]
                %426 = vst [vmem:[%s374 + $0x64] sm:$0xf] %v425
                %v427 = vld [vmem:[%s373 + $0xa8] sm:$0xf]
                %428 = vst [vmem:[%s374 + $0x68] sm:$0xf] %v427
                %v429 = vld [vmem:[%s373 + $0xac] sm:$0xf]
                %430 = vst [vmem:[%s374 + $0x6c] sm:$0xf] %v429
                %v431 = vld [vmem:[%s373 + $0xb0] sm:$0xf]
                %432 = vst [vmem:[%s374 + $0x70] sm:$0xf] %v431
                %v433 = vld [vmem:[%s373 + $0xb4] sm:$0xf]
                %434 = vst [vmem:[%s374 + $0x74] sm:$0xf] %v433
                %v435 = vld [vmem:[%s373 + $0xb8] sm:$0xf]
                %436 = vst [vmem:[%s374 + $0x78] sm:$0xf] %v435
                %v437 = vld [vmem:[%s373 + $0xbc] sm:$0xf]
                %438 = vst [vmem:[%s374 + $0x7c] sm:$0xf] %v437
                %v439 = vld [vmem:[%s373 + $0x100] sm:$0xf]
                %440 = vst [vmem:[%s374 + $0x80] sm:$0xf] %v439
                %v441 = vld [vmem:[%s373 + $0x104] sm:$0xf]
                %442 = vst [vmem:[%s374 + $0x84] sm:$0xf] %v441
                %v443 = vld [vmem:[%s373 + $0x108] sm:$0xf]
                %444 = vst [vmem:[%s374 + $0x88] sm:$0xf] %v443
                %v445 = vld [vmem:[%s373 + $0x10c] sm:$0xf]
                %446 = vst [vmem:[%s374 + $0x8c] sm:$0xf] %v445
                %v447 = vld [vmem:[%s373 + $0x110] sm:$0xf]
                %448 = vst [vmem:[%s374 + $0x90] sm:$0xf] %v447
                %v449 = vld [vmem:[%s373 + $0x114] sm:$0xf]
                %450 = vst [vmem:[%s374 + $0x94] sm:$0xf] %v449
                %v451 = vld [vmem:[%s373 + $0x118] sm:$0xf]
                %452 = vst [vmem:[%s374 + $0x98] sm:$0xf] %v451
                %v453 = vld [vmem:[%s373 + $0x11c] sm:$0xf]
                %454 = vst [vmem:[%s374 + $0x9c] sm:$0xf] %v453
                %v455 = vld [vmem:[%s373 + $0x120] sm:$0xf]
                %456 = vst [vmem:[%s374 + $0xa0] sm:$0xf] %v455
                %v457 = vld [vmem:[%s373 + $0x124] sm:$0xf]
                %458 = vst [vmem:[%s374 + $0xa4] sm:$0xf] %v457
                %v459 = vld [vmem:[%s373 + $0x128] sm:$0xf]
                %460 = vst [vmem:[%s374 + $0xa8] sm:$0xf] %v459
                %v461 = vld [vmem:[%s373 + $0x12c] sm:$0xf]
                %462 = vst [vmem:[%s374 + $0xac] sm:$0xf] %v461
                %v463 = vld [vmem:[%s373 + $0x130] sm:$0xf]
                %464 = vst [vmem:[%s374 + $0xb0] sm:$0xf] %v463
                %v465 = vld [vmem:[%s373 + $0x134] sm:$0xf]
                %466 = vst [vmem:[%s374 + $0xb4] sm:$0xf] %v465
                %v467 = vld [vmem:[%s373 + $0x138] sm:$0xf]
                %468 = vst [vmem:[%s374 + $0xb8] sm:$0xf] %v467
                %v469 = vld [vmem:[%s373 + $0x13c] sm:$0xf]
                %470 = vst [vmem:[%s374 + $0xbc] sm:$0xf] %v469
                %v471 = vld [vmem:[%s373 + $0x180] sm:$0xf]
                %472 = vst [vmem:[%s374 + $0xc0] sm:$0xf] %v471
                %v473 = vld [vmem:[%s373 + $0x184] sm:$0xf]
                %474 = vst [vmem:[%s374 + $0xc4] sm:$0xf] %v473
                %v475 = vld [vmem:[%s373 + $0x188] sm:$0xf]
                %476 = vst [vmem:[%s374 + $0xc8] sm:$0xf] %v475
                %v477 = vld [vmem:[%s373 + $0x18c] sm:$0xf]
                %478 = vst [vmem:[%s374 + $0xcc] sm:$0xf] %v477
                %v479 = vld [vmem:[%s373 + $0x190] sm:$0xf]
                %480 = vst [vmem:[%s374 + $0xd0] sm:$0xf] %v479
                %v481 = vld [vmem:[%s373 + $0x194] sm:$0xf]
                %482 = vst [vmem:[%s374 + $0xd4] sm:$0xf] %v481
                %v483 = vld [vmem:[%s373 + $0x198] sm:$0xf]
                %484 = vst [vmem:[%s374 + $0xd8] sm:$0xf] %v483
                %v485 = vld [vmem:[%s373 + $0x19c] sm:$0xf]
                %486 = vst [vmem:[%s374 + $0xdc] sm:$0xf] %v485
                %v487 = vld [vmem:[%s373 + $0x1a0] sm:$0xf]
                %488 = vst [vmem:[%s374 + $0xe0] sm:$0xf] %v487
                %v489 = vld [vmem:[%s373 + $0x1a4] sm:$0xf]
                %490 = vst [vmem:[%s374 + $0xe4] sm:$0xf] %v489
                %v491 = vld [vmem:[%s373 + $0x1a8] sm:$0xf]
                %492 = vst [vmem:[%s374 + $0xe8] sm:$0xf] %v491
                %v493 = vld [vmem:[%s373 + $0x1ac] sm:$0xf]
                %494 = vst [vmem:[%s374 + $0xec] sm:$0xf] %v493
                %v495 = vld [vmem:[%s373 + $0x1b0] sm:$0xf]
                %496 = vst [vmem:[%s374 + $0xf0] sm:$0xf] %v495
                %v497 = vld [vmem:[%s373 + $0x1b4] sm:$0xf]
                %498 = vst [vmem:[%s374 + $0xf4] sm:$0xf] %v497
                %v499 = vld [vmem:[%s373 + $0x1b8] sm:$0xf]
                %500 = vst [vmem:[%s374 + $0xf8] sm:$0xf] %v499
                %v501 = vld [vmem:[%s373 + $0x1bc] sm:$0xf]
                %502 = vst [vmem:[%s374 + $0xfc] sm:$0xf] %v501
                %v503 = vld [vmem:[%s373 + $0x200] sm:$0xf]
                %504 = vst [vmem:[%s374 + $0x100] sm:$0xf] %v503
                %v505 = vld [vmem:[%s373 + $0x204] sm:$0xf]
                %506 = vst [vmem:[%s374 + $0x104] sm:$0xf] %v505
                %v507 = vld [vmem:[%s373 + $0x208] sm:$0xf]
                %508 = vst [vmem:[%s374 + $0x108] sm:$0xf] %v507
                %v509 = vld [vmem:[%s373 + $0x20c] sm:$0xf]
                %510 = vst [vmem:[%s374 + $0x10c] sm:$0xf] %v509
                %v511 = vld [vmem:[%s373 + $0x210] sm:$0xf]
                %512 = vst [vmem:[%s374 + $0x110] sm:$0xf] %v511
                %v513 = vld [vmem:[%s373 + $0x214] sm:$0xf]
                %514 = vst [vmem:[%s374 + $0x114] sm:$0xf] %v513
                %v515 = vld [vmem:[%s373 + $0x218] sm:$0xf]
                %516 = vst [vmem:[%s374 + $0x118] sm:$0xf] %v515
                %v517 = vld [vmem:[%s373 + $0x21c] sm:$0xf]
                %518 = vst [vmem:[%s374 + $0x11c] sm:$0xf] %v517
                %v519 = vld [vmem:[%s373 + $0x220] sm:$0xf]
                %520 = vst [vmem:[%s374 + $0x120] sm:$0xf] %v519
                %v521 = vld [vmem:[%s373 + $0x224] sm:$0xf]
                %522 = vst [vmem:[%s374 + $0x124] sm:$0xf] %v521
                %v523 = vld [vmem:[%s373 + $0x228] sm:$0xf]
                %524 = vst [vmem:[%s374 + $0x128] sm:$0xf] %v523
                %v525 = vld [vmem:[%s373 + $0x22c] sm:$0xf]
                %526 = vst [vmem:[%s374 + $0x12c] sm:$0xf] %v525
                %v527 = vld [vmem:[%s373 + $0x230] sm:$0xf]
                %528 = vst [vmem:[%s374 + $0x130] sm:$0xf] %v527
                %v529 = vld [vmem:[%s373 + $0x234] sm:$0xf]
                %530 = vst [vmem:[%s374 + $0x134] sm:$0xf] %v529
                %v531 = vld [vmem:[%s373 + $0x238] sm:$0xf]
                %532 = vst [vmem:[%s374 + $0x138] sm:$0xf] %v531
                %v533 = vld [vmem:[%s373 + $0x23c] sm:$0xf]
                %534 = vst [vmem:[%s374 + $0x13c] sm:$0xf] %v533
                %v535 = vld [vmem:[%s373 + $0x280] sm:$0xf]
                %536 = vst [vmem:[%s374 + $0x140] sm:$0xf] %v535
                %v537 = vld [vmem:[%s373 + $0x284] sm:$0xf]
                %538 = vst [vmem:[%s374 + $0x144] sm:$0xf] %v537
                %v539 = vld [vmem:[%s373 + $0x288] sm:$0xf]
                %540 = vst [vmem:[%s374 + $0x148] sm:$0xf] %v539
                %v541 = vld [vmem:[%s373 + $0x28c] sm:$0xf]
                %542 = vst [vmem:[%s374 + $0x14c] sm:$0xf] %v541
                %v543 = vld [vmem:[%s373 + $0x290] sm:$0xf]
                %544 = vst [vmem:[%s374 + $0x150] sm:$0xf] %v543
                %v545 = vld [vmem:[%s373 + $0x294] sm:$0xf]
                %546 = vst [vmem:[%s374 + $0x154] sm:$0xf] %v545
                %v547 = vld [vmem:[%s373 + $0x298] sm:$0xf]
                %548 = vst [vmem:[%s374 + $0x158] sm:$0xf] %v547
                %v549 = vld [vmem:[%s373 + $0x29c] sm:$0xf]
                %550 = vst [vmem:[%s374 + $0x15c] sm:$0xf] %v549
                %v551 = vld [vmem:[%s373 + $0x2a0] sm:$0xf]
                %552 = vst [vmem:[%s374 + $0x160] sm:$0xf] %v551
                %v553 = vld [vmem:[%s373 + $0x2a4] sm:$0xf]
                %554 = vst [vmem:[%s374 + $0x164] sm:$0xf] %v553
                %v555 = vld [vmem:[%s373 + $0x2a8] sm:$0xf]
                %556 = vst [vmem:[%s374 + $0x168] sm:$0xf] %v555
                %v557 = vld [vmem:[%s373 + $0x2ac] sm:$0xf]
                %558 = vst [vmem:[%s374 + $0x16c] sm:$0xf] %v557
                %v559 = vld [vmem:[%s373 + $0x2b0] sm:$0xf]
                %560 = vst [vmem:[%s374 + $0x170] sm:$0xf] %v559
                %v561 = vld [vmem:[%s373 + $0x2b4] sm:$0xf]
                %562 = vst [vmem:[%s374 + $0x174] sm:$0xf] %v561
                %v563 = vld [vmem:[%s373 + $0x2b8] sm:$0xf]
                %564 = vst [vmem:[%s374 + $0x178] sm:$0xf] %v563
                %v565 = vld [vmem:[%s373 + $0x2bc] sm:$0xf]
                %566 = vst [vmem:[%s374 + $0x17c] sm:$0xf] %v565
                %v567 = vld [vmem:[%s373 + $0x300] sm:$0xf]
                %568 = vst [vmem:[%s374 + $0x180] sm:$0xf] %v567
                %v569 = vld [vmem:[%s373 + $0x304] sm:$0xf]
                %570 = vst [vmem:[%s374 + $0x184] sm:$0xf] %v569
                %v571 = vld [vmem:[%s373 + $0x308] sm:$0xf]
                %572 = vst [vmem:[%s374 + $0x188] sm:$0xf] %v571
                %v573 = vld [vmem:[%s373 + $0x30c] sm:$0xf]
                %574 = vst [vmem:[%s374 + $0x18c] sm:$0xf] %v573
                %v575 = vld [vmem:[%s373 + $0x310] sm:$0xf]
                %576 = vst [vmem:[%s374 + $0x190] sm:$0xf] %v575
                %v577 = vld [vmem:[%s373 + $0x314] sm:$0xf]
                %578 = vst [vmem:[%s374 + $0x194] sm:$0xf] %v577
                %v579 = vld [vmem:[%s373 + $0x318] sm:$0xf]
                %580 = vst [vmem:[%s374 + $0x198] sm:$0xf] %v579
                %v581 = vld [vmem:[%s373 + $0x31c] sm:$0xf]
                %582 = vst [vmem:[%s374 + $0x19c] sm:$0xf] %v581
                %v583 = vld [vmem:[%s373 + $0x320] sm:$0xf]
                %584 = vst [vmem:[%s374 + $0x1a0] sm:$0xf] %v583
                %v585 = vld [vmem:[%s373 + $0x324] sm:$0xf]
                %586 = vst [vmem:[%s374 + $0x1a4] sm:$0xf] %v585
                %v587 = vld [vmem:[%s373 + $0x328] sm:$0xf]
                %588 = vst [vmem:[%s374 + $0x1a8] sm:$0xf] %v587
                %v589 = vld [vmem:[%s373 + $0x32c] sm:$0xf]
                %590 = vst [vmem:[%s374 + $0x1ac] sm:$0xf] %v589
                %v591 = vld [vmem:[%s373 + $0x330] sm:$0xf]
                %592 = vst [vmem:[%s374 + $0x1b0] sm:$0xf] %v591
                %v593 = vld [vmem:[%s373 + $0x334] sm:$0xf]
                %594 = vst [vmem:[%s374 + $0x1b4] sm:$0xf] %v593
                %v595 = vld [vmem:[%s373 + $0x338] sm:$0xf]
                %596 = vst [vmem:[%s374 + $0x1b8] sm:$0xf] %v595
                %v597 = vld [vmem:[%s373 + $0x33c] sm:$0xf]
                %598 = vst [vmem:[%s374 + $0x1bc] sm:$0xf] %v597
                %v599 = vld [vmem:[%s373 + $0x380] sm:$0xf]
                %600 = vst [vmem:[%s374 + $0x1c0] sm:$0xf] %v599
                %v601 = vld [vmem:[%s373 + $0x384] sm:$0xf]
                %602 = vst [vmem:[%s374 + $0x1c4] sm:$0xf] %v601
                %v603 = vld [vmem:[%s373 + $0x388] sm:$0xf]
                %604 = vst [vmem:[%s374 + $0x1c8] sm:$0xf] %v603
                %v605 = vld [vmem:[%s373 + $0x38c] sm:$0xf]
                %606 = vst [vmem:[%s374 + $0x1cc] sm:$0xf] %v605
                %v607 = vld [vmem:[%s373 + $0x390] sm:$0xf]
                %608 = vst [vmem:[%s374 + $0x1d0] sm:$0xf] %v607
                %v609 = vld [vmem:[%s373 + $0x394] sm:$0xf]
                %610 = vst [vmem:[%s374 + $0x1d4] sm:$0xf] %v609
                %v611 = vld [vmem:[%s373 + $0x398] sm:$0xf]
                %612 = vst [vmem:[%s374 + $0x1d8] sm:$0xf] %v611
                %v613 = vld [vmem:[%s373 + $0x39c] sm:$0xf]
                %614 = vst [vmem:[%s374 + $0x1dc] sm:$0xf] %v613
                %v615 = vld [vmem:[%s373 + $0x3a0] sm:$0xf]
                %616 = vst [vmem:[%s374 + $0x1e0] sm:$0xf] %v615
                %v617 = vld [vmem:[%s373 + $0x3a4] sm:$0xf]
                %618 = vst [vmem:[%s374 + $0x1e4] sm:$0xf] %v617
                %v619 = vld [vmem:[%s373 + $0x3a8] sm:$0xf]
                %620 = vst [vmem:[%s374 + $0x1e8] sm:$0xf] %v619
                %v621 = vld [vmem:[%s373 + $0x3ac] sm:$0xf]
                %622 = vst [vmem:[%s374 + $0x1ec] sm:$0xf] %v621
                %v623 = vld [vmem:[%s373 + $0x3b0] sm:$0xf]
                %624 = vst [vmem:[%s374 + $0x1f0] sm:$0xf] %v623
                %v625 = vld [vmem:[%s373 + $0x3b4] sm:$0xf]
                %626 = vst [vmem:[%s374 + $0x1f4] sm:$0xf] %v625
                %v627 = vld [vmem:[%s373 + $0x3b8] sm:$0xf]
                %628 = vst [vmem:[%s374 + $0x1f8] sm:$0xf] %v627
                %v629 = vld [vmem:[%s373 + $0x3bc] sm:$0xf]
                %630 = vst [vmem:[%s374 + $0x1fc] sm:$0xf] %v629
              $region69: #{_lvar_val_forward.3} parent=63 // loop_footer
                %s372 = sadd.s32 1, %s368
              $region70: #{_lvar_val_forward.3} parent=63 // loop_footer_branch
                %367 = sbr.rel target = $region66
              $region71: #{_lvar_val_forward.3} parent=63 // loop_exit
                _
            $region64: #{_lvar_val_forward.3} parent=55 // pred_fallthru
              _
          $region56: #{_lvar_val_forward.3} parent=51 // pred_fallthru
            _
          %906 = vnop
        $region52: #{_lvar_val_forward.3} parent=47 // pred_fallthru
          _
      $region48: #{_lvar_val_forward.3} parent=5 // pred_fallthru
        _
      %p907 = scmp.le.s32.totalorder 1, %s18
      %p908 = scmp.lt.s32.totalorder %s18, 3
      %p909 = pnand %p907, %p908
      %p910 = pneg %p909
      // Predicated region
      $region90: #{_lvar_val_forward.3} parent=5 // pred_check
        _
      $region91: #{_lvar_val_forward.3} parent=5 // pred_check_branch
        %912 = sbr.rel (%p909) target = $region93
      $region92: #{_lvar_val_forward.3} parent=5 // pred_region
        %s913 = ssub.s32 %s18, 1
        %s914 = sand.u32 %s45, 1
        %s915 = sand.u32 %s45, 1
        %s916 = smul.addr %s915, 512
        %s917 = scalar_lea.vmem [#allocation4], %s916
        // Predicated region
        $region94: #{_lvar_val_forward.3} parent=92 // pred_check
          %p918 = pneg %p58
        $region95: #{_lvar_val_forward.3} parent=92 // pred_check_branch
          %920 = sbr.rel (%p918) target = $region97
        $region96: #{_lvar_val_forward.3} parent=92 // pred_region
          _
        $region97: #{_lvar_val_forward.3} parent=92 // pred_fallthru
          _
        %s921 = sand.u32 %s45, 1
        %s922 = sand.u32 %s45, 1
        %s923 = smul.addr %s922, 512
        %s924 = scalar_lea.vmem [#allocation4], %s923
        %p925 = pneg %p58
        %p926 = pneg %p55
        %p927 = pneg %p79
        %p928 = pneg %p76
        %p929 = pneg %p100
        %p930 = pneg %p97
        %p931 = pneg %p121
        %p932 = pneg %p118
        %p933 = pneg %p142
        %p934 = pneg %p139
        %p935 = pneg %p163
        %p936 = pneg %p160
        %p937 = pneg %p184
        %p938 = pneg %p181
        %p939 = pneg %p205
        %p940 = pneg %p202
        %p941 = pneg %p226
        %p942 = pneg %p223
        %p943 = pneg %p252
        %p944 = pneg %p249
        %p945 = scmp.lt.s32.totalorder %s27, 0
        %s946 = scalar_select %p945, %s27, 0
        %s947 = smul.addr %s946, 8
        %s948 = scalar_lea.vmem %s9, %s947
        %p949 = pneg %p278
        %p950 = pneg %p275
        %p951 = scmp.lt.s32.totalorder %s27, 0
        %s952 = scalar_select %p951, %s27, 0
        %s953 = smul.addr %s952, 8
        %s954 = scalar_lea.vmem %s10, %s953
        %p955 = pneg %p304
        %p956 = pneg %p301
        %p957 = scmp.lt.s32.totalorder %s27, 0
        %s958 = scalar_select %p957, %s27, 0
        %s959 = smul.addr %s958, 8
        %s960 = scalar_lea.vmem %s11, %s959
        %s961 = smul.u32 8, %s27
        %s962 = smul.u32 16, %s28
        %p963 = scmp.lt.s32.totalorder %s27, 0
        %s964 = scalar_select %p963, %s27, 0
        %s965 = smul.addr %s964, 8
        %s966 = scalar_lea.vmem %s9, %s965
        %p967 = scmp.lt.s32.totalorder %s27, 0
        %s968 = scalar_select %p967, %s27, 0
        %s969 = smul.addr %s968, 8
        %s970 = scalar_lea.vmem %s10, %s969
        %p971 = scmp.lt.s32.totalorder %s27, 0
        %s972 = scalar_select %p971, %s27, 0
        %s973 = smul.addr %s972, 8
        %s974 = scalar_lea.vmem %s11, %s973
        %p976 = scmp.eq.s32.totalorder %s28, 0
        // Predicated region
        $region98: #{_lvar_val_forward.3} parent=92 // pred_check
          %p977 = pneg %p976
        $region99: #{_lvar_val_forward.3} parent=92 // pred_check_branch
          %979 = sbr.rel (%p977) target = $region101
        $region100: #{_lvar_val_forward.3} parent=92 // pred_region
          %980 = vst [vmem:[#allocation2] sm:$0xff] 0.0
          %981 = vst [vmem:[#allocation2 + $0x8] sm:$0xff] 0.0
          %982 = vst [vmem:[#allocation3] sm:$0xff] 0.0
        $region101: #{_lvar_val_forward.3} parent=92 // pred_fallthru
          _
        %v983 = vld [vmem:[%s917] sm:$0xf]
        %v984 = vld [vmem:[%s917 + $0x4] sm:$0xf]
        %v985 = vld [vmem:[%s917 + $0x8] sm:$0xf]
        %v986 = vld [vmem:[%s917 + $0xc] sm:$0xf]
        %v987 = vld [vmem:[%s917 + $0x10] sm:$0xf]
        %v988 = vld [vmem:[%s917 + $0x14] sm:$0xf]
        %v989 = vld [vmem:[%s917 + $0x18] sm:$0xf]
        %v990 = vld [vmem:[%s917 + $0x1c] sm:$0xf]
        %v991 = vld [vmem:[%s917 + $0x20] sm:$0xf]
        %v992 = vld [vmem:[%s917 + $0x24] sm:$0xf]
        %v993 = vld [vmem:[%s917 + $0x28] sm:$0xf]
        %v994 = vld [vmem:[%s917 + $0x2c] sm:$0xf]
        %v995 = vld [vmem:[%s917 + $0x30] sm:$0xf]
        %v996 = vld [vmem:[%s917 + $0x34] sm:$0xf]
        %v997 = vld [vmem:[%s917 + $0x38] sm:$0xf]
        %v998 = vld [vmem:[%s917 + $0x3c] sm:$0xf]
        %v999 = vld [vmem:[%s917 + $0x40] sm:$0xf]
        %v1000 = vld [vmem:[%s917 + $0x44] sm:$0xf]
        %v1001 = vld [vmem:[%s917 + $0x48] sm:$0xf]
        %v1002 = vld [vmem:[%s917 + $0x4c] sm:$0xf]
        %v1003 = vld [vmem:[%s917 + $0x50] sm:$0xf]
        %v1004 = vld [vmem:[%s917 + $0x54] sm:$0xf]
        %v1005 = vld [vmem:[%s917 + $0x58] sm:$0xf]
        %v1006 = vld [vmem:[%s917 + $0x5c] sm:$0xf]
        %v1007 = vld [vmem:[%s917 + $0x60] sm:$0xf]
        %v1008 = vld [vmem:[%s917 + $0x64] sm:$0xf]
        %v1009 = vld [vmem:[%s917 + $0x68] sm:$0xf]
        %v1010 = vld [vmem:[%s917 + $0x6c] sm:$0xf]
        %v1011 = vld [vmem:[%s917 + $0x70] sm:$0xf]
        %v1012 = vld [vmem:[%s917 + $0x74] sm:$0xf]
        %v1013 = vld [vmem:[%s917 + $0x78] sm:$0xf]
        %v1014 = vld [vmem:[%s917 + $0x7c] sm:$0xf]
        %v1015 = vld [vmem:[%s917 + $0x80] sm:$0xf]
        %v1016 = vld [vmem:[%s917 + $0x84] sm:$0xf]
        %v1017 = vld [vmem:[%s917 + $0x88] sm:$0xf]
        %v1018 = vld [vmem:[%s917 + $0x8c] sm:$0xf]
        %v1019 = vld [vmem:[%s917 + $0x90] sm:$0xf]
        %v1020 = vld [vmem:[%s917 + $0x94] sm:$0xf]
        %v1021 = vld [vmem:[%s917 + $0x98] sm:$0xf]
        %v1022 = vld [vmem:[%s917 + $0x9c] sm:$0xf]
        %v1023 = vld [vmem:[%s917 + $0xa0] sm:$0xf]
        %v1024 = vld [vmem:[%s917 + $0xa4] sm:$0xf]
        %v1025 = vld [vmem:[%s917 + $0xa8] sm:$0xf]
        %v1026 = vld [vmem:[%s917 + $0xac] sm:$0xf]
        %v1027 = vld [vmem:[%s917 + $0xb0] sm:$0xf]
        %v1028 = vld [vmem:[%s917 + $0xb4] sm:$0xf]
        %v1029 = vld [vmem:[%s917 + $0xb8] sm:$0xf]
        %v1030 = vld [vmem:[%s917 + $0xbc] sm:$0xf]
        %v1031 = vld [vmem:[%s917 + $0xc0] sm:$0xf]
        %v1032 = vld [vmem:[%s917 + $0xc4] sm:$0xf]
        %v1033 = vld [vmem:[%s917 + $0xc8] sm:$0xf]
        %v1034 = vld [vmem:[%s917 + $0xcc] sm:$0xf]
        %v1035 = vld [vmem:[%s917 + $0xd0] sm:$0xf]
        %v1036 = vld [vmem:[%s917 + $0xd4] sm:$0xf]
        %v1037 = vld [vmem:[%s917 + $0xd8] sm:$0xf]
        %v1038 = vld [vmem:[%s917 + $0xdc] sm:$0xf]
        %v1039 = vld [vmem:[%s917 + $0xe0] sm:$0xf]
        %v1040 = vld [vmem:[%s917 + $0xe4] sm:$0xf]
        %v1041 = vld [vmem:[%s917 + $0xe8] sm:$0xf]
        %v1042 = vld [vmem:[%s917 + $0xec] sm:$0xf]
        %v1043 = vld [vmem:[%s917 + $0xf0] sm:$0xf]
        %v1044 = vld [vmem:[%s917 + $0xf4] sm:$0xf]
        %v1045 = vld [vmem:[%s917 + $0xf8] sm:$0xf]
        %v1046 = vld [vmem:[%s917 + $0xfc] sm:$0xf]
        %v1047 = vld [vmem:[%s917 + $0x100] sm:$0xf]
        %v1048 = vld [vmem:[%s917 + $0x104] sm:$0xf]
        %v1049 = vld [vmem:[%s917 + $0x108] sm:$0xf]
        %v1050 = vld [vmem:[%s917 + $0x10c] sm:$0xf]
        %v1051 = vld [vmem:[%s917 + $0x110] sm:$0xf]
        %v1052 = vld [vmem:[%s917 + $0x114] sm:$0xf]
        %v1053 = vld [vmem:[%s917 + $0x118] sm:$0xf]
        %v1054 = vld [vmem:[%s917 + $0x11c] sm:$0xf]
        %v1055 = vld [vmem:[%s917 + $0x120] sm:$0xf]
        %v1056 = vld [vmem:[%s917 + $0x124] sm:$0xf]
        %v1057 = vld [vmem:[%s917 + $0x128] sm:$0xf]
        %v1058 = vld [vmem:[%s917 + $0x12c] sm:$0xf]
        %v1059 = vld [vmem:[%s917 + $0x130] sm:$0xf]
        %v1060 = vld [vmem:[%s917 + $0x134] sm:$0xf]
        %v1061 = vld [vmem:[%s917 + $0x138] sm:$0xf]
        %v1062 = vld [vmem:[%s917 + $0x13c] sm:$0xf]
        %v1063 = vld [vmem:[%s917 + $0x140] sm:$0xf]
        %v1064 = vld [vmem:[%s917 + $0x144] sm:$0xf]
        %v1065 = vld [vmem:[%s917 + $0x148] sm:$0xf]
        %v1066 = vld [vmem:[%s917 + $0x14c] sm:$0xf]
        %v1067 = vld [vmem:[%s917 + $0x150] sm:$0xf]
        %v1068 = vld [vmem:[%s917 + $0x154] sm:$0xf]
        %v1069 = vld [vmem:[%s917 + $0x158] sm:$0xf]
        %v1070 = vld [vmem:[%s917 + $0x15c] sm:$0xf]
        %v1071 = vld [vmem:[%s917 + $0x160] sm:$0xf]
        %v1072 = vld [vmem:[%s917 + $0x164] sm:$0xf]
        %v1073 = vld [vmem:[%s917 + $0x168] sm:$0xf]
        %v1074 = vld [vmem:[%s917 + $0x16c] sm:$0xf]
        %v1075 = vld [vmem:[%s917 + $0x170] sm:$0xf]
        %v1076 = vld [vmem:[%s917 + $0x174] sm:$0xf]
        %v1077 = vld [vmem:[%s917 + $0x178] sm:$0xf]
        %v1078 = vld [vmem:[%s917 + $0x17c] sm:$0xf]
        %v1079 = vld [vmem:[%s917 + $0x180] sm:$0xf]
        %v1080 = vld [vmem:[%s917 + $0x184] sm:$0xf]
        %v1081 = vld [vmem:[%s917 + $0x188] sm:$0xf]
        %v1082 = vld [vmem:[%s917 + $0x18c] sm:$0xf]
        %v1083 = vld [vmem:[%s917 + $0x190] sm:$0xf]
        %v1084 = vld [vmem:[%s917 + $0x194] sm:$0xf]
        %v1085 = vld [vmem:[%s917 + $0x198] sm:$0xf]
        %v1086 = vld [vmem:[%s917 + $0x19c] sm:$0xf]
        %v1087 = vld [vmem:[%s917 + $0x1a0] sm:$0xf]
        %v1088 = vld [vmem:[%s917 + $0x1a4] sm:$0xf]
        %v1089 = vld [vmem:[%s917 + $0x1a8] sm:$0xf]
        %v1090 = vld [vmem:[%s917 + $0x1ac] sm:$0xf]
        %v1091 = vld [vmem:[%s917 + $0x1b0] sm:$0xf]
        %v1092 = vld [vmem:[%s917 + $0x1b4] sm:$0xf]
        %v1093 = vld [vmem:[%s917 + $0x1b8] sm:$0xf]
        %v1094 = vld [vmem:[%s917 + $0x1bc] sm:$0xf]
        %v1095 = vld [vmem:[%s917 + $0x1c0] sm:$0xf]
        %v1096 = vld [vmem:[%s917 + $0x1c4] sm:$0xf]
        %v1097 = vld [vmem:[%s917 + $0x1c8] sm:$0xf]
        %v1098 = vld [vmem:[%s917 + $0x1cc] sm:$0xf]
        %v1099 = vld [vmem:[%s917 + $0x1d0] sm:$0xf]
        %v1100 = vld [vmem:[%s917 + $0x1d4] sm:$0xf]
        %v1101 = vld [vmem:[%s917 + $0x1d8] sm:$0xf]
        %v1102 = vld [vmem:[%s917 + $0x1dc] sm:$0xf]
        %v1103 = vld [vmem:[%s917 + $0x1e0] sm:$0xf]
        %v1104 = vld [vmem:[%s917 + $0x1e4] sm:$0xf]
        %v1105 = vld [vmem:[%s917 + $0x1e8] sm:$0xf]
        %v1106 = vld [vmem:[%s917 + $0x1ec] sm:$0xf]
        %v1107 = vld [vmem:[%s917 + $0x1f0] sm:$0xf]
        %v1108 = vld [vmem:[%s917 + $0x1f4] sm:$0xf]
        %v1109 = vld [vmem:[%s917 + $0x1f8] sm:$0xf]
        %v1110 = vld [vmem:[%s917 + $0x1fc] sm:$0xf]
        %v1111 = vld [vmem:[%s1] sm:$0xff]
        %v1112 = vld [vmem:[%s1 + $0x8] sm:$0xff]
        %v1113 = vld [vmem:[%s1 + $0x10] sm:$0xff]
        %v1114 = vld [vmem:[%s1 + $0x18] sm:$0xff]
        %v1115 = vld [vmem:[%s1 + $0x20] sm:$0xff]
        %v1116 = vld [vmem:[%s1 + $0x28] sm:$0xff]
        %v1117 = vld [vmem:[%s1 + $0x30] sm:$0xff]
        %v1118 = vld [vmem:[%s1 + $0x38] sm:$0xff]
        %v1119 = vld [vmem:[%s1 + $0x40] sm:$0xff]
        %v1120 = vld [vmem:[%s1 + $0x48] sm:$0xff]
        %v1121 = vld [vmem:[%s1 + $0x50] sm:$0xff]
        %v1122 = vld [vmem:[%s1 + $0x58] sm:$0xff]
        %v1123 = vld [vmem:[%s1 + $0x60] sm:$0xff]
        %v1124 = vld [vmem:[%s1 + $0x68] sm:$0xff]
        %v1125 = vld [vmem:[%s1 + $0x70] sm:$0xff]
        %v1126 = vld [vmem:[%s1 + $0x78] sm:$0xff]
        %v1127 = vld [vmem:[%s2] sm:$0x3]
        %v1129 = vlaneseq
        %v1130 = vshrl.u32 %v1129, 7
        %v1131 = vsub.s32 0, %v1130
        %v1132 = vrot.slane %v1127, %v1131
        %v1133 = vlaneseq
        %v1134 = vshrl.u32 %v1133, 7
        %v1135 = vsub.s32 1, %v1134
        %v1136 = vrot.slane %v1127, %v1135
        %v1267 = vunpack.c.l.b16 %v983
        %v1268 = vunpack.c.l.b16 %v984
        %v1269 = vunpack.c.l.b16 %v985
        %v1270 = vunpack.c.l.b16 %v986
        %v1271 = vunpack.c.l.b16 %v987
        %v1272 = vunpack.c.l.b16 %v988
        %v1273 = vunpack.c.l.b16 %v989
        %v1274 = vunpack.c.l.b16 %v990
        %v1275 = vunpack.c.l.b16 %v991
        %v1276 = vunpack.c.l.b16 %v992
        %v1277 = vunpack.c.l.b16 %v993
        %v1278 = vunpack.c.l.b16 %v994
        %v1279 = vunpack.c.l.b16 %v995
        %v1280 = vunpack.c.l.b16 %v996
        %v1281 = vunpack.c.l.b16 %v997
        %v1282 = vunpack.c.l.b16 %v998
        %v1283 = vunpack.c.l.b16 %v999
        %v1284 = vunpack.c.l.b16 %v1000
        %v1285 = vunpack.c.l.b16 %v1001
        %v1286 = vunpack.c.l.b16 %v1002
        %v1287 = vunpack.c.l.b16 %v1003
        %v1288 = vunpack.c.l.b16 %v1004
        %v1289 = vunpack.c.l.b16 %v1005
        %v1290 = vunpack.c.l.b16 %v1006
        %v1291 = vunpack.c.l.b16 %v1007
        %v1292 = vunpack.c.l.b16 %v1008
        %v1293 = vunpack.c.l.b16 %v1009
        %v1294 = vunpack.c.l.b16 %v1010
        %v1295 = vunpack.c.l.b16 %v1011
        %v1296 = vunpack.c.l.b16 %v1012
        %v1297 = vunpack.c.l.b16 %v1013
        %v1298 = vunpack.c.l.b16 %v1014
        %v1299 = vunpack.c.l.b16 %v1015
        %v1300 = vunpack.c.l.b16 %v1016
        %v1301 = vunpack.c.l.b16 %v1017
        %v1302 = vunpack.c.l.b16 %v1018
        %v1303 = vunpack.c.l.b16 %v1019
        %v1304 = vunpack.c.l.b16 %v1020
        %v1305 = vunpack.c.l.b16 %v1021
        %v1306 = vunpack.c.l.b16 %v1022
        %v1307 = vunpack.c.l.b16 %v1023
        %v1308 = vunpack.c.l.b16 %v1024
        %v1309 = vunpack.c.l.b16 %v1025
        %v1310 = vunpack.c.l.b16 %v1026
        %v1311 = vunpack.c.l.b16 %v1027
        %v1312 = vunpack.c.l.b16 %v1028
        %v1313 = vunpack.c.l.b16 %v1029
        %v1314 = vunpack.c.l.b16 %v1030
        %v1315 = vunpack.c.l.b16 %v1031
        %v1316 = vunpack.c.l.b16 %v1032
        %v1317 = vunpack.c.l.b16 %v1033
        %v1318 = vunpack.c.l.b16 %v1034
        %v1319 = vunpack.c.l.b16 %v1035
        %v1320 = vunpack.c.l.b16 %v1036
        %v1321 = vunpack.c.l.b16 %v1037
        %v1322 = vunpack.c.l.b16 %v1038
        %v1323 = vunpack.c.l.b16 %v1039
        %v1324 = vunpack.c.l.b16 %v1040
        %v1325 = vunpack.c.l.b16 %v1041
        %v1326 = vunpack.c.l.b16 %v1042
        %v1327 = vunpack.c.l.b16 %v1043
        %v1328 = vunpack.c.l.b16 %v1044
        %v1329 = vunpack.c.l.b16 %v1045
        %v1330 = vunpack.c.l.b16 %v1046
        %v1331 = vunpack.c.l.b16 %v1047
        %v1332 = vunpack.c.l.b16 %v1048
        %v1333 = vunpack.c.l.b16 %v1049
        %v1334 = vunpack.c.l.b16 %v1050
        %v1335 = vunpack.c.l.b16 %v1051
        %v1336 = vunpack.c.l.b16 %v1052
        %v1337 = vunpack.c.l.b16 %v1053
        %v1338 = vunpack.c.l.b16 %v1054
        %v1339 = vunpack.c.l.b16 %v1055
        %v1340 = vunpack.c.l.b16 %v1056
        %v1341 = vunpack.c.l.b16 %v1057
        %v1342 = vunpack.c.l.b16 %v1058
        %v1343 = vunpack.c.l.b16 %v1059
        %v1344 = vunpack.c.l.b16 %v1060
        %v1345 = vunpack.c.l.b16 %v1061
        %v1346 = vunpack.c.l.b16 %v1062
        %v1347 = vunpack.c.l.b16 %v1063
        %v1348 = vunpack.c.l.b16 %v1064
        %v1349 = vunpack.c.l.b16 %v1065
        %v1350 = vunpack.c.l.b16 %v1066
        %v1351 = vunpack.c.l.b16 %v1067
        %v1352 = vunpack.c.l.b16 %v1068
        %v1353 = vunpack.c.l.b16 %v1069
        %v1354 = vunpack.c.l.b16 %v1070
        %v1355 = vunpack.c.l.b16 %v1071
        %v1356 = vunpack.c.l.b16 %v1072
        %v1357 = vunpack.c.l.b16 %v1073
        %v1358 = vunpack.c.l.b16 %v1074
        %v1359 = vunpack.c.l.b16 %v1075
        %v1360 = vunpack.c.l.b16 %v1076
        %v1361 = vunpack.c.l.b16 %v1077
        %v1362 = vunpack.c.l.b16 %v1078
        %v1363 = vunpack.c.l.b16 %v1079
        %v1364 = vunpack.c.l.b16 %v1080
        %v1365 = vunpack.c.l.b16 %v1081
        %v1366 = vunpack.c.l.b16 %v1082
        %v1367 = vunpack.c.l.b16 %v1083
        %v1368 = vunpack.c.l.b16 %v1084
        %v1369 = vunpack.c.l.b16 %v1085
        %v1370 = vunpack.c.l.b16 %v1086
        %v1371 = vunpack.c.l.b16 %v1087
        %v1372 = vunpack.c.l.b16 %v1088
        %v1373 = vunpack.c.l.b16 %v1089
        %v1374 = vunpack.c.l.b16 %v1090
        %v1375 = vunpack.c.l.b16 %v1091
        %v1376 = vunpack.c.l.b16 %v1092
        %v1377 = vunpack.c.l.b16 %v1093
        %v1378 = vunpack.c.l.b16 %v1094
        %v1379 = vunpack.c.l.b16 %v1095
        %v1380 = vunpack.c.l.b16 %v1096
        %v1381 = vunpack.c.l.b16 %v1097
        %v1382 = vunpack.c.l.b16 %v1098
        %v1383 = vunpack.c.l.b16 %v1099
        %v1384 = vunpack.c.l.b16 %v1100
        %v1385 = vunpack.c.l.b16 %v1101
        %v1386 = vunpack.c.l.b16 %v1102
        %v1387 = vunpack.c.l.b16 %v1103
        %v1388 = vunpack.c.l.b16 %v1104
        %v1389 = vunpack.c.l.b16 %v1105
        %v1390 = vunpack.c.l.b16 %v1106
        %v1391 = vunpack.c.l.b16 %v1107
        %v1392 = vunpack.c.l.b16 %v1108
        %v1393 = vunpack.c.l.b16 %v1109
        %v1394 = vunpack.c.l.b16 %v1110
        %v1395 = vpack.c.b16 %v1268, %v1267
        %v1396 = vpack.c.b16 %v1270, %v1269
        %v1397 = vpack.c.b16 %v1272, %v1271
        %v1398 = vpack.c.b16 %v1274, %v1273
        %v1399 = vpack.c.b16 %v1276, %v1275
        %v1400 = vpack.c.b16 %v1278, %v1277
        %v1401 = vpack.c.b16 %v1280, %v1279
        %v1402 = vpack.c.b16 %v1282, %v1281
        %v1403 = vpack.c.b16 %v1284, %v1283
        %v1404 = vpack.c.b16 %v1286, %v1285
        %v1405 = vpack.c.b16 %v1288, %v1287
        %v1406 = vpack.c.b16 %v1290, %v1289
        %v1407 = vpack.c.b16 %v1292, %v1291
        %v1408 = vpack.c.b16 %v1294, %v1293
        %v1409 = vpack.c.b16 %v1296, %v1295
        %v1410 = vpack.c.b16 %v1298, %v1297
        %v1411 = vpack.c.b16 %v1300, %v1299
        %v1412 = vpack.c.b16 %v1302, %v1301
        %v1413 = vpack.c.b16 %v1304, %v1303
        %v1414 = vpack.c.b16 %v1306, %v1305
        %v1415 = vpack.c.b16 %v1308, %v1307
        %v1416 = vpack.c.b16 %v1310, %v1309
        %v1417 = vpack.c.b16 %v1312, %v1311
        %v1418 = vpack.c.b16 %v1314, %v1313
        %v1419 = vpack.c.b16 %v1316, %v1315
        %v1420 = vpack.c.b16 %v1318, %v1317
        %v1421 = vpack.c.b16 %v1320, %v1319
        %v1422 = vpack.c.b16 %v1322, %v1321
        %v1423 = vpack.c.b16 %v1324, %v1323
        %v1424 = vpack.c.b16 %v1326, %v1325
        %v1425 = vpack.c.b16 %v1328, %v1327
        %v1426 = vpack.c.b16 %v1330, %v1329
        %v1427 = vpack.c.b16 %v1332, %v1331
        %v1428 = vpack.c.b16 %v1334, %v1333
        %v1429 = vpack.c.b16 %v1336, %v1335
        %v1430 = vpack.c.b16 %v1338, %v1337
        %v1431 = vpack.c.b16 %v1340, %v1339
        %v1432 = vpack.c.b16 %v1342, %v1341
        %v1433 = vpack.c.b16 %v1344, %v1343
        %v1434 = vpack.c.b16 %v1346, %v1345
        %v1435 = vpack.c.b16 %v1348, %v1347
        %v1436 = vpack.c.b16 %v1350, %v1349
        %v1437 = vpack.c.b16 %v1352, %v1351
        %v1438 = vpack.c.b16 %v1354, %v1353
        %v1439 = vpack.c.b16 %v1356, %v1355
        %v1440 = vpack.c.b16 %v1358, %v1357
        %v1441 = vpack.c.b16 %v1360, %v1359
        %v1442 = vpack.c.b16 %v1362, %v1361
        %v1443 = vpack.c.b16 %v1364, %v1363
        %v1444 = vpack.c.b16 %v1366, %v1365
        %v1445 = vpack.c.b16 %v1368, %v1367
        %v1446 = vpack.c.b16 %v1370, %v1369
        %v1447 = vpack.c.b16 %v1372, %v1371
        %v1448 = vpack.c.b16 %v1374, %v1373
        %v1449 = vpack.c.b16 %v1376, %v1375
        %v1450 = vpack.c.b16 %v1378, %v1377
        %v1451 = vpack.c.b16 %v1380, %v1379
        %v1452 = vpack.c.b16 %v1382, %v1381
        %v1453 = vpack.c.b16 %v1384, %v1383
        %v1454 = vpack.c.b16 %v1386, %v1385
        %v1455 = vpack.c.b16 %v1388, %v1387
        %v1456 = vpack.c.b16 %v1390, %v1389
        %v1457 = vpack.c.b16 %v1392, %v1391
        %v1458 = vpack.c.b16 %v1394, %v1393
        %v1539 = vunpack.c.l.b16 %v1111
        %v1540 = vunpack.c.h.b16 %v1111
        %v1541 = vunpack.c.l.b16 %v1112
        %v1542 = vunpack.c.h.b16 %v1112
        %v1543 = vunpack.c.l.b16 %v1113
        %v1544 = vunpack.c.h.b16 %v1113
        %v1545 = vunpack.c.l.b16 %v1114
        %v1546 = vunpack.c.h.b16 %v1114
        %v1547 = vunpack.c.l.b16 %v1115
        %v1548 = vunpack.c.h.b16 %v1115
        %v1549 = vunpack.c.l.b16 %v1116
        %v1550 = vunpack.c.h.b16 %v1116
        %v1551 = vunpack.c.l.b16 %v1117
        %v1552 = vunpack.c.h.b16 %v1117
        %v1553 = vunpack.c.l.b16 %v1118
        %v1554 = vunpack.c.h.b16 %v1118
        %v1555 = vunpack.c.l.b16 %v1119
        %v1556 = vunpack.c.h.b16 %v1119
        %v1557 = vunpack.c.l.b16 %v1120
        %v1558 = vunpack.c.h.b16 %v1120
        %v1559 = vunpack.c.l.b16 %v1121
        %v1560 = vunpack.c.h.b16 %v1121
        %v1561 = vunpack.c.l.b16 %v1122
        %v1562 = vunpack.c.h.b16 %v1122
        %v1563 = vunpack.c.l.b16 %v1123
        %v1564 = vunpack.c.h.b16 %v1123
        %v1565 = vunpack.c.l.b16 %v1124
        %v1566 = vunpack.c.h.b16 %v1124
        %v1567 = vunpack.c.l.b16 %v1125
        %v1568 = vunpack.c.h.b16 %v1125
        %v1569 = vunpack.c.l.b16 %v1126
        %v1570 = vunpack.c.h.b16 %v1126
        %v1571 = vpack.c.b16 %v1541, %v1539
        %v1572 = vpack.c.b16 %v1542, %v1540
        %v1573 = vpack.c.b16 %v1545, %v1543
        %v1574 = vpack.c.b16 %v1546, %v1544
        %v1575 = vpack.c.b16 %v1549, %v1547
        %v1576 = vpack.c.b16 %v1550, %v1548
        %v1577 = vpack.c.b16 %v1553, %v1551
        %v1578 = vpack.c.b16 %v1554, %v1552
        %v1579 = vpack.c.b16 %v1557, %v1555
        %v1580 = vpack.c.b16 %v1558, %v1556
        %v1581 = vpack.c.b16 %v1561, %v1559
        %v1582 = vpack.c.b16 %v1562, %v1560
        %v1583 = vpack.c.b16 %v1565, %v1563
        %v1584 = vpack.c.b16 %v1566, %v1564
        %v1585 = vpack.c.b16 %v1569, %v1567
        %v1586 = vpack.c.b16 %v1570, %v1568
        %1603 = vmatprep.subr.bf16.mxu0 %v1572
        %1604 = vmatpush1.bf16.msra.mxu0 %v1571
        %1605 = vmatprep.subr.bf16.mxu0 %v1574
        %1606 = vmatpush1.bf16.msra.mxu0 %v1573
        %1607 = vmatprep.subr.bf16.mxu0 %v1576
        %1608 = vmatpush1.bf16.msra.mxu0 %v1575
        %1609 = vmatprep.subr.bf16.mxu0 %v1578
        %1610 = vmatpush1.bf16.msra.mxu0 %v1577
        %1611 = vmatprep.subr.bf16.mxu0 %v1580
        %1612 = vmatpush1.bf16.msra.mxu0 %v1579
        %1613 = vmatprep.subr.bf16.mxu0 %v1582
        %1614 = vmatpush1.bf16.msra.mxu0 %v1581
        %1615 = vmatprep.subr.bf16.mxu0 %v1584
        %1616 = vmatpush1.bf16.msra.mxu0 %v1583
        %1617 = vmatprep.subr.bf16.mxu0 %v1586
        %1618 = vmatpush1.bf16.msra.mxu0 %v1585
        %1619 = vmatprep.subr.bf16.mxu0 0
        %1620 = vmatpush1.bf16.msra.mxu0 0
        %1621 = vmatprep.subr.bf16.mxu0 0
        %1622 = vmatpush1.bf16.msra.mxu0 0
        %1623 = vmatprep.subr.bf16.mxu0 0
        %1624 = vmatpush1.bf16.msra.mxu0 0
        %1625 = vmatprep.subr.bf16.mxu0 0
        %1626 = vmatpush1.bf16.msra.mxu0 0
        %1627 = vmatprep.subr.bf16.mxu0 0
        %1628 = vmatpush1.bf16.msra.mxu0 0
        %1629 = vmatprep.subr.bf16.mxu0 0
        %1630 = vmatpush1.bf16.msra.mxu0 0
        %1631 = vmatprep.subr.bf16.mxu0 0
        %1632 = vmatpush1.bf16.msra.mxu0 0
        %1633 = vmatprep.subr.bf16.mxu0 0
        %1634 = vmatpush1.bf16.msra.mxu0 0
        %1635 = vmatprep.mubr.bf16.mxu0 0
        %1636 = vmatmul.mubr.bf16.gmra.mrb[0].mxu0 %v1395
        %v1637 = vpop.f32.mrb[0].mxu0
        %v1638 = vadd.f32 %v1132, %v1637
        %v1639 = vpop.f32.mrb[0].mxu0
        %v1640 = vadd.f32 %v1136, %v1639
        %v1641 = vpop.f32.mrb[0].mxu0
        %v1642 = vadd.f32 %v1132, %v1641
        %v1643 = vpop.f32.mrb[0].mxu0
        %v1644 = vadd.f32 %v1136, %v1643
        %1645 = vmatprep.mubr.bf16.mxu0 0
        %1646 = vmatmul.mubr.bf16.gmra.mrb[0].mxu0 %v1396
        %v1647 = vpop.f32.mrb[0].mxu0
        %v1648 = vadd.f32 %v1132, %v1647
        %v1649 = vpop.f32.mrb[0].mxu0
        %v1650 = vadd.f32 %v1136, %v1649
        %v1651 = vpop.f32.mrb[0].mxu0
        %v1652 = vadd.f32 %v1132, %v1651
        %v1653 = vpop.f32.mrb[0].mxu0
        %v1654 = vadd.f32 %v1136, %v1653
        %1655 = vmatprep.mubr.bf16.mxu0 0
        %1656 = vmatmul.mubr.bf16.gmra.mrb[0].mxu0 %v1397
        %v1657 = vpop.f32.mrb[0].mxu0
        %v1658 = vadd.f32 %v1132, %v1657
        %v1659 = vpop.f32.mrb[0].mxu0
        %v1660 = vadd.f32 %v1136, %v1659
        %v1661 = vpop.f32.mrb[0].mxu0
        %v1662 = vadd.f32 %v1132, %v1661
        %v1663 = vpop.f32.mrb[0].mxu0
        %v1664 = vadd.f32 %v1136, %v1663
        %1665 = vmatprep.mubr.bf16.mxu0 0
        %1666 = vmatmul.mubr.bf16.gmra.mrb[0].mxu0 %v1398
        %v1667 = vpop.f32.mrb[0].mxu0
        %v1668 = vadd.f32 %v1132, %v1667
        %v1669 = vpop.f32.mrb[0].mxu0
        %v1670 = vadd.f32 %v1136, %v1669
        %v1671 = vpop.f32.mrb[0].mxu0
        %v1672 = vadd.f32 %v1132, %v1671
        %v1673 = vpop.f32.mrb[0].mxu0
        %v1674 = vadd.f32 %v1136, %v1673
        %1675 = vmatprep.mubr.bf16.mxu0 0
        %1676 = vmatmul.mubr.bf16.gmra.mrb[0].mxu0 %v1399
        %v1677 = vpop.f32.mrb[0].mxu0
        %v1678 = vadd.f32 %v1132, %v1677
        %v1679 = vpop.f32.mrb[0].mxu0
        %v1680 = vadd.f32 %v1136, %v1679
        %v1681 = vpop.f32.mrb[0].mxu0
        %v1682 = vadd.f32 %v1132, %v1681
        %v1683 = vpop.f32.mrb[0].mxu0
        %v1684 = vadd.f32 %v1136, %v1683
        %1685 = vmatprep.mubr.bf16.mxu0 0
        %1686 = vmatmul.mubr.bf16.gmra.mrb[0].mxu0 %v1400
        %v1687 = vpop.f32.mrb[0].mxu0
        %v1688 = vadd.f32 %v1132, %v1687
        %v1689 = vpop.f32.mrb[0].mxu0
        %v1690 = vadd.f32 %v1136, %v1689
        %v1691 = vpop.f32.mrb[0].mxu0
        %v1692 = vadd.f32 %v1132, %v1691
        %v1693 = vpop.f32.mrb[0].mxu0
        %v1694 = vadd.f32 %v1136, %v1693
        %1695 = vmatprep.mubr.bf16.mxu0 0
        %1696 = vmatmul.mubr.bf16.gmra.mrb[0].mxu0 %v1401
        %v1697 = vpop.f32.mrb[0].mxu0
        %v1698 = vadd.f32 %v1132, %v1697
        %v1699 = vpop.f32.mrb[0].mxu0
        %v1700 = vadd.f32 %v1136, %v1699
        %v1701 = vpop.f32.mrb[0].mxu0
        %v1702 = vadd.f32 %v1132, %v1701
        %v1703 = vpop.f32.mrb[0].mxu0
        %v1704 = vadd.f32 %v1136, %v1703
        %1705 = vmatprep.mubr.bf16.mxu0 0
        %1706 = vmatmul.mubr.bf16.gmra.mrb[0].mxu0 %v1402
        %v1707 = vpop.f32.mrb[0].mxu0
        %v1708 = vadd.f32 %v1132, %v1707
        %v1709 = vpop.f32.mrb[0].mxu0
        %v1710 = vadd.f32 %v1136, %v1709
        %v1711 = vpop.f32.mrb[0].mxu0
        %v1712 = vadd.f32 %v1132, %v1711
        %v1713 = vpop.f32.mrb[0].mxu0
        %v1714 = vadd.f32 %v1136, %v1713
        %1715 = vmatprep.mubr.bf16.mxu0 0
        %1716 = vmatmul.mubr.bf16.gmra.mrb[0].mxu0 %v1403
        %v1717 = vpop.f32.mrb[0].mxu0
        %v1718 = vadd.f32 %v1132, %v1717
        %v1719 = vpop.f32.mrb[0].mxu0
        %v1720 = vadd.f32 %v1136, %v1719
        %v1721 = vpop.f32.mrb[0].mxu0
        %v1722 = vadd.f32 %v1132, %v1721
        %v1723 = vpop.f32.mrb[0].mxu0
        %v1724 = vadd.f32 %v1136, %v1723
        %1725 = vmatprep.mubr.bf16.mxu0 0
        %1726 = vmatmul.mubr.bf16.gmra.mrb[0].mxu0 %v1404
        %v1727 = vpop.f32.mrb[0].mxu0
        %v1728 = vadd.f32 %v1132, %v1727
        %v1729 = vpop.f32.mrb[0].mxu0
        %v1730 = vadd.f32 %v1136, %v1729
        %v1731 = vpop.f32.mrb[0].mxu0
        %v1732 = vadd.f32 %v1132, %v1731
        %v1733 = vpop.f32.mrb[0].mxu0
        %v1734 = vadd.f32 %v1136, %v1733
        %1735 = vmatprep.mubr.bf16.mxu0 0
        %1736 = vmatmul.mubr.bf16.gmra.mrb[0].mxu0 %v1405
        %v1737 = vpop.f32.mrb[0].mxu0
        %v1738 = vadd.f32 %v1132, %v1737
        %v1739 = vpop.f32.mrb[0].mxu0
        %v1740 = vadd.f32 %v1136, %v1739
        %v1741 = vpop.f32.mrb[0].mxu0
        %v1742 = vadd.f32 %v1132, %v1741
        %v1743 = vpop.f32.mrb[0].mxu0
        %v1744 = vadd.f32 %v1136, %v1743
        %1745 = vmatprep.mubr.bf16.mxu0 0
        %1746 = vmatmul.mubr.bf16.gmra.mrb[0].mxu0 %v1406
        %v1747 = vpop.f32.mrb[0].mxu0
        %v1748 = vadd.f32 %v1132, %v1747
        %v1749 = vpop.f32.mrb[0].mxu0
        %v1750 = vadd.f32 %v1136, %v1749
        %v1751 = vpop.f32.mrb[0].mxu0
        %v1752 = vadd.f32 %v1132, %v1751
        %v1753 = vpop.f32.mrb[0].mxu0
        %v1754 = vadd.f32 %v1136, %v1753
        %1755 = vmatprep.mubr.bf16.mxu0 0
        %1756 = vmatmul.mubr.bf16.gmra.mrb[0].mxu0 %v1407
        %v1757 = vpop.f32.mrb[0].mxu0
        %v1758 = vadd.f32 %v1132, %v1757
        %v1759 = vpop.f32.mrb[0].mxu0
        %v1760 = vadd.f32 %v1136, %v1759
        %v1761 = vpop.f32.mrb[0].mxu0
        %v1762 = vadd.f32 %v1132, %v1761
        %v1763 = vpop.f32.mrb[0].mxu0
        %v1764 = vadd.f32 %v1136, %v1763
        %1765 = vmatprep.mubr.bf16.mxu0 0
        %1766 = vmatmul.mubr.bf16.gmra.mrb[0].mxu0 %v1408
        %v1767 = vpop.f32.mrb[0].mxu0
        %v1768 = vadd.f32 %v1132, %v1767
        %v1769 = vpop.f32.mrb[0].mxu0
        %v1770 = vadd.f32 %v1136, %v1769
        %v1771 = vpop.f32.mrb[0].mxu0
        %v1772 = vadd.f32 %v1132, %v1771
        %v1773 = vpop.f32.mrb[0].mxu0
        %v1774 = vadd.f32 %v1136, %v1773
        %1775 = vmatprep.mubr.bf16.mxu0 0
        %1776 = vmatmul.mubr.bf16.gmra.mrb[0].mxu0 %v1409
        %v1777 = vpop.f32.mrb[0].mxu0
        %v1778 = vadd.f32 %v1132, %v1777
        %v1779 = vpop.f32.mrb[0].mxu0
        %v1780 = vadd.f32 %v1136, %v1779
        %v1781 = vpop.f32.mrb[0].mxu0
        %v1782 = vadd.f32 %v1132, %v1781
        %v1783 = vpop.f32.mrb[0].mxu0
        %v1784 = vadd.f32 %v1136, %v1783
        %1785 = vmatprep.mubr.bf16.mxu0 0
        %1786 = vmatmul.mubr.bf16.gmra.mrb[0].mxu0 %v1410
        %v1787 = vpop.f32.mrb[0].mxu0
        %v1788 = vadd.f32 %v1132, %v1787
        %v1789 = vpop.f32.mrb[0].mxu0
        %v1790 = vadd.f32 %v1136, %v1789
        %v1791 = vpop.f32.mrb[0].mxu0
        %v1792 = vadd.f32 %v1132, %v1791
        %v1793 = vpop.f32.mrb[0].mxu0
        %v1794 = vadd.f32 %v1136, %v1793
        %1795 = vmatprep.mubr.bf16.mxu0 0
        %1796 = vmatmul.mubr.bf16.gmra.mrb[0].mxu0 %v1411
        %v1797 = vpop.f32.mrb[0].mxu0
        %v1798 = vadd.f32 %v1132, %v1797
        %v1799 = vpop.f32.mrb[0].mxu0
        %v1800 = vadd.f32 %v1136, %v1799
        %v1801 = vpop.f32.mrb[0].mxu0
        %v1802 = vadd.f32 %v1132, %v1801
        %v1803 = vpop.f32.mrb[0].mxu0
        %v1804 = vadd.f32 %v1136, %v1803
        %1805 = vmatprep.mubr.bf16.mxu0 0
        %1806 = vmatmul.mubr.bf16.gmra.mrb[0].mxu0 %v1412
        %v1807 = vpop.f32.mrb[0].mxu0
        %v1808 = vadd.f32 %v1132, %v1807
        %v1809 = vpop.f32.mrb[0].mxu0
        %v1810 = vadd.f32 %v1136, %v1809
        %v1811 = vpop.f32.mrb[0].mxu0
        %v1812 = vadd.f32 %v1132, %v1811
        %v1813 = vpop.f32.mrb[0].mxu0
        %v1814 = vadd.f32 %v1136, %v1813
        %1815 = vmatprep.mubr.bf16.mxu0 0
        %1816 = vmatmul.mubr.bf16.gmra.mrb[0].mxu0 %v1413
        %v1817 = vpop.f32.mrb[0].mxu0
        %v1818 = vadd.f32 %v1132, %v1817
        %v1819 = vpop.f32.mrb[0].mxu0
        %v1820 = vadd.f32 %v1136, %v1819
        %v1821 = vpop.f32.mrb[0].mxu0
        %v1822 = vadd.f32 %v1132, %v1821
        %v1823 = vpop.f32.mrb[0].mxu0
        %v1824 = vadd.f32 %v1136, %v1823
        %1825 = vmatprep.mubr.bf16.mxu0 0
        %1826 = vmatmul.mubr.bf16.gmra.mrb[0].mxu0 %v1414
        %v1827 = vpop.f32.mrb[0].mxu0
        %v1828 = vadd.f32 %v1132, %v1827
        %v1829 = vpop.f32.mrb[0].mxu0
        %v1830 = vadd.f32 %v1136, %v1829
        %v1831 = vpop.f32.mrb[0].mxu0
        %v1832 = vadd.f32 %v1132, %v1831
        %v1833 = vpop.f32.mrb[0].mxu0
        %v1834 = vadd.f32 %v1136, %v1833
        %1835 = vmatprep.mubr.bf16.mxu0 0
        %1836 = vmatmul.mubr.bf16.gmra.mrb[0].mxu0 %v1415
        %v1837 = vpop.f32.mrb[0].mxu0
        %v1838 = vadd.f32 %v1132, %v1837
        %v1839 = vpop.f32.mrb[0].mxu0
        %v1840 = vadd.f32 %v1136, %v1839
        %v1841 = vpop.f32.mrb[0].mxu0
        %v1842 = vadd.f32 %v1132, %v1841
        %v1843 = vpop.f32.mrb[0].mxu0
        %v1844 = vadd.f32 %v1136, %v1843
        %1845 = vmatprep.mubr.bf16.mxu0 0
        %1846 = vmatmul.mubr.bf16.gmra.mrb[0].mxu0 %v1416
        %v1847 = vpop.f32.mrb[0].mxu0
        %v1848 = vadd.f32 %v1132, %v1847
        %v1849 = vpop.f32.mrb[0].mxu0
        %v1850 = vadd.f32 %v1136, %v1849
        %v1851 = vpop.f32.mrb[0].mxu0
        %v1852 = vadd.f32 %v1132, %v1851
        %v1853 = vpop.f32.mrb[0].mxu0
        %v1854 = vadd.f32 %v1136, %v1853
        %1855 = vmatprep.mubr.bf16.mxu0 0
        %1856 = vmatmul.mubr.bf16.gmra.mrb[0].mxu0 %v1417
        %v1857 = vpop.f32.mrb[0].mxu0
        %v1858 = vadd.f32 %v1132, %v1857
        %v1859 = vpop.f32.mrb[0].mxu0
        %v1860 = vadd.f32 %v1136, %v1859
        %v1861 = vpop.f32.mrb[0].mxu0
        %v1862 = vadd.f32 %v1132, %v1861
        %v1863 = vpop.f32.mrb[0].mxu0
        %v1864 = vadd.f32 %v1136, %v1863
        %1865 = vmatprep.mubr.bf16.mxu0 0
        %1866 = vmatmul.mubr.bf16.gmra.mrb[0].mxu0 %v1418
        %v1867 = vpop.f32.mrb[0].mxu0
        %v1868 = vadd.f32 %v1132, %v1867
        %v1869 = vpop.f32.mrb[0].mxu0
        %v1870 = vadd.f32 %v1136, %v1869
        %v1871 = vpop.f32.mrb[0].mxu0
        %v1872 = vadd.f32 %v1132, %v1871
        %v1873 = vpop.f32.mrb[0].mxu0
        %v1874 = vadd.f32 %v1136, %v1873
        %1875 = vmatprep.mubr.bf16.mxu0 0
        %1876 = vmatmul.mubr.bf16.gmra.mrb[0].mxu0 %v1419
        %v1877 = vpop.f32.mrb[0].mxu0
        %v1878 = vadd.f32 %v1132, %v1877
        %v1879 = vpop.f32.mrb[0].mxu0
        %v1880 = vadd.f32 %v1136, %v1879
        %v1881 = vpop.f32.mrb[0].mxu0
        %v1882 = vadd.f32 %v1132, %v1881
        %v1883 = vpop.f32.mrb[0].mxu0
        %v1884 = vadd.f32 %v1136, %v1883
        %1885 = vmatprep.mubr.bf16.mxu0 0
        %1886 = vmatmul.mubr.bf16.gmra.mrb[0].mxu0 %v1420
        %v1887 = vpop.f32.mrb[0].mxu0
        %v1888 = vadd.f32 %v1132, %v1887
        %v1889 = vpop.f32.mrb[0].mxu0
        %v1890 = vadd.f32 %v1136, %v1889
        %v1891 = vpop.f32.mrb[0].mxu0
        %v1892 = vadd.f32 %v1132, %v1891
        %v1893 = vpop.f32.mrb[0].mxu0
        %v1894 = vadd.f32 %v1136, %v1893
        %1895 = vmatprep.mubr.bf16.mxu0 0
        %1896 = vmatmul.mubr.bf16.gmra.mrb[0].mxu0 %v1421
        %v1897 = vpop.f32.mrb[0].mxu0
        %v1898 = vadd.f32 %v1132, %v1897
        %v1899 = vpop.f32.mrb[0].mxu0
        %v1900 = vadd.f32 %v1136, %v1899
        %v1901 = vpop.f32.mrb[0].mxu0
        %v1902 = vadd.f32 %v1132, %v1901
        %v1903 = vpop.f32.mrb[0].mxu0
        %v1904 = vadd.f32 %v1136, %v1903
        %1905 = vmatprep.mubr.bf16.mxu0 0
        %1906 = vmatmul.mubr.bf16.gmra.mrb[0].mxu0 %v1422
        %v1907 = vpop.f32.mrb[0].mxu0
        %v1908 = vadd.f32 %v1132, %v1907
        %v1909 = vpop.f32.mrb[0].mxu0
        %v1910 = vadd.f32 %v1136, %v1909
        %v1911 = vpop.f32.mrb[0].mxu0
        %v1912 = vadd.f32 %v1132, %v1911
        %v1913 = vpop.f32.mrb[0].mxu0
        %v1914 = vadd.f32 %v1136, %v1913
        %1915 = vmatprep.mubr.bf16.mxu0 0
        %1916 = vmatmul.mubr.bf16.gmra.mrb[0].mxu0 %v1423
        %v1917 = vpop.f32.mrb[0].mxu0
        %v1918 = vadd.f32 %v1132, %v1917
        %v1919 = vpop.f32.mrb[0].mxu0
        %v1920 = vadd.f32 %v1136, %v1919
        %v1921 = vpop.f32.mrb[0].mxu0
        %v1922 = vadd.f32 %v1132, %v1921
        %v1923 = vpop.f32.mrb[0].mxu0
        %v1924 = vadd.f32 %v1136, %v1923
        %1925 = vmatprep.mubr.bf16.mxu0 0
        %1926 = vmatmul.mubr.bf16.gmra.mrb[0].mxu0 %v1424
        %v1927 = vpop.f32.mrb[0].mxu0
        %v1928 = vadd.f32 %v1132, %v1927
        %v1929 = vpop.f32.mrb[0].mxu0
        %v1930 = vadd.f32 %v1136, %v1929
        %v1931 = vpop.f32.mrb[0].mxu0
        %v1932 = vadd.f32 %v1132, %v1931
        %v1933 = vpop.f32.mrb[0].mxu0
        %v1934 = vadd.f32 %v1136, %v1933
        %1935 = vmatprep.mubr.bf16.mxu0 0
        %1936 = vmatmul.mubr.bf16.gmra.mrb[0].mxu0 %v1425
        %v1937 = vpop.f32.mrb[0].mxu0
        %v1938 = vadd.f32 %v1132, %v1937
        %v1939 = vpop.f32.mrb[0].mxu0
        %v1940 = vadd.f32 %v1136, %v1939
        %v1941 = vpop.f32.mrb[0].mxu0
        %v1942 = vadd.f32 %v1132, %v1941
        %v1943 = vpop.f32.mrb[0].mxu0
        %v1944 = vadd.f32 %v1136, %v1943
        %1945 = vmatprep.mubr.bf16.mxu0 0
        %1946 = vmatmul.mubr.bf16.gmra.mrb[0].mxu0 %v1426
        %v1947 = vpop.f32.mrb[0].mxu0
        %v1948 = vadd.f32 %v1132, %v1947
        %v1949 = vpop.f32.mrb[0].mxu0
        %v1950 = vadd.f32 %v1136, %v1949
        %v1951 = vpop.f32.mrb[0].mxu0
        %v1952 = vadd.f32 %v1132, %v1951
        %v1953 = vpop.f32.mrb[0].mxu0
        %v1954 = vadd.f32 %v1136, %v1953
        %1955 = vmatprep.mubr.bf16.mxu0 0
        %1956 = vmatmul.mubr.bf16.gmra.mrb[0].mxu0 %v1427
        %v1957 = vpop.f32.mrb[0].mxu0
        %v1958 = vadd.f32 %v1132, %v1957
        %v1959 = vpop.f32.mrb[0].mxu0
        %v1960 = vadd.f32 %v1136, %v1959
        %v1961 = vpop.f32.mrb[0].mxu0
        %v1962 = vadd.f32 %v1132, %v1961
        %v1963 = vpop.f32.mrb[0].mxu0
        %v1964 = vadd.f32 %v1136, %v1963
        %1965 = vmatprep.mubr.bf16.mxu0 0
        %1966 = vmatmul.mubr.bf16.gmra.mrb[0].mxu0 %v1428
        %v1967 = vpop.f32.mrb[0].mxu0
        %v1968 = vadd.f32 %v1132, %v1967
        %v1969 = vpop.f32.mrb[0].mxu0
        %v1970 = vadd.f32 %v1136, %v1969
        %v1971 = vpop.f32.mrb[0].mxu0
        %v1972 = vadd.f32 %v1132, %v1971
        %v1973 = vpop.f32.mrb[0].mxu0
        %v1974 = vadd.f32 %v1136, %v1973
        %1975 = vmatprep.mubr.bf16.mxu0 0
        %1976 = vmatmul.mubr.bf16.gmra.mrb[0].mxu0 %v1429
        %v1977 = vpop.f32.mrb[0].mxu0
        %v1978 = vadd.f32 %v1132, %v1977
        %v1979 = vpop.f32.mrb[0].mxu0
        %v1980 = vadd.f32 %v1136, %v1979
        %v1981 = vpop.f32.mrb[0].mxu0
        %v1982 = vadd.f32 %v1132, %v1981
        %v1983 = vpop.f32.mrb[0].mxu0
        %v1984 = vadd.f32 %v1136, %v1983
        %1985 = vmatprep.mubr.bf16.mxu0 0
        %1986 = vmatmul.mubr.bf16.gmra.mrb[0].mxu0 %v1430
        %v1987 = vpop.f32.mrb[0].mxu0
        %v1988 = vadd.f32 %v1132, %v1987
        %v1989 = vpop.f32.mrb[0].mxu0
        %v1990 = vadd.f32 %v1136, %v1989
        %v1991 = vpop.f32.mrb[0].mxu0
        %v1992 = vadd.f32 %v1132, %v1991
        %v1993 = vpop.f32.mrb[0].mxu0
        %v1994 = vadd.f32 %v1136, %v1993
        %1995 = vmatprep.mubr.bf16.mxu0 0
        %1996 = vmatmul.mubr.bf16.gmra.mrb[0].mxu0 %v1431
        %v1997 = vpop.f32.mrb[0].mxu0
        %v1998 = vadd.f32 %v1132, %v1997
        %v1999 = vpop.f32.mrb[0].mxu0
        %v2000 = vadd.f32 %v1136, %v1999
        %v2001 = vpop.f32.mrb[0].mxu0
        %v2002 = vadd.f32 %v1132, %v2001
        %v2003 = vpop.f32.mrb[0].mxu0
        %v2004 = vadd.f32 %v1136, %v2003
        %2005 = vmatprep.mubr.bf16.mxu0 0
        %2006 = vmatmul.mubr.bf16.gmra.mrb[0].mxu0 %v1432
        %v2007 = vpop.f32.mrb[0].mxu0
        %v2008 = vadd.f32 %v1132, %v2007
        %v2009 = vpop.f32.mrb[0].mxu0
        %v2010 = vadd.f32 %v1136, %v2009
        %v2011 = vpop.f32.mrb[0].mxu0
        %v2012 = vadd.f32 %v1132, %v2011
        %v2013 = vpop.f32.mrb[0].mxu0
        %v2014 = vadd.f32 %v1136, %v2013
        %2015 = vmatprep.mubr.bf16.mxu0 0
        %2016 = vmatmul.mubr.bf16.gmra.mrb[0].mxu0 %v1433
        %v2017 = vpop.f32.mrb[0].mxu0
        %v2018 = vadd.f32 %v1132, %v2017
        %v2019 = vpop.f32.mrb[0].mxu0
        %v2020 = vadd.f32 %v1136, %v2019
        %v2021 = vpop.f32.mrb[0].mxu0
        %v2022 = vadd.f32 %v1132, %v2021
        %v2023 = vpop.f32.mrb[0].mxu0
        %v2024 = vadd.f32 %v1136, %v2023
        %2025 = vmatprep.mubr.bf16.mxu0 0
        %2026 = vmatmul.mubr.bf16.gmra.mrb[0].mxu0 %v1434
        %v2027 = vpop.f32.mrb[0].mxu0
        %v2028 = vadd.f32 %v1132, %v2027
        %v2029 = vpop.f32.mrb[0].mxu0
        %v2030 = vadd.f32 %v1136, %v2029
        %v2031 = vpop.f32.mrb[0].mxu0
        %v2032 = vadd.f32 %v1132, %v2031
        %v2033 = vpop.f32.mrb[0].mxu0
        %v2034 = vadd.f32 %v1136, %v2033
        %2035 = vmatprep.mubr.bf16.mxu0 0
        %2036 = vmatmul.mubr.bf16.gmra.mrb[0].mxu0 %v1435
        %v2037 = vpop.f32.mrb[0].mxu0
        %v2038 = vadd.f32 %v1132, %v2037
        %v2039 = vpop.f32.mrb[0].mxu0
        %v2040 = vadd.f32 %v1136, %v2039
        %v2041 = vpop.f32.mrb[0].mxu0
        %v2042 = vadd.f32 %v1132, %v2041
        %v2043 = vpop.f32.mrb[0].mxu0
        %v2044 = vadd.f32 %v1136, %v2043
        %2045 = vmatprep.mubr.bf16.mxu0 0
        %2046 = vmatmul.mubr.bf16.gmra.mrb[0].mxu0 %v1436
        %v2047 = vpop.f32.mrb[0].mxu0
        %v2048 = vadd.f32 %v1132, %v2047
        %v2049 = vpop.f32.mrb[0].mxu0
        %v2050 = vadd.f32 %v1136, %v2049
        %v2051 = vpop.f32.mrb[0].mxu0
        %v2052 = vadd.f32 %v1132, %v2051
        %v2053 = vpop.f32.mrb[0].mxu0
        %v2054 = vadd.f32 %v1136, %v2053
        %2055 = vmatprep.mubr.bf16.mxu0 0
        %2056 = vmatmul.mubr.bf16.gmra.mrb[0].mxu0 %v1437
        %v2057 = vpop.f32.mrb[0].mxu0
        %v2058 = vadd.f32 %v1132, %v2057
        %v2059 = vpop.f32.mrb[0].mxu0
        %v2060 = vadd.f32 %v1136, %v2059
        %v2061 = vpop.f32.mrb[0].mxu0
        %v2062 = vadd.f32 %v1132, %v2061
        %v2063 = vpop.f32.mrb[0].mxu0
        %v2064 = vadd.f32 %v1136, %v2063
        %2065 = vmatprep.mubr.bf16.mxu0 0
        %2066 = vmatmul.mubr.bf16.gmra.mrb[0].mxu0 %v1438
        %v2067 = vpop.f32.mrb[0].mxu0
        %v2068 = vadd.f32 %v1132, %v2067
        %v2069 = vpop.f32.mrb[0].mxu0
        %v2070 = vadd.f32 %v1136, %v2069
        %v2071 = vpop.f32.mrb[0].mxu0
        %v2072 = vadd.f32 %v1132, %v2071
        %v2073 = vpop.f32.mrb[0].mxu0
        %v2074 = vadd.f32 %v1136, %v2073
        %2075 = vmatprep.mubr.bf16.mxu0 0
        %2076 = vmatmul.mubr.bf16.gmra.mrb[0].mxu0 %v1439
        %v2077 = vpop.f32.mrb[0].mxu0
        %v2078 = vadd.f32 %v1132, %v2077
        %v2079 = vpop.f32.mrb[0].mxu0
        %v2080 = vadd.f32 %v1136, %v2079
        %v2081 = vpop.f32.mrb[0].mxu0
        %v2082 = vadd.f32 %v1132, %v2081
        %v2083 = vpop.f32.mrb[0].mxu0
        %v2084 = vadd.f32 %v1136, %v2083
        %2085 = vmatprep.mubr.bf16.mxu0 0
        %2086 = vmatmul.mubr.bf16.gmra.mrb[0].mxu0 %v1440
        %v2087 = vpop.f32.mrb[0].mxu0
        %v2088 = vadd.f32 %v1132, %v2087
        %v2089 = vpop.f32.mrb[0].mxu0
        %v2090 = vadd.f32 %v1136, %v2089
        %v2091 = vpop.f32.mrb[0].mxu0
        %v2092 = vadd.f32 %v1132, %v2091
        %v2093 = vpop.f32.mrb[0].mxu0
        %v2094 = vadd.f32 %v1136, %v2093
        %2095 = vmatprep.mubr.bf16.mxu0 0
        %2096 = vmatmul.mubr.bf16.gmra.mrb[0].mxu0 %v1441
        %v2097 = vpop.f32.mrb[0].mxu0
        %v2098 = vadd.f32 %v1132, %v2097
        %v2099 = vpop.f32.mrb[0].mxu0
        %v2100 = vadd.f32 %v1136, %v2099
        %v2101 = vpop.f32.mrb[0].mxu0
        %v2102 = vadd.f32 %v1132, %v2101
        %v2103 = vpop.f32.mrb[0].mxu0
        %v2104 = vadd.f32 %v1136, %v2103
        %2105 = vmatprep.mubr.bf16.mxu0 0
        %2106 = vmatmul.mubr.bf16.gmra.mrb[0].mxu0 %v1442
        %v2107 = vpop.f32.mrb[0].mxu0
        %v2108 = vadd.f32 %v1132, %v2107
        %v2109 = vpop.f32.mrb[0].mxu0
        %v2110 = vadd.f32 %v1136, %v2109
        %v2111 = vpop.f32.mrb[0].mxu0
        %v2112 = vadd.f32 %v1132, %v2111
        %v2113 = vpop.f32.mrb[0].mxu0
        %v2114 = vadd.f32 %v1136, %v2113
        %2115 = vmatprep.mubr.bf16.mxu0 0
        %2116 = vmatmul.mubr.bf16.gmra.mrb[0].mxu0 %v1443
        %v2117 = vpop.f32.mrb[0].mxu0
        %v2118 = vadd.f32 %v1132, %v2117
        %v2119 = vpop.f32.mrb[0].mxu0
        %v2120 = vadd.f32 %v1136, %v2119
        %v2121 = vpop.f32.mrb[0].mxu0
        %v2122 = vadd.f32 %v1132, %v2121
        %v2123 = vpop.f32.mrb[0].mxu0
        %v2124 = vadd.f32 %v1136, %v2123
        %2125 = vmatprep.mubr.bf16.mxu0 0
        %2126 = vmatmul.mubr.bf16.gmra.mrb[0].mxu0 %v1444
        %v2127 = vpop.f32.mrb[0].mxu0
        %v2128 = vadd.f32 %v1132, %v2127
        %v2129 = vpop.f32.mrb[0].mxu0
        %v2130 = vadd.f32 %v1136, %v2129
        %v2131 = vpop.f32.mrb[0].mxu0
        %v2132 = vadd.f32 %v1132, %v2131
        %v2133 = vpop.f32.mrb[0].mxu0
        %v2134 = vadd.f32 %v1136, %v2133
        %2135 = vmatprep.mubr.bf16.mxu0 0
        %2136 = vmatmul.mubr.bf16.gmra.mrb[0].mxu0 %v1445
        %v2137 = vpop.f32.mrb[0].mxu0
        %v2138 = vadd.f32 %v1132, %v2137
        %v2139 = vpop.f32.mrb[0].mxu0
        %v2140 = vadd.f32 %v1136, %v2139
        %v2141 = vpop.f32.mrb[0].mxu0
        %v2142 = vadd.f32 %v1132, %v2141
        %v2143 = vpop.f32.mrb[0].mxu0
        %v2144 = vadd.f32 %v1136, %v2143
        %2145 = vmatprep.mubr.bf16.mxu0 0
        %2146 = vmatmul.mubr.bf16.gmra.mrb[0].mxu0 %v1446
        %v2147 = vpop.f32.mrb[0].mxu0
        %v2148 = vadd.f32 %v1132, %v2147
        %v2149 = vpop.f32.mrb[0].mxu0
        %v2150 = vadd.f32 %v1136, %v2149
        %v2151 = vpop.f32.mrb[0].mxu0
        %v2152 = vadd.f32 %v1132, %v2151
        %v2153 = vpop.f32.mrb[0].mxu0
        %v2154 = vadd.f32 %v1136, %v2153
        %2155 = vmatprep.mubr.bf16.mxu0 0
        %2156 = vmatmul.mubr.bf16.gmra.mrb[0].mxu0 %v1447
        %v2157 = vpop.f32.mrb[0].mxu0
        %v2158 = vadd.f32 %v1132, %v2157
        %v2159 = vpop.f32.mrb[0].mxu0
        %v2160 = vadd.f32 %v1136, %v2159
        %v2161 = vpop.f32.mrb[0].mxu0
        %v2162 = vadd.f32 %v1132, %v2161
        %v2163 = vpop.f32.mrb[0].mxu0
        %v2164 = vadd.f32 %v1136, %v2163
        %2165 = vmatprep.mubr.bf16.mxu0 0
        %2166 = vmatmul.mubr.bf16.gmra.mrb[0].mxu0 %v1448
        %v2167 = vpop.f32.mrb[0].mxu0
        %v2168 = vadd.f32 %v1132, %v2167
        %v2169 = vpop.f32.mrb[0].mxu0
        %v2170 = vadd.f32 %v1136, %v2169
        %v2171 = vpop.f32.mrb[0].mxu0
        %v2172 = vadd.f32 %v1132, %v2171
        %v2173 = vpop.f32.mrb[0].mxu0
        %v2174 = vadd.f32 %v1136, %v2173
        %2175 = vmatprep.mubr.bf16.mxu0 0
        %2176 = vmatmul.mubr.bf16.gmra.mrb[0].mxu0 %v1449
        %v2177 = vpop.f32.mrb[0].mxu0
        %v2178 = vadd.f32 %v1132, %v2177
        %v2179 = vpop.f32.mrb[0].mxu0
        %v2180 = vadd.f32 %v1136, %v2179
        %v2181 = vpop.f32.mrb[0].mxu0
        %v2182 = vadd.f32 %v1132, %v2181
        %v2183 = vpop.f32.mrb[0].mxu0
        %v2184 = vadd.f32 %v1136, %v2183
        %2185 = vmatprep.mubr.bf16.mxu0 0
        %2186 = vmatmul.mubr.bf16.gmra.mrb[0].mxu0 %v1450
        %v2187 = vpop.f32.mrb[0].mxu0
        %v2188 = vadd.f32 %v1132, %v2187
        %v2189 = vpop.f32.mrb[0].mxu0
        %v2190 = vadd.f32 %v1136, %v2189
        %v2191 = vpop.f32.mrb[0].mxu0
        %v2192 = vadd.f32 %v1132, %v2191
        %v2193 = vpop.f32.mrb[0].mxu0
        %v2194 = vadd.f32 %v1136, %v2193
        %2195 = vmatprep.mubr.bf16.mxu0 0
        %2196 = vmatmul.mubr.bf16.gmra.mrb[0].mxu0 %v1451
        %v2197 = vpop.f32.mrb[0].mxu0
        %v2198 = vadd.f32 %v1132, %v2197
        %v2199 = vpop.f32.mrb[0].mxu0
        %v2200 = vadd.f32 %v1136, %v2199
        %v2201 = vpop.f32.mrb[0].mxu0
        %v2202 = vadd.f32 %v1132, %v2201
        %v2203 = vpop.f32.mrb[0].mxu0
        %v2204 = vadd.f32 %v1136, %v2203
        %2205 = vmatprep.mubr.bf16.mxu0 0
        %2206 = vmatmul.mubr.bf16.gmra.mrb[0].mxu0 %v1452
        %v2207 = vpop.f32.mrb[0].mxu0
        %v2208 = vadd.f32 %v1132, %v2207
        %v2209 = vpop.f32.mrb[0].mxu0
        %v2210 = vadd.f32 %v1136, %v2209
        %v2211 = vpop.f32.mrb[0].mxu0
        %v2212 = vadd.f32 %v1132, %v2211
        %v2213 = vpop.f32.mrb[0].mxu0
        %v2214 = vadd.f32 %v1136, %v2213
        %2215 = vmatprep.mubr.bf16.mxu0 0
        %2216 = vmatmul.mubr.bf16.gmra.mrb[0].mxu0 %v1453
        %v2217 = vpop.f32.mrb[0].mxu0
        %v2218 = vadd.f32 %v1132, %v2217
        %v2219 = vpop.f32.mrb[0].mxu0
        %v2220 = vadd.f32 %v1136, %v2219
        %v2221 = vpop.f32.mrb[0].mxu0
        %v2222 = vadd.f32 %v1132, %v2221
        %v2223 = vpop.f32.mrb[0].mxu0
        %v2224 = vadd.f32 %v1136, %v2223
        %2225 = vmatprep.mubr.bf16.mxu0 0
        %2226 = vmatmul.mubr.bf16.gmra.mrb[0].mxu0 %v1454
        %v2227 = vpop.f32.mrb[0].mxu0
        %v2228 = vadd.f32 %v1132, %v2227
        %v2229 = vpop.f32.mrb[0].mxu0
        %v2230 = vadd.f32 %v1136, %v2229
        %v2231 = vpop.f32.mrb[0].mxu0
        %v2232 = vadd.f32 %v1132, %v2231
        %v2233 = vpop.f32.mrb[0].mxu0
        %v2234 = vadd.f32 %v1136, %v2233
        %2235 = vmatprep.mubr.bf16.mxu0 0
        %2236 = vmatmul.mubr.bf16.gmra.mrb[0].mxu0 %v1455
        %v2237 = vpop.f32.mrb[0].mxu0
        %v2238 = vadd.f32 %v1132, %v2237
        %v2239 = vpop.f32.mrb[0].mxu0
        %v2240 = vadd.f32 %v1136, %v2239
        %v2241 = vpop.f32.mrb[0].mxu0
        %v2242 = vadd.f32 %v1132, %v2241
        %v2243 = vpop.f32.mrb[0].mxu0
        %v2244 = vadd.f32 %v1136, %v2243
        %2245 = vmatprep.mubr.bf16.mxu0 0
        %2246 = vmatmul.mubr.bf16.gmra.mrb[0].mxu0 %v1456
        %v2247 = vpop.f32.mrb[0].mxu0
        %v2248 = vadd.f32 %v1132, %v2247
        %v2249 = vpop.f32.mrb[0].mxu0
        %v2250 = vadd.f32 %v1136, %v2249
        %v2251 = vpop.f32.mrb[0].mxu0
        %v2252 = vadd.f32 %v1132, %v2251
        %v2253 = vpop.f32.mrb[0].mxu0
        %v2254 = vadd.f32 %v1136, %v2253
        %2255 = vmatprep.mubr.bf16.mxu0 0
        %2256 = vmatmul.mubr.bf16.gmra.mrb[0].mxu0 %v1457
        %v2257 = vpop.f32.mrb[0].mxu0
        %v2258 = vadd.f32 %v1132, %v2257
        %v2259 = vpop.f32.mrb[0].mxu0
        %v2260 = vadd.f32 %v1136, %v2259
        %v2261 = vpop.f32.mrb[0].mxu0
        %v2262 = vadd.f32 %v1132, %v2261
        %v2263 = vpop.f32.mrb[0].mxu0
        %v2264 = vadd.f32 %v1136, %v2263
        %2265 = vmatprep.mubr.bf16.mxu0 0
        %2266 = vmatmul.mubr.bf16.gmra.mrb[0].mxu0 %v1458
        %v2267 = vpop.f32.mrb[0].mxu0
        %v2268 = vadd.f32 %v1132, %v2267
        %v2269 = vpop.f32.mrb[0].mxu0
        %v2270 = vadd.f32 %v1136, %v2269
        %v2271 = vpop.f32.mrb[0].mxu0
        %v2272 = vadd.f32 %v1132, %v2271
        %v2273 = vpop.f32.mrb[0].mxu0
        %v2274 = vadd.f32 %v1136, %v2273
        %2275 = vdwg.mxu0
        %v2276 = vmax.f32 %v1638, 0.0
        %v2277 = vmax.f32 %v1640, 0.0
        %v2278 = vmax.f32 %v1642, 0.0
        %v2279 = vmax.f32 %v1644, 0.0
        %v2280 = vmax.f32 %v1648, 0.0
        %v2281 = vmax.f32 %v1650, 0.0
        %v2282 = vmax.f32 %v1652, 0.0
        %v2283 = vmax.f32 %v1654, 0.0
        %v2284 = vmax.f32 %v1658, 0.0
        %v2285 = vmax.f32 %v1660, 0.0
        %v2286 = vmax.f32 %v1662, 0.0
        %v2287 = vmax.f32 %v1664, 0.0
        %v2288 = vmax.f32 %v1668, 0.0
        %v2289 = vmax.f32 %v1670, 0.0
        %v2290 = vmax.f32 %v1672, 0.0
        %v2291 = vmax.f32 %v1674, 0.0
        %v2292 = vmax.f32 %v1678, 0.0
        %v2293 = vmax.f32 %v1680, 0.0
        %v2294 = vmax.f32 %v1682, 0.0
        %v2295 = vmax.f32 %v1684, 0.0
        %v2296 = vmax.f32 %v1688, 0.0
        %v2297 = vmax.f32 %v1690, 0.0
        %v2298 = vmax.f32 %v1692, 0.0
        %v2299 = vmax.f32 %v1694, 0.0
        %v2300 = vmax.f32 %v1698, 0.0
        %v2301 = vmax.f32 %v1700, 0.0
        %v2302 = vmax.f32 %v1702, 0.0
        %v2303 = vmax.f32 %v1704, 0.0
        %v2304 = vmax.f32 %v1708, 0.0
        %v2305 = vmax.f32 %v1710, 0.0
        %v2306 = vmax.f32 %v1712, 0.0
        %v2307 = vmax.f32 %v1714, 0.0
        %v2308 = vmax.f32 %v1718, 0.0
        %v2309 = vmax.f32 %v1720, 0.0
        %v2310 = vmax.f32 %v1722, 0.0
        %v2311 = vmax.f32 %v1724, 0.0
        %v2312 = vmax.f32 %v1728, 0.0
        %v2313 = vmax.f32 %v1730, 0.0
        %v2314 = vmax.f32 %v1732, 0.0
        %v2315 = vmax.f32 %v1734, 0.0
        %v2316 = vmax.f32 %v1738, 0.0
        %v2317 = vmax.f32 %v1740, 0.0
        %v2318 = vmax.f32 %v1742, 0.0
        %v2319 = vmax.f32 %v1744, 0.0
        %v2320 = vmax.f32 %v1748, 0.0
        %v2321 = vmax.f32 %v1750, 0.0
        %v2322 = vmax.f32 %v1752, 0.0
        %v2323 = vmax.f32 %v1754, 0.0
        %v2324 = vmax.f32 %v1758, 0.0
        %v2325 = vmax.f32 %v1760, 0.0
        %v2326 = vmax.f32 %v1762, 0.0
        %v2327 = vmax.f32 %v1764, 0.0
        %v2328 = vmax.f32 %v1768, 0.0
        %v2329 = vmax.f32 %v1770, 0.0
        %v2330 = vmax.f32 %v1772, 0.0
        %v2331 = vmax.f32 %v1774, 0.0
        %v2332 = vmax.f32 %v1778, 0.0
        %v2333 = vmax.f32 %v1780, 0.0
        %v2334 = vmax.f32 %v1782, 0.0
        %v2335 = vmax.f32 %v1784, 0.0
        %v2336 = vmax.f32 %v1788, 0.0
        %v2337 = vmax.f32 %v1790, 0.0
        %v2338 = vmax.f32 %v1792, 0.0
        %v2339 = vmax.f32 %v1794, 0.0
        %v2340 = vmax.f32 %v1798, 0.0
        %v2341 = vmax.f32 %v1800, 0.0
        %v2342 = vmax.f32 %v1802, 0.0
        %v2343 = vmax.f32 %v1804, 0.0
        %v2344 = vmax.f32 %v1808, 0.0
        %v2345 = vmax.f32 %v1810, 0.0
        %v2346 = vmax.f32 %v1812, 0.0
        %v2347 = vmax.f32 %v1814, 0.0
        %v2348 = vmax.f32 %v1818, 0.0
        %v2349 = vmax.f32 %v1820, 0.0
        %v2350 = vmax.f32 %v1822, 0.0
        %v2351 = vmax.f32 %v1824, 0.0
        %v2352 = vmax.f32 %v1828, 0.0
        %v2353 = vmax.f32 %v1830, 0.0
        %v2354 = vmax.f32 %v1832, 0.0
        %v2355 = vmax.f32 %v1834, 0.0
        %v2356 = vmax.f32 %v1838, 0.0
        %v2357 = vmax.f32 %v1840, 0.0
        %v2358 = vmax.f32 %v1842, 0.0
        %v2359 = vmax.f32 %v1844, 0.0
        %v2360 = vmax.f32 %v1848, 0.0
        %v2361 = vmax.f32 %v1850, 0.0
        %v2362 = vmax.f32 %v1852, 0.0
        %v2363 = vmax.f32 %v1854, 0.0
        %v2364 = vmax.f32 %v1858, 0.0
        %v2365 = vmax.f32 %v1860, 0.0
        %v2366 = vmax.f32 %v1862, 0.0
        %v2367 = vmax.f32 %v1864, 0.0
        %v2368 = vmax.f32 %v1868, 0.0
        %v2369 = vmax.f32 %v1870, 0.0
        %v2370 = vmax.f32 %v1872, 0.0
        %v2371 = vmax.f32 %v1874, 0.0
        %v2372 = vmax.f32 %v1878, 0.0
        %v2373 = vmax.f32 %v1880, 0.0
        %v2374 = vmax.f32 %v1882, 0.0
        %v2375 = vmax.f32 %v1884, 0.0
        %v2376 = vmax.f32 %v1888, 0.0
        %v2377 = vmax.f32 %v1890, 0.0
        %v2378 = vmax.f32 %v1892, 0.0
        %v2379 = vmax.f32 %v1894, 0.0
        %v2380 = vmax.f32 %v1898, 0.0
        %v2381 = vmax.f32 %v1900, 0.0
        %v2382 = vmax.f32 %v1902, 0.0
        %v2383 = vmax.f32 %v1904, 0.0
        %v2384 = vmax.f32 %v1908, 0.0
        %v2385 = vmax.f32 %v1910, 0.0
        %v2386 = vmax.f32 %v1912, 0.0
        %v2387 = vmax.f32 %v1914, 0.0
        %v2388 = vmax.f32 %v1918, 0.0
        %v2389 = vmax.f32 %v1920, 0.0
        %v2390 = vmax.f32 %v1922, 0.0
        %v2391 = vmax.f32 %v1924, 0.0
        %v2392 = vmax.f32 %v1928, 0.0
        %v2393 = vmax.f32 %v1930, 0.0
        %v2394 = vmax.f32 %v1932, 0.0
        %v2395 = vmax.f32 %v1934, 0.0
        %v2396 = vmax.f32 %v1938, 0.0
        %v2397 = vmax.f32 %v1940, 0.0
        %v2398 = vmax.f32 %v1942, 0.0
        %v2399 = vmax.f32 %v1944, 0.0
        %v2400 = vmax.f32 %v1948, 0.0
        %v2401 = vmax.f32 %v1950, 0.0
        %v2402 = vmax.f32 %v1952, 0.0
        %v2403 = vmax.f32 %v1954, 0.0
        %v2404 = vmax.f32 %v1958, 0.0
        %v2405 = vmax.f32 %v1960, 0.0
        %v2406 = vmax.f32 %v1962, 0.0
        %v2407 = vmax.f32 %v1964, 0.0
        %v2408 = vmax.f32 %v1968, 0.0
        %v2409 = vmax.f32 %v1970, 0.0
        %v2410 = vmax.f32 %v1972, 0.0
        %v2411 = vmax.f32 %v1974, 0.0
        %v2412 = vmax.f32 %v1978, 0.0
        %v2413 = vmax.f32 %v1980, 0.0
        %v2414 = vmax.f32 %v1982, 0.0
        %v2415 = vmax.f32 %v1984, 0.0
        %v2416 = vmax.f32 %v1988, 0.0
        %v2417 = vmax.f32 %v1990, 0.0
        %v2418 = vmax.f32 %v1992, 0.0
        %v2419 = vmax.f32 %v1994, 0.0
        %v2420 = vmax.f32 %v1998, 0.0
        %v2421 = vmax.f32 %v2000, 0.0
        %v2422 = vmax.f32 %v2002, 0.0
        %v2423 = vmax.f32 %v2004, 0.0
        %v2424 = vmax.f32 %v2008, 0.0
        %v2425 = vmax.f32 %v2010, 0.0
        %v2426 = vmax.f32 %v2012, 0.0
        %v2427 = vmax.f32 %v2014, 0.0
        %v2428 = vmax.f32 %v2018, 0.0
        %v2429 = vmax.f32 %v2020, 0.0
        %v2430 = vmax.f32 %v2022, 0.0
        %v2431 = vmax.f32 %v2024, 0.0
        %v2432 = vmax.f32 %v2028, 0.0
        %v2433 = vmax.f32 %v2030, 0.0
        %v2434 = vmax.f32 %v2032, 0.0
        %v2435 = vmax.f32 %v2034, 0.0
        %v2436 = vmax.f32 %v2038, 0.0
        %v2437 = vmax.f32 %v2040, 0.0
        %v2438 = vmax.f32 %v2042, 0.0
        %v2439 = vmax.f32 %v2044, 0.0
        %v2440 = vmax.f32 %v2048, 0.0
        %v2441 = vmax.f32 %v2050, 0.0
        %v2442 = vmax.f32 %v2052, 0.0
        %v2443 = vmax.f32 %v2054, 0.0
        %v2444 = vmax.f32 %v2058, 0.0
        %v2445 = vmax.f32 %v2060, 0.0
        %v2446 = vmax.f32 %v2062, 0.0
        %v2447 = vmax.f32 %v2064, 0.0
        %v2448 = vmax.f32 %v2068, 0.0
        %v2449 = vmax.f32 %v2070, 0.0
        %v2450 = vmax.f32 %v2072, 0.0
        %v2451 = vmax.f32 %v2074, 0.0
        %v2452 = vmax.f32 %v2078, 0.0
        %v2453 = vmax.f32 %v2080, 0.0
        %v2454 = vmax.f32 %v2082, 0.0
        %v2455 = vmax.f32 %v2084, 0.0
        %v2456 = vmax.f32 %v2088, 0.0
        %v2457 = vmax.f32 %v2090, 0.0
        %v2458 = vmax.f32 %v2092, 0.0
        %v2459 = vmax.f32 %v2094, 0.0
        %v2460 = vmax.f32 %v2098, 0.0
        %v2461 = vmax.f32 %v2100, 0.0
        %v2462 = vmax.f32 %v2102, 0.0
        %v2463 = vmax.f32 %v2104, 0.0
        %v2464 = vmax.f32 %v2108, 0.0
        %v2465 = vmax.f32 %v2110, 0.0
        %v2466 = vmax.f32 %v2112, 0.0
        %v2467 = vmax.f32 %v2114, 0.0
        %v2468 = vmax.f32 %v2118, 0.0
        %v2469 = vmax.f32 %v2120, 0.0
        %v2470 = vmax.f32 %v2122, 0.0
        %v2471 = vmax.f32 %v2124, 0.0
        %v2472 = vmax.f32 %v2128, 0.0
        %v2473 = vmax.f32 %v2130, 0.0
        %v2474 = vmax.f32 %v2132, 0.0
        %v2475 = vmax.f32 %v2134, 0.0
        %v2476 = vmax.f32 %v2138, 0.0
        %v2477 = vmax.f32 %v2140, 0.0
        %v2478 = vmax.f32 %v2142, 0.0
        %v2479 = vmax.f32 %v2144, 0.0
        %v2480 = vmax.f32 %v2148, 0.0
        %v2481 = vmax.f32 %v2150, 0.0
        %v2482 = vmax.f32 %v2152, 0.0
        %v2483 = vmax.f32 %v2154, 0.0
        %v2484 = vmax.f32 %v2158, 0.0
        %v2485 = vmax.f32 %v2160, 0.0
        %v2486 = vmax.f32 %v2162, 0.0
        %v2487 = vmax.f32 %v2164, 0.0
        %v2488 = vmax.f32 %v2168, 0.0
        %v2489 = vmax.f32 %v2170, 0.0
        %v2490 = vmax.f32 %v2172, 0.0
        %v2491 = vmax.f32 %v2174, 0.0
        %v2492 = vmax.f32 %v2178, 0.0
        %v2493 = vmax.f32 %v2180, 0.0
        %v2494 = vmax.f32 %v2182, 0.0
        %v2495 = vmax.f32 %v2184, 0.0
        %v2496 = vmax.f32 %v2188, 0.0
        %v2497 = vmax.f32 %v2190, 0.0
        %v2498 = vmax.f32 %v2192, 0.0
        %v2499 = vmax.f32 %v2194, 0.0
        %v2500 = vmax.f32 %v2198, 0.0
        %v2501 = vmax.f32 %v2200, 0.0
        %v2502 = vmax.f32 %v2202, 0.0
        %v2503 = vmax.f32 %v2204, 0.0
        %v2504 = vmax.f32 %v2208, 0.0
        %v2505 = vmax.f32 %v2210, 0.0
        %v2506 = vmax.f32 %v2212, 0.0
        %v2507 = vmax.f32 %v2214, 0.0
        %v2508 = vmax.f32 %v2218, 0.0
        %v2509 = vmax.f32 %v2220, 0.0
        %v2510 = vmax.f32 %v2222, 0.0
        %v2511 = vmax.f32 %v2224, 0.0
        %v2512 = vmax.f32 %v2228, 0.0
        %v2513 = vmax.f32 %v2230, 0.0
        %v2514 = vmax.f32 %v2232, 0.0
        %v2515 = vmax.f32 %v2234, 0.0
        %v2516 = vmax.f32 %v2238, 0.0
        %v2517 = vmax.f32 %v2240, 0.0
        %v2518 = vmax.f32 %v2242, 0.0
        %v2519 = vmax.f32 %v2244, 0.0
        %v2520 = vmax.f32 %v2248, 0.0
        %v2521 = vmax.f32 %v2250, 0.0
        %v2522 = vmax.f32 %v2252, 0.0
        %v2523 = vmax.f32 %v2254, 0.0
        %v2524 = vmax.f32 %v2258, 0.0
        %v2525 = vmax.f32 %v2260, 0.0
        %v2526 = vmax.f32 %v2262, 0.0
        %v2527 = vmax.f32 %v2264, 0.0
        %v2528 = vmax.f32 %v2268, 0.0
        %v2529 = vmax.f32 %v2270, 0.0
        %v2530 = vmax.f32 %v2272, 0.0
        %v2531 = vmax.f32 %v2274, 0.0
        %v2532 = vld [vmem:[#allocation2] sm:$0xff]
        %v2533 = vld [vmem:[#allocation2 + $0x8] sm:$0xff]
        %v2534 = vadd.f32 %v2276, %v2278
        %v2535 = vadd.f32 %v2534, %v2280
        %v2536 = vadd.f32 %v2535, %v2282
        %v2537 = vadd.f32 %v2536, %v2284
        %v2538 = vadd.f32 %v2537, %v2286
        %v2539 = vadd.f32 %v2538, %v2288
        %v2540 = vadd.f32 %v2539, %v2290
        %v2541 = vadd.f32 %v2540, %v2292
        %v2542 = vadd.f32 %v2541, %v2294
        %v2543 = vadd.f32 %v2542, %v2296
        %v2544 = vadd.f32 %v2543, %v2298
        %v2545 = vadd.f32 %v2544, %v2300
        %v2546 = vadd.f32 %v2545, %v2302
        %v2547 = vadd.f32 %v2546, %v2304
        %v2548 = vadd.f32 %v2547, %v2306
        %v2549 = vrot.slane %v2548, 4
        %v2550 = vadd.f32 %v2548, %v2549
        %v2551 = vrot.slane %v2550, 2
        %v2552 = vadd.f32 %v2550, %v2551
        %v2553 = vrot.slane %v2552, 1
        %v2554 = vadd.f32 %v2552, %v2553
        %v2555 = vadd.f32 %v2277, %v2279
        %v2556 = vadd.f32 %v2555, %v2281
        %v2557 = vadd.f32 %v2556, %v2283
        %v2558 = vadd.f32 %v2557, %v2285
        %v2559 = vadd.f32 %v2558, %v2287
        %v2560 = vadd.f32 %v2559, %v2289
        %v2561 = vadd.f32 %v2560, %v2291
        %v2562 = vadd.f32 %v2561, %v2293
        %v2563 = vadd.f32 %v2562, %v2295
        %v2564 = vadd.f32 %v2563, %v2297
        %v2565 = vadd.f32 %v2564, %v2299
        %v2566 = vadd.f32 %v2565, %v2301
        %v2567 = vadd.f32 %v2566, %v2303
        %v2568 = vadd.f32 %v2567, %v2305
        %v2569 = vadd.f32 %v2568, %v2307
        %v2570 = vrot.slane %v2569, 4
        %v2571 = vadd.f32 %v2569, %v2570
        %v2572 = vrot.slane %v2571, 2
        %v2573 = vadd.f32 %v2571, %v2572
        %v2574 = vrot.slane %v2573, 1
        %v2575 = vadd.f32 %v2573, %v2574
        %v2576 = vadd.f32 %v2308, %v2310
        %v2577 = vadd.f32 %v2576, %v2312
        %v2578 = vadd.f32 %v2577, %v2314
        %v2579 = vadd.f32 %v2578, %v2316
        %v2580 = vadd.f32 %v2579, %v2318
        %v2581 = vadd.f32 %v2580, %v2320
        %v2582 = vadd.f32 %v2581, %v2322
        %v2583 = vadd.f32 %v2582, %v2324
        %v2584 = vadd.f32 %v2583, %v2326
        %v2585 = vadd.f32 %v2584, %v2328
        %v2586 = vadd.f32 %v2585, %v2330
        %v2587 = vadd.f32 %v2586, %v2332
        %v2588 = vadd.f32 %v2587, %v2334
        %v2589 = vadd.f32 %v2588, %v2336
        %v2590 = vadd.f32 %v2589, %v2338
        %v2591 = vrot.slane %v2590, 4
        %v2592 = vadd.f32 %v2590, %v2591
        %v2593 = vrot.slane %v2592, 2
        %v2594 = vadd.f32 %v2592, %v2593
        %v2595 = vrot.slane %v2594, 1
        %v2596 = vadd.f32 %v2594, %v2595
        %v2597 = vadd.f32 %v2309, %v2311
        %v2598 = vadd.f32 %v2597, %v2313
        %v2599 = vadd.f32 %v2598, %v2315
        %v2600 = vadd.f32 %v2599, %v2317
        %v2601 = vadd.f32 %v2600, %v2319
        %v2602 = vadd.f32 %v2601, %v2321
        %v2603 = vadd.f32 %v2602, %v2323
        %v2604 = vadd.f32 %v2603, %v2325
        %v2605 = vadd.f32 %v2604, %v2327
        %v2606 = vadd.f32 %v2605, %v2329
        %v2607 = vadd.f32 %v2606, %v2331
        %v2608 = vadd.f32 %v2607, %v2333
        %v2609 = vadd.f32 %v2608, %v2335
        %v2610 = vadd.f32 %v2609, %v2337
        %v2611 = vadd.f32 %v2610, %v2339
        %v2612 = vrot.slane %v2611, 4
        %v2613 = vadd.f32 %v2611, %v2612
        %v2614 = vrot.slane %v2613, 2
        %v2615 = vadd.f32 %v2613, %v2614
        %v2616 = vrot.slane %v2615, 1
        %v2617 = vadd.f32 %v2615, %v2616
        %v2618 = vadd.f32 %v2340, %v2342
        %v2619 = vadd.f32 %v2618, %v2344
        %v2620 = vadd.f32 %v2619, %v2346
        %v2621 = vadd.f32 %v2620, %v2348
        %v2622 = vadd.f32 %v2621, %v2350
        %v2623 = vadd.f32 %v2622, %v2352
        %v2624 = vadd.f32 %v2623, %v2354
        %v2625 = vadd.f32 %v2624, %v2356
        %v2626 = vadd.f32 %v2625, %v2358
        %v2627 = vadd.f32 %v2626, %v2360
        %v2628 = vadd.f32 %v2627, %v2362
        %v2629 = vadd.f32 %v2628, %v2364
        %v2630 = vadd.f32 %v2629, %v2366
        %v2631 = vadd.f32 %v2630, %v2368
        %v2632 = vadd.f32 %v2631, %v2370
        %v2633 = vrot.slane %v2632, 4
        %v2634 = vadd.f32 %v2632, %v2633
        %v2635 = vrot.slane %v2634, 2
        %v2636 = vadd.f32 %v2634, %v2635
        %v2637 = vrot.slane %v2636, 1
        %v2638 = vadd.f32 %v2636, %v2637
        %v2639 = vadd.f32 %v2341, %v2343
        %v2640 = vadd.f32 %v2639, %v2345
        %v2641 = vadd.f32 %v2640, %v2347
        %v2642 = vadd.f32 %v2641, %v2349
        %v2643 = vadd.f32 %v2642, %v2351
        %v2644 = vadd.f32 %v2643, %v2353
        %v2645 = vadd.f32 %v2644, %v2355
        %v2646 = vadd.f32 %v2645, %v2357
        %v2647 = vadd.f32 %v2646, %v2359
        %v2648 = vadd.f32 %v2647, %v2361
        %v2649 = vadd.f32 %v2648, %v2363
        %v2650 = vadd.f32 %v2649, %v2365
        %v2651 = vadd.f32 %v2650, %v2367
        %v2652 = vadd.f32 %v2651, %v2369
        %v2653 = vadd.f32 %v2652, %v2371
        %v2654 = vrot.slane %v2653, 4
        %v2655 = vadd.f32 %v2653, %v2654
        %v2656 = vrot.slane %v2655, 2
        %v2657 = vadd.f32 %v2655, %v2656
        %v2658 = vrot.slane %v2657, 1
        %v2659 = vadd.f32 %v2657, %v2658
        %v2660 = vadd.f32 %v2372, %v2374
        %v2661 = vadd.f32 %v2660, %v2376
        %v2662 = vadd.f32 %v2661, %v2378
        %v2663 = vadd.f32 %v2662, %v2380
        %v2664 = vadd.f32 %v2663, %v2382
        %v2665 = vadd.f32 %v2664, %v2384
        %v2666 = vadd.f32 %v2665, %v2386
        %v2667 = vadd.f32 %v2666, %v2388
        %v2668 = vadd.f32 %v2667, %v2390
        %v2669 = vadd.f32 %v2668, %v2392
        %v2670 = vadd.f32 %v2669, %v2394
        %v2671 = vadd.f32 %v2670, %v2396
        %v2672 = vadd.f32 %v2671, %v2398
        %v2673 = vadd.f32 %v2672, %v2400
        %v2674 = vadd.f32 %v2673, %v2402
        %v2675 = vrot.slane %v2674, 4
        %v2676 = vadd.f32 %v2674, %v2675
        %v2677 = vrot.slane %v2676, 2
        %v2678 = vadd.f32 %v2676, %v2677
        %v2679 = vrot.slane %v2678, 1
        %v2680 = vadd.f32 %v2678, %v2679
        %v2681 = vadd.f32 %v2373, %v2375
        %v2682 = vadd.f32 %v2681, %v2377
        %v2683 = vadd.f32 %v2682, %v2379
        %v2684 = vadd.f32 %v2683, %v2381
        %v2685 = vadd.f32 %v2684, %v2383
        %v2686 = vadd.f32 %v2685, %v2385
        %v2687 = vadd.f32 %v2686, %v2387
        %v2688 = vadd.f32 %v2687, %v2389
        %v2689 = vadd.f32 %v2688, %v2391
        %v2690 = vadd.f32 %v2689, %v2393
        %v2691 = vadd.f32 %v2690, %v2395
        %v2692 = vadd.f32 %v2691, %v2397
        %v2693 = vadd.f32 %v2692, %v2399
        %v2694 = vadd.f32 %v2693, %v2401
        %v2695 = vadd.f32 %v2694, %v2403
        %v2696 = vrot.slane %v2695, 4
        %v2697 = vadd.f32 %v2695, %v2696
        %v2698 = vrot.slane %v2697, 2
        %v2699 = vadd.f32 %v2697, %v2698
        %v2700 = vrot.slane %v2699, 1
        %v2701 = vadd.f32 %v2699, %v2700
        %v2702 = vadd.f32 %v2404, %v2406
        %v2703 = vadd.f32 %v2702, %v2408
        %v2704 = vadd.f32 %v2703, %v2410
        %v2705 = vadd.f32 %v2704, %v2412
        %v2706 = vadd.f32 %v2705, %v2414
        %v2707 = vadd.f32 %v2706, %v2416
        %v2708 = vadd.f32 %v2707, %v2418
        %v2709 = vadd.f32 %v2708, %v2420
        %v2710 = vadd.f32 %v2709, %v2422
        %v2711 = vadd.f32 %v2710, %v2424
        %v2712 = vadd.f32 %v2711, %v2426
        %v2713 = vadd.f32 %v2712, %v2428
        %v2714 = vadd.f32 %v2713, %v2430
        %v2715 = vadd.f32 %v2714, %v2432
        %v2716 = vadd.f32 %v2715, %v2434
        %v2717 = vrot.slane %v2716, 4
        %v2718 = vadd.f32 %v2716, %v2717
        %v2719 = vrot.slane %v2718, 2
        %v2720 = vadd.f32 %v2718, %v2719
        %v2721 = vrot.slane %v2720, 1
        %v2722 = vadd.f32 %v2720, %v2721
        %v2723 = vadd.f32 %v2405, %v2407
        %v2724 = vadd.f32 %v2723, %v2409
        %v2725 = vadd.f32 %v2724, %v2411
        %v2726 = vadd.f32 %v2725, %v2413
        %v2727 = vadd.f32 %v2726, %v2415
        %v2728 = vadd.f32 %v2727, %v2417
        %v2729 = vadd.f32 %v2728, %v2419
        %v2730 = vadd.f32 %v2729, %v2421
        %v2731 = vadd.f32 %v2730, %v2423
        %v2732 = vadd.f32 %v2731, %v2425
        %v2733 = vadd.f32 %v2732, %v2427
        %v2734 = vadd.f32 %v2733, %v2429
        %v2735 = vadd.f32 %v2734, %v2431
        %v2736 = vadd.f32 %v2735, %v2433
        %v2737 = vadd.f32 %v2736, %v2435
        %v2738 = vrot.slane %v2737, 4
        %v2739 = vadd.f32 %v2737, %v2738
        %v2740 = vrot.slane %v2739, 2
        %v2741 = vadd.f32 %v2739, %v2740
        %v2742 = vrot.slane %v2741, 1
        %v2743 = vadd.f32 %v2741, %v2742
        %v2744 = vadd.f32 %v2436, %v2438
        %v2745 = vadd.f32 %v2744, %v2440
        %v2746 = vadd.f32 %v2745, %v2442
        %v2747 = vadd.f32 %v2746, %v2444
        %v2748 = vadd.f32 %v2747, %v2446
        %v2749 = vadd.f32 %v2748, %v2448
        %v2750 = vadd.f32 %v2749, %v2450
        %v2751 = vadd.f32 %v2750, %v2452
        %v2752 = vadd.f32 %v2751, %v2454
        %v2753 = vadd.f32 %v2752, %v2456
        %v2754 = vadd.f32 %v2753, %v2458
        %v2755 = vadd.f32 %v2754, %v2460
        %v2756 = vadd.f32 %v2755, %v2462
        %v2757 = vadd.f32 %v2756, %v2464
        %v2758 = vadd.f32 %v2757, %v2466
        %v2759 = vrot.slane %v2758, 4
        %v2760 = vadd.f32 %v2758, %v2759
        %v2761 = vrot.slane %v2760, 2
        %v2762 = vadd.f32 %v2760, %v2761
        %v2763 = vrot.slane %v2762, 1
        %v2764 = vadd.f32 %v2762, %v2763
        %v2765 = vadd.f32 %v2437, %v2439
        %v2766 = vadd.f32 %v2765, %v2441
        %v2767 = vadd.f32 %v2766, %v2443
        %v2768 = vadd.f32 %v2767, %v2445
        %v2769 = vadd.f32 %v2768, %v2447
        %v2770 = vadd.f32 %v2769, %v2449
        %v2771 = vadd.f32 %v2770, %v2451
        %v2772 = vadd.f32 %v2771, %v2453
        %v2773 = vadd.f32 %v2772, %v2455
        %v2774 = vadd.f32 %v2773, %v2457
        %v2775 = vadd.f32 %v2774, %v2459
        %v2776 = vadd.f32 %v2775, %v2461
        %v2777 = vadd.f32 %v2776, %v2463
        %v2778 = vadd.f32 %v2777, %v2465
        %v2779 = vadd.f32 %v2778, %v2467
        %v2780 = vrot.slane %v2779, 4
        %v2781 = vadd.f32 %v2779, %v2780
        %v2782 = vrot.slane %v2781, 2
        %v2783 = vadd.f32 %v2781, %v2782
        %v2784 = vrot.slane %v2783, 1
        %v2785 = vadd.f32 %v2783, %v2784
        %v2786 = vadd.f32 %v2468, %v2470
        %v2787 = vadd.f32 %v2786, %v2472
        %v2788 = vadd.f32 %v2787, %v2474
        %v2789 = vadd.f32 %v2788, %v2476
        %v2790 = vadd.f32 %v2789, %v2478
        %v2791 = vadd.f32 %v2790, %v2480
        %v2792 = vadd.f32 %v2791, %v2482
        %v2793 = vadd.f32 %v2792, %v2484
        %v2794 = vadd.f32 %v2793, %v2486
        %v2795 = vadd.f32 %v2794, %v2488
        %v2796 = vadd.f32 %v2795, %v2490
        %v2797 = vadd.f32 %v2796, %v2492
        %v2798 = vadd.f32 %v2797, %v2494
        %v2799 = vadd.f32 %v2798, %v2496
        %v2800 = vadd.f32 %v2799, %v2498
        %v2801 = vrot.slane %v2800, 4
        %v2802 = vadd.f32 %v2800, %v2801
        %v2803 = vrot.slane %v2802, 2
        %v2804 = vadd.f32 %v2802, %v2803
        %v2805 = vrot.slane %v2804, 1
        %v2806 = vadd.f32 %v2804, %v2805
        %v2807 = vadd.f32 %v2469, %v2471
        %v2808 = vadd.f32 %v2807, %v2473
        %v2809 = vadd.f32 %v2808, %v2475
        %v2810 = vadd.f32 %v2809, %v2477
        %v2811 = vadd.f32 %v2810, %v2479
        %v2812 = vadd.f32 %v2811, %v2481
        %v2813 = vadd.f32 %v2812, %v2483
        %v2814 = vadd.f32 %v2813, %v2485
        %v2815 = vadd.f32 %v2814, %v2487
        %v2816 = vadd.f32 %v2815, %v2489
        %v2817 = vadd.f32 %v2816, %v2491
        %v2818 = vadd.f32 %v2817, %v2493
        %v2819 = vadd.f32 %v2818, %v2495
        %v2820 = vadd.f32 %v2819, %v2497
        %v2821 = vadd.f32 %v2820, %v2499
        %v2822 = vrot.slane %v2821, 4
        %v2823 = vadd.f32 %v2821, %v2822
        %v2824 = vrot.slane %v2823, 2
        %v2825 = vadd.f32 %v2823, %v2824
        %v2826 = vrot.slane %v2825, 1
        %v2827 = vadd.f32 %v2825, %v2826
        %v2828 = vadd.f32 %v2500, %v2502
        %v2829 = vadd.f32 %v2828, %v2504
        %v2830 = vadd.f32 %v2829, %v2506
        %v2831 = vadd.f32 %v2830, %v2508
        %v2832 = vadd.f32 %v2831, %v2510
        %v2833 = vadd.f32 %v2832, %v2512
        %v2834 = vadd.f32 %v2833, %v2514
        %v2835 = vadd.f32 %v2834, %v2516
        %v2836 = vadd.f32 %v2835, %v2518
        %v2837 = vadd.f32 %v2836, %v2520
        %v2838 = vadd.f32 %v2837, %v2522
        %v2839 = vadd.f32 %v2838, %v2524
        %v2840 = vadd.f32 %v2839, %v2526
        %v2841 = vadd.f32 %v2840, %v2528
        %v2842 = vadd.f32 %v2841, %v2530
        %v2843 = vrot.slane %v2842, 4
        %v2844 = vadd.f32 %v2842, %v2843
        %v2845 = vrot.slane %v2844, 2
        %v2846 = vadd.f32 %v2844, %v2845
        %v2847 = vrot.slane %v2846, 1
        %v2848 = vadd.f32 %v2846, %v2847
        %v2849 = vadd.f32 %v2501, %v2503
        %v2850 = vadd.f32 %v2849, %v2505
        %v2851 = vadd.f32 %v2850, %v2507
        %v2852 = vadd.f32 %v2851, %v2509
        %v2853 = vadd.f32 %v2852, %v2511
        %v2854 = vadd.f32 %v2853, %v2513
        %v2855 = vadd.f32 %v2854, %v2515
        %v2856 = vadd.f32 %v2855, %v2517
        %v2857 = vadd.f32 %v2856, %v2519
        %v2858 = vadd.f32 %v2857, %v2521
        %v2859 = vadd.f32 %v2858, %v2523
        %v2860 = vadd.f32 %v2859, %v2525
        %v2861 = vadd.f32 %v2860, %v2527
        %v2862 = vadd.f32 %v2861, %v2529
        %v2863 = vadd.f32 %v2862, %v2531
        %v2864 = vrot.slane %v2863, 4
        %v2865 = vadd.f32 %v2863, %v2864
        %v2866 = vrot.slane %v2865, 2
        %v2867 = vadd.f32 %v2865, %v2866
        %v2868 = vrot.slane %v2867, 1
        %v2869 = vadd.f32 %v2867, %v2868
        %vm2886 = vcmask 1041409
        %v2887 = vsel %vm2886, %v2596, %v2554
        %vm2888 = vcmask 1042434
        %v2889 = vsel %vm2888, %v2638, %v2887
        %vm2890 = vcmask 1043459
        %v2891 = vsel %vm2890, %v2680, %v2889
        %vm2892 = vcmask 1044484
        %v2893 = vsel %vm2892, %v2722, %v2891
        %vm2894 = vcmask 1045509
        %v2895 = vsel %vm2894, %v2764, %v2893
        %vm2896 = vcmask 1046534
        %v2897 = vsel %vm2896, %v2806, %v2895
        %vm2898 = vcmask 1047559
        %v2899 = vsel %vm2898, %v2848, %v2897
        %v2900 = vsel %vm2886, %v2617, %v2575
        %v2901 = vsel %vm2888, %v2659, %v2900
        %v2902 = vsel %vm2890, %v2701, %v2901
        %v2903 = vsel %vm2892, %v2743, %v2902
        %v2904 = vsel %vm2894, %v2785, %v2903
        %v2905 = vsel %vm2896, %v2827, %v2904
        %v2906 = vsel %vm2898, %v2869, %v2905
        %v2909 = vadd.f32 %v2532, %v2899
        %v2910 = vadd.f32 %v2533, %v2906
        %2911 = vst [vmem:[#allocation2] sm:$0xff] %v2909
        %2912 = vst [vmem:[#allocation2 + $0x8] sm:$0xff] %v2910
        %v2913 = vld [vmem:[#allocation3] sm:$0xff]
        %v2914 = vunpack.c.l.bf16 %v983
        %v2915 = vunpack.c.l.bf16 %v984
        %v2916 = vunpack.c.l.bf16 %v985
        %v2917 = vunpack.c.l.bf16 %v986
        %v2918 = vunpack.c.l.bf16 %v987
        %v2919 = vunpack.c.l.bf16 %v988
        %v2920 = vunpack.c.l.bf16 %v989
        %v2921 = vunpack.c.l.bf16 %v990
        %v2922 = vunpack.c.l.bf16 %v991
        %v2923 = vunpack.c.l.bf16 %v992
        %v2924 = vunpack.c.l.bf16 %v993
        %v2925 = vunpack.c.l.bf16 %v994
        %v2926 = vunpack.c.l.bf16 %v995
        %v2927 = vunpack.c.l.bf16 %v996
        %v2928 = vunpack.c.l.bf16 %v997
        %v2929 = vunpack.c.l.bf16 %v998
        %v2930 = vunpack.c.l.bf16 %v999
        %v2931 = vunpack.c.l.bf16 %v1000
        %v2932 = vunpack.c.l.bf16 %v1001
        %v2933 = vunpack.c.l.bf16 %v1002
        %v2934 = vunpack.c.l.bf16 %v1003
        %v2935 = vunpack.c.l.bf16 %v1004
        %v2936 = vunpack.c.l.bf16 %v1005
        %v2937 = vunpack.c.l.bf16 %v1006
        %v2938 = vunpack.c.l.bf16 %v1007
        %v2939 = vunpack.c.l.bf16 %v1008
        %v2940 = vunpack.c.l.bf16 %v1009
        %v2941 = vunpack.c.l.bf16 %v1010
        %v2942 = vunpack.c.l.bf16 %v1011
        %v2943 = vunpack.c.l.bf16 %v1012
        %v2944 = vunpack.c.l.bf16 %v1013
        %v2945 = vunpack.c.l.bf16 %v1014
        %v2946 = vunpack.c.l.bf16 %v1015
        %v2947 = vunpack.c.l.bf16 %v1016
        %v2948 = vunpack.c.l.bf16 %v1017
        %v2949 = vunpack.c.l.bf16 %v1018
        %v2950 = vunpack.c.l.bf16 %v1019
        %v2951 = vunpack.c.l.bf16 %v1020
        %v2952 = vunpack.c.l.bf16 %v1021
        %v2953 = vunpack.c.l.bf16 %v1022
        %v2954 = vunpack.c.l.bf16 %v1023
        %v2955 = vunpack.c.l.bf16 %v1024
        %v2956 = vunpack.c.l.bf16 %v1025
        %v2957 = vunpack.c.l.bf16 %v1026
        %v2958 = vunpack.c.l.bf16 %v1027
        %v2959 = vunpack.c.l.bf16 %v1028
        %v2960 = vunpack.c.l.bf16 %v1029
        %v2961 = vunpack.c.l.bf16 %v1030
        %v2962 = vunpack.c.l.bf16 %v1031
        %v2963 = vunpack.c.l.bf16 %v1032
        %v2964 = vunpack.c.l.bf16 %v1033
        %v2965 = vunpack.c.l.bf16 %v1034
        %v2966 = vunpack.c.l.bf16 %v1035
        %v2967 = vunpack.c.l.bf16 %v1036
        %v2968 = vunpack.c.l.bf16 %v1037
        %v2969 = vunpack.c.l.bf16 %v1038
        %v2970 = vunpack.c.l.bf16 %v1039
        %v2971 = vunpack.c.l.bf16 %v1040
        %v2972 = vunpack.c.l.bf16 %v1041
        %v2973 = vunpack.c.l.bf16 %v1042
        %v2974 = vunpack.c.l.bf16 %v1043
        %v2975 = vunpack.c.l.bf16 %v1044
        %v2976 = vunpack.c.l.bf16 %v1045
        %v2977 = vunpack.c.l.bf16 %v1046
        %v2978 = vunpack.c.l.bf16 %v1047
        %v2979 = vunpack.c.l.bf16 %v1048
        %v2980 = vunpack.c.l.bf16 %v1049
        %v2981 = vunpack.c.l.bf16 %v1050
        %v2982 = vunpack.c.l.bf16 %v1051
        %v2983 = vunpack.c.l.bf16 %v1052
        %v2984 = vunpack.c.l.bf16 %v1053
        %v2985 = vunpack.c.l.bf16 %v1054
        %v2986 = vunpack.c.l.bf16 %v1055
        %v2987 = vunpack.c.l.bf16 %v1056
        %v2988 = vunpack.c.l.bf16 %v1057
        %v2989 = vunpack.c.l.bf16 %v1058
        %v2990 = vunpack.c.l.bf16 %v1059
        %v2991 = vunpack.c.l.bf16 %v1060
        %v2992 = vunpack.c.l.bf16 %v1061
        %v2993 = vunpack.c.l.bf16 %v1062
        %v2994 = vunpack.c.l.bf16 %v1063
        %v2995 = vunpack.c.l.bf16 %v1064
        %v2996 = vunpack.c.l.bf16 %v1065
        %v2997 = vunpack.c.l.bf16 %v1066
        %v2998 = vunpack.c.l.bf16 %v1067
        %v2999 = vunpack.c.l.bf16 %v1068
        %v3000 = vunpack.c.l.bf16 %v1069
        %v3001 = vunpack.c.l.bf16 %v1070
        %v3002 = vunpack.c.l.bf16 %v1071
        %v3003 = vunpack.c.l.bf16 %v1072
        %v3004 = vunpack.c.l.bf16 %v1073
        %v3005 = vunpack.c.l.bf16 %v1074
        %v3006 = vunpack.c.l.bf16 %v1075
        %v3007 = vunpack.c.l.bf16 %v1076
        %v3008 = vunpack.c.l.bf16 %v1077
        %v3009 = vunpack.c.l.bf16 %v1078
        %v3010 = vunpack.c.l.bf16 %v1079
        %v3011 = vunpack.c.l.bf16 %v1080
        %v3012 = vunpack.c.l.bf16 %v1081
        %v3013 = vunpack.c.l.bf16 %v1082
        %v3014 = vunpack.c.l.bf16 %v1083
        %v3015 = vunpack.c.l.bf16 %v1084
        %v3016 = vunpack.c.l.bf16 %v1085
        %v3017 = vunpack.c.l.bf16 %v1086
        %v3018 = vunpack.c.l.bf16 %v1087
        %v3019 = vunpack.c.l.bf16 %v1088
        %v3020 = vunpack.c.l.bf16 %v1089
        %v3021 = vunpack.c.l.bf16 %v1090
        %v3022 = vunpack.c.l.bf16 %v1091
        %v3023 = vunpack.c.l.bf16 %v1092
        %v3024 = vunpack.c.l.bf16 %v1093
        %v3025 = vunpack.c.l.bf16 %v1094
        %v3026 = vunpack.c.l.bf16 %v1095
        %v3027 = vunpack.c.l.bf16 %v1096
        %v3028 = vunpack.c.l.bf16 %v1097
        %v3029 = vunpack.c.l.bf16 %v1098
        %v3030 = vunpack.c.l.bf16 %v1099
        %v3031 = vunpack.c.l.bf16 %v1100
        %v3032 = vunpack.c.l.bf16 %v1101
        %v3033 = vunpack.c.l.bf16 %v1102
        %v3034 = vunpack.c.l.bf16 %v1103
        %v3035 = vunpack.c.l.bf16 %v1104
        %v3036 = vunpack.c.l.bf16 %v1105
        %v3037 = vunpack.c.l.bf16 %v1106
        %v3038 = vunpack.c.l.bf16 %v1107
        %v3039 = vunpack.c.l.bf16 %v1108
        %v3040 = vunpack.c.l.bf16 %v1109
        %v3041 = vunpack.c.l.bf16 %v1110
        %v3042 = vadd.f32 %v2914, %v2915
        %v3043 = vadd.f32 %v3042, %v2916
        %v3044 = vadd.f32 %v3043, %v2917
        %v3045 = vadd.f32 %v3044, %v2918
        %v3046 = vadd.f32 %v3045, %v2919
        %v3047 = vadd.f32 %v3046, %v2920
        %v3048 = vadd.f32 %v3047, %v2921
        %v3049 = vadd.f32 %v3048, %v2922
        %v3050 = vadd.f32 %v3049, %v2923
        %v3051 = vadd.f32 %v3050, %v2924
        %v3052 = vadd.f32 %v3051, %v2925
        %v3053 = vadd.f32 %v3052, %v2926
        %v3054 = vadd.f32 %v3053, %v2927
        %v3055 = vadd.f32 %v3054, %v2928
        %v3056 = vadd.f32 %v3055, %v2929
        %v3057 = vrot.slane %v3056, 4
        %v3058 = vadd.f32 %v3056, %v3057
        %v3059 = vrot.slane %v3058, 2
        %v3060 = vadd.f32 %v3058, %v3059
        %v3061 = vrot.slane %v3060, 1
        %v3062 = vadd.f32 %v3060, %v3061
        %v3063 = vadd.f32 %v2930, %v2931
        %v3064 = vadd.f32 %v3063, %v2932
        %v3065 = vadd.f32 %v3064, %v2933
        %v3066 = vadd.f32 %v3065, %v2934
        %v3067 = vadd.f32 %v3066, %v2935
        %v3068 = vadd.f32 %v3067, %v2936
        %v3069 = vadd.f32 %v3068, %v2937
        %v3070 = vadd.f32 %v3069, %v2938
        %v3071 = vadd.f32 %v3070, %v2939
        %v3072 = vadd.f32 %v3071, %v2940
        %v3073 = vadd.f32 %v3072, %v2941
        %v3074 = vadd.f32 %v3073, %v2942
        %v3075 = vadd.f32 %v3074, %v2943
        %v3076 = vadd.f32 %v3075, %v2944
        %v3077 = vadd.f32 %v3076, %v2945
        %v3078 = vrot.slane %v3077, 4
        %v3079 = vadd.f32 %v3077, %v3078
        %v3080 = vrot.slane %v3079, 2
        %v3081 = vadd.f32 %v3079, %v3080
        %v3082 = vrot.slane %v3081, 1
        %v3083 = vadd.f32 %v3081, %v3082
        %v3084 = vadd.f32 %v2946, %v2947
        %v3085 = vadd.f32 %v3084, %v2948
        %v3086 = vadd.f32 %v3085, %v2949
        %v3087 = vadd.f32 %v3086, %v2950
        %v3088 = vadd.f32 %v3087, %v2951
        %v3089 = vadd.f32 %v3088, %v2952
        %v3090 = vadd.f32 %v3089, %v2953
        %v3091 = vadd.f32 %v3090, %v2954
        %v3092 = vadd.f32 %v3091, %v2955
        %v3093 = vadd.f32 %v3092, %v2956
        %v3094 = vadd.f32 %v3093, %v2957
        %v3095 = vadd.f32 %v3094, %v2958
        %v3096 = vadd.f32 %v3095, %v2959
        %v3097 = vadd.f32 %v3096, %v2960
        %v3098 = vadd.f32 %v3097, %v2961
        %v3099 = vrot.slane %v3098, 4
        %v3100 = vadd.f32 %v3098, %v3099
        %v3101 = vrot.slane %v3100, 2
        %v3102 = vadd.f32 %v3100, %v3101
        %v3103 = vrot.slane %v3102, 1
        %v3104 = vadd.f32 %v3102, %v3103
        %v3105 = vadd.f32 %v2962, %v2963
        %v3106 = vadd.f32 %v3105, %v2964
        %v3107 = vadd.f32 %v3106, %v2965
        %v3108 = vadd.f32 %v3107, %v2966
        %v3109 = vadd.f32 %v3108, %v2967
        %v3110 = vadd.f32 %v3109, %v2968
        %v3111 = vadd.f32 %v3110, %v2969
        %v3112 = vadd.f32 %v3111, %v2970
        %v3113 = vadd.f32 %v3112, %v2971
        %v3114 = vadd.f32 %v3113, %v2972
        %v3115 = vadd.f32 %v3114, %v2973
        %v3116 = vadd.f32 %v3115, %v2974
        %v3117 = vadd.f32 %v3116, %v2975
        %v3118 = vadd.f32 %v3117, %v2976
        %v3119 = vadd.f32 %v3118, %v2977
        %v3120 = vrot.slane %v3119, 4
        %v3121 = vadd.f32 %v3119, %v3120
        %v3122 = vrot.slane %v3121, 2
        %v3123 = vadd.f32 %v3121, %v3122
        %v3124 = vrot.slane %v3123, 1
        %v3125 = vadd.f32 %v3123, %v3124
        %v3126 = vadd.f32 %v2978, %v2979
        %v3127 = vadd.f32 %v3126, %v2980
        %v3128 = vadd.f32 %v3127, %v2981
        %v3129 = vadd.f32 %v3128, %v2982
        %v3130 = vadd.f32 %v3129, %v2983
        %v3131 = vadd.f32 %v3130, %v2984
        %v3132 = vadd.f32 %v3131, %v2985
        %v3133 = vadd.f32 %v3132, %v2986
        %v3134 = vadd.f32 %v3133, %v2987
        %v3135 = vadd.f32 %v3134, %v2988
        %v3136 = vadd.f32 %v3135, %v2989
        %v3137 = vadd.f32 %v3136, %v2990
        %v3138 = vadd.f32 %v3137, %v2991
        %v3139 = vadd.f32 %v3138, %v2992
        %v3140 = vadd.f32 %v3139, %v2993
        %v3141 = vrot.slane %v3140, 4
        %v3142 = vadd.f32 %v3140, %v3141
        %v3143 = vrot.slane %v3142, 2
        %v3144 = vadd.f32 %v3142, %v3143
        %v3145 = vrot.slane %v3144, 1
        %v3146 = vadd.f32 %v3144, %v3145
        %v3147 = vadd.f32 %v2994, %v2995
        %v3148 = vadd.f32 %v3147, %v2996
        %v3149 = vadd.f32 %v3148, %v2997
        %v3150 = vadd.f32 %v3149, %v2998
        %v3151 = vadd.f32 %v3150, %v2999
        %v3152 = vadd.f32 %v3151, %v3000
        %v3153 = vadd.f32 %v3152, %v3001
        %v3154 = vadd.f32 %v3153, %v3002
        %v3155 = vadd.f32 %v3154, %v3003
        %v3156 = vadd.f32 %v3155, %v3004
        %v3157 = vadd.f32 %v3156, %v3005
        %v3158 = vadd.f32 %v3157, %v3006
        %v3159 = vadd.f32 %v3158, %v3007
        %v3160 = vadd.f32 %v3159, %v3008
        %v3161 = vadd.f32 %v3160, %v3009
        %v3162 = vrot.slane %v3161, 4
        %v3163 = vadd.f32 %v3161, %v3162
        %v3164 = vrot.slane %v3163, 2
        %v3165 = vadd.f32 %v3163, %v3164
        %v3166 = vrot.slane %v3165, 1
        %v3167 = vadd.f32 %v3165, %v3166
        %v3168 = vadd.f32 %v3010, %v3011
        %v3169 = vadd.f32 %v3168, %v3012
        %v3170 = vadd.f32 %v3169, %v3013
        %v3171 = vadd.f32 %v3170, %v3014
        %v3172 = vadd.f32 %v3171, %v3015
        %v3173 = vadd.f32 %v3172, %v3016
        %v3174 = vadd.f32 %v3173, %v3017
        %v3175 = vadd.f32 %v3174, %v3018
        %v3176 = vadd.f32 %v3175, %v3019
        %v3177 = vadd.f32 %v3176, %v3020
        %v3178 = vadd.f32 %v3177, %v3021
        %v3179 = vadd.f32 %v3178, %v3022
        %v3180 = vadd.f32 %v3179, %v3023
        %v3181 = vadd.f32 %v3180, %v3024
        %v3182 = vadd.f32 %v3181, %v3025
        %v3183 = vrot.slane %v3182, 4
        %v3184 = vadd.f32 %v3182, %v3183
        %v3185 = vrot.slane %v3184, 2
        %v3186 = vadd.f32 %v3184, %v3185
        %v3187 = vrot.slane %v3186, 1
        %v3188 = vadd.f32 %v3186, %v3187
        %v3189 = vadd.f32 %v3026, %v3027
        %v3190 = vadd.f32 %v3189, %v3028
        %v3191 = vadd.f32 %v3190, %v3029
        %v3192 = vadd.f32 %v3191, %v3030
        %v3193 = vadd.f32 %v3192, %v3031
        %v3194 = vadd.f32 %v3193, %v3032
        %v3195 = vadd.f32 %v3194, %v3033
        %v3196 = vadd.f32 %v3195, %v3034
        %v3197 = vadd.f32 %v3196, %v3035
        %v3198 = vadd.f32 %v3197, %v3036
        %v3199 = vadd.f32 %v3198, %v3037
        %v3200 = vadd.f32 %v3199, %v3038
        %v3201 = vadd.f32 %v3200, %v3039
        %v3202 = vadd.f32 %v3201, %v3040
        %v3203 = vadd.f32 %v3202, %v3041
        %v3204 = vrot.slane %v3203, 4
        %v3205 = vadd.f32 %v3203, %v3204
        %v3206 = vrot.slane %v3205, 2
        %v3207 = vadd.f32 %v3205, %v3206
        %v3208 = vrot.slane %v3207, 1
        %v3209 = vadd.f32 %v3207, %v3208
        %v3218 = vsel %vm2886, %v3083, %v3062
        %v3219 = vsel %vm2888, %v3104, %v3218
        %v3220 = vsel %vm2890, %v3125, %v3219
        %v3221 = vsel %vm2892, %v3146, %v3220
        %v3222 = vsel %vm2894, %v3167, %v3221
        %v3223 = vsel %vm2896, %v3188, %v3222
        %v3224 = vsel %vm2898, %v3209, %v3223
        %v3226 = vadd.f32 %v2913, %v3224
        %3227 = vst [vmem:[#allocation3] sm:$0xff] %v3226
        %p3228 = scmp.eq.s32.totalorder %s28, 1
        // Predicated region
        $region102: #{_lvar_val_forward.3} parent=92 // pred_check
          %p3229 = pneg %p3228
        $region103: #{_lvar_val_forward.3} parent=92 // pred_check_branch
          %3231 = sbr.rel (%p3229) target = $region105
        $region104: #{_lvar_val_forward.3} parent=92 // pred_region
          %v3232 = vld [vmem:[#allocation2] sm:$0xff]
          %v3233 = vld [vmem:[#allocation2 + $0x8] sm:$0xff]
          %v3234 = vmul.f32 %v3232, 0.00390625
          %v3235 = vmul.f32 %v3233, 0.00390625
          %v3236 = vld [vmem:[#allocation3] sm:$0xff]
          %v3237 = vmul.f32 %v3236, 0.00390625
          %v3238 = vpack.c.bf16 %v3234, %v3234
          %v3239 = vld [vmem:[%s3] sm:$0xf]
          %v3240 = vld [vmem:[%s3 + $0x4] sm:$0xf]
          %v3241 = vld [vmem:[%s3 + $0x8] sm:$0xf]
          %v3242 = vld [vmem:[%s3 + $0xc] sm:$0xf]
          %v3243 = vld [vmem:[%s3 + $0x10] sm:$0xf]
          %v3244 = vld [vmem:[%s3 + $0x14] sm:$0xf]
          %v3245 = vld [vmem:[%s3 + $0x18] sm:$0xf]
          %v3246 = vld [vmem:[%s3 + $0x1c] sm:$0xf]
          %v3247 = vld [vmem:[%s3 + $0x20] sm:$0xf]
          %v3248 = vld [vmem:[%s3 + $0x24] sm:$0xf]
          %v3249 = vld [vmem:[%s3 + $0x28] sm:$0xf]
          %v3250 = vld [vmem:[%s3 + $0x2c] sm:$0xf]
          %v3251 = vld [vmem:[%s3 + $0x30] sm:$0xf]
          %v3252 = vld [vmem:[%s3 + $0x34] sm:$0xf]
          %v3253 = vld [vmem:[%s3 + $0x38] sm:$0xf]
          %v3254 = vld [vmem:[%s3 + $0x3c] sm:$0xf]
          %v3255 = vld [vmem:[%s4] sm:$0x1]
          %v3257 = vlaneseq
          %v3258 = vshrl.u32 %v3257, 7
          %v3259 = vsub.s32 0, %v3258
          %v3260 = vrot.slane %v3255, %v3259
          %v3278 = vunpack.c.l.b16 %v3239
          %v3279 = vunpack.c.l.b16 %v3240
          %v3280 = vunpack.c.l.b16 %v3241
          %v3281 = vunpack.c.l.b16 %v3242
          %v3282 = vunpack.c.l.b16 %v3243
          %v3283 = vunpack.c.l.b16 %v3244
          %v3284 = vunpack.c.l.b16 %v3245
          %v3285 = vunpack.c.l.b16 %v3246
          %v3286 = vunpack.c.l.b16 %v3247
          %v3287 = vunpack.c.l.b16 %v3248
          %v3288 = vunpack.c.l.b16 %v3249
          %v3289 = vunpack.c.l.b16 %v3250
          %v3290 = vunpack.c.l.b16 %v3251
          %v3291 = vunpack.c.l.b16 %v3252
          %v3292 = vunpack.c.l.b16 %v3253
          %v3293 = vunpack.c.l.b16 %v3254
          %v3294 = vpack.c.b16 %v3279, %v3278
          %v3295 = vpack.c.b16 %v3281, %v3280
          %v3296 = vpack.c.b16 %v3283, %v3282
          %v3297 = vpack.c.b16 %v3285, %v3284
          %v3298 = vpack.c.b16 %v3287, %v3286
          %v3299 = vpack.c.b16 %v3289, %v3288
          %v3300 = vpack.c.b16 %v3291, %v3290
          %v3301 = vpack.c.b16 %v3293, %v3292
          %3310 = vmatprep.subr.bf16.mxu0 0
          %3311 = vmatpush1.bf16.msra.mxu0 %v3294
          %3312 = vmatprep.subr.bf16.mxu0 0
          %3313 = vmatpush1.bf16.msra.mxu0 %v3295
          %3314 = vmatprep.subr.bf16.mxu0 0
          %3315 = vmatpush1.bf16.msra.mxu0 %v3296
          %3316 = vmatprep.subr.bf16.mxu0 0
          %3317 = vmatpush1.bf16.msra.mxu0 %v3297
          %3318 = vmatprep.subr.bf16.mxu0 0
          %3319 = vmatpush1.bf16.msra.mxu0 %v3298
          %3320 = vmatprep.subr.bf16.mxu0 0
          %3321 = vmatpush1.bf16.msra.mxu0 %v3299
          %3322 = vmatprep.subr.bf16.mxu0 0
          %3323 = vmatpush1.bf16.msra.mxu0 %v3300
          %3324 = vmatprep.subr.bf16.mxu0 0
          %3325 = vmatpush1.bf16.msra.mxu0 %v3301
          %3326 = vmatprep.subr.bf16.mxu0 0
          %3327 = vmatpush1.bf16.msra.mxu0 0
          %3328 = vmatprep.subr.bf16.mxu0 0
          %3329 = vmatpush1.bf16.msra.mxu0 0
          %3330 = vmatprep.subr.bf16.mxu0 0
          %3331 = vmatpush1.bf16.msra.mxu0 0
          %3332 = vmatprep.subr.bf16.mxu0 0
          %3333 = vmatpush1.bf16.msra.mxu0 0
          %3334 = vmatprep.subr.bf16.mxu0 0
          %3335 = vmatpush1.bf16.msra.mxu0 0
          %3336 = vmatprep.subr.bf16.mxu0 0
          %3337 = vmatpush1.bf16.msra.mxu0 0
          %3338 = vmatprep.subr.bf16.mxu0 0
          %3339 = vmatpush1.bf16.msra.mxu0 0
          %3340 = vmatprep.subr.bf16.mxu0 0
          %3341 = vmatpush1.bf16.msra.mxu0 0
          %3342 = vmatprep.mubr.bf16.mxu0 0
          %3343 = vmatmul.mubr.bf16.gmra.mrb[0].mxu0 %v3238
          %v3344 = vpop.f32.mrb[0].mxu0
          %v3345 = vadd.f32 %v3260, %v3344
          %v3346 = vpop.f32.mrb[0].mxu0
          %v3347 = vpop.f32.mrb[0].mxu0
          %v3348 = vpop.f32.mrb[0].mxu0
          %3349 = vdwg.mxu0
          %v3350 = vmax.f32 %v3345, 0.0
          %v3351 = vpack.c.bf16 %v3350, %v3350
          %v3352 = vld [vmem:[%s5] sm:$0xf]
          %v3353 = vld [vmem:[%s5 + $0x4] sm:$0xf]
          %v3354 = vld [vmem:[%s5 + $0x8] sm:$0xf]
          %v3355 = vld [vmem:[%s5 + $0xc] sm:$0xf]
          %v3356 = vld [vmem:[%s5 + $0x10] sm:$0xf]
          %v3357 = vld [vmem:[%s5 + $0x14] sm:$0xf]
          %v3358 = vld [vmem:[%s5 + $0x18] sm:$0xf]
          %v3359 = vld [vmem:[%s5 + $0x1c] sm:$0xf]
          %v3360 = vld [vmem:[%s5 + $0x20] sm:$0xf]
          %v3361 = vld [vmem:[%s5 + $0x24] sm:$0xf]
          %v3362 = vld [vmem:[%s5 + $0x28] sm:$0xf]
          %v3363 = vld [vmem:[%s5 + $0x2c] sm:$0xf]
          %v3364 = vld [vmem:[%s5 + $0x30] sm:$0xf]
          %v3365 = vld [vmem:[%s5 + $0x34] sm:$0xf]
          %v3366 = vld [vmem:[%s5 + $0x38] sm:$0xf]
          %v3367 = vld [vmem:[%s5 + $0x3c] sm:$0xf]
          %v3368 = vld [vmem:[%s6] sm:$0x1]
          %v3370 = vlaneseq
          %v3371 = vshrl.u32 %v3370, 7
          %v3372 = vsub.s32 0, %v3371
          %v3373 = vrot.slane %v3368, %v3372
          %v3391 = vunpack.c.l.b16 %v3352
          %v3392 = vunpack.c.l.b16 %v3353
          %v3393 = vunpack.c.l.b16 %v3354
          %v3394 = vunpack.c.l.b16 %v3355
          %v3395 = vunpack.c.l.b16 %v3356
          %v3396 = vunpack.c.l.b16 %v3357
          %v3397 = vunpack.c.l.b16 %v3358
          %v3398 = vunpack.c.l.b16 %v3359
          %v3399 = vunpack.c.l.b16 %v3360
          %v3400 = vunpack.c.l.b16 %v3361
          %v3401 = vunpack.c.l.b16 %v3362
          %v3402 = vunpack.c.l.b16 %v3363
          %v3403 = vunpack.c.l.b16 %v3364
          %v3404 = vunpack.c.l.b16 %v3365
          %v3405 = vunpack.c.l.b16 %v3366
          %v3406 = vunpack.c.l.b16 %v3367
          %v3407 = vpack.c.b16 %v3392, %v3391
          %v3408 = vpack.c.b16 %v3394, %v3393
          %v3409 = vpack.c.b16 %v3396, %v3395
          %v3410 = vpack.c.b16 %v3398, %v3397
          %v3411 = vpack.c.b16 %v3400, %v3399
          %v3412 = vpack.c.b16 %v3402, %v3401
          %v3413 = vpack.c.b16 %v3404, %v3403
          %v3414 = vpack.c.b16 %v3406, %v3405
          %3423 = vmatprep.subr.bf16.mxu0 0
          %3424 = vmatpush1.bf16.msra.mxu0 %v3407
          %3425 = vmatprep.subr.bf16.mxu0 0
          %3426 = vmatpush1.bf16.msra.mxu0 %v3408
          %3427 = vmatprep.subr.bf16.mxu0 0
          %3428 = vmatpush1.bf16.msra.mxu0 %v3409
          %3429 = vmatprep.subr.bf16.mxu0 0
          %3430 = vmatpush1.bf16.msra.mxu0 %v3410
          %3431 = vmatprep.subr.bf16.mxu0 0
          %3432 = vmatpush1.bf16.msra.mxu0 %v3411
          %3433 = vmatprep.subr.bf16.mxu0 0
          %3434 = vmatpush1.bf16.msra.mxu0 %v3412
          %3435 = vmatprep.subr.bf16.mxu0 0
          %3436 = vmatpush1.bf16.msra.mxu0 %v3413
          %3437 = vmatprep.subr.bf16.mxu0 0
          %3438 = vmatpush1.bf16.msra.mxu0 %v3414
          %3439 = vmatprep.subr.bf16.mxu0 0
          %3440 = vmatpush1.bf16.msra.mxu0 0
          %3441 = vmatprep.subr.bf16.mxu0 0
          %3442 = vmatpush1.bf16.msra.mxu0 0
          %3443 = vmatprep.subr.bf16.mxu0 0
          %3444 = vmatpush1.bf16.msra.mxu0 0
          %3445 = vmatprep.subr.bf16.mxu0 0
          %3446 = vmatpush1.bf16.msra.mxu0 0
          %3447 = vmatprep.subr.bf16.mxu0 0
          %3448 = vmatpush1.bf16.msra.mxu0 0
          %3449 = vmatprep.subr.bf16.mxu0 0
          %3450 = vmatpush1.bf16.msra.mxu0 0
          %3451 = vmatprep.subr.bf16.mxu0 0
          %3452 = vmatpush1.bf16.msra.mxu0 0
          %3453 = vmatprep.subr.bf16.mxu0 0
          %3454 = vmatpush1.bf16.msra.mxu0 0
          %3455 = vmatprep.mubr.bf16.mxu0 0
          %3456 = vmatmul.mubr.bf16.gmra.mrb[0].mxu0 %v3351
          %v3457 = vpop.f32.mrb[0].mxu0
          %v3458 = vadd.f32 %v3373, %v3457
          %v3459 = vpop.f32.mrb[0].mxu0
          %v3460 = vpop.f32.mrb[0].mxu0
          %v3461 = vpop.f32.mrb[0].mxu0
          %3462 = vdwg.mxu0
          %v3463 = vmax.f32 %v3458, 0.0
          %v3464 = vpack.c.bf16 %v3463, %v3463
          %v3465 = vpack.c.bf16 %v3235, %v3235
          %s3466 = scalar_lea.vmem %s3, 64
          %v3467 = vld [vmem:[%s3466] sm:$0xf]
          %v3468 = vld [vmem:[%s3466 + $0x4] sm:$0xf]
          %v3469 = vld [vmem:[%s3466 + $0x8] sm:$0xf]
          %v3470 = vld [vmem:[%s3466 + $0xc] sm:$0xf]
          %v3471 = vld [vmem:[%s3466 + $0x10] sm:$0xf]
          %v3472 = vld [vmem:[%s3466 + $0x14] sm:$0xf]
          %v3473 = vld [vmem:[%s3466 + $0x18] sm:$0xf]
          %v3474 = vld [vmem:[%s3466 + $0x1c] sm:$0xf]
          %v3475 = vld [vmem:[%s3466 + $0x20] sm:$0xf]
          %v3476 = vld [vmem:[%s3466 + $0x24] sm:$0xf]
          %v3477 = vld [vmem:[%s3466 + $0x28] sm:$0xf]
          %v3478 = vld [vmem:[%s3466 + $0x2c] sm:$0xf]
          %v3479 = vld [vmem:[%s3466 + $0x30] sm:$0xf]
          %v3480 = vld [vmem:[%s3466 + $0x34] sm:$0xf]
          %v3481 = vld [vmem:[%s3466 + $0x38] sm:$0xf]
          %v3482 = vld [vmem:[%s3466 + $0x3c] sm:$0xf]
          %s3483 = scalar_lea.vmem %s4, 1
          %v3484 = vld [vmem:[%s3483] sm:$0x1]
          %v3486 = vlaneseq
          %v3487 = vshrl.u32 %v3486, 7
          %v3488 = vsub.s32 0, %v3487
          %v3489 = vrot.slane %v3484, %v3488
          %v3507 = vunpack.c.l.b16 %v3467
          %v3508 = vunpack.c.l.b16 %v3468
          %v3509 = vunpack.c.l.b16 %v3469
          %v3510 = vunpack.c.l.b16 %v3470
          %v3511 = vunpack.c.l.b16 %v3471
          %v3512 = vunpack.c.l.b16 %v3472
          %v3513 = vunpack.c.l.b16 %v3473
          %v3514 = vunpack.c.l.b16 %v3474
          %v3515 = vunpack.c.l.b16 %v3475
          %v3516 = vunpack.c.l.b16 %v3476
          %v3517 = vunpack.c.l.b16 %v3477
          %v3518 = vunpack.c.l.b16 %v3478
          %v3519 = vunpack.c.l.b16 %v3479
          %v3520 = vunpack.c.l.b16 %v3480
          %v3521 = vunpack.c.l.b16 %v3481
          %v3522 = vunpack.c.l.b16 %v3482
          %v3523 = vpack.c.b16 %v3508, %v3507
          %v3524 = vpack.c.b16 %v3510, %v3509
          %v3525 = vpack.c.b16 %v3512, %v3511
          %v3526 = vpack.c.b16 %v3514, %v3513
          %v3527 = vpack.c.b16 %v3516, %v3515
          %v3528 = vpack.c.b16 %v3518, %v3517
          %v3529 = vpack.c.b16 %v3520, %v3519
          %v3530 = vpack.c.b16 %v3522, %v3521
          %3539 = vmatprep.subr.bf16.mxu0 0
          %3540 = vmatpush1.bf16.msra.mxu0 %v3523
          %3541 = vmatprep.subr.bf16.mxu0 0
          %3542 = vmatpush1.bf16.msra.mxu0 %v3524
          %3543 = vmatprep.subr.bf16.mxu0 0
          %3544 = vmatpush1.bf16.msra.mxu0 %v3525
          %3545 = vmatprep.subr.bf16.mxu0 0
          %3546 = vmatpush1.bf16.msra.mxu0 %v3526
          %3547 = vmatprep.subr.bf16.mxu0 0
          %3548 = vmatpush1.bf16.msra.mxu0 %v3527
          %3549 = vmatprep.subr.bf16.mxu0 0
          %3550 = vmatpush1.bf16.msra.mxu0 %v3528
          %3551 = vmatprep.subr.bf16.mxu0 0
          %3552 = vmatpush1.bf16.msra.mxu0 %v3529
          %3553 = vmatprep.subr.bf16.mxu0 0
          %3554 = vmatpush1.bf16.msra.mxu0 %v3530
          %3555 = vmatprep.subr.bf16.mxu0 0
          %3556 = vmatpush1.bf16.msra.mxu0 0
          %3557 = vmatprep.subr.bf16.mxu0 0
          %3558 = vmatpush1.bf16.msra.mxu0 0
          %3559 = vmatprep.subr.bf16.mxu0 0
          %3560 = vmatpush1.bf16.msra.mxu0 0
          %3561 = vmatprep.subr.bf16.mxu0 0
          %3562 = vmatpush1.bf16.msra.mxu0 0
          %3563 = vmatprep.subr.bf16.mxu0 0
          %3564 = vmatpush1.bf16.msra.mxu0 0
          %3565 = vmatprep.subr.bf16.mxu0 0
          %3566 = vmatpush1.bf16.msra.mxu0 0
          %3567 = vmatprep.subr.bf16.mxu0 0
          %3568 = vmatpush1.bf16.msra.mxu0 0
          %3569 = vmatprep.subr.bf16.mxu0 0
          %3570 = vmatpush1.bf16.msra.mxu0 0
          %3571 = vmatprep.mubr.bf16.mxu0 0
          %3572 = vmatmul.mubr.bf16.gmra.mrb[0].mxu0 %v3465
          %v3573 = vpop.f32.mrb[0].mxu0
          %v3574 = vadd.f32 %v3489, %v3573
          %v3575 = vpop.f32.mrb[0].mxu0
          %v3576 = vpop.f32.mrb[0].mxu0
          %v3577 = vpop.f32.mrb[0].mxu0
          %3578 = vdwg.mxu0
          %v3579 = vmax.f32 %v3574, 0.0
          %v3580 = vpack.c.bf16 %v3579, %v3579
          %s3581 = scalar_lea.vmem %s5, 64
          %v3582 = vld [vmem:[%s3581] sm:$0xf]
          %v3583 = vld [vmem:[%s3581 + $0x4] sm:$0xf]
          %v3584 = vld [vmem:[%s3581 + $0x8] sm:$0xf]
          %v3585 = vld [vmem:[%s3581 + $0xc] sm:$0xf]
          %v3586 = vld [vmem:[%s3581 + $0x10] sm:$0xf]
          %v3587 = vld [vmem:[%s3581 + $0x14] sm:$0xf]
          %v3588 = vld [vmem:[%s3581 + $0x18] sm:$0xf]
          %v3589 = vld [vmem:[%s3581 + $0x1c] sm:$0xf]
          %v3590 = vld [vmem:[%s3581 + $0x20] sm:$0xf]
          %v3591 = vld [vmem:[%s3581 + $0x24] sm:$0xf]
          %v3592 = vld [vmem:[%s3581 + $0x28] sm:$0xf]
          %v3593 = vld [vmem:[%s3581 + $0x2c] sm:$0xf]
          %v3594 = vld [vmem:[%s3581 + $0x30] sm:$0xf]
          %v3595 = vld [vmem:[%s3581 + $0x34] sm:$0xf]
          %v3596 = vld [vmem:[%s3581 + $0x38] sm:$0xf]
          %v3597 = vld [vmem:[%s3581 + $0x3c] sm:$0xf]
          %s3598 = scalar_lea.vmem %s6, 1
          %v3599 = vld [vmem:[%s3598] sm:$0x1]
          %v3601 = vlaneseq
          %v3602 = vshrl.u32 %v3601, 7
          %v3603 = vsub.s32 0, %v3602
          %v3604 = vrot.slane %v3599, %v3603
          %v3622 = vunpack.c.l.b16 %v3582
          %v3623 = vunpack.c.l.b16 %v3583
          %v3624 = vunpack.c.l.b16 %v3584
          %v3625 = vunpack.c.l.b16 %v3585
          %v3626 = vunpack.c.l.b16 %v3586
          %v3627 = vunpack.c.l.b16 %v3587
          %v3628 = vunpack.c.l.b16 %v3588
          %v3629 = vunpack.c.l.b16 %v3589
          %v3630 = vunpack.c.l.b16 %v3590
          %v3631 = vunpack.c.l.b16 %v3591
          %v3632 = vunpack.c.l.b16 %v3592
          %v3633 = vunpack.c.l.b16 %v3593
          %v3634 = vunpack.c.l.b16 %v3594
          %v3635 = vunpack.c.l.b16 %v3595
          %v3636 = vunpack.c.l.b16 %v3596
          %v3637 = vunpack.c.l.b16 %v3597
          %v3638 = vpack.c.b16 %v3623, %v3622
          %v3639 = vpack.c.b16 %v3625, %v3624
          %v3640 = vpack.c.b16 %v3627, %v3626
          %v3641 = vpack.c.b16 %v3629, %v3628
          %v3642 = vpack.c.b16 %v3631, %v3630
          %v3643 = vpack.c.b16 %v3633, %v3632
          %v3644 = vpack.c.b16 %v3635, %v3634
          %v3645 = vpack.c.b16 %v3637, %v3636
          %3654 = vmatprep.subr.bf16.mxu0 0
          %3655 = vmatpush1.bf16.msra.mxu0 %v3638
          %3656 = vmatprep.subr.bf16.mxu0 0
          %3657 = vmatpush1.bf16.msra.mxu0 %v3639
          %3658 = vmatprep.subr.bf16.mxu0 0
          %3659 = vmatpush1.bf16.msra.mxu0 %v3640
          %3660 = vmatprep.subr.bf16.mxu0 0
          %3661 = vmatpush1.bf16.msra.mxu0 %v3641
          %3662 = vmatprep.subr.bf16.mxu0 0
          %3663 = vmatpush1.bf16.msra.mxu0 %v3642
          %3664 = vmatprep.subr.bf16.mxu0 0
          %3665 = vmatpush1.bf16.msra.mxu0 %v3643
          %3666 = vmatprep.subr.bf16.mxu0 0
          %3667 = vmatpush1.bf16.msra.mxu0 %v3644
          %3668 = vmatprep.subr.bf16.mxu0 0
          %3669 = vmatpush1.bf16.msra.mxu0 %v3645
          %3670 = vmatprep.subr.bf16.mxu0 0
          %3671 = vmatpush1.bf16.msra.mxu0 0
          %3672 = vmatprep.subr.bf16.mxu0 0
          %3673 = vmatpush1.bf16.msra.mxu0 0
          %3674 = vmatprep.subr.bf16.mxu0 0
          %3675 = vmatpush1.bf16.msra.mxu0 0
          %3676 = vmatprep.subr.bf16.mxu0 0
          %3677 = vmatpush1.bf16.msra.mxu0 0
          %3678 = vmatprep.subr.bf16.mxu0 0
          %3679 = vmatpush1.bf16.msra.mxu0 0
          %3680 = vmatprep.subr.bf16.mxu0 0
          %3681 = vmatpush1.bf16.msra.mxu0 0
          %3682 = vmatprep.subr.bf16.mxu0 0
          %3683 = vmatpush1.bf16.msra.mxu0 0
          %3684 = vmatprep.subr.bf16.mxu0 0
          %3685 = vmatpush1.bf16.msra.mxu0 0
          %3686 = vmatprep.mubr.bf16.mxu0 0
          %3687 = vmatmul.mubr.bf16.gmra.mrb[0].mxu0 %v3580
          %v3688 = vpop.f32.mrb[0].mxu0
          %v3689 = vadd.f32 %v3604, %v3688
          %v3690 = vpop.f32.mrb[0].mxu0
          %v3691 = vpop.f32.mrb[0].mxu0
          %v3692 = vpop.f32.mrb[0].mxu0
          %3693 = vdwg.mxu0
          %v3694 = vmax.f32 %v3689, 0.0
          %v3695 = vpack.c.bf16 %v3694, %v3694
          %v3696 = vpack.c.bf16 %v3237, %v3237
          %s3697 = scalar_lea.vmem %s3, 128
          %v3698 = vld [vmem:[%s3697] sm:$0xf]
          %v3699 = vld [vmem:[%s3697 + $0x4] sm:$0xf]
          %v3700 = vld [vmem:[%s3697 + $0x8] sm:$0xf]
          %v3701 = vld [vmem:[%s3697 + $0xc] sm:$0xf]
          %v3702 = vld [vmem:[%s3697 + $0x10] sm:$0xf]
          %v3703 = vld [vmem:[%s3697 + $0x14] sm:$0xf]
          %v3704 = vld [vmem:[%s3697 + $0x18] sm:$0xf]
          %v3705 = vld [vmem:[%s3697 + $0x1c] sm:$0xf]
          %v3706 = vld [vmem:[%s3697 + $0x20] sm:$0xf]
          %v3707 = vld [vmem:[%s3697 + $0x24] sm:$0xf]
          %v3708 = vld [vmem:[%s3697 + $0x28] sm:$0xf]
          %v3709 = vld [vmem:[%s3697 + $0x2c] sm:$0xf]
          %v3710 = vld [vmem:[%s3697 + $0x30] sm:$0xf]
          %v3711 = vld [vmem:[%s3697 + $0x34] sm:$0xf]
          %v3712 = vld [vmem:[%s3697 + $0x38] sm:$0xf]
          %v3713 = vld [vmem:[%s3697 + $0x3c] sm:$0xf]
          %s3714 = scalar_lea.vmem %s4, 2
          %v3715 = vld [vmem:[%s3714] sm:$0x1]
          %v3717 = vlaneseq
          %v3718 = vshrl.u32 %v3717, 7
          %v3719 = vsub.s32 0, %v3718
          %v3720 = vrot.slane %v3715, %v3719
          %v3738 = vunpack.c.l.b16 %v3698
          %v3739 = vunpack.c.l.b16 %v3699
          %v3740 = vunpack.c.l.b16 %v3700
          %v3741 = vunpack.c.l.b16 %v3701
          %v3742 = vunpack.c.l.b16 %v3702
          %v3743 = vunpack.c.l.b16 %v3703
          %v3744 = vunpack.c.l.b16 %v3704
          %v3745 = vunpack.c.l.b16 %v3705
          %v3746 = vunpack.c.l.b16 %v3706
          %v3747 = vunpack.c.l.b16 %v3707
          %v3748 = vunpack.c.l.b16 %v3708
          %v3749 = vunpack.c.l.b16 %v3709
          %v3750 = vunpack.c.l.b16 %v3710
          %v3751 = vunpack.c.l.b16 %v3711
          %v3752 = vunpack.c.l.b16 %v3712
          %v3753 = vunpack.c.l.b16 %v3713
          %v3754 = vpack.c.b16 %v3739, %v3738
          %v3755 = vpack.c.b16 %v3741, %v3740
          %v3756 = vpack.c.b16 %v3743, %v3742
          %v3757 = vpack.c.b16 %v3745, %v3744
          %v3758 = vpack.c.b16 %v3747, %v3746
          %v3759 = vpack.c.b16 %v3749, %v3748
          %v3760 = vpack.c.b16 %v3751, %v3750
          %v3761 = vpack.c.b16 %v3753, %v3752
          %3770 = vmatprep.subr.bf16.mxu0 0
          %3771 = vmatpush1.bf16.msra.mxu0 %v3754
          %3772 = vmatprep.subr.bf16.mxu0 0
          %3773 = vmatpush1.bf16.msra.mxu0 %v3755
          %3774 = vmatprep.subr.bf16.mxu0 0
          %3775 = vmatpush1.bf16.msra.mxu0 %v3756
          %3776 = vmatprep.subr.bf16.mxu0 0
          %3777 = vmatpush1.bf16.msra.mxu0 %v3757
          %3778 = vmatprep.subr.bf16.mxu0 0
          %3779 = vmatpush1.bf16.msra.mxu0 %v3758
          %3780 = vmatprep.subr.bf16.mxu0 0
          %3781 = vmatpush1.bf16.msra.mxu0 %v3759
          %3782 = vmatprep.subr.bf16.mxu0 0
          %3783 = vmatpush1.bf16.msra.mxu0 %v3760
          %3784 = vmatprep.subr.bf16.mxu0 0
          %3785 = vmatpush1.bf16.msra.mxu0 %v3761
          %3786 = vmatprep.subr.bf16.mxu0 0
          %3787 = vmatpush1.bf16.msra.mxu0 0
          %3788 = vmatprep.subr.bf16.mxu0 0
          %3789 = vmatpush1.bf16.msra.mxu0 0
          %3790 = vmatprep.subr.bf16.mxu0 0
          %3791 = vmatpush1.bf16.msra.mxu0 0
          %3792 = vmatprep.subr.bf16.mxu0 0
          %3793 = vmatpush1.bf16.msra.mxu0 0
          %3794 = vmatprep.subr.bf16.mxu0 0
          %3795 = vmatpush1.bf16.msra.mxu0 0
          %3796 = vmatprep.subr.bf16.mxu0 0
          %3797 = vmatpush1.bf16.msra.mxu0 0
          %3798 = vmatprep.subr.bf16.mxu0 0
          %3799 = vmatpush1.bf16.msra.mxu0 0
          %3800 = vmatprep.subr.bf16.mxu0 0
          %3801 = vmatpush1.bf16.msra.mxu0 0
          %3802 = vmatprep.mubr.bf16.mxu0 0
          %3803 = vmatmul.mubr.bf16.gmra.mrb[0].mxu0 %v3696
          %v3804 = vpop.f32.mrb[0].mxu0
          %v3805 = vadd.f32 %v3720, %v3804
          %v3806 = vpop.f32.mrb[0].mxu0
          %v3807 = vpop.f32.mrb[0].mxu0
          %v3808 = vpop.f32.mrb[0].mxu0
          %3809 = vdwg.mxu0
          %v3810 = vmax.f32 %v3805, 0.0
          %v3811 = vpack.c.bf16 %v3810, %v3810
          %s3812 = scalar_lea.vmem %s5, 128
          %v3813 = vld [vmem:[%s3812] sm:$0xf]
          %v3814 = vld [vmem:[%s3812 + $0x4] sm:$0xf]
          %v3815 = vld [vmem:[%s3812 + $0x8] sm:$0xf]
          %v3816 = vld [vmem:[%s3812 + $0xc] sm:$0xf]
          %v3817 = vld [vmem:[%s3812 + $0x10] sm:$0xf]
          %v3818 = vld [vmem:[%s3812 + $0x14] sm:$0xf]
          %v3819 = vld [vmem:[%s3812 + $0x18] sm:$0xf]
          %v3820 = vld [vmem:[%s3812 + $0x1c] sm:$0xf]
          %v3821 = vld [vmem:[%s3812 + $0x20] sm:$0xf]
          %v3822 = vld [vmem:[%s3812 + $0x24] sm:$0xf]
          %v3823 = vld [vmem:[%s3812 + $0x28] sm:$0xf]
          %v3824 = vld [vmem:[%s3812 + $0x2c] sm:$0xf]
          %v3825 = vld [vmem:[%s3812 + $0x30] sm:$0xf]
          %v3826 = vld [vmem:[%s3812 + $0x34] sm:$0xf]
          %v3827 = vld [vmem:[%s3812 + $0x38] sm:$0xf]
          %v3828 = vld [vmem:[%s3812 + $0x3c] sm:$0xf]
          %s3829 = scalar_lea.vmem %s6, 2
          %v3830 = vld [vmem:[%s3829] sm:$0x1]
          %v3832 = vlaneseq
          %v3833 = vshrl.u32 %v3832, 7
          %v3834 = vsub.s32 0, %v3833
          %v3835 = vrot.slane %v3830, %v3834
          %v3853 = vunpack.c.l.b16 %v3813
          %v3854 = vunpack.c.l.b16 %v3814
          %v3855 = vunpack.c.l.b16 %v3815
          %v3856 = vunpack.c.l.b16 %v3816
          %v3857 = vunpack.c.l.b16 %v3817
          %v3858 = vunpack.c.l.b16 %v3818
          %v3859 = vunpack.c.l.b16 %v3819
          %v3860 = vunpack.c.l.b16 %v3820
          %v3861 = vunpack.c.l.b16 %v3821
          %v3862 = vunpack.c.l.b16 %v3822
          %v3863 = vunpack.c.l.b16 %v3823
          %v3864 = vunpack.c.l.b16 %v3824
          %v3865 = vunpack.c.l.b16 %v3825
          %v3866 = vunpack.c.l.b16 %v3826
          %v3867 = vunpack.c.l.b16 %v3827
          %v3868 = vunpack.c.l.b16 %v3828
          %v3869 = vpack.c.b16 %v3854, %v3853
          %v3870 = vpack.c.b16 %v3856, %v3855
          %v3871 = vpack.c.b16 %v3858, %v3857
          %v3872 = vpack.c.b16 %v3860, %v3859
          %v3873 = vpack.c.b16 %v3862, %v3861
          %v3874 = vpack.c.b16 %v3864, %v3863
          %v3875 = vpack.c.b16 %v3866, %v3865
          %v3876 = vpack.c.b16 %v3868, %v3867
          %3885 = vmatprep.subr.bf16.mxu0 0
          %3886 = vmatpush1.bf16.msra.mxu0 %v3869
          %3887 = vmatprep.subr.bf16.mxu0 0
          %3888 = vmatpush1.bf16.msra.mxu0 %v3870
          %3889 = vmatprep.subr.bf16.mxu0 0
          %3890 = vmatpush1.bf16.msra.mxu0 %v3871
          %3891 = vmatprep.subr.bf16.mxu0 0
          %3892 = vmatpush1.bf16.msra.mxu0 %v3872
          %3893 = vmatprep.subr.bf16.mxu0 0
          %3894 = vmatpush1.bf16.msra.mxu0 %v3873
          %3895 = vmatprep.subr.bf16.mxu0 0
          %3896 = vmatpush1.bf16.msra.mxu0 %v3874
          %3897 = vmatprep.subr.bf16.mxu0 0
          %3898 = vmatpush1.bf16.msra.mxu0 %v3875
          %3899 = vmatprep.subr.bf16.mxu0 0
          %3900 = vmatpush1.bf16.msra.mxu0 %v3876
          %3901 = vmatprep.subr.bf16.mxu0 0
          %3902 = vmatpush1.bf16.msra.mxu0 0
          %3903 = vmatprep.subr.bf16.mxu0 0
          %3904 = vmatpush1.bf16.msra.mxu0 0
          %3905 = vmatprep.subr.bf16.mxu0 0
          %3906 = vmatpush1.bf16.msra.mxu0 0
          %3907 = vmatprep.subr.bf16.mxu0 0
          %3908 = vmatpush1.bf16.msra.mxu0 0
          %3909 = vmatprep.subr.bf16.mxu0 0
          %3910 = vmatpush1.bf16.msra.mxu0 0
          %3911 = vmatprep.subr.bf16.mxu0 0
          %3912 = vmatpush1.bf16.msra.mxu0 0
          %3913 = vmatprep.subr.bf16.mxu0 0
          %3914 = vmatpush1.bf16.msra.mxu0 0
          %3915 = vmatprep.subr.bf16.mxu0 0
          %3916 = vmatpush1.bf16.msra.mxu0 0
          %3917 = vmatprep.mubr.bf16.mxu0 0
          %3918 = vmatmul.mubr.bf16.gmra.mrb[0].mxu0 %v3811
          %v3919 = vpop.f32.mrb[0].mxu0
          %v3920 = vadd.f32 %v3835, %v3919
          %v3921 = vpop.f32.mrb[0].mxu0
          %v3922 = vpop.f32.mrb[0].mxu0
          %v3923 = vpop.f32.mrb[0].mxu0
          %3924 = vdwg.mxu0
          %v3925 = vmax.f32 %v3920, 0.0
          %v3926 = vpack.c.bf16 %v3925, %v3925
          %v3927 = vld [vmem:[%s7] sm:$0xf]
          %v3928 = vld [vmem:[%s7 + $0x4] sm:$0xf]
          %v3929 = vld [vmem:[%s7 + $0x8] sm:$0xf]
          %v3930 = vld [vmem:[%s7 + $0xc] sm:$0xf]
          %v3931 = vld [vmem:[%s7 + $0x10] sm:$0xf]
          %v3932 = vld [vmem:[%s7 + $0x14] sm:$0xf]
          %v3933 = vld [vmem:[%s7 + $0x18] sm:$0xf]
          %v3934 = vld [vmem:[%s7 + $0x1c] sm:$0xf]
          %v3935 = vld [vmem:[%s7 + $0x20] sm:$0xf]
          %v3936 = vld [vmem:[%s7 + $0x24] sm:$0xf]
          %v3937 = vld [vmem:[%s7 + $0x28] sm:$0xf]
          %v3938 = vld [vmem:[%s7 + $0x2c] sm:$0xf]
          %v3939 = vld [vmem:[%s7 + $0x30] sm:$0xf]
          %v3940 = vld [vmem:[%s7 + $0x34] sm:$0xf]
          %v3941 = vld [vmem:[%s7 + $0x38] sm:$0xf]
          %v3942 = vld [vmem:[%s7 + $0x3c] sm:$0xf]
          %v3959 = vunpack.c.l.b16 %v3927
          %v3960 = vunpack.c.l.b16 %v3928
          %v3961 = vunpack.c.l.b16 %v3929
          %v3962 = vunpack.c.l.b16 %v3930
          %v3963 = vunpack.c.l.b16 %v3931
          %v3964 = vunpack.c.l.b16 %v3932
          %v3965 = vunpack.c.l.b16 %v3933
          %v3966 = vunpack.c.l.b16 %v3934
          %v3967 = vunpack.c.l.b16 %v3935
          %v3968 = vunpack.c.l.b16 %v3936
          %v3969 = vunpack.c.l.b16 %v3937
          %v3970 = vunpack.c.l.b16 %v3938
          %v3971 = vunpack.c.l.b16 %v3939
          %v3972 = vunpack.c.l.b16 %v3940
          %v3973 = vunpack.c.l.b16 %v3941
          %v3974 = vunpack.c.l.b16 %v3942
          %v3975 = vpack.c.b16 %v3960, %v3959
          %v3976 = vpack.c.b16 %v3962, %v3961
          %v3977 = vpack.c.b16 %v3964, %v3963
          %v3978 = vpack.c.b16 %v3966, %v3965
          %v3979 = vpack.c.b16 %v3968, %v3967
          %v3980 = vpack.c.b16 %v3970, %v3969
          %v3981 = vpack.c.b16 %v3972, %v3971
          %v3982 = vpack.c.b16 %v3974, %v3973
          %3991 = vmatprep.subr.bf16.mxu0 0
          %3992 = vmatpush1.bf16.xpose.msra.mxu0 %v3975
          %3993 = vmatprep.subr.bf16.mxu0 0
          %3994 = vmatpush1.bf16.xpose.msra.mxu0 %v3976
          %3995 = vmatprep.subr.bf16.mxu0 0
          %3996 = vmatpush1.bf16.xpose.msra.mxu0 %v3977
          %3997 = vmatprep.subr.bf16.mxu0 0
          %3998 = vmatpush1.bf16.xpose.msra.mxu0 %v3978
          %3999 = vmatprep.subr.bf16.mxu0 0
          %4000 = vmatpush1.bf16.xpose.msra.mxu0 %v3979
          %4001 = vmatprep.subr.bf16.mxu0 0
          %4002 = vmatpush1.bf16.xpose.msra.mxu0 %v3980
          %4003 = vmatprep.subr.bf16.mxu0 0
          %4004 = vmatpush1.bf16.xpose.msra.mxu0 %v3981
          %4005 = vmatprep.subr.bf16.mxu0 0
          %4006 = vmatpush1.bf16.xpose.msra.mxu0 %v3982
          %4007 = vmatprep.subr.bf16.mxu0 0
          %4008 = vmatpush1.bf16.xpose.msra.mxu0 0
          %4009 = vmatprep.subr.bf16.mxu0 0
          %4010 = vmatpush1.bf16.xpose.msra.mxu0 0
          %4011 = vmatprep.subr.bf16.mxu0 0
          %4012 = vmatpush1.bf16.xpose.msra.mxu0 0
          %4013 = vmatprep.subr.bf16.mxu0 0
          %4014 = vmatpush1.bf16.xpose.msra.mxu0 0
          %4015 = vmatprep.subr.bf16.mxu0 0
          %4016 = vmatpush1.bf16.xpose.msra.mxu0 0
          %4017 = vmatprep.subr.bf16.mxu0 0
          %4018 = vmatpush1.bf16.xpose.msra.mxu0 0
          %4019 = vmatprep.subr.bf16.mxu0 0
          %4020 = vmatpush1.bf16.xpose.msra.mxu0 0
          %4021 = vmatprep.subr.bf16.mxu0 0
          %4022 = vmatpush1.bf16.xpose.msra.mxu0 0
          %4023 = vmatprep.mubr.bf16.mxu0 0
          %4024 = vmatmul.mubr.bf16.gmra.mrb[0].mxu0 %v3464
          %v4025 = vpop.f32.mrb[0].mxu0
          %v4026 = vadd.f32 0.0, %v4025
          %v4027 = vpop.f32.mrb[0].mxu0
          %v4028 = vpop.f32.mrb[0].mxu0
          %v4029 = vpop.f32.mrb[0].mxu0
          %4030 = vdwg.mxu0
          %4031 = vst [vmem:[%s966] sm:$0xff] %v4026
          %s4032 = scalar_lea.vmem %s7, 64
          %v4033 = vld [vmem:[%s4032] sm:$0xf]
          %v4034 = vld [vmem:[%s4032 + $0x4] sm:$0xf]
          %v4035 = vld [vmem:[%s4032 + $0x8] sm:$0xf]
          %v4036 = vld [vmem:[%s4032 + $0xc] sm:$0xf]
          %v4037 = vld [vmem:[%s4032 + $0x10] sm:$0xf]
          %v4038 = vld [vmem:[%s4032 + $0x14] sm:$0xf]
          %v4039 = vld [vmem:[%s4032 + $0x18] sm:$0xf]
          %v4040 = vld [vmem:[%s4032 + $0x1c] sm:$0xf]
          %v4041 = vld [vmem:[%s4032 + $0x20] sm:$0xf]
          %v4042 = vld [vmem:[%s4032 + $0x24] sm:$0xf]
          %v4043 = vld [vmem:[%s4032 + $0x28] sm:$0xf]
          %v4044 = vld [vmem:[%s4032 + $0x2c] sm:$0xf]
          %v4045 = vld [vmem:[%s4032 + $0x30] sm:$0xf]
          %v4046 = vld [vmem:[%s4032 + $0x34] sm:$0xf]
          %v4047 = vld [vmem:[%s4032 + $0x38] sm:$0xf]
          %v4048 = vld [vmem:[%s4032 + $0x3c] sm:$0xf]
          %v4065 = vunpack.c.l.b16 %v4033
          %v4066 = vunpack.c.l.b16 %v4034
          %v4067 = vunpack.c.l.b16 %v4035
          %v4068 = vunpack.c.l.b16 %v4036
          %v4069 = vunpack.c.l.b16 %v4037
          %v4070 = vunpack.c.l.b16 %v4038
          %v4071 = vunpack.c.l.b16 %v4039
          %v4072 = vunpack.c.l.b16 %v4040
          %v4073 = vunpack.c.l.b16 %v4041
          %v4074 = vunpack.c.l.b16 %v4042
          %v4075 = vunpack.c.l.b16 %v4043
          %v4076 = vunpack.c.l.b16 %v4044
          %v4077 = vunpack.c.l.b16 %v4045
          %v4078 = vunpack.c.l.b16 %v4046
          %v4079 = vunpack.c.l.b16 %v4047
          %v4080 = vunpack.c.l.b16 %v4048
          %v4081 = vpack.c.b16 %v4066, %v4065
          %v4082 = vpack.c.b16 %v4068, %v4067
          %v4083 = vpack.c.b16 %v4070, %v4069
          %v4084 = vpack.c.b16 %v4072, %v4071
          %v4085 = vpack.c.b16 %v4074, %v4073
          %v4086 = vpack.c.b16 %v4076, %v4075
          %v4087 = vpack.c.b16 %v4078, %v4077
          %v4088 = vpack.c.b16 %v4080, %v4079
          %4097 = vmatprep.subr.bf16.mxu0 0
          %4098 = vmatpush1.bf16.xpose.msra.mxu0 %v4081
          %4099 = vmatprep.subr.bf16.mxu0 0
          %4100 = vmatpush1.bf16.xpose.msra.mxu0 %v4082
          %4101 = vmatprep.subr.bf16.mxu0 0
          %4102 = vmatpush1.bf16.xpose.msra.mxu0 %v4083
          %4103 = vmatprep.subr.bf16.mxu0 0
          %4104 = vmatpush1.bf16.xpose.msra.mxu0 %v4084
          %4105 = vmatprep.subr.bf16.mxu0 0
          %4106 = vmatpush1.bf16.xpose.msra.mxu0 %v4085
          %4107 = vmatprep.subr.bf16.mxu0 0
          %4108 = vmatpush1.bf16.xpose.msra.mxu0 %v4086
          %4109 = vmatprep.subr.bf16.mxu0 0
          %4110 = vmatpush1.bf16.xpose.msra.mxu0 %v4087
          %4111 = vmatprep.subr.bf16.mxu0 0
          %4112 = vmatpush1.bf16.xpose.msra.mxu0 %v4088
          %4113 = vmatprep.subr.bf16.mxu0 0
          %4114 = vmatpush1.bf16.xpose.msra.mxu0 0
          %4115 = vmatprep.subr.bf16.mxu0 0
          %4116 = vmatpush1.bf16.xpose.msra.mxu0 0
          %4117 = vmatprep.subr.bf16.mxu0 0
          %4118 = vmatpush1.bf16.xpose.msra.mxu0 0
          %4119 = vmatprep.subr.bf16.mxu0 0
          %4120 = vmatpush1.bf16.xpose.msra.mxu0 0
          %4121 = vmatprep.subr.bf16.mxu0 0
          %4122 = vmatpush1.bf16.xpose.msra.mxu0 0
          %4123 = vmatprep.subr.bf16.mxu0 0
          %4124 = vmatpush1.bf16.xpose.msra.mxu0 0
          %4125 = vmatprep.subr.bf16.mxu0 0
          %4126 = vmatpush1.bf16.xpose.msra.mxu0 0
          %4127 = vmatprep.subr.bf16.mxu0 0
          %4128 = vmatpush1.bf16.xpose.msra.mxu0 0
          %4129 = vmatprep.mubr.bf16.mxu0 0
          %4130 = vmatmul.mubr.bf16.gmra.mrb[0].mxu0 %v3695
          %v4131 = vpop.f32.mrb[0].mxu0
          %v4132 = vadd.f32 0.0, %v4131
          %v4133 = vpop.f32.mrb[0].mxu0
          %v4134 = vpop.f32.mrb[0].mxu0
          %v4135 = vpop.f32.mrb[0].mxu0
          %4136 = vdwg.mxu0
          %4137 = vst [vmem:[%s970] sm:$0xff] %v4132
          %v4138 = vld [vmem:[%s8] sm:$0xf]
          %v4139 = vld [vmem:[%s8 + $0x4] sm:$0xf]
          %v4140 = vld [vmem:[%s8 + $0x8] sm:$0xf]
          %v4141 = vld [vmem:[%s8 + $0xc] sm:$0xf]
          %v4142 = vld [vmem:[%s8 + $0x10] sm:$0xf]
          %v4143 = vld [vmem:[%s8 + $0x14] sm:$0xf]
          %v4144 = vld [vmem:[%s8 + $0x18] sm:$0xf]
          %v4145 = vld [vmem:[%s8 + $0x1c] sm:$0xf]
          %v4146 = vld [vmem:[%s8 + $0x20] sm:$0xf]
          %v4147 = vld [vmem:[%s8 + $0x24] sm:$0xf]
          %v4148 = vld [vmem:[%s8 + $0x28] sm:$0xf]
          %v4149 = vld [vmem:[%s8 + $0x2c] sm:$0xf]
          %v4150 = vld [vmem:[%s8 + $0x30] sm:$0xf]
          %v4151 = vld [vmem:[%s8 + $0x34] sm:$0xf]
          %v4152 = vld [vmem:[%s8 + $0x38] sm:$0xf]
          %v4153 = vld [vmem:[%s8 + $0x3c] sm:$0xf]
          %v4170 = vunpack.c.l.b16 %v4138
          %v4171 = vunpack.c.l.b16 %v4139
          %v4172 = vunpack.c.l.b16 %v4140
          %v4173 = vunpack.c.l.b16 %v4141
          %v4174 = vunpack.c.l.b16 %v4142
          %v4175 = vunpack.c.l.b16 %v4143
          %v4176 = vunpack.c.l.b16 %v4144
          %v4177 = vunpack.c.l.b16 %v4145
          %v4178 = vunpack.c.l.b16 %v4146
          %v4179 = vunpack.c.l.b16 %v4147
          %v4180 = vunpack.c.l.b16 %v4148
          %v4181 = vunpack.c.l.b16 %v4149
          %v4182 = vunpack.c.l.b16 %v4150
          %v4183 = vunpack.c.l.b16 %v4151
          %v4184 = vunpack.c.l.b16 %v4152
          %v4185 = vunpack.c.l.b16 %v4153
          %v4186 = vpack.c.b16 %v4171, %v4170
          %v4187 = vpack.c.b16 %v4173, %v4172
          %v4188 = vpack.c.b16 %v4175, %v4174
          %v4189 = vpack.c.b16 %v4177, %v4176
          %v4190 = vpack.c.b16 %v4179, %v4178
          %v4191 = vpack.c.b16 %v4181, %v4180
          %v4192 = vpack.c.b16 %v4183, %v4182
          %v4193 = vpack.c.b16 %v4185, %v4184
          %4202 = vmatprep.subr.bf16.mxu0 0
          %4203 = vmatpush1.bf16.msra.mxu0 %v4186
          %4204 = vmatprep.subr.bf16.mxu0 0
          %4205 = vmatpush1.bf16.msra.mxu0 %v4187
          %4206 = vmatprep.subr.bf16.mxu0 0
          %4207 = vmatpush1.bf16.msra.mxu0 %v4188
          %4208 = vmatprep.subr.bf16.mxu0 0
          %4209 = vmatpush1.bf16.msra.mxu0 %v4189
          %4210 = vmatprep.subr.bf16.mxu0 0
          %4211 = vmatpush1.bf16.msra.mxu0 %v4190
          %4212 = vmatprep.subr.bf16.mxu0 0
          %4213 = vmatpush1.bf16.msra.mxu0 %v4191
          %4214 = vmatprep.subr.bf16.mxu0 0
          %4215 = vmatpush1.bf16.msra.mxu0 %v4192
          %4216 = vmatprep.subr.bf16.mxu0 0
          %4217 = vmatpush1.bf16.msra.mxu0 %v4193
          %4218 = vmatprep.subr.bf16.mxu0 0
          %4219 = vmatpush1.bf16.msra.mxu0 0
          %4220 = vmatprep.subr.bf16.mxu0 0
          %4221 = vmatpush1.bf16.msra.mxu0 0
          %4222 = vmatprep.subr.bf16.mxu0 0
          %4223 = vmatpush1.bf16.msra.mxu0 0
          %4224 = vmatprep.subr.bf16.mxu0 0
          %4225 = vmatpush1.bf16.msra.mxu0 0
          %4226 = vmatprep.subr.bf16.mxu0 0
          %4227 = vmatpush1.bf16.msra.mxu0 0
          %4228 = vmatprep.subr.bf16.mxu0 0
          %4229 = vmatpush1.bf16.msra.mxu0 0
          %4230 = vmatprep.subr.bf16.mxu0 0
          %4231 = vmatpush1.bf16.msra.mxu0 0
          %4232 = vmatprep.subr.bf16.mxu0 0
          %4233 = vmatpush1.bf16.msra.mxu0 0
          %4234 = vmatprep.mubr.bf16.mxu0 0
          %4235 = vmatmul.mubr.bf16.gmra.mrb[0].mxu0 %v3926
          %v4236 = vpop.f32.mrb[0].mxu0
          %v4237 = vadd.f32 0.0, %v4236
          %v4238 = vpop.f32.mrb[0].mxu0
          %v4239 = vpop.f32.mrb[0].mxu0
          %v4240 = vpop.f32.mrb[0].mxu0
          %4241 = vdwg.mxu0
          %4242 = vst [vmem:[%s974] sm:$0xff] %v4237
        $region105: #{_lvar_val_forward.3} parent=92 // pred_fallthru
          _
        %p4243 = scmp.lt.s32.totalorder %s27, 0
        %s4244 = scalar_select %p4243, %s27, 0
        %s4245 = smul.addr %s4244, 8
        %s4246 = scalar_lea.vmem %s9, %s4245
        %p4247 = scmp.lt.s32.totalorder %s27, 0
        %s4248 = scalar_select %p4247, %s27, 0
        %s4249 = smul.addr %s4248, 8
        %s4250 = scalar_lea.vmem %s10, %s4249
        %p4251 = scmp.lt.s32.totalorder %s27, 0
        %s4252 = scalar_select %p4251, %s27, 0
        %s4253 = smul.addr %s4252, 8
        %s4254 = scalar_lea.vmem %s11, %s4253
        // Predicated region
        $region106: #{_lvar_val_forward.3} parent=92 // pred_check
          %p4255 = pneg %p249
        $region107: #{_lvar_val_forward.3} parent=92 // pred_check_branch
          %4257 = sbr.rel (%p4255) target = $region109
        $region108: #{_lvar_val_forward.3} parent=92 // pred_region
          _
        $region109: #{_lvar_val_forward.3} parent=92 // pred_fallthru
          _
        // Predicated region
        $region110: #{_lvar_val_forward.3} parent=92 // pred_check
          %p4258 = pneg %p275
        $region111: #{_lvar_val_forward.3} parent=92 // pred_check_branch
          %4260 = sbr.rel (%p4258) target = $region113
        $region112: #{_lvar_val_forward.3} parent=92 // pred_region
          _
        $region113: #{_lvar_val_forward.3} parent=92 // pred_fallthru
          _
        // Predicated region
        $region114: #{_lvar_val_forward.3} parent=92 // pred_check
          %p4261 = pneg %p301
        $region115: #{_lvar_val_forward.3} parent=92 // pred_check_branch
          %4263 = sbr.rel (%p4261) target = $region117
        $region116: #{_lvar_val_forward.3} parent=92 // pred_region
          _
        $region117: #{_lvar_val_forward.3} parent=92 // pred_fallthru
          _
        // Predicated region
        $region118: #{_lvar_val_forward.3} parent=92 // pred_check
          %p4264 = pneg %p249
        $region119: #{_lvar_val_forward.3} parent=92 // pred_check_branch
          %4266 = sbr.rel (%p4264) target = $region121
        $region120: #{_lvar_val_forward.3} parent=92 // pred_region
          %p4267 = scmp.lt.s32.totalorder %s27, 0
          %s4268 = scalar_select %p4267, %s27, 0
          %s4269 = smul.addr %s4268, 8
          %s4270 = scalar_lea.vmem %s9, %s4269
        $region121: #{_lvar_val_forward.3} parent=92 // pred_fallthru
          _
        // Predicated region
        $region122: #{_lvar_val_forward.3} parent=92 // pred_check
          %p4271 = pneg %p275
        $region123: #{_lvar_val_forward.3} parent=92 // pred_check_branch
          %4273 = sbr.rel (%p4271) target = $region125
        $region124: #{_lvar_val_forward.3} parent=92 // pred_region
          %p4274 = scmp.lt.s32.totalorder %s27, 0
          %s4275 = scalar_select %p4274, %s27, 0
          %s4276 = smul.addr %s4275, 8
          %s4277 = scalar_lea.vmem %s10, %s4276
        $region125: #{_lvar_val_forward.3} parent=92 // pred_fallthru
          _
        // Predicated region
        $region126: #{_lvar_val_forward.3} parent=92 // pred_check
          %p4278 = pneg %p301
        $region127: #{_lvar_val_forward.3} parent=92 // pred_check_branch
          %4280 = sbr.rel (%p4278) target = $region129
        $region128: #{_lvar_val_forward.3} parent=92 // pred_region
          %p4281 = scmp.lt.s32.totalorder %s27, 0
          %s4282 = scalar_select %p4281, %s27, 0
          %s4283 = smul.addr %s4282, 8
          %s4284 = scalar_lea.vmem %s11, %s4283
        $region129: #{_lvar_val_forward.3} parent=92 // pred_fallthru
          _
      $region93: #{_lvar_val_forward.3} parent=5 // pred_fallthru
        _
      %p4285 = scmp.le.s32.totalorder 2, %s18
      // Predicated region
      $region130: #{_lvar_val_forward.3} parent=5 // pred_check
        %p4286 = pneg %p4285
      $region131: #{_lvar_val_forward.3} parent=5 // pred_check_branch
        %4288 = sbr.rel (%p4286) target = $region133
      $region132: #{_lvar_val_forward.3} parent=5 // pred_region
        %s4289 = ssub.s32 %s18, 2
      $region133: #{_lvar_val_forward.3} parent=5 // pred_fallthru
        _
    $region6: #{_lvar_val_forward.3} parent=1 // loop_footer
      %s22 = sadd.s32 1, %s18
    $region7: #{_lvar_val_forward.3} parent=1 // loop_footer_branch
      %17 = sbr.rel target = $region3
    $region8: #{_lvar_val_forward.3} parent=1 // loop_exit
      _

// kernel: _lvar_val_forward.2
$region0: #{_lvar_val_forward.2}
  #allocation0 [shape = 'u32[]', space=smem, size = 0x4, offset = 0x4, fixed_abs, tag = 'smem constant byte address 0x4 - core index']
  #allocation1 [shape = 'u32[144,128]{1,0:T(1,128)}', space=vmem, size = 0x12000, scoped, tag = 'internal scratch']
  %s0 = inlined_call_operand.vmem [shape: bf16[2,128,128], index: 0, kind: input, shape index: {}]
  %s1 = inlined_call_operand.vmem [shape: bf16[2,128,128], index: 1, kind: input, shape index: {}]
  %s2 = inlined_call_operand.vmem [shape: f32[2,1,128], index: 2, kind: input, shape index: {}]
  %s3 = inlined_call_operand.vmem [shape: bf16[2,128,128], index: 3, kind: input, shape index: {}]
  %s4 = inlined_call_operand.vmem [shape: f32[2,1,128], index: 4, kind: input, shape index: {}]
  %s5 = inlined_call_operand.vmem [shape: f32[2,1,128], index: 5, kind: input, shape index: {}]
  %s6 = inlined_call_operand.vmem [shape: f32[2,1,128], index: 6, kind: input, shape index: {}]
  %s7 = inlined_call_operand.vmem [shape: bf16[2,128,256], index: 7, kind: input, shape index: {}]
  %s8 = inlined_call_operand.vmem [shape: f32[2,1,256], index: 8, kind: input, shape index: {}]
  %s9 = inlined_call_operand.vmem [shape: bf16[2,256,128], index: 9, kind: input, shape index: {}]
  %s10 = inlined_call_operand.vmem [shape: f32[2,1,128], index: 10, kind: input, shape index: {}]
  %s11 = inlined_call_operand.vmem [shape: f32[2,1,128], index: 11, kind: input, shape index: {}]
  %s12 = inlined_call_operand.vmem [shape: f32[2,1,128], index: 12, kind: input, shape index: {}]
  %s13 = inlined_call_operand.vmem [shape: bf16[2,128,128], index: 13, kind: output, shape index: {}]
  %s14 = sld [smem:[#allocation0]]
  $region62: #{_lvar_val_forward.2} parent=0
    _
  %s16 = ssub.s32 1, %s14
  %s17 = scalar_select 0, %s16, %s14
  // Predicated region
  $region2: #{_lvar_val_forward.2} parent=0 // pred_check
    _
  $region3: #{_lvar_val_forward.2} parent=0 // pred_check_branch
    %19 = sbr.rel (0) target = $region5
  $region4: #{_lvar_val_forward.2} parent=0 // pred_region
    _
  $region5: #{_lvar_val_forward.2} parent=0 // pred_fallthru
    _
  // Predicated region
  $region6: #{_lvar_val_forward.2} parent=0 // pred_check
    _
  $region7: #{_lvar_val_forward.2} parent=0 // pred_check_branch
    %21 = sbr.rel (0) target = $region9
  $region8: #{_lvar_val_forward.2} parent=0 // pred_region
    _
  $region9: #{_lvar_val_forward.2} parent=0 // pred_fallthru
    _
  // Predicated region
  $region10: #{_lvar_val_forward.2} parent=0 // pred_check
    _
  $region11: #{_lvar_val_forward.2} parent=0 // pred_check_branch
    %23 = sbr.rel (0) target = $region13
  $region12: #{_lvar_val_forward.2} parent=0 // pred_region
    _
  $region13: #{_lvar_val_forward.2} parent=0 // pred_fallthru
    _
  // Predicated region
  $region14: #{_lvar_val_forward.2} parent=0 // pred_check
    _
  $region15: #{_lvar_val_forward.2} parent=0 // pred_check_branch
    %25 = sbr.rel (0) target = $region17
  $region16: #{_lvar_val_forward.2} parent=0 // pred_region
    _
  $region17: #{_lvar_val_forward.2} parent=0 // pred_fallthru
    _
  // Predicated region
  $region18: #{_lvar_val_forward.2} parent=0 // pred_check
    _
  $region19: #{_lvar_val_forward.2} parent=0 // pred_check_branch
    %27 = sbr.rel (0) target = $region21
  $region20: #{_lvar_val_forward.2} parent=0 // pred_region
    _
  $region21: #{_lvar_val_forward.2} parent=0 // pred_fallthru
    _
  // Predicated region
  $region22: #{_lvar_val_forward.2} parent=0 // pred_check
    _
  $region23: #{_lvar_val_forward.2} parent=0 // pred_check_branch
    %29 = sbr.rel (0) target = $region25
  $region24: #{_lvar_val_forward.2} parent=0 // pred_region
    _
  $region25: #{_lvar_val_forward.2} parent=0 // pred_fallthru
    _
  // Predicated region
  $region26: #{_lvar_val_forward.2} parent=0 // pred_check
    _
  $region27: #{_lvar_val_forward.2} parent=0 // pred_check_branch
    %31 = sbr.rel (0) target = $region29
  $region28: #{_lvar_val_forward.2} parent=0 // pred_region
    _
  $region29: #{_lvar_val_forward.2} parent=0 // pred_fallthru
    _
  // Predicated region
  $region30: #{_lvar_val_forward.2} parent=0 // pred_check
    _
  $region31: #{_lvar_val_forward.2} parent=0 // pred_check_branch
    %33 = sbr.rel (0) target = $region33
  $region32: #{_lvar_val_forward.2} parent=0 // pred_region
    _
  $region33: #{_lvar_val_forward.2} parent=0 // pred_fallthru
    _
  // Predicated region
  $region34: #{_lvar_val_forward.2} parent=0 // pred_check
    _
  $region35: #{_lvar_val_forward.2} parent=0 // pred_check_branch
    %35 = sbr.rel (0) target = $region37
  $region36: #{_lvar_val_forward.2} parent=0 // pred_region
    _
  $region37: #{_lvar_val_forward.2} parent=0 // pred_fallthru
    _
  // Predicated region
  $region38: #{_lvar_val_forward.2} parent=0 // pred_check
    _
  $region39: #{_lvar_val_forward.2} parent=0 // pred_check_branch
    %37 = sbr.rel (0) target = $region41
  $region40: #{_lvar_val_forward.2} parent=0 // pred_region
    _
  $region41: #{_lvar_val_forward.2} parent=0 // pred_fallthru
    _
  // Predicated region
  $region42: #{_lvar_val_forward.2} parent=0 // pred_check
    _
  $region43: #{_lvar_val_forward.2} parent=0 // pred_check_branch
    %39 = sbr.rel (0) target = $region45
  $region44: #{_lvar_val_forward.2} parent=0 // pred_region
    _
  $region45: #{_lvar_val_forward.2} parent=0 // pred_fallthru
    _
  // Predicated region
  $region46: #{_lvar_val_forward.2} parent=0 // pred_check
    _
  $region47: #{_lvar_val_forward.2} parent=0 // pred_check_branch
    %41 = sbr.rel (0) target = $region49
  $region48: #{_lvar_val_forward.2} parent=0 // pred_region
    _
  $region49: #{_lvar_val_forward.2} parent=0 // pred_fallthru
    _
  // Predicated region
  $region50: #{_lvar_val_forward.2} parent=0 // pred_check
    _
  $region51: #{_lvar_val_forward.2} parent=0 // pred_check_branch
    %43 = sbr.rel (0) target = $region53
  $region52: #{_lvar_val_forward.2} parent=0 // pred_region
    _
  $region53: #{_lvar_val_forward.2} parent=0 // pred_fallthru
    _
  %v45 = vld [vmem:[%s0] sm:$0xf]
  %v46 = vld [vmem:[%s0 + $0x4] sm:$0xf]
  %v47 = vld [vmem:[%s0 + $0x8] sm:$0xf]
  %v48 = vld [vmem:[%s0 + $0xc] sm:$0xf]
  %v49 = vld [vmem:[%s0 + $0x10] sm:$0xf]
  %v50 = vld [vmem:[%s0 + $0x14] sm:$0xf]
  %v51 = vld [vmem:[%s0 + $0x18] sm:$0xf]
  %v52 = vld [vmem:[%s0 + $0x1c] sm:$0xf]
  %v53 = vld [vmem:[%s0 + $0x20] sm:$0xf]
  %v54 = vld [vmem:[%s0 + $0x24] sm:$0xf]
  %v55 = vld [vmem:[%s0 + $0x28] sm:$0xf]
  %v56 = vld [vmem:[%s0 + $0x2c] sm:$0xf]
  %v57 = vld [vmem:[%s0 + $0x30] sm:$0xf]
  %v58 = vld [vmem:[%s0 + $0x34] sm:$0xf]
  %v59 = vld [vmem:[%s0 + $0x38] sm:$0xf]
  %v60 = vld [vmem:[%s0 + $0x3c] sm:$0xf]
  %v61 = vunpack.c.l.bf16 %v45
  %v62 = vunpack.c.l.bf16 %v46
  %v63 = vunpack.c.l.bf16 %v47
  %v64 = vunpack.c.l.bf16 %v48
  %v65 = vunpack.c.l.bf16 %v49
  %v66 = vunpack.c.l.bf16 %v50
  %v67 = vunpack.c.l.bf16 %v51
  %v68 = vunpack.c.l.bf16 %v52
  %v69 = vunpack.c.l.bf16 %v53
  %v70 = vunpack.c.l.bf16 %v54
  %v71 = vunpack.c.l.bf16 %v55
  %v72 = vunpack.c.l.bf16 %v56
  %v73 = vunpack.c.l.bf16 %v57
  %v74 = vunpack.c.l.bf16 %v58
  %v75 = vunpack.c.l.bf16 %v59
  %v76 = vunpack.c.l.bf16 %v60
  %v77 = vld [vmem:[%s1] sm:$0xf]
  %v78 = vld [vmem:[%s1 + $0x4] sm:$0xf]
  %v79 = vld [vmem:[%s1 + $0x8] sm:$0xf]
  %v80 = vld [vmem:[%s1 + $0xc] sm:$0xf]
  %v81 = vld [vmem:[%s1 + $0x10] sm:$0xf]
  %v82 = vld [vmem:[%s1 + $0x14] sm:$0xf]
  %v83 = vld [vmem:[%s1 + $0x18] sm:$0xf]
  %v84 = vld [vmem:[%s1 + $0x1c] sm:$0xf]
  %v85 = vld [vmem:[%s1 + $0x20] sm:$0xf]
  %v86 = vld [vmem:[%s1 + $0x24] sm:$0xf]
  %v87 = vld [vmem:[%s1 + $0x28] sm:$0xf]
  %v88 = vld [vmem:[%s1 + $0x2c] sm:$0xf]
  %v89 = vld [vmem:[%s1 + $0x30] sm:$0xf]
  %v90 = vld [vmem:[%s1 + $0x34] sm:$0xf]
  %v91 = vld [vmem:[%s1 + $0x38] sm:$0xf]
  %v92 = vld [vmem:[%s1 + $0x3c] sm:$0xf]
  %v93 = vld [vmem:[%s2] sm:$0x1]
  %v95 = vlaneseq
  %v96 = vshrl.u32 %v95, 7
  %v97 = vsub.s32 0, %v96
  %v98 = vrot.slane %v93, %v97
  %v116 = vunpack.c.l.b16 %v45
  %v117 = vunpack.c.l.b16 %v46
  %v118 = vunpack.c.l.b16 %v47
  %v119 = vunpack.c.l.b16 %v48
  %v120 = vunpack.c.l.b16 %v49
  %v121 = vunpack.c.l.b16 %v50
  %v122 = vunpack.c.l.b16 %v51
  %v123 = vunpack.c.l.b16 %v52
  %v124 = vunpack.c.l.b16 %v53
  %v125 = vunpack.c.l.b16 %v54
  %v126 = vunpack.c.l.b16 %v55
  %v127 = vunpack.c.l.b16 %v56
  %v128 = vunpack.c.l.b16 %v57
  %v129 = vunpack.c.l.b16 %v58
  %v130 = vunpack.c.l.b16 %v59
  %v131 = vunpack.c.l.b16 %v60
  %v132 = vpack.c.b16 %v117, %v116
  %v133 = vpack.c.b16 %v119, %v118
  %v134 = vpack.c.b16 %v121, %v120
  %v135 = vpack.c.b16 %v123, %v122
  %v136 = vpack.c.b16 %v125, %v124
  %v137 = vpack.c.b16 %v127, %v126
  %v138 = vpack.c.b16 %v129, %v128
  %v139 = vpack.c.b16 %v131, %v130
  %v164 = vunpack.c.l.b16 %v77
  %v165 = vunpack.c.l.b16 %v78
  %v166 = vunpack.c.l.b16 %v79
  %v167 = vunpack.c.l.b16 %v80
  %v168 = vunpack.c.l.b16 %v81
  %v169 = vunpack.c.l.b16 %v82
  %v170 = vunpack.c.l.b16 %v83
  %v171 = vunpack.c.l.b16 %v84
  %v172 = vunpack.c.l.b16 %v85
  %v173 = vunpack.c.l.b16 %v86
  %v174 = vunpack.c.l.b16 %v87
  %v175 = vunpack.c.l.b16 %v88
  %v176 = vunpack.c.l.b16 %v89
  %v177 = vunpack.c.l.b16 %v90
  %v178 = vunpack.c.l.b16 %v91
  %v179 = vunpack.c.l.b16 %v92
  %v180 = vpack.c.b16 %v165, %v164
  %v181 = vpack.c.b16 %v167, %v166
  %v182 = vpack.c.b16 %v169, %v168
  %v183 = vpack.c.b16 %v171, %v170
  %v184 = vpack.c.b16 %v173, %v172
  %v185 = vpack.c.b16 %v175, %v174
  %v186 = vpack.c.b16 %v177, %v176
  %v187 = vpack.c.b16 %v179, %v178
  %196 = vmatprep.subr.bf16.mxu0 0
  %197 = vmatpush1.bf16.msra.mxu0 %v180
  %198 = vmatprep.subr.bf16.mxu0 0
  %199 = vmatpush1.bf16.msra.mxu0 %v181
  %200 = vmatprep.subr.bf16.mxu0 0
  %201 = vmatpush1.bf16.msra.mxu0 %v182
  %202 = vmatprep.subr.bf16.mxu0 0
  %203 = vmatpush1.bf16.msra.mxu0 %v183
  %204 = vmatprep.subr.bf16.mxu0 0
  %205 = vmatpush1.bf16.msra.mxu0 %v184
  %206 = vmatprep.subr.bf16.mxu0 0
  %207 = vmatpush1.bf16.msra.mxu0 %v185
  %208 = vmatprep.subr.bf16.mxu0 0
  %209 = vmatpush1.bf16.msra.mxu0 %v186
  %210 = vmatprep.subr.bf16.mxu0 0
  %211 = vmatpush1.bf16.msra.mxu0 %v187
  %212 = vmatprep.subr.bf16.mxu0 0
  %213 = vmatpush1.bf16.msra.mxu0 0
  %214 = vmatprep.subr.bf16.mxu0 0
  %215 = vmatpush1.bf16.msra.mxu0 0
  %216 = vmatprep.subr.bf16.mxu0 0
  %217 = vmatpush1.bf16.msra.mxu0 0
  %218 = vmatprep.subr.bf16.mxu0 0
  %219 = vmatpush1.bf16.msra.mxu0 0
  %220 = vmatprep.subr.bf16.mxu0 0
  %221 = vmatpush1.bf16.msra.mxu0 0
  %222 = vmatprep.subr.bf16.mxu0 0
  %223 = vmatpush1.bf16.msra.mxu0 0
  %224 = vmatprep.subr.bf16.mxu0 0
  %225 = vmatpush1.bf16.msra.mxu0 0
  %226 = vmatprep.subr.bf16.mxu0 0
  %227 = vmatpush1.bf16.msra.mxu0 0
  %228 = vmatprep.mubr.bf16.mxu0 0
  %229 = vmatmul.mubr.bf16.gmra.mrb[0].mxu0 %v132
  %v230 = vpop.f32.mrb[0].mxu0
  %v231 = vadd.f32 %v98, %v230
  %v232 = vpop.f32.mrb[0].mxu0
  %v233 = vpop.f32.mrb[0].mxu0
  %v234 = vadd.f32 %v98, %v233
  %v235 = vpop.f32.mrb[0].mxu0
  %236 = vmatprep.mubr.bf16.mxu0 0
  %237 = vmatmul.mubr.bf16.gmra.mrb[0].mxu0 %v133
  %v238 = vpop.f32.mrb[0].mxu0
  %v239 = vadd.f32 %v98, %v238
  %v240 = vpop.f32.mrb[0].mxu0
  %v241 = vpop.f32.mrb[0].mxu0
  %v242 = vadd.f32 %v98, %v241
  %v243 = vpop.f32.mrb[0].mxu0
  %244 = vmatprep.mubr.bf16.mxu0 0
  %245 = vmatmul.mubr.bf16.gmra.mrb[0].mxu0 %v134
  %v246 = vpop.f32.mrb[0].mxu0
  %v247 = vadd.f32 %v98, %v246
  %v248 = vpop.f32.mrb[0].mxu0
  %v249 = vpop.f32.mrb[0].mxu0
  %v250 = vadd.f32 %v98, %v249
  %v251 = vpop.f32.mrb[0].mxu0
  %252 = vmatprep.mubr.bf16.mxu0 0
  %253 = vmatmul.mubr.bf16.gmra.mrb[0].mxu0 %v135
  %v254 = vpop.f32.mrb[0].mxu0
  %v255 = vadd.f32 %v98, %v254
  %v256 = vpop.f32.mrb[0].mxu0
  %v257 = vpop.f32.mrb[0].mxu0
  %v258 = vadd.f32 %v98, %v257
  %v259 = vpop.f32.mrb[0].mxu0
  %260 = vmatprep.mubr.bf16.mxu0 0
  %261 = vmatmul.mubr.bf16.gmra.mrb[0].mxu0 %v136
  %v262 = vpop.f32.mrb[0].mxu0
  %v263 = vadd.f32 %v98, %v262
  %v264 = vpop.f32.mrb[0].mxu0
  %v265 = vpop.f32.mrb[0].mxu0
  %v266 = vadd.f32 %v98, %v265
  %v267 = vpop.f32.mrb[0].mxu0
  %268 = vmatprep.mubr.bf16.mxu0 0
  %269 = vmatmul.mubr.bf16.gmra.mrb[0].mxu0 %v137
  %v270 = vpop.f32.mrb[0].mxu0
  %v271 = vadd.f32 %v98, %v270
  %v272 = vpop.f32.mrb[0].mxu0
  %v273 = vpop.f32.mrb[0].mxu0
  %v274 = vadd.f32 %v98, %v273
  %v275 = vpop.f32.mrb[0].mxu0
  %276 = vmatprep.mubr.bf16.mxu0 0
  %277 = vmatmul.mubr.bf16.gmra.mrb[0].mxu0 %v138
  %v278 = vpop.f32.mrb[0].mxu0
  %v279 = vadd.f32 %v98, %v278
  %v280 = vpop.f32.mrb[0].mxu0
  %v281 = vpop.f32.mrb[0].mxu0
  %v282 = vadd.f32 %v98, %v281
  %v283 = vpop.f32.mrb[0].mxu0
  %284 = vmatprep.mubr.bf16.mxu0 0
  %285 = vmatmul.mubr.bf16.gmra.mrb[0].mxu0 %v139
  %v286 = vpop.f32.mrb[0].mxu0
  %v287 = vadd.f32 %v98, %v286
  %v288 = vpop.f32.mrb[0].mxu0
  %v289 = vpop.f32.mrb[0].mxu0
  %v290 = vadd.f32 %v98, %v289
  %v291 = vpop.f32.mrb[0].mxu0
  %292 = vdwg.mxu0
  %v293 = vpack.c.bf16 %v234, %v231
  %v294 = vpack.c.bf16 %v242, %v239
  %v295 = vpack.c.bf16 %v250, %v247
  %v296 = vpack.c.bf16 %v258, %v255
  %v297 = vpack.c.bf16 %v266, %v263
  %v298 = vpack.c.bf16 %v274, %v271
  %v299 = vpack.c.bf16 %v282, %v279
  %v300 = vpack.c.bf16 %v290, %v287
  %v301 = vld [vmem:[%s3] sm:$0xf]
  %v302 = vld [vmem:[%s3 + $0x4] sm:$0xf]
  %v303 = vld [vmem:[%s3 + $0x8] sm:$0xf]
  %v304 = vld [vmem:[%s3 + $0xc] sm:$0xf]
  %v305 = vld [vmem:[%s3 + $0x10] sm:$0xf]
  %v306 = vld [vmem:[%s3 + $0x14] sm:$0xf]
  %v307 = vld [vmem:[%s3 + $0x18] sm:$0xf]
  %v308 = vld [vmem:[%s3 + $0x1c] sm:$0xf]
  %v309 = vld [vmem:[%s3 + $0x20] sm:$0xf]
  %v310 = vld [vmem:[%s3 + $0x24] sm:$0xf]
  %v311 = vld [vmem:[%s3 + $0x28] sm:$0xf]
  %v312 = vld [vmem:[%s3 + $0x2c] sm:$0xf]
  %v313 = vld [vmem:[%s3 + $0x30] sm:$0xf]
  %v314 = vld [vmem:[%s3 + $0x34] sm:$0xf]
  %v315 = vld [vmem:[%s3 + $0x38] sm:$0xf]
  %v316 = vld [vmem:[%s3 + $0x3c] sm:$0xf]
  %v317 = vld [vmem:[%s4] sm:$0x1]
  %v319 = vlaneseq
  %v320 = vshrl.u32 %v319, 7
  %v321 = vsub.s32 0, %v320
  %v322 = vrot.slane %v317, %v321
  %v340 = vunpack.c.l.b16 %v301
  %v341 = vunpack.c.l.b16 %v302
  %v342 = vunpack.c.l.b16 %v303
  %v343 = vunpack.c.l.b16 %v304
  %v344 = vunpack.c.l.b16 %v305
  %v345 = vunpack.c.l.b16 %v306
  %v346 = vunpack.c.l.b16 %v307
  %v347 = vunpack.c.l.b16 %v308
  %v348 = vunpack.c.l.b16 %v309
  %v349 = vunpack.c.l.b16 %v310
  %v350 = vunpack.c.l.b16 %v311
  %v351 = vunpack.c.l.b16 %v312
  %v352 = vunpack.c.l.b16 %v313
  %v353 = vunpack.c.l.b16 %v314
  %v354 = vunpack.c.l.b16 %v315
  %v355 = vunpack.c.l.b16 %v316
  %v356 = vpack.c.b16 %v341, %v340
  %v357 = vpack.c.b16 %v343, %v342
  %v358 = vpack.c.b16 %v345, %v344
  %v359 = vpack.c.b16 %v347, %v346
  %v360 = vpack.c.b16 %v349, %v348
  %v361 = vpack.c.b16 %v351, %v350
  %v362 = vpack.c.b16 %v353, %v352
  %v363 = vpack.c.b16 %v355, %v354
  %372 = vmatprep.subr.bf16.mxu0 0
  %373 = vmatpush1.bf16.msra.mxu0 %v356
  %374 = vmatprep.subr.bf16.mxu0 0
  %375 = vmatpush1.bf16.msra.mxu0 %v357
  %376 = vmatprep.subr.bf16.mxu0 0
  %377 = vmatpush1.bf16.msra.mxu0 %v358
  %378 = vmatprep.subr.bf16.mxu0 0
  %379 = vmatpush1.bf16.msra.mxu0 %v359
  %380 = vmatprep.subr.bf16.mxu0 0
  %381 = vmatpush1.bf16.msra.mxu0 %v360
  %382 = vmatprep.subr.bf16.mxu0 0
  %383 = vmatpush1.bf16.msra.mxu0 %v361
  %384 = vmatprep.subr.bf16.mxu0 0
  %385 = vmatpush1.bf16.msra.mxu0 %v362
  %386 = vmatprep.subr.bf16.mxu0 0
  %387 = vmatpush1.bf16.msra.mxu0 %v363
  %388 = vmatprep.subr.bf16.mxu0 0
  %389 = vmatpush1.bf16.msra.mxu0 0
  %390 = vmatprep.subr.bf16.mxu0 0
  %391 = vmatpush1.bf16.msra.mxu0 0
  %392 = vmatprep.subr.bf16.mxu0 0
  %393 = vmatpush1.bf16.msra.mxu0 0
  %394 = vmatprep.subr.bf16.mxu0 0
  %395 = vmatpush1.bf16.msra.mxu0 0
  %396 = vmatprep.subr.bf16.mxu0 0
  %397 = vmatpush1.bf16.msra.mxu0 0
  %398 = vmatprep.subr.bf16.mxu0 0
  %399 = vmatpush1.bf16.msra.mxu0 0
  %400 = vmatprep.subr.bf16.mxu0 0
  %401 = vmatpush1.bf16.msra.mxu0 0
  %402 = vmatprep.subr.bf16.mxu0 0
  %403 = vmatpush1.bf16.msra.mxu0 0
  %404 = vmatprep.mubr.bf16.mxu0 0
  %405 = vmatmul.mubr.bf16.gmra.mrb[0].mxu0 %v293
  %v406 = vpop.f32.mrb[0].mxu0
  %v407 = vadd.f32 %v322, %v406
  %v408 = vpop.f32.mrb[0].mxu0
  %v409 = vpop.f32.mrb[0].mxu0
  %v410 = vadd.f32 %v322, %v409
  %v411 = vpop.f32.mrb[0].mxu0
  %412 = vmatprep.mubr.bf16.mxu0 0
  %413 = vmatmul.mubr.bf16.gmra.mrb[0].mxu0 %v294
  %v414 = vpop.f32.mrb[0].mxu0
  %v415 = vadd.f32 %v322, %v414
  %v416 = vpop.f32.mrb[0].mxu0
  %v417 = vpop.f32.mrb[0].mxu0
  %v418 = vadd.f32 %v322, %v417
  %v419 = vpop.f32.mrb[0].mxu0
  %420 = vmatprep.mubr.bf16.mxu0 0
  %421 = vmatmul.mubr.bf16.gmra.mrb[0].mxu0 %v295
  %v422 = vpop.f32.mrb[0].mxu0
  %v423 = vadd.f32 %v322, %v422
  %v424 = vpop.f32.mrb[0].mxu0
  %v425 = vpop.f32.mrb[0].mxu0
  %v426 = vadd.f32 %v322, %v425
  %v427 = vpop.f32.mrb[0].mxu0
  %428 = vmatprep.mubr.bf16.mxu0 0
  %429 = vmatmul.mubr.bf16.gmra.mrb[0].mxu0 %v296
  %v430 = vpop.f32.mrb[0].mxu0
  %v431 = vadd.f32 %v322, %v430
  %v432 = vpop.f32.mrb[0].mxu0
  %v433 = vpop.f32.mrb[0].mxu0
  %v434 = vadd.f32 %v322, %v433
  %v435 = vpop.f32.mrb[0].mxu0
  %436 = vmatprep.mubr.bf16.mxu0 0
  %437 = vmatmul.mubr.bf16.gmra.mrb[0].mxu0 %v297
  %v438 = vpop.f32.mrb[0].mxu0
  %v439 = vadd.f32 %v322, %v438
  %v440 = vpop.f32.mrb[0].mxu0
  %v441 = vpop.f32.mrb[0].mxu0
  %v442 = vadd.f32 %v322, %v441
  %v443 = vpop.f32.mrb[0].mxu0
  %444 = vmatprep.mubr.bf16.mxu0 0
  %445 = vmatmul.mubr.bf16.gmra.mrb[0].mxu0 %v298
  %v446 = vpop.f32.mrb[0].mxu0
  %v447 = vadd.f32 %v322, %v446
  %v448 = vpop.f32.mrb[0].mxu0
  %v449 = vpop.f32.mrb[0].mxu0
  %v450 = vadd.f32 %v322, %v449
  %v451 = vpop.f32.mrb[0].mxu0
  %452 = vmatprep.mubr.bf16.mxu0 0
  %453 = vmatmul.mubr.bf16.gmra.mrb[0].mxu0 %v299
  %v454 = vpop.f32.mrb[0].mxu0
  %v455 = vadd.f32 %v322, %v454
  %v456 = vpop.f32.mrb[0].mxu0
  %v457 = vpop.f32.mrb[0].mxu0
  %v458 = vadd.f32 %v322, %v457
  %v459 = vpop.f32.mrb[0].mxu0
  %460 = vmatprep.mubr.bf16.mxu0 0
  %461 = vmatmul.mubr.bf16.gmra.mrb[0].mxu0 %v300
  %v462 = vpop.f32.mrb[0].mxu0
  %v463 = vadd.f32 %v322, %v462
  %v464 = vpop.f32.mrb[0].mxu0
  %v465 = vpop.f32.mrb[0].mxu0
  %v466 = vadd.f32 %v322, %v465
  %v467 = vpop.f32.mrb[0].mxu0
  %468 = vdwg.mxu0
  %v469 = vadd.f32 %v61, %v407
  %v470 = vadd.f32 %v62, %v410
  %v471 = vadd.f32 %v63, %v415
  %v472 = vadd.f32 %v64, %v418
  %v473 = vadd.f32 %v65, %v423
  %v474 = vadd.f32 %v66, %v426
  %v475 = vadd.f32 %v67, %v431
  %v476 = vadd.f32 %v68, %v434
  %v477 = vadd.f32 %v69, %v439
  %v478 = vadd.f32 %v70, %v442
  %v479 = vadd.f32 %v71, %v447
  %v480 = vadd.f32 %v72, %v450
  %v481 = vadd.f32 %v73, %v455
  %v482 = vadd.f32 %v74, %v458
  %v483 = vadd.f32 %v75, %v463
  %v484 = vadd.f32 %v76, %v466
  %v485 = vld [vmem:[%s5] sm:$0x1]
  %v486 = vld [vmem:[%s6] sm:$0x1]
  %487 = vadd.xlane.f32.xlu0 %v469
  %v488 = vpop.xlane.xlu0 %487
  %489 = vadd.xlane.f32.xlu0 %v470
  %v490 = vpop.xlane.xlu0 %489
  %491 = vadd.xlane.f32.xlu0 %v471
  %v492 = vpop.xlane.xlu0 %491
  %493 = vadd.xlane.f32.xlu0 %v472
  %v494 = vpop.xlane.xlu0 %493
  %495 = vadd.xlane.f32.xlu0 %v473
  %v496 = vpop.xlane.xlu0 %495
  %497 = vadd.xlane.f32.xlu0 %v474
  %v498 = vpop.xlane.xlu0 %497
  %499 = vadd.xlane.f32.xlu0 %v475
  %v500 = vpop.xlane.xlu0 %499
  %501 = vadd.xlane.f32.xlu0 %v476
  %v502 = vpop.xlane.xlu0 %501
  %503 = vadd.xlane.f32.xlu0 %v477
  %v504 = vpop.xlane.xlu0 %503
  %505 = vadd.xlane.f32.xlu0 %v478
  %v506 = vpop.xlane.xlu0 %505
  %507 = vadd.xlane.f32.xlu0 %v479
  %v508 = vpop.xlane.xlu0 %507
  %509 = vadd.xlane.f32.xlu0 %v480
  %v510 = vpop.xlane.xlu0 %509
  %511 = vadd.xlane.f32.xlu0 %v481
  %v512 = vpop.xlane.xlu0 %511
  %513 = vadd.xlane.f32.xlu0 %v482
  %v514 = vpop.xlane.xlu0 %513
  %515 = vadd.xlane.f32.xlu0 %v483
  %v516 = vpop.xlane.xlu0 %515
  %517 = vadd.xlane.f32.xlu0 %v484
  %v518 = vpop.xlane.xlu0 %517
  %v519 = vrcp.pop 128.0
  %v520 = vmul.f32 %v488, %v519
  %v521 = vmul.f32 %v490, %v519
  %v522 = vmul.f32 %v492, %v519
  %v523 = vmul.f32 %v494, %v519
  %v524 = vmul.f32 %v496, %v519
  %v525 = vmul.f32 %v498, %v519
  %v526 = vmul.f32 %v500, %v519
  %v527 = vmul.f32 %v502, %v519
  %v528 = vmul.f32 %v504, %v519
  %v529 = vmul.f32 %v506, %v519
  %v530 = vmul.f32 %v508, %v519
  %v531 = vmul.f32 %v510, %v519
  %v532 = vmul.f32 %v512, %v519
  %v533 = vmul.f32 %v514, %v519
  %v534 = vmul.f32 %v516, %v519
  %v535 = vmul.f32 %v518, %v519
  %v536 = vsub.f32 %v469, %v520
  %v537 = vsub.f32 %v470, %v521
  %v538 = vsub.f32 %v471, %v522
  %v539 = vsub.f32 %v472, %v523
  %v540 = vsub.f32 %v473, %v524
  %v541 = vsub.f32 %v474, %v525
  %v542 = vsub.f32 %v475, %v526
  %v543 = vsub.f32 %v476, %v527
  %v544 = vsub.f32 %v477, %v528
  %v545 = vsub.f32 %v478, %v529
  %v546 = vsub.f32 %v479, %v530
  %v547 = vsub.f32 %v480, %v531
  %v548 = vsub.f32 %v481, %v532
  %v549 = vsub.f32 %v482, %v533
  %v550 = vsub.f32 %v483, %v534
  %v551 = vsub.f32 %v484, %v535
  %v552 = vmul.f32 %v536, %v536
  %v553 = vmul.f32 %v537, %v537
  %v554 = vmul.f32 %v538, %v538
  %v555 = vmul.f32 %v539, %v539
  %v556 = vmul.f32 %v540, %v540
  %v557 = vmul.f32 %v541, %v541
  %v558 = vmul.f32 %v542, %v542
  %v559 = vmul.f32 %v543, %v543
  %v560 = vmul.f32 %v544, %v544
  %v561 = vmul.f32 %v545, %v545
  %v562 = vmul.f32 %v546, %v546
  %v563 = vmul.f32 %v547, %v547
  %v564 = vmul.f32 %v548, %v548
  %v565 = vmul.f32 %v549, %v549
  %v566 = vmul.f32 %v550, %v550
  %v567 = vmul.f32 %v551, %v551
  %568 = vadd.xlane.f32.xlu0 %v552
  %v569 = vpop.xlane.xlu0 %568
  %570 = vadd.xlane.f32.xlu0 %v553
  %v571 = vpop.xlane.xlu0 %570
  %572 = vadd.xlane.f32.xlu0 %v554
  %v573 = vpop.xlane.xlu0 %572
  %574 = vadd.xlane.f32.xlu0 %v555
  %v575 = vpop.xlane.xlu0 %574
  %576 = vadd.xlane.f32.xlu0 %v556
  %v577 = vpop.xlane.xlu0 %576
  %578 = vadd.xlane.f32.xlu0 %v557
  %v579 = vpop.xlane.xlu0 %578
  %580 = vadd.xlane.f32.xlu0 %v558
  %v581 = vpop.xlane.xlu0 %580
  %582 = vadd.xlane.f32.xlu0 %v559
  %v583 = vpop.xlane.xlu0 %582
  %584 = vadd.xlane.f32.xlu0 %v560
  %v585 = vpop.xlane.xlu0 %584
  %586 = vadd.xlane.f32.xlu0 %v561
  %v587 = vpop.xlane.xlu0 %586
  %588 = vadd.xlane.f32.xlu0 %v562
  %v589 = vpop.xlane.xlu0 %588
  %590 = vadd.xlane.f32.xlu0 %v563
  %v591 = vpop.xlane.xlu0 %590
  %592 = vadd.xlane.f32.xlu0 %v564
  %v593 = vpop.xlane.xlu0 %592
  %594 = vadd.xlane.f32.xlu0 %v565
  %v595 = vpop.xlane.xlu0 %594
  %596 = vadd.xlane.f32.xlu0 %v566
  %v597 = vpop.xlane.xlu0 %596
  %598 = vadd.xlane.f32.xlu0 %v567
  %v599 = vpop.xlane.xlu0 %598
  %v600 = vmul.f32 %v569, %v519
  %v601 = vmul.f32 %v571, %v519
  %v602 = vmul.f32 %v573, %v519
  %v603 = vmul.f32 %v575, %v519
  %v604 = vmul.f32 %v577, %v519
  %v605 = vmul.f32 %v579, %v519
  %v606 = vmul.f32 %v581, %v519
  %v607 = vmul.f32 %v583, %v519
  %v608 = vmul.f32 %v585, %v519
  %v609 = vmul.f32 %v587, %v519
  %v610 = vmul.f32 %v589, %v519
  %v611 = vmul.f32 %v591, %v519
  %v612 = vmul.f32 %v593, %v519
  %v613 = vmul.f32 %v595, %v519
  %v614 = vmul.f32 %v597, %v519
  %v615 = vmul.f32 %v599, %v519
  %v616 = vadd.f32 %v600, 1e-05
  %v617 = vadd.f32 %v601, 1e-05
  %v618 = vadd.f32 %v602, 1e-05
  %v619 = vadd.f32 %v603, 1e-05
  %v620 = vadd.f32 %v604, 1e-05
  %v621 = vadd.f32 %v605, 1e-05
  %v622 = vadd.f32 %v606, 1e-05
  %v623 = vadd.f32 %v607, 1e-05
  %v624 = vadd.f32 %v608, 1e-05
  %v625 = vadd.f32 %v609, 1e-05
  %v626 = vadd.f32 %v610, 1e-05
  %v627 = vadd.f32 %v611, 1e-05
  %v628 = vadd.f32 %v612, 1e-05
  %v629 = vadd.f32 %v613, 1e-05
  %v630 = vadd.f32 %v614, 1e-05
  %v631 = vadd.f32 %v615, 1e-05
  %v632 = vrsqrt.pop %v616
  %v633 = vrsqrt.pop %v617
  %v634 = vrsqrt.pop %v618
  %v635 = vrsqrt.pop %v619
  %v636 = vrsqrt.pop %v620
  %v637 = vrsqrt.pop %v621
  %v638 = vrsqrt.pop %v622
  %v639 = vrsqrt.pop %v623
  %v640 = vrsqrt.pop %v624
  %v641 = vrsqrt.pop %v625
  %v642 = vrsqrt.pop %v626
  %v643 = vrsqrt.pop %v627
  %v644 = vrsqrt.pop %v628
  %v645 = vrsqrt.pop %v629
  %v646 = vrsqrt.pop %v630
  %v647 = vrsqrt.pop %v631
  %v648 = vmul.f32 %v536, %v632
  %v649 = vmul.f32 %v537, %v633
  %v650 = vmul.f32 %v538, %v634
  %v651 = vmul.f32 %v539, %v635
  %v652 = vmul.f32 %v540, %v636
  %v653 = vmul.f32 %v541, %v637
  %v654 = vmul.f32 %v542, %v638
  %v655 = vmul.f32 %v543, %v639
  %v656 = vmul.f32 %v544, %v640
  %v657 = vmul.f32 %v545, %v641
  %v658 = vmul.f32 %v546, %v642
  %v659 = vmul.f32 %v547, %v643
  %v660 = vmul.f32 %v548, %v644
  %v661 = vmul.f32 %v549, %v645
  %v662 = vmul.f32 %v550, %v646
  %v663 = vmul.f32 %v551, %v647
  %v665 = vlaneseq
  %v666 = vshrl.u32 %v665, 7
  %v667 = vsub.s32 0, %v666
  %v668 = vrot.slane %v485, %v667
  %v670 = vmul.f32 %v648, %v668
  %v671 = vmul.f32 %v649, %v668
  %v672 = vmul.f32 %v650, %v668
  %v673 = vmul.f32 %v651, %v668
  %v674 = vmul.f32 %v652, %v668
  %v675 = vmul.f32 %v653, %v668
  %v676 = vmul.f32 %v654, %v668
  %v677 = vmul.f32 %v655, %v668
  %v678 = vmul.f32 %v656, %v668
  %v679 = vmul.f32 %v657, %v668
  %v680 = vmul.f32 %v658, %v668
  %v681 = vmul.f32 %v659, %v668
  %v682 = vmul.f32 %v660, %v668
  %v683 = vmul.f32 %v661, %v668
  %v684 = vmul.f32 %v662, %v668
  %v685 = vmul.f32 %v663, %v668
  %v687 = vlaneseq
  %v688 = vshrl.u32 %v687, 7
  %v689 = vsub.s32 0, %v688
  %v690 = vrot.slane %v486, %v689
  %v692 = vadd.f32 %v670, %v690
  %v693 = vadd.f32 %v671, %v690
  %v694 = vadd.f32 %v672, %v690
  %v695 = vadd.f32 %v673, %v690
  %v696 = vadd.f32 %v674, %v690
  %v697 = vadd.f32 %v675, %v690
  %v698 = vadd.f32 %v676, %v690
  %v699 = vadd.f32 %v677, %v690
  %v700 = vadd.f32 %v678, %v690
  %v701 = vadd.f32 %v679, %v690
  %v702 = vadd.f32 %v680, %v690
  %v703 = vadd.f32 %v681, %v690
  %v704 = vadd.f32 %v682, %v690
  %v705 = vadd.f32 %v683, %v690
  %v706 = vadd.f32 %v684, %v690
  %v707 = vadd.f32 %v685, %v690
  %v708 = vpack.c.bf16 %v693, %v692
  %v709 = vpack.c.bf16 %v695, %v694
  %v710 = vpack.c.bf16 %v697, %v696
  %v711 = vpack.c.bf16 %v699, %v698
  %v712 = vpack.c.bf16 %v701, %v700
  %v713 = vpack.c.bf16 %v703, %v702
  %v714 = vpack.c.bf16 %v705, %v704
  %v715 = vpack.c.bf16 %v707, %v706
  %v716 = vld [vmem:[%s7] sm:$0xff]
  %v717 = vld [vmem:[%s7 + $0x8] sm:$0xff]
  %v718 = vld [vmem:[%s7 + $0x10] sm:$0xff]
  %v719 = vld [vmem:[%s7 + $0x18] sm:$0xff]
  %v720 = vld [vmem:[%s7 + $0x20] sm:$0xff]
  %v721 = vld [vmem:[%s7 + $0x28] sm:$0xff]
  %v722 = vld [vmem:[%s7 + $0x30] sm:$0xff]
  %v723 = vld [vmem:[%s7 + $0x38] sm:$0xff]
  %v724 = vld [vmem:[%s7 + $0x40] sm:$0xff]
  %v725 = vld [vmem:[%s7 + $0x48] sm:$0xff]
  %v726 = vld [vmem:[%s7 + $0x50] sm:$0xff]
  %v727 = vld [vmem:[%s7 + $0x58] sm:$0xff]
  %v728 = vld [vmem:[%s7 + $0x60] sm:$0xff]
  %v729 = vld [vmem:[%s7 + $0x68] sm:$0xff]
  %v730 = vld [vmem:[%s7 + $0x70] sm:$0xff]
  %v731 = vld [vmem:[%s7 + $0x78] sm:$0xff]
  %v732 = vld [vmem:[%s8] sm:$0x3]
  %v734 = vlaneseq
  %v735 = vshrl.u32 %v734, 7
  %v736 = vsub.s32 0, %v735
  %v737 = vrot.slane %v732, %v736
  %v738 = vlaneseq
  %v739 = vshrl.u32 %v738, 7
  %v740 = vsub.s32 1, %v739
  %v741 = vrot.slane %v732, %v740
  %v760 = vunpack.c.l.b16 %v716
  %v761 = vunpack.c.h.b16 %v716
  %v762 = vunpack.c.l.b16 %v717
  %v763 = vunpack.c.h.b16 %v717
  %v764 = vunpack.c.l.b16 %v718
  %v765 = vunpack.c.h.b16 %v718
  %v766 = vunpack.c.l.b16 %v719
  %v767 = vunpack.c.h.b16 %v719
  %v768 = vunpack.c.l.b16 %v720
  %v769 = vunpack.c.h.b16 %v720
  %v770 = vunpack.c.l.b16 %v721
  %v771 = vunpack.c.h.b16 %v721
  %v772 = vunpack.c.l.b16 %v722
  %v773 = vunpack.c.h.b16 %v722
  %v774 = vunpack.c.l.b16 %v723
  %v775 = vunpack.c.h.b16 %v723
  %v776 = vunpack.c.l.b16 %v724
  %v777 = vunpack.c.h.b16 %v724
  %v778 = vunpack.c.l.b16 %v725
  %v779 = vunpack.c.h.b16 %v725
  %v780 = vunpack.c.l.b16 %v726
  %v781 = vunpack.c.h.b16 %v726
  %v782 = vunpack.c.l.b16 %v727
  %v783 = vunpack.c.h.b16 %v727
  %v784 = vunpack.c.l.b16 %v728
  %v785 = vunpack.c.h.b16 %v728
  %v786 = vunpack.c.l.b16 %v729
  %v787 = vunpack.c.h.b16 %v729
  %v788 = vunpack.c.l.b16 %v730
  %v789 = vunpack.c.h.b16 %v730
  %v790 = vunpack.c.l.b16 %v731
  %v791 = vunpack.c.h.b16 %v731
  %v792 = vpack.c.b16 %v762, %v760
  %v793 = vpack.c.b16 %v763, %v761
  %v794 = vpack.c.b16 %v766, %v764
  %v795 = vpack.c.b16 %v767, %v765
  %v796 = vpack.c.b16 %v770, %v768
  %v797 = vpack.c.b16 %v771, %v769
  %v798 = vpack.c.b16 %v774, %v772
  %v799 = vpack.c.b16 %v775, %v773
  %v800 = vpack.c.b16 %v778, %v776
  %v801 = vpack.c.b16 %v779, %v777
  %v802 = vpack.c.b16 %v782, %v780
  %v803 = vpack.c.b16 %v783, %v781
  %v804 = vpack.c.b16 %v786, %v784
  %v805 = vpack.c.b16 %v787, %v785
  %v806 = vpack.c.b16 %v790, %v788
  %v807 = vpack.c.b16 %v791, %v789
  %824 = vmatprep.subr.bf16.mxu0 %v793
  %825 = vmatpush1.bf16.msra.mxu0 %v792
  %826 = vmatprep.subr.bf16.mxu0 %v795
  %827 = vmatpush1.bf16.msra.mxu0 %v794
  %828 = vmatprep.subr.bf16.mxu0 %v797
  %829 = vmatpush1.bf16.msra.mxu0 %v796
  %830 = vmatprep.subr.bf16.mxu0 %v799
  %831 = vmatpush1.bf16.msra.mxu0 %v798
  %832 = vmatprep.subr.bf16.mxu0 %v801
  %833 = vmatpush1.bf16.msra.mxu0 %v800
  %834 = vmatprep.subr.bf16.mxu0 %v803
  %835 = vmatpush1.bf16.msra.mxu0 %v802
  %836 = vmatprep.subr.bf16.mxu0 %v805
  %837 = vmatpush1.bf16.msra.mxu0 %v804
  %838 = vmatprep.subr.bf16.mxu0 %v807
  %839 = vmatpush1.bf16.msra.mxu0 %v806
  %840 = vmatprep.subr.bf16.mxu0 0
  %841 = vmatpush1.bf16.msra.mxu0 0
  %842 = vmatprep.subr.bf16.mxu0 0
  %843 = vmatpush1.bf16.msra.mxu0 0
  %844 = vmatprep.subr.bf16.mxu0 0
  %845 = vmatpush1.bf16.msra.mxu0 0
  %846 = vmatprep.subr.bf16.mxu0 0
  %847 = vmatpush1.bf16.msra.mxu0 0
  %848 = vmatprep.subr.bf16.mxu0 0
  %849 = vmatpush1.bf16.msra.mxu0 0
  %850 = vmatprep.subr.bf16.mxu0 0
  %851 = vmatpush1.bf16.msra.mxu0 0
  %852 = vmatprep.subr.bf16.mxu0 0
  %853 = vmatpush1.bf16.msra.mxu0 0
  %854 = vmatprep.subr.bf16.mxu0 0
  %855 = vmatpush1.bf16.msra.mxu0 0
  %856 = vmatprep.mubr.bf16.mxu0 0
  %857 = vmatmul.mubr.bf16.gmra.mrb[0].mxu0 %v708
  %v858 = vpop.f32.mrb[0].mxu0
  %v859 = vadd.f32 %v737, %v858
  %v860 = vpop.f32.mrb[0].mxu0
  %v861 = vadd.f32 %v741, %v860
  %v862 = vpop.f32.mrb[0].mxu0
  %v863 = vadd.f32 %v737, %v862
  %v864 = vpop.f32.mrb[0].mxu0
  %v865 = vadd.f32 %v741, %v864
  %866 = vmatprep.mubr.bf16.mxu0 0
  %867 = vmatmul.mubr.bf16.gmra.mrb[0].mxu0 %v709
  %v868 = vpop.f32.mrb[0].mxu0
  %v869 = vadd.f32 %v737, %v868
  %v870 = vpop.f32.mrb[0].mxu0
  %v871 = vadd.f32 %v741, %v870
  %v872 = vpop.f32.mrb[0].mxu0
  %v873 = vadd.f32 %v737, %v872
  %v874 = vpop.f32.mrb[0].mxu0
  %v875 = vadd.f32 %v741, %v874
  %876 = vmatprep.mubr.bf16.mxu0 0
  %877 = vmatmul.mubr.bf16.gmra.mrb[0].mxu0 %v710
  %v878 = vpop.f32.mrb[0].mxu0
  %v879 = vadd.f32 %v737, %v878
  %v880 = vpop.f32.mrb[0].mxu0
  %v881 = vadd.f32 %v741, %v880
  %v882 = vpop.f32.mrb[0].mxu0
  %v883 = vadd.f32 %v737, %v882
  %v884 = vpop.f32.mrb[0].mxu0
  %v885 = vadd.f32 %v741, %v884
  %886 = vmatprep.mubr.bf16.mxu0 0
  %887 = vmatmul.mubr.bf16.gmra.mrb[0].mxu0 %v711
  %v888 = vpop.f32.mrb[0].mxu0
  %v889 = vadd.f32 %v737, %v888
  %v890 = vpop.f32.mrb[0].mxu0
  %v891 = vadd.f32 %v741, %v890
  %v892 = vpop.f32.mrb[0].mxu0
  %v893 = vadd.f32 %v737, %v892
  %v894 = vpop.f32.mrb[0].mxu0
  %v895 = vadd.f32 %v741, %v894
  %896 = vmatprep.mubr.bf16.mxu0 0
  %897 = vmatmul.mubr.bf16.gmra.mrb[0].mxu0 %v712
  %v898 = vpop.f32.mrb[0].mxu0
  %v899 = vadd.f32 %v737, %v898
  %v900 = vpop.f32.mrb[0].mxu0
  %v901 = vadd.f32 %v741, %v900
  %v902 = vpop.f32.mrb[0].mxu0
  %v903 = vadd.f32 %v737, %v902
  %v904 = vpop.f32.mrb[0].mxu0
  %v905 = vadd.f32 %v741, %v904
  %906 = vmatprep.mubr.bf16.mxu0 0
  %907 = vmatmul.mubr.bf16.gmra.mrb[0].mxu0 %v713
  %v908 = vpop.f32.mrb[0].mxu0
  %v909 = vadd.f32 %v737, %v908
  %v910 = vpop.f32.mrb[0].mxu0
  %v911 = vadd.f32 %v741, %v910
  %v912 = vpop.f32.mrb[0].mxu0
  %v913 = vadd.f32 %v737, %v912
  %v914 = vpop.f32.mrb[0].mxu0
  %v915 = vadd.f32 %v741, %v914
  %916 = vmatprep.mubr.bf16.mxu0 0
  %917 = vmatmul.mubr.bf16.gmra.mrb[0].mxu0 %v714
  %v918 = vpop.f32.mrb[0].mxu0
  %v919 = vadd.f32 %v737, %v918
  %v920 = vpop.f32.mrb[0].mxu0
  %v921 = vadd.f32 %v741, %v920
  %v922 = vpop.f32.mrb[0].mxu0
  %v923 = vadd.f32 %v737, %v922
  %v924 = vpop.f32.mrb[0].mxu0
  %v925 = vadd.f32 %v741, %v924
  %926 = vmatprep.mubr.bf16.mxu0 0
  %927 = vmatmul.mubr.bf16.gmra.mrb[0].mxu0 %v715
  %v928 = vpop.f32.mrb[0].mxu0
  %v929 = vadd.f32 %v737, %v928
  %v930 = vpop.f32.mrb[0].mxu0
  %v931 = vadd.f32 %v741, %v930
  %v932 = vpop.f32.mrb[0].mxu0
  %v933 = vadd.f32 %v737, %v932
  %v934 = vpop.f32.mrb[0].mxu0
  %v935 = vadd.f32 %v741, %v934
  %936 = vdwg.mxu0
  %v937 = vmax.f32 %v859, 0.0
  %v938 = vmax.f32 %v861, 0.0
  %v939 = vmax.f32 %v863, 0.0
  %v940 = vmax.f32 %v865, 0.0
  %v941 = vmax.f32 %v869, 0.0
  %v942 = vmax.f32 %v871, 0.0
  %v943 = vmax.f32 %v873, 0.0
  %v944 = vmax.f32 %v875, 0.0
  %v945 = vmax.f32 %v879, 0.0
  %v946 = vmax.f32 %v881, 0.0
  %v947 = vmax.f32 %v883, 0.0
  %v948 = vmax.f32 %v885, 0.0
  %v949 = vmax.f32 %v889, 0.0
  %v950 = vmax.f32 %v891, 0.0
  %v951 = vmax.f32 %v893, 0.0
  %v952 = vmax.f32 %v895, 0.0
  %v953 = vmax.f32 %v899, 0.0
  %v954 = vmax.f32 %v901, 0.0
  %v955 = vmax.f32 %v903, 0.0
  %v956 = vmax.f32 %v905, 0.0
  %v957 = vmax.f32 %v909, 0.0
  %v958 = vmax.f32 %v911, 0.0
  %v959 = vmax.f32 %v913, 0.0
  %v960 = vmax.f32 %v915, 0.0
  %v961 = vmax.f32 %v919, 0.0
  %v962 = vmax.f32 %v921, 0.0
  %v963 = vmax.f32 %v923, 0.0
  %v964 = vmax.f32 %v925, 0.0
  %v965 = vmax.f32 %v929, 0.0
  %v966 = vmax.f32 %v931, 0.0
  %v967 = vmax.f32 %v933, 0.0
  %v968 = vmax.f32 %v935, 0.0
  %v969 = vpack.c.bf16 %v939, %v937
  %v970 = vpack.c.bf16 %v940, %v938
  %v971 = vpack.c.bf16 %v943, %v941
  %v972 = vpack.c.bf16 %v944, %v942
  %v973 = vpack.c.bf16 %v947, %v945
  %v974 = vpack.c.bf16 %v948, %v946
  %v975 = vpack.c.bf16 %v951, %v949
  %v976 = vpack.c.bf16 %v952, %v950
  %v977 = vpack.c.bf16 %v955, %v953
  %v978 = vpack.c.bf16 %v956, %v954
  %v979 = vpack.c.bf16 %v959, %v957
  %v980 = vpack.c.bf16 %v960, %v958
  %v981 = vpack.c.bf16 %v963, %v961
  %v982 = vpack.c.bf16 %v964, %v962
  %v983 = vpack.c.bf16 %v967, %v965
  %v984 = vpack.c.bf16 %v968, %v966
  %v985 = vld [vmem:[%s9] sm:$0xf]
  %v986 = vld [vmem:[%s9 + $0x4] sm:$0xf]
  %v987 = vld [vmem:[%s9 + $0x8] sm:$0xf]
  %v988 = vld [vmem:[%s9 + $0xc] sm:$0xf]
  %v989 = vld [vmem:[%s9 + $0x10] sm:$0xf]
  %v990 = vld [vmem:[%s9 + $0x14] sm:$0xf]
  %v991 = vld [vmem:[%s9 + $0x18] sm:$0xf]
  %v992 = vld [vmem:[%s9 + $0x1c] sm:$0xf]
  %v993 = vld [vmem:[%s9 + $0x20] sm:$0xf]
  %v994 = vld [vmem:[%s9 + $0x24] sm:$0xf]
  %v995 = vld [vmem:[%s9 + $0x28] sm:$0xf]
  %v996 = vld [vmem:[%s9 + $0x2c] sm:$0xf]
  %v997 = vld [vmem:[%s9 + $0x30] sm:$0xf]
  %v998 = vld [vmem:[%s9 + $0x34] sm:$0xf]
  %v999 = vld [vmem:[%s9 + $0x38] sm:$0xf]
  %v1000 = vld [vmem:[%s9 + $0x3c] sm:$0xf]
  %v1001 = vld [vmem:[%s9 + $0x40] sm:$0xf]
  %v1002 = vld [vmem:[%s9 + $0x44] sm:$0xf]
  %v1003 = vld [vmem:[%s9 + $0x48] sm:$0xf]
  %v1004 = vld [vmem:[%s9 + $0x4c] sm:$0xf]
  %v1005 = vld [vmem:[%s9 + $0x50] sm:$0xf]
  %v1006 = vld [vmem:[%s9 + $0x54] sm:$0xf]
  %v1007 = vld [vmem:[%s9 + $0x58] sm:$0xf]
  %v1008 = vld [vmem:[%s9 + $0x5c] sm:$0xf]
  %v1009 = vld [vmem:[%s9 + $0x60] sm:$0xf]
  %v1010 = vld [vmem:[%s9 + $0x64] sm:$0xf]
  %v1011 = vld [vmem:[%s9 + $0x68] sm:$0xf]
  %v1012 = vld [vmem:[%s9 + $0x6c] sm:$0xf]
  %v1013 = vld [vmem:[%s9 + $0x70] sm:$0xf]
  %v1014 = vld [vmem:[%s9 + $0x74] sm:$0xf]
  %v1015 = vld [vmem:[%s9 + $0x78] sm:$0xf]
  %v1016 = vld [vmem:[%s9 + $0x7c] sm:$0xf]
  %v1017 = vld [vmem:[%s10] sm:$0x1]
  %v1019 = vlaneseq
  %v1020 = vshrl.u32 %v1019, 7
  %v1021 = vsub.s32 0, %v1020
  %v1022 = vrot.slane %v1017, %v1021
  %v1056 = vunpack.c.l.b16 %v985
  %v1057 = vunpack.c.l.b16 %v986
  %v1058 = vunpack.c.l.b16 %v987
  %v1059 = vunpack.c.l.b16 %v988
  %v1060 = vunpack.c.l.b16 %v989
  %v1061 = vunpack.c.l.b16 %v990
  %v1062 = vunpack.c.l.b16 %v991
  %v1063 = vunpack.c.l.b16 %v992
  %v1064 = vunpack.c.l.b16 %v993
  %v1065 = vunpack.c.l.b16 %v994
  %v1066 = vunpack.c.l.b16 %v995
  %v1067 = vunpack.c.l.b16 %v996
  %v1068 = vunpack.c.l.b16 %v997
  %v1069 = vunpack.c.l.b16 %v998
  %v1070 = vunpack.c.l.b16 %v999
  %v1071 = vunpack.c.l.b16 %v1000
  %v1072 = vunpack.c.l.b16 %v1001
  %v1073 = vunpack.c.l.b16 %v1002
  %v1074 = vunpack.c.l.b16 %v1003
  %v1075 = vunpack.c.l.b16 %v1004
  %v1076 = vunpack.c.l.b16 %v1005
  %v1077 = vunpack.c.l.b16 %v1006
  %v1078 = vunpack.c.l.b16 %v1007
  %v1079 = vunpack.c.l.b16 %v1008
  %v1080 = vunpack.c.l.b16 %v1009
  %v1081 = vunpack.c.l.b16 %v1010
  %v1082 = vunpack.c.l.b16 %v1011
  %v1083 = vunpack.c.l.b16 %v1012
  %v1084 = vunpack.c.l.b16 %v1013
  %v1085 = vunpack.c.l.b16 %v1014
  %v1086 = vunpack.c.l.b16 %v1015
  %v1087 = vunpack.c.l.b16 %v1016
  %v1088 = vpack.c.b16 %v1057, %v1056
  %v1089 = vpack.c.b16 %v1059, %v1058
  %v1090 = vpack.c.b16 %v1061, %v1060
  %v1091 = vpack.c.b16 %v1063, %v1062
  %v1092 = vpack.c.b16 %v1065, %v1064
  %v1093 = vpack.c.b16 %v1067, %v1066
  %v1094 = vpack.c.b16 %v1069, %v1068
  %v1095 = vpack.c.b16 %v1071, %v1070
  %v1096 = vpack.c.b16 %v1073, %v1072
  %v1097 = vpack.c.b16 %v1075, %v1074
  %v1098 = vpack.c.b16 %v1077, %v1076
  %v1099 = vpack.c.b16 %v1079, %v1078
  %v1100 = vpack.c.b16 %v1081, %v1080
  %v1101 = vpack.c.b16 %v1083, %v1082
  %v1102 = vpack.c.b16 %v1085, %v1084
  %v1103 = vpack.c.b16 %v1087, %v1086
  %1120 = vmatprep.subr.bf16.mxu0 0
  %1121 = vmatpush1.bf16.msra.mxu0 %v1088
  %1122 = vmatprep.subr.bf16.mxu0 0
  %1123 = vmatpush1.bf16.msra.mxu0 %v1089
  %1124 = vmatprep.subr.bf16.mxu0 0
  %1125 = vmatpush1.bf16.msra.mxu0 %v1090
  %1126 = vmatprep.subr.bf16.mxu0 0
  %1127 = vmatpush1.bf16.msra.mxu0 %v1091
  %1128 = vmatprep.subr.bf16.mxu0 0
  %1129 = vmatpush1.bf16.msra.mxu0 %v1092
  %1130 = vmatprep.subr.bf16.mxu0 0
  %1131 = vmatpush1.bf16.msra.mxu0 %v1093
  %1132 = vmatprep.subr.bf16.mxu0 0
  %1133 = vmatpush1.bf16.msra.mxu0 %v1094
  %1134 = vmatprep.subr.bf16.mxu0 0
  %1135 = vmatpush1.bf16.msra.mxu0 %v1095
  %1136 = vmatprep.subr.bf16.mxu0 0
  %1137 = vmatpush1.bf16.msra.mxu0 %v1096
  %1138 = vmatprep.subr.bf16.mxu0 0
  %1139 = vmatpush1.bf16.msra.mxu0 %v1097
  %1140 = vmatprep.subr.bf16.mxu0 0
  %1141 = vmatpush1.bf16.msra.mxu0 %v1098
  %1142 = vmatprep.subr.bf16.mxu0 0
  %1143 = vmatpush1.bf16.msra.mxu0 %v1099
  %1144 = vmatprep.subr.bf16.mxu0 0
  %1145 = vmatpush1.bf16.msra.mxu0 %v1100
  %1146 = vmatprep.subr.bf16.mxu0 0
  %1147 = vmatpush1.bf16.msra.mxu0 %v1101
  %1148 = vmatprep.subr.bf16.mxu0 0
  %1149 = vmatpush1.bf16.msra.mxu0 %v1102
  %1150 = vmatprep.subr.bf16.mxu0 0
  %1151 = vmatpush1.bf16.msra.mxu0 %v1103
  %1152 = vmatprep.mubr.bf16.mxu0 %v970
  %1153 = vmatmul.mubr.bf16.gmra.mrb[0].mxu0 %v969
  %v1154 = vpop.f32.mrb[0].mxu0
  %v1155 = vadd.f32 %v1022, %v1154
  %v1156 = vpop.f32.mrb[0].mxu0
  %v1157 = vpop.f32.mrb[0].mxu0
  %v1158 = vadd.f32 %v1022, %v1157
  %v1159 = vpop.f32.mrb[0].mxu0
  %1160 = vmatprep.mubr.bf16.mxu0 %v972
  %1161 = vmatmul.mubr.bf16.gmra.mrb[0].mxu0 %v971
  %v1162 = vpop.f32.mrb[0].mxu0
  %v1163 = vadd.f32 %v1022, %v1162
  %v1164 = vpop.f32.mrb[0].mxu0
  %v1165 = vpop.f32.mrb[0].mxu0
  %v1166 = vadd.f32 %v1022, %v1165
  %v1167 = vpop.f32.mrb[0].mxu0
  %1168 = vmatprep.mubr.bf16.mxu0 %v974
  %1169 = vmatmul.mubr.bf16.gmra.mrb[0].mxu0 %v973
  %v1170 = vpop.f32.mrb[0].mxu0
  %v1171 = vadd.f32 %v1022, %v1170
  %v1172 = vpop.f32.mrb[0].mxu0
  %v1173 = vpop.f32.mrb[0].mxu0
  %v1174 = vadd.f32 %v1022, %v1173
  %v1175 = vpop.f32.mrb[0].mxu0
  %1176 = vmatprep.mubr.bf16.mxu0 %v976
  %1177 = vmatmul.mubr.bf16.gmra.mrb[0].mxu0 %v975
  %v1178 = vpop.f32.mrb[0].mxu0
  %v1179 = vadd.f32 %v1022, %v1178
  %v1180 = vpop.f32.mrb[0].mxu0
  %v1181 = vpop.f32.mrb[0].mxu0
  %v1182 = vadd.f32 %v1022, %v1181
  %v1183 = vpop.f32.mrb[0].mxu0
  %1184 = vmatprep.mubr.bf16.mxu0 %v978
  %1185 = vmatmul.mubr.bf16.gmra.mrb[0].mxu0 %v977
  %v1186 = vpop.f32.mrb[0].mxu0
  %v1187 = vadd.f32 %v1022, %v1186
  %v1188 = vpop.f32.mrb[0].mxu0
  %v1189 = vpop.f32.mrb[0].mxu0
  %v1190 = vadd.f32 %v1022, %v1189
  %v1191 = vpop.f32.mrb[0].mxu0
  %1192 = vmatprep.mubr.bf16.mxu0 %v980
  %1193 = vmatmul.mubr.bf16.gmra.mrb[0].mxu0 %v979
  %v1194 = vpop.f32.mrb[0].mxu0
  %v1195 = vadd.f32 %v1022, %v1194
  %v1196 = vpop.f32.mrb[0].mxu0
  %v1197 = vpop.f32.mrb[0].mxu0
  %v1198 = vadd.f32 %v1022, %v1197
  %v1199 = vpop.f32.mrb[0].mxu0
  %1200 = vmatprep.mubr.bf16.mxu0 %v982
  %1201 = vmatmul.mubr.bf16.gmra.mrb[0].mxu0 %v981
  %v1202 = vpop.f32.mrb[0].mxu0
  %v1203 = vadd.f32 %v1022, %v1202
  %v1204 = vpop.f32.mrb[0].mxu0
  %v1205 = vpop.f32.mrb[0].mxu0
  %v1206 = vadd.f32 %v1022, %v1205
  %v1207 = vpop.f32.mrb[0].mxu0
  %1208 = vmatprep.mubr.bf16.mxu0 %v984
  %1209 = vmatmul.mubr.bf16.gmra.mrb[0].mxu0 %v983
  %v1210 = vpop.f32.mrb[0].mxu0
  %v1211 = vadd.f32 %v1022, %v1210
  %v1212 = vpop.f32.mrb[0].mxu0
  %v1213 = vpop.f32.mrb[0].mxu0
  %v1214 = vadd.f32 %v1022, %v1213
  %v1215 = vpop.f32.mrb[0].mxu0
  %1216 = vdwg.mxu0
  %v1217 = vadd.f32 %v692, %v1155
  %v1218 = vadd.f32 %v693, %v1158
  %v1219 = vadd.f32 %v694, %v1163
  %v1220 = vadd.f32 %v695, %v1166
  %v1221 = vadd.f32 %v696, %v1171
  %v1222 = vadd.f32 %v697, %v1174
  %v1223 = vadd.f32 %v698, %v1179
  %v1224 = vadd.f32 %v699, %v1182
  %v1225 = vadd.f32 %v700, %v1187
  %v1226 = vadd.f32 %v701, %v1190
  %v1227 = vadd.f32 %v702, %v1195
  %v1228 = vadd.f32 %v703, %v1198
  %v1229 = vadd.f32 %v704, %v1203
  %v1230 = vadd.f32 %v705, %v1206
  %v1231 = vadd.f32 %v706, %v1211
  %v1232 = vadd.f32 %v707, %v1214
  %v1233 = vld [vmem:[%s11] sm:$0x1]
  %v1234 = vld [vmem:[%s12] sm:$0x1]
  %1235 = vadd.xlane.f32.xlu0 %v1217
  %v1236 = vpop.xlane.xlu0 %1235
  %1237 = vadd.xlane.f32.xlu0 %v1218
  %v1238 = vpop.xlane.xlu0 %1237
  %1239 = vadd.xlane.f32.xlu0 %v1219
  %v1240 = vpop.xlane.xlu0 %1239
  %1241 = vadd.xlane.f32.xlu0 %v1220
  %v1242 = vpop.xlane.xlu0 %1241
  %1243 = vadd.xlane.f32.xlu0 %v1221
  %v1244 = vpop.xlane.xlu0 %1243
  %1245 = vadd.xlane.f32.xlu0 %v1222
  %v1246 = vpop.xlane.xlu0 %1245
  %1247 = vadd.xlane.f32.xlu0 %v1223
  %v1248 = vpop.xlane.xlu0 %1247
  %1249 = vadd.xlane.f32.xlu0 %v1224
  %v1250 = vpop.xlane.xlu0 %1249
  %1251 = vadd.xlane.f32.xlu0 %v1225
  %v1252 = vpop.xlane.xlu0 %1251
  %1253 = vadd.xlane.f32.xlu0 %v1226
  %v1254 = vpop.xlane.xlu0 %1253
  %1255 = vadd.xlane.f32.xlu0 %v1227
  %v1256 = vpop.xlane.xlu0 %1255
  %1257 = vadd.xlane.f32.xlu0 %v1228
  %v1258 = vpop.xlane.xlu0 %1257
  %1259 = vadd.xlane.f32.xlu0 %v1229
  %v1260 = vpop.xlane.xlu0 %1259
  %1261 = vadd.xlane.f32.xlu0 %v1230
  %v1262 = vpop.xlane.xlu0 %1261
  %1263 = vadd.xlane.f32.xlu0 %v1231
  %v1264 = vpop.xlane.xlu0 %1263
  %1265 = vadd.xlane.f32.xlu0 %v1232
  %v1266 = vpop.xlane.xlu0 %1265
  %v1267 = vmul.f32 %v1236, %v519
  %v1268 = vmul.f32 %v1238, %v519
  %v1269 = vmul.f32 %v1240, %v519
  %v1270 = vmul.f32 %v1242, %v519
  %v1271 = vmul.f32 %v1244, %v519
  %v1272 = vmul.f32 %v1246, %v519
  %v1273 = vmul.f32 %v1248, %v519
  %v1274 = vmul.f32 %v1250, %v519
  %v1275 = vmul.f32 %v1252, %v519
  %v1276 = vmul.f32 %v1254, %v519
  %v1277 = vmul.f32 %v1256, %v519
  %v1278 = vmul.f32 %v1258, %v519
  %v1279 = vmul.f32 %v1260, %v519
  %v1280 = vmul.f32 %v1262, %v519
  %v1281 = vmul.f32 %v1264, %v519
  %v1282 = vmul.f32 %v1266, %v519
  %v1283 = vsub.f32 %v1217, %v1267
  %v1284 = vsub.f32 %v1218, %v1268
  %v1285 = vsub.f32 %v1219, %v1269
  %v1286 = vsub.f32 %v1220, %v1270
  %v1287 = vsub.f32 %v1221, %v1271
  %v1288 = vsub.f32 %v1222, %v1272
  %v1289 = vsub.f32 %v1223, %v1273
  %v1290 = vsub.f32 %v1224, %v1274
  %v1291 = vsub.f32 %v1225, %v1275
  %v1292 = vsub.f32 %v1226, %v1276
  %v1293 = vsub.f32 %v1227, %v1277
  %v1294 = vsub.f32 %v1228, %v1278
  %v1295 = vsub.f32 %v1229, %v1279
  %v1296 = vsub.f32 %v1230, %v1280
  %v1297 = vsub.f32 %v1231, %v1281
  %v1298 = vsub.f32 %v1232, %v1282
  %v1299 = vmul.f32 %v1283, %v1283
  %v1300 = vmul.f32 %v1284, %v1284
  %v1301 = vmul.f32 %v1285, %v1285
  %v1302 = vmul.f32 %v1286, %v1286
  %v1303 = vmul.f32 %v1287, %v1287
  %v1304 = vmul.f32 %v1288, %v1288
  %v1305 = vmul.f32 %v1289, %v1289
  %v1306 = vmul.f32 %v1290, %v1290
  %v1307 = vmul.f32 %v1291, %v1291
  %v1308 = vmul.f32 %v1292, %v1292
  %v1309 = vmul.f32 %v1293, %v1293
  %v1310 = vmul.f32 %v1294, %v1294
  %v1311 = vmul.f32 %v1295, %v1295
  %v1312 = vmul.f32 %v1296, %v1296
  %v1313 = vmul.f32 %v1297, %v1297
  %v1314 = vmul.f32 %v1298, %v1298
  %1315 = vadd.xlane.f32.xlu0 %v1299
  %v1316 = vpop.xlane.xlu0 %1315
  %1317 = vadd.xlane.f32.xlu0 %v1300
  %v1318 = vpop.xlane.xlu0 %1317
  %1319 = vadd.xlane.f32.xlu0 %v1301
  %v1320 = vpop.xlane.xlu0 %1319
  %1321 = vadd.xlane.f32.xlu0 %v1302
  %v1322 = vpop.xlane.xlu0 %1321
  %1323 = vadd.xlane.f32.xlu0 %v1303
  %v1324 = vpop.xlane.xlu0 %1323
  %1325 = vadd.xlane.f32.xlu0 %v1304
  %v1326 = vpop.xlane.xlu0 %1325
  %1327 = vadd.xlane.f32.xlu0 %v1305
  %v1328 = vpop.xlane.xlu0 %1327
  %1329 = vadd.xlane.f32.xlu0 %v1306
  %v1330 = vpop.xlane.xlu0 %1329
  %1331 = vadd.xlane.f32.xlu0 %v1307
  %v1332 = vpop.xlane.xlu0 %1331
  %1333 = vadd.xlane.f32.xlu0 %v1308
  %v1334 = vpop.xlane.xlu0 %1333
  %1335 = vadd.xlane.f32.xlu0 %v1309
  %v1336 = vpop.xlane.xlu0 %1335
  %1337 = vadd.xlane.f32.xlu0 %v1310
  %v1338 = vpop.xlane.xlu0 %1337
  %1339 = vadd.xlane.f32.xlu0 %v1311
  %v1340 = vpop.xlane.xlu0 %1339
  %1341 = vadd.xlane.f32.xlu0 %v1312
  %v1342 = vpop.xlane.xlu0 %1341
  %1343 = vadd.xlane.f32.xlu0 %v1313
  %v1344 = vpop.xlane.xlu0 %1343
  %1345 = vadd.xlane.f32.xlu0 %v1314
  %v1346 = vpop.xlane.xlu0 %1345
  %v1347 = vmul.f32 %v1316, %v519
  %v1348 = vmul.f32 %v1318, %v519
  %v1349 = vmul.f32 %v1320, %v519
  %v1350 = vmul.f32 %v1322, %v519
  %v1351 = vmul.f32 %v1324, %v519
  %v1352 = vmul.f32 %v1326, %v519
  %v1353 = vmul.f32 %v1328, %v519
  %v1354 = vmul.f32 %v1330, %v519
  %v1355 = vmul.f32 %v1332, %v519
  %v1356 = vmul.f32 %v1334, %v519
  %v1357 = vmul.f32 %v1336, %v519
  %v1358 = vmul.f32 %v1338, %v519
  %v1359 = vmul.f32 %v1340, %v519
  %v1360 = vmul.f32 %v1342, %v519
  %v1361 = vmul.f32 %v1344, %v519
  %v1362 = vmul.f32 %v1346, %v519
  %v1363 = vadd.f32 %v1347, 1e-05
  %v1364 = vadd.f32 %v1348, 1e-05
  %v1365 = vadd.f32 %v1349, 1e-05
  %v1366 = vadd.f32 %v1350, 1e-05
  %v1367 = vadd.f32 %v1351, 1e-05
  %v1368 = vadd.f32 %v1352, 1e-05
  %v1369 = vadd.f32 %v1353, 1e-05
  %v1370 = vadd.f32 %v1354, 1e-05
  %v1371 = vadd.f32 %v1355, 1e-05
  %v1372 = vadd.f32 %v1356, 1e-05
  %v1373 = vadd.f32 %v1357, 1e-05
  %v1374 = vadd.f32 %v1358, 1e-05
  %v1375 = vadd.f32 %v1359, 1e-05
  %v1376 = vadd.f32 %v1360, 1e-05
  %v1377 = vadd.f32 %v1361, 1e-05
  %v1378 = vadd.f32 %v1362, 1e-05
  %v1379 = vrsqrt.pop %v1363
  %v1380 = vrsqrt.pop %v1364
  %v1381 = vrsqrt.pop %v1365
  %v1382 = vrsqrt.pop %v1366
  %v1383 = vrsqrt.pop %v1367
  %v1384 = vrsqrt.pop %v1368
  %v1385 = vrsqrt.pop %v1369
  %v1386 = vrsqrt.pop %v1370
  %v1387 = vrsqrt.pop %v1371
  %v1388 = vrsqrt.pop %v1372
  %v1389 = vrsqrt.pop %v1373
  %v1390 = vrsqrt.pop %v1374
  %v1391 = vrsqrt.pop %v1375
  %v1392 = vrsqrt.pop %v1376
  %v1393 = vrsqrt.pop %v1377
  %v1394 = vrsqrt.pop %v1378
  %v1395 = vmul.f32 %v1283, %v1379
  %v1396 = vmul.f32 %v1284, %v1380
  %v1397 = vmul.f32 %v1285, %v1381
  %v1398 = vmul.f32 %v1286, %v1382
  %v1399 = vmul.f32 %v1287, %v1383
  %v1400 = vmul.f32 %v1288, %v1384
  %v1401 = vmul.f32 %v1289, %v1385
  %v1402 = vmul.f32 %v1290, %v1386
  %v1403 = vmul.f32 %v1291, %v1387
  %v1404 = vmul.f32 %v1292, %v1388
  %v1405 = vmul.f32 %v1293, %v1389
  %v1406 = vmul.f32 %v1294, %v1390
  %v1407 = vmul.f32 %v1295, %v1391
  %v1408 = vmul.f32 %v1296, %v1392
  %v1409 = vmul.f32 %v1297, %v1393
  %v1410 = vmul.f32 %v1298, %v1394
  %v1412 = vlaneseq
  %v1413 = vshrl.u32 %v1412, 7
  %v1414 = vsub.s32 0, %v1413
  %v1415 = vrot.slane %v1233, %v1414
  %v1417 = vmul.f32 %v1395, %v1415
  %v1418 = vmul.f32 %v1396, %v1415
  %v1419 = vmul.f32 %v1397, %v1415
  %v1420 = vmul.f32 %v1398, %v1415
  %v1421 = vmul.f32 %v1399, %v1415
  %v1422 = vmul.f32 %v1400, %v1415
  %v1423 = vmul.f32 %v1401, %v1415
  %v1424 = vmul.f32 %v1402, %v1415
  %v1425 = vmul.f32 %v1403, %v1415
  %v1426 = vmul.f32 %v1404, %v1415
  %v1427 = vmul.f32 %v1405, %v1415
  %v1428 = vmul.f32 %v1406, %v1415
  %v1429 = vmul.f32 %v1407, %v1415
  %v1430 = vmul.f32 %v1408, %v1415
  %v1431 = vmul.f32 %v1409, %v1415
  %v1432 = vmul.f32 %v1410, %v1415
  %v1434 = vlaneseq
  %v1435 = vshrl.u32 %v1434, 7
  %v1436 = vsub.s32 0, %v1435
  %v1437 = vrot.slane %v1234, %v1436
  %v1439 = vadd.f32 %v1417, %v1437
  %v1440 = vadd.f32 %v1418, %v1437
  %v1441 = vadd.f32 %v1419, %v1437
  %v1442 = vadd.f32 %v1420, %v1437
  %v1443 = vadd.f32 %v1421, %v1437
  %v1444 = vadd.f32 %v1422, %v1437
  %v1445 = vadd.f32 %v1423, %v1437
  %v1446 = vadd.f32 %v1424, %v1437
  %v1447 = vadd.f32 %v1425, %v1437
  %v1448 = vadd.f32 %v1426, %v1437
  %v1449 = vadd.f32 %v1427, %v1437
  %v1450 = vadd.f32 %v1428, %v1437
  %v1451 = vadd.f32 %v1429, %v1437
  %v1452 = vadd.f32 %v1430, %v1437
  %v1453 = vadd.f32 %v1431, %v1437
  %v1454 = vadd.f32 %v1432, %v1437
  %v1455 = vpack.c.bf16 %v1440, %v1439
  %v1456 = vpack.c.bf16 %v1442, %v1441
  %v1457 = vpack.c.bf16 %v1444, %v1443
  %v1458 = vpack.c.bf16 %v1446, %v1445
  %v1459 = vpack.c.bf16 %v1448, %v1447
  %v1460 = vpack.c.bf16 %v1450, %v1449
  %v1461 = vpack.c.bf16 %v1452, %v1451
  %v1462 = vpack.c.bf16 %v1454, %v1453
  %v1471 = vunpack.c.l.b16 %v1455
  %v1472 = vunpack.c.h.b16 %v1455
  %v1473 = vunpack.c.l.b16 %v1456
  %v1474 = vunpack.c.h.b16 %v1456
  %v1475 = vunpack.c.l.b16 %v1457
  %v1476 = vunpack.c.h.b16 %v1457
  %v1477 = vunpack.c.l.b16 %v1458
  %v1478 = vunpack.c.h.b16 %v1458
  %v1479 = vunpack.c.l.b16 %v1459
  %v1480 = vunpack.c.h.b16 %v1459
  %v1481 = vunpack.c.l.b16 %v1460
  %v1482 = vunpack.c.h.b16 %v1460
  %v1483 = vunpack.c.l.b16 %v1461
  %v1484 = vunpack.c.h.b16 %v1461
  %v1485 = vunpack.c.l.b16 %v1462
  %v1486 = vunpack.c.h.b16 %v1462
  %v1487 = vpack.c.b16 %v1471, %v1471
  %v1488 = vpack.c.b16 %v1472, %v1472
  %v1489 = vpack.c.b16 %v1473, %v1473
  %v1490 = vpack.c.b16 %v1474, %v1474
  %v1491 = vpack.c.b16 %v1475, %v1475
  %v1492 = vpack.c.b16 %v1476, %v1476
  %v1493 = vpack.c.b16 %v1477, %v1477
  %v1494 = vpack.c.b16 %v1478, %v1478
  %v1495 = vpack.c.b16 %v1479, %v1479
  %v1496 = vpack.c.b16 %v1480, %v1480
  %v1497 = vpack.c.b16 %v1481, %v1481
  %v1498 = vpack.c.b16 %v1482, %v1482
  %v1499 = vpack.c.b16 %v1483, %v1483
  %v1500 = vpack.c.b16 %v1484, %v1484
  %v1501 = vpack.c.b16 %v1485, %v1485
  %v1502 = vpack.c.b16 %v1486, %v1486
  %1519 = vst [vmem:[%s13] sm:$0xf] %v1487
  %1520 = vst [vmem:[%s13 + $0x4] sm:$0xf] %v1488
  %1521 = vst [vmem:[%s13 + $0x8] sm:$0xf] %v1489
  %1522 = vst [vmem:[%s13 + $0xc] sm:$0xf] %v1490
  %1523 = vst [vmem:[%s13 + $0x10] sm:$0xf] %v1491
  %1524 = vst [vmem:[%s13 + $0x14] sm:$0xf] %v1492
  %1525 = vst [vmem:[%s13 + $0x18] sm:$0xf] %v1493
  %1526 = vst [vmem:[%s13 + $0x1c] sm:$0xf] %v1494
  %1527 = vst [vmem:[%s13 + $0x20] sm:$0xf] %v1495
  %1528 = vst [vmem:[%s13 + $0x24] sm:$0xf] %v1496
  %1529 = vst [vmem:[%s13 + $0x28] sm:$0xf] %v1497
  %1530 = vst [vmem:[%s13 + $0x2c] sm:$0xf] %v1498
  %1531 = vst [vmem:[%s13 + $0x30] sm:$0xf] %v1499
  %1532 = vst [vmem:[%s13 + $0x34] sm:$0xf] %v1500
  %1533 = vst [vmem:[%s13 + $0x38] sm:$0xf] %v1501
  %1534 = vst [vmem:[%s13 + $0x3c] sm:$0xf] %v1502
  %s1535 = scalar_lea.vmem %s0, 64
  %v1536 = vld [vmem:[%s1535] sm:$0xf]
  %v1537 = vld [vmem:[%s1535 + $0x4] sm:$0xf]
  %v1538 = vld [vmem:[%s1535 + $0x8] sm:$0xf]
  %v1539 = vld [vmem:[%s1535 + $0xc] sm:$0xf]
  %v1540 = vld [vmem:[%s1535 + $0x10] sm:$0xf]
  %v1541 = vld [vmem:[%s1535 + $0x14] sm:$0xf]
  %v1542 = vld [vmem:[%s1535 + $0x18] sm:$0xf]
  %v1543 = vld [vmem:[%s1535 + $0x1c] sm:$0xf]
  %v1544 = vld [vmem:[%s1535 + $0x20] sm:$0xf]
  %v1545 = vld [vmem:[%s1535 + $0x24] sm:$0xf]
  %v1546 = vld [vmem:[%s1535 + $0x28] sm:$0xf]
  %v1547 = vld [vmem:[%s1535 + $0x2c] sm:$0xf]
  %v1548 = vld [vmem:[%s1535 + $0x30] sm:$0xf]
  %v1549 = vld [vmem:[%s1535 + $0x34] sm:$0xf]
  %v1550 = vld [vmem:[%s1535 + $0x38] sm:$0xf]
  %v1551 = vld [vmem:[%s1535 + $0x3c] sm:$0xf]
  %v1552 = vunpack.c.l.bf16 %v1536
  %v1553 = vunpack.c.l.bf16 %v1537
  %v1554 = vunpack.c.l.bf16 %v1538
  %v1555 = vunpack.c.l.bf16 %v1539
  %v1556 = vunpack.c.l.bf16 %v1540
  %v1557 = vunpack.c.l.bf16 %v1541
  %v1558 = vunpack.c.l.bf16 %v1542
  %v1559 = vunpack.c.l.bf16 %v1543
  %v1560 = vunpack.c.l.bf16 %v1544
  %v1561 = vunpack.c.l.bf16 %v1545
  %v1562 = vunpack.c.l.bf16 %v1546
  %v1563 = vunpack.c.l.bf16 %v1547
  %v1564 = vunpack.c.l.bf16 %v1548
  %v1565 = vunpack.c.l.bf16 %v1549
  %v1566 = vunpack.c.l.bf16 %v1550
  %v1567 = vunpack.c.l.bf16 %v1551
  %s1568 = scalar_lea.vmem %s1, 64
  %v1569 = vld [vmem:[%s1568] sm:$0xf]
  %v1570 = vld [vmem:[%s1568 + $0x4] sm:$0xf]
  %v1571 = vld [vmem:[%s1568 + $0x8] sm:$0xf]
  %v1572 = vld [vmem:[%s1568 + $0xc] sm:$0xf]
  %v1573 = vld [vmem:[%s1568 + $0x10] sm:$0xf]
  %v1574 = vld [vmem:[%s1568 + $0x14] sm:$0xf]
  %v1575 = vld [vmem:[%s1568 + $0x18] sm:$0xf]
  %v1576 = vld [vmem:[%s1568 + $0x1c] sm:$0xf]
  %v1577 = vld [vmem:[%s1568 + $0x20] sm:$0xf]
  %v1578 = vld [vmem:[%s1568 + $0x24] sm:$0xf]
  %v1579 = vld [vmem:[%s1568 + $0x28] sm:$0xf]
  %v1580 = vld [vmem:[%s1568 + $0x2c] sm:$0xf]
  %v1581 = vld [vmem:[%s1568 + $0x30] sm:$0xf]
  %v1582 = vld [vmem:[%s1568 + $0x34] sm:$0xf]
  %v1583 = vld [vmem:[%s1568 + $0x38] sm:$0xf]
  %v1584 = vld [vmem:[%s1568 + $0x3c] sm:$0xf]
  %s1585 = scalar_lea.vmem %s2, 1
  %v1586 = vld [vmem:[%s1585] sm:$0x1]
  %v1588 = vlaneseq
  %v1589 = vshrl.u32 %v1588, 7
  %v1590 = vsub.s32 0, %v1589
  %v1591 = vrot.slane %v1586, %v1590
  %v1609 = vunpack.c.l.b16 %v1536
  %v1610 = vunpack.c.l.b16 %v1537
  %v1611 = vunpack.c.l.b16 %v1538
  %v1612 = vunpack.c.l.b16 %v1539
  %v1613 = vunpack.c.l.b16 %v1540
  %v1614 = vunpack.c.l.b16 %v1541
  %v1615 = vunpack.c.l.b16 %v1542
  %v1616 = vunpack.c.l.b16 %v1543
  %v1617 = vunpack.c.l.b16 %v1544
  %v1618 = vunpack.c.l.b16 %v1545
  %v1619 = vunpack.c.l.b16 %v1546
  %v1620 = vunpack.c.l.b16 %v1547
  %v1621 = vunpack.c.l.b16 %v1548
  %v1622 = vunpack.c.l.b16 %v1549
  %v1623 = vunpack.c.l.b16 %v1550
  %v1624 = vunpack.c.l.b16 %v1551
  %v1625 = vpack.c.b16 %v1610, %v1609
  %v1626 = vpack.c.b16 %v1612, %v1611
  %v1627 = vpack.c.b16 %v1614, %v1613
  %v1628 = vpack.c.b16 %v1616, %v1615
  %v1629 = vpack.c.b16 %v1618, %v1617
  %v1630 = vpack.c.b16 %v1620, %v1619
  %v1631 = vpack.c.b16 %v1622, %v1621
  %v1632 = vpack.c.b16 %v1624, %v1623
  %v1657 = vunpack.c.l.b16 %v1569
  %v1658 = vunpack.c.l.b16 %v1570
  %v1659 = vunpack.c.l.b16 %v1571
  %v1660 = vunpack.c.l.b16 %v1572
  %v1661 = vunpack.c.l.b16 %v1573
  %v1662 = vunpack.c.l.b16 %v1574
  %v1663 = vunpack.c.l.b16 %v1575
  %v1664 = vunpack.c.l.b16 %v1576
  %v1665 = vunpack.c.l.b16 %v1577
  %v1666 = vunpack.c.l.b16 %v1578
  %v1667 = vunpack.c.l.b16 %v1579
  %v1668 = vunpack.c.l.b16 %v1580
  %v1669 = vunpack.c.l.b16 %v1581
  %v1670 = vunpack.c.l.b16 %v1582
  %v1671 = vunpack.c.l.b16 %v1583
  %v1672 = vunpack.c.l.b16 %v1584
  %v1673 = vpack.c.b16 %v1658, %v1657
  %v1674 = vpack.c.b16 %v1660, %v1659
  %v1675 = vpack.c.b16 %v1662, %v1661
  %v1676 = vpack.c.b16 %v1664, %v1663
  %v1677 = vpack.c.b16 %v1666, %v1665
  %v1678 = vpack.c.b16 %v1668, %v1667
  %v1679 = vpack.c.b16 %v1670, %v1669
  %v1680 = vpack.c.b16 %v1672, %v1671
  %1689 = vmatprep.subr.bf16.mxu0 0
  %1690 = vmatpush1.bf16.msra.mxu0 %v1673
  %1691 = vmatprep.subr.bf16.mxu0 0
  %1692 = vmatpush1.bf16.msra.mxu0 %v1674
  %1693 = vmatprep.subr.bf16.mxu0 0
  %1694 = vmatpush1.bf16.msra.mxu0 %v1675
  %1695 = vmatprep.subr.bf16.mxu0 0
  %1696 = vmatpush1.bf16.msra.mxu0 %v1676
  %1697 = vmatprep.subr.bf16.mxu0 0
  %1698 = vmatpush1.bf16.msra.mxu0 %v1677
  %1699 = vmatprep.subr.bf16.mxu0 0
  %1700 = vmatpush1.bf16.msra.mxu0 %v1678
  %1701 = vmatprep.subr.bf16.mxu0 0
  %1702 = vmatpush1.bf16.msra.mxu0 %v1679
  %1703 = vmatprep.subr.bf16.mxu0 0
  %1704 = vmatpush1.bf16.msra.mxu0 %v1680
  %1705 = vmatprep.subr.bf16.mxu0 0
  %1706 = vmatpush1.bf16.msra.mxu0 0
  %1707 = vmatprep.subr.bf16.mxu0 0
  %1708 = vmatpush1.bf16.msra.mxu0 0
  %1709 = vmatprep.subr.bf16.mxu0 0
  %1710 = vmatpush1.bf16.msra.mxu0 0
  %1711 = vmatprep.subr.bf16.mxu0 0
  %1712 = vmatpush1.bf16.msra.mxu0 0
  %1713 = vmatprep.subr.bf16.mxu0 0
  %1714 = vmatpush1.bf16.msra.mxu0 0
  %1715 = vmatprep.subr.bf16.mxu0 0
  %1716 = vmatpush1.bf16.msra.mxu0 0
  %1717 = vmatprep.subr.bf16.mxu0 0
  %1718 = vmatpush1.bf16.msra.mxu0 0
  %1719 = vmatprep.subr.bf16.mxu0 0
  %1720 = vmatpush1.bf16.msra.mxu0 0
  %1721 = vmatprep.mubr.bf16.mxu0 0
  %1722 = vmatmul.mubr.bf16.gmra.mrb[0].mxu0 %v1625
  %v1723 = vpop.f32.mrb[0].mxu0
  %v1724 = vadd.f32 %v1591, %v1723
  %v1725 = vpop.f32.mrb[0].mxu0
  %v1726 = vpop.f32.mrb[0].mxu0
  %v1727 = vadd.f32 %v1591, %v1726
  %v1728 = vpop.f32.mrb[0].mxu0
  %1729 = vmatprep.mubr.bf16.mxu0 0
  %1730 = vmatmul.mubr.bf16.gmra.mrb[0].mxu0 %v1626
  %v1731 = vpop.f32.mrb[0].mxu0
  %v1732 = vadd.f32 %v1591, %v1731
  %v1733 = vpop.f32.mrb[0].mxu0
  %v1734 = vpop.f32.mrb[0].mxu0
  %v1735 = vadd.f32 %v1591, %v1734
  %v1736 = vpop.f32.mrb[0].mxu0
  %1737 = vmatprep.mubr.bf16.mxu0 0
  %1738 = vmatmul.mubr.bf16.gmra.mrb[0].mxu0 %v1627
  %v1739 = vpop.f32.mrb[0].mxu0
  %v1740 = vadd.f32 %v1591, %v1739
  %v1741 = vpop.f32.mrb[0].mxu0
  %v1742 = vpop.f32.mrb[0].mxu0
  %v1743 = vadd.f32 %v1591, %v1742
  %v1744 = vpop.f32.mrb[0].mxu0
  %1745 = vmatprep.mubr.bf16.mxu0 0
  %1746 = vmatmul.mubr.bf16.gmra.mrb[0].mxu0 %v1628
  %v1747 = vpop.f32.mrb[0].mxu0
  %v1748 = vadd.f32 %v1591, %v1747
  %v1749 = vpop.f32.mrb[0].mxu0
  %v1750 = vpop.f32.mrb[0].mxu0
  %v1751 = vadd.f32 %v1591, %v1750
  %v1752 = vpop.f32.mrb[0].mxu0
  %1753 = vmatprep.mubr.bf16.mxu0 0
  %1754 = vmatmul.mubr.bf16.gmra.mrb[0].mxu0 %v1629
  %v1755 = vpop.f32.mrb[0].mxu0
  %v1756 = vadd.f32 %v1591, %v1755
  %v1757 = vpop.f32.mrb[0].mxu0
  %v1758 = vpop.f32.mrb[0].mxu0
  %v1759 = vadd.f32 %v1591, %v1758
  %v1760 = vpop.f32.mrb[0].mxu0
  %1761 = vmatprep.mubr.bf16.mxu0 0
  %1762 = vmatmul.mubr.bf16.gmra.mrb[0].mxu0 %v1630
  %v1763 = vpop.f32.mrb[0].mxu0
  %v1764 = vadd.f32 %v1591, %v1763
  %v1765 = vpop.f32.mrb[0].mxu0
  %v1766 = vpop.f32.mrb[0].mxu0
  %v1767 = vadd.f32 %v1591, %v1766
  %v1768 = vpop.f32.mrb[0].mxu0
  %1769 = vmatprep.mubr.bf16.mxu0 0
  %1770 = vmatmul.mubr.bf16.gmra.mrb[0].mxu0 %v1631
  %v1771 = vpop.f32.mrb[0].mxu0
  %v1772 = vadd.f32 %v1591, %v1771
  %v1773 = vpop.f32.mrb[0].mxu0
  %v1774 = vpop.f32.mrb[0].mxu0
  %v1775 = vadd.f32 %v1591, %v1774
  %v1776 = vpop.f32.mrb[0].mxu0
  %1777 = vmatprep.mubr.bf16.mxu0 0
  %1778 = vmatmul.mubr.bf16.gmra.mrb[0].mxu0 %v1632
  %v1779 = vpop.f32.mrb[0].mxu0
  %v1780 = vadd.f32 %v1591, %v1779
  %v1781 = vpop.f32.mrb[0].mxu0
  %v1782 = vpop.f32.mrb[0].mxu0
  %v1783 = vadd.f32 %v1591, %v1782
  %v1784 = vpop.f32.mrb[0].mxu0
  %1785 = vdwg.mxu0
  %v1786 = vpack.c.bf16 %v1727, %v1724
  %v1787 = vpack.c.bf16 %v1735, %v1732
  %v1788 = vpack.c.bf16 %v1743, %v1740
  %v1789 = vpack.c.bf16 %v1751, %v1748
  %v1790 = vpack.c.bf16 %v1759, %v1756
  %v1791 = vpack.c.bf16 %v1767, %v1764
  %v1792 = vpack.c.bf16 %v1775, %v1772
  %v1793 = vpack.c.bf16 %v1783, %v1780
  %s1794 = scalar_lea.vmem %s3, 64
  %v1795 = vld [vmem:[%s1794] sm:$0xf]
  %v1796 = vld [vmem:[%s1794 + $0x4] sm:$0xf]
  %v1797 = vld [vmem:[%s1794 + $0x8] sm:$0xf]
  %v1798 = vld [vmem:[%s1794 + $0xc] sm:$0xf]
  %v1799 = vld [vmem:[%s1794 + $0x10] sm:$0xf]
  %v1800 = vld [vmem:[%s1794 + $0x14] sm:$0xf]
  %v1801 = vld [vmem:[%s1794 + $0x18] sm:$0xf]
  %v1802 = vld [vmem:[%s1794 + $0x1c] sm:$0xf]
  %v1803 = vld [vmem:[%s1794 + $0x20] sm:$0xf]
  %v1804 = vld [vmem:[%s1794 + $0x24] sm:$0xf]
  %v1805 = vld [vmem:[%s1794 + $0x28] sm:$0xf]
  %v1806 = vld [vmem:[%s1794 + $0x2c] sm:$0xf]
  %v1807 = vld [vmem:[%s1794 + $0x30] sm:$0xf]
  %v1808 = vld [vmem:[%s1794 + $0x34] sm:$0xf]
  %v1809 = vld [vmem:[%s1794 + $0x38] sm:$0xf]
  %v1810 = vld [vmem:[%s1794 + $0x3c] sm:$0xf]
  %s1811 = scalar_lea.vmem %s4, 1
  %v1812 = vld [vmem:[%s1811] sm:$0x1]
  %v1814 = vlaneseq
  %v1815 = vshrl.u32 %v1814, 7
  %v1816 = vsub.s32 0, %v1815
  %v1817 = vrot.slane %v1812, %v1816
  %v1835 = vunpack.c.l.b16 %v1795
  %v1836 = vunpack.c.l.b16 %v1796
  %v1837 = vunpack.c.l.b16 %v1797
  %v1838 = vunpack.c.l.b16 %v1798
  %v1839 = vunpack.c.l.b16 %v1799
  %v1840 = vunpack.c.l.b16 %v1800
  %v1841 = vunpack.c.l.b16 %v1801
  %v1842 = vunpack.c.l.b16 %v1802
  %v1843 = vunpack.c.l.b16 %v1803
  %v1844 = vunpack.c.l.b16 %v1804
  %v1845 = vunpack.c.l.b16 %v1805
  %v1846 = vunpack.c.l.b16 %v1806
  %v1847 = vunpack.c.l.b16 %v1807
  %v1848 = vunpack.c.l.b16 %v1808
  %v1849 = vunpack.c.l.b16 %v1809
  %v1850 = vunpack.c.l.b16 %v1810
  %v1851 = vpack.c.b16 %v1836, %v1835
  %v1852 = vpack.c.b16 %v1838, %v1837
  %v1853 = vpack.c.b16 %v1840, %v1839
  %v1854 = vpack.c.b16 %v1842, %v1841
  %v1855 = vpack.c.b16 %v1844, %v1843
  %v1856 = vpack.c.b16 %v1846, %v1845
  %v1857 = vpack.c.b16 %v1848, %v1847
  %v1858 = vpack.c.b16 %v1850, %v1849
  %1867 = vmatprep.subr.bf16.mxu0 0
  %1868 = vmatpush1.bf16.msra.mxu0 %v1851
  %1869 = vmatprep.subr.bf16.mxu0 0
  %1870 = vmatpush1.bf16.msra.mxu0 %v1852
  %1871 = vmatprep.subr.bf16.mxu0 0
  %1872 = vmatpush1.bf16.msra.mxu0 %v1853
  %1873 = vmatprep.subr.bf16.mxu0 0
  %1874 = vmatpush1.bf16.msra.mxu0 %v1854
  %1875 = vmatprep.subr.bf16.mxu0 0
  %1876 = vmatpush1.bf16.msra.mxu0 %v1855
  %1877 = vmatprep.subr.bf16.mxu0 0
  %1878 = vmatpush1.bf16.msra.mxu0 %v1856
  %1879 = vmatprep.subr.bf16.mxu0 0
  %1880 = vmatpush1.bf16.msra.mxu0 %v1857
  %1881 = vmatprep.subr.bf16.mxu0 0
  %1882 = vmatpush1.bf16.msra.mxu0 %v1858
  %1883 = vmatprep.subr.bf16.mxu0 0
  %1884 = vmatpush1.bf16.msra.mxu0 0
  %1885 = vmatprep.subr.bf16.mxu0 0
  %1886 = vmatpush1.bf16.msra.mxu0 0
  %1887 = vmatprep.subr.bf16.mxu0 0
  %1888 = vmatpush1.bf16.msra.mxu0 0
  %1889 = vmatprep.subr.bf16.mxu0 0
  %1890 = vmatpush1.bf16.msra.mxu0 0
  %1891 = vmatprep.subr.bf16.mxu0 0
  %1892 = vmatpush1.bf16.msra.mxu0 0
  %1893 = vmatprep.subr.bf16.mxu0 0
  %1894 = vmatpush1.bf16.msra.mxu0 0
  %1895 = vmatprep.subr.bf16.mxu0 0
  %1896 = vmatpush1.bf16.msra.mxu0 0
  %1897 = vmatprep.subr.bf16.mxu0 0
  %1898 = vmatpush1.bf16.msra.mxu0 0
  %1899 = vmatprep.mubr.bf16.mxu0 0
  %1900 = vmatmul.mubr.bf16.gmra.mrb[0].mxu0 %v1786
  %v1901 = vpop.f32.mrb[0].mxu0
  %v1902 = vadd.f32 %v1817, %v1901
  %v1903 = vpop.f32.mrb[0].mxu0
  %v1904 = vpop.f32.mrb[0].mxu0
  %v1905 = vadd.f32 %v1817, %v1904
  %v1906 = vpop.f32.mrb[0].mxu0
  %1907 = vmatprep.mubr.bf16.mxu0 0
  %1908 = vmatmul.mubr.bf16.gmra.mrb[0].mxu0 %v1787
  %v1909 = vpop.f32.mrb[0].mxu0
  %v1910 = vadd.f32 %v1817, %v1909
  %v1911 = vpop.f32.mrb[0].mxu0
  %v1912 = vpop.f32.mrb[0].mxu0
  %v1913 = vadd.f32 %v1817, %v1912
  %v1914 = vpop.f32.mrb[0].mxu0
  %1915 = vmatprep.mubr.bf16.mxu0 0
  %1916 = vmatmul.mubr.bf16.gmra.mrb[0].mxu0 %v1788
  %v1917 = vpop.f32.mrb[0].mxu0
  %v1918 = vadd.f32 %v1817, %v1917
  %v1919 = vpop.f32.mrb[0].mxu0
  %v1920 = vpop.f32.mrb[0].mxu0
  %v1921 = vadd.f32 %v1817, %v1920
  %v1922 = vpop.f32.mrb[0].mxu0
  %1923 = vmatprep.mubr.bf16.mxu0 0
  %1924 = vmatmul.mubr.bf16.gmra.mrb[0].mxu0 %v1789
  %v1925 = vpop.f32.mrb[0].mxu0
  %v1926 = vadd.f32 %v1817, %v1925
  %v1927 = vpop.f32.mrb[0].mxu0
  %v1928 = vpop.f32.mrb[0].mxu0
  %v1929 = vadd.f32 %v1817, %v1928
  %v1930 = vpop.f32.mrb[0].mxu0
  %1931 = vmatprep.mubr.bf16.mxu0 0
  %1932 = vmatmul.mubr.bf16.gmra.mrb[0].mxu0 %v1790
  %v1933 = vpop.f32.mrb[0].mxu0
  %v1934 = vadd.f32 %v1817, %v1933
  %v1935 = vpop.f32.mrb[0].mxu0
  %v1936 = vpop.f32.mrb[0].mxu0
  %v1937 = vadd.f32 %v1817, %v1936
  %v1938 = vpop.f32.mrb[0].mxu0
  %1939 = vmatprep.mubr.bf16.mxu0 0
  %1940 = vmatmul.mubr.bf16.gmra.mrb[0].mxu0 %v1791
  %v1941 = vpop.f32.mrb[0].mxu0
  %v1942 = vadd.f32 %v1817, %v1941
  %v1943 = vpop.f32.mrb[0].mxu0
  %v1944 = vpop.f32.mrb[0].mxu0
  %v1945 = vadd.f32 %v1817, %v1944
  %v1946 = vpop.f32.mrb[0].mxu0
  %1947 = vmatprep.mubr.bf16.mxu0 0
  %1948 = vmatmul.mubr.bf16.gmra.mrb[0].mxu0 %v1792
  %v1949 = vpop.f32.mrb[0].mxu0
  %v1950 = vadd.f32 %v1817, %v1949
  %v1951 = vpop.f32.mrb[0].mxu0
  %v1952 = vpop.f32.mrb[0].mxu0
  %v1953 = vadd.f32 %v1817, %v1952
  %v1954 = vpop.f32.mrb[0].mxu0
  %1955 = vmatprep.mubr.bf16.mxu0 0
  %1956 = vmatmul.mubr.bf16.gmra.mrb[0].mxu0 %v1793
  %v1957 = vpop.f32.mrb[0].mxu0
  %v1958 = vadd.f32 %v1817, %v1957
  %v1959 = vpop.f32.mrb[0].mxu0
  %v1960 = vpop.f32.mrb[0].mxu0
  %v1961 = vadd.f32 %v1817, %v1960
  %v1962 = vpop.f32.mrb[0].mxu0
  %1963 = vdwg.mxu0
  %v1964 = vadd.f32 %v1552, %v1902
  %v1965 = vadd.f32 %v1553, %v1905
  %v1966 = vadd.f32 %v1554, %v1910
  %v1967 = vadd.f32 %v1555, %v1913
  %v1968 = vadd.f32 %v1556, %v1918
  %v1969 = vadd.f32 %v1557, %v1921
  %v1970 = vadd.f32 %v1558, %v1926
  %v1971 = vadd.f32 %v1559, %v1929
  %v1972 = vadd.f32 %v1560, %v1934
  %v1973 = vadd.f32 %v1561, %v1937
  %v1974 = vadd.f32 %v1562, %v1942
  %v1975 = vadd.f32 %v1563, %v1945
  %v1976 = vadd.f32 %v1564, %v1950
  %v1977 = vadd.f32 %v1565, %v1953
  %v1978 = vadd.f32 %v1566, %v1958
  %v1979 = vadd.f32 %v1567, %v1961
  %s1980 = scalar_lea.vmem %s5, 1
  %v1981 = vld [vmem:[%s1980] sm:$0x1]
  %s1982 = scalar_lea.vmem %s6, 1
  %v1983 = vld [vmem:[%s1982] sm:$0x1]
  %1984 = vadd.xlane.f32.xlu0 %v1964
  %v1985 = vpop.xlane.xlu0 %1984
  %1986 = vadd.xlane.f32.xlu0 %v1965
  %v1987 = vpop.xlane.xlu0 %1986
  %1988 = vadd.xlane.f32.xlu0 %v1966
  %v1989 = vpop.xlane.xlu0 %1988
  %1990 = vadd.xlane.f32.xlu0 %v1967
  %v1991 = vpop.xlane.xlu0 %1990
  %1992 = vadd.xlane.f32.xlu0 %v1968
  %v1993 = vpop.xlane.xlu0 %1992
  %1994 = vadd.xlane.f32.xlu0 %v1969
  %v1995 = vpop.xlane.xlu0 %1994
  %1996 = vadd.xlane.f32.xlu0 %v1970
  %v1997 = vpop.xlane.xlu0 %1996
  %1998 = vadd.xlane.f32.xlu0 %v1971
  %v1999 = vpop.xlane.xlu0 %1998
  %2000 = vadd.xlane.f32.xlu0 %v1972
  %v2001 = vpop.xlane.xlu0 %2000
  %2002 = vadd.xlane.f32.xlu0 %v1973
  %v2003 = vpop.xlane.xlu0 %2002
  %2004 = vadd.xlane.f32.xlu0 %v1974
  %v2005 = vpop.xlane.xlu0 %2004
  %2006 = vadd.xlane.f32.xlu0 %v1975
  %v2007 = vpop.xlane.xlu0 %2006
  %2008 = vadd.xlane.f32.xlu0 %v1976
  %v2009 = vpop.xlane.xlu0 %2008
  %2010 = vadd.xlane.f32.xlu0 %v1977
  %v2011 = vpop.xlane.xlu0 %2010
  %2012 = vadd.xlane.f32.xlu0 %v1978
  %v2013 = vpop.xlane.xlu0 %2012
  %2014 = vadd.xlane.f32.xlu0 %v1979
  %v2015 = vpop.xlane.xlu0 %2014
  %v2016 = vmul.f32 %v1985, %v519
  %v2017 = vmul.f32 %v1987, %v519
  %v2018 = vmul.f32 %v1989, %v519
  %v2019 = vmul.f32 %v1991, %v519
  %v2020 = vmul.f32 %v1993, %v519
  %v2021 = vmul.f32 %v1995, %v519
  %v2022 = vmul.f32 %v1997, %v519
  %v2023 = vmul.f32 %v1999, %v519
  %v2024 = vmul.f32 %v2001, %v519
  %v2025 = vmul.f32 %v2003, %v519
  %v2026 = vmul.f32 %v2005, %v519
  %v2027 = vmul.f32 %v2007, %v519
  %v2028 = vmul.f32 %v2009, %v519
  %v2029 = vmul.f32 %v2011, %v519
  %v2030 = vmul.f32 %v2013, %v519
  %v2031 = vmul.f32 %v2015, %v519
  %v2032 = vsub.f32 %v1964, %v2016
  %v2033 = vsub.f32 %v1965, %v2017
  %v2034 = vsub.f32 %v1966, %v2018
  %v2035 = vsub.f32 %v1967, %v2019
  %v2036 = vsub.f32 %v1968, %v2020
  %v2037 = vsub.f32 %v1969, %v2021
  %v2038 = vsub.f32 %v1970, %v2022
  %v2039 = vsub.f32 %v1971, %v2023
  %v2040 = vsub.f32 %v1972, %v2024
  %v2041 = vsub.f32 %v1973, %v2025
  %v2042 = vsub.f32 %v1974, %v2026
  %v2043 = vsub.f32 %v1975, %v2027
  %v2044 = vsub.f32 %v1976, %v2028
  %v2045 = vsub.f32 %v1977, %v2029
  %v2046 = vsub.f32 %v1978, %v2030
  %v2047 = vsub.f32 %v1979, %v2031
  %v2048 = vmul.f32 %v2032, %v2032
  %v2049 = vmul.f32 %v2033, %v2033
  %v2050 = vmul.f32 %v2034, %v2034
  %v2051 = vmul.f32 %v2035, %v2035
  %v2052 = vmul.f32 %v2036, %v2036
  %v2053 = vmul.f32 %v2037, %v2037
  %v2054 = vmul.f32 %v2038, %v2038
  %v2055 = vmul.f32 %v2039, %v2039
  %v2056 = vmul.f32 %v2040, %v2040
  %v2057 = vmul.f32 %v2041, %v2041
  %v2058 = vmul.f32 %v2042, %v2042
  %v2059 = vmul.f32 %v2043, %v2043
  %v2060 = vmul.f32 %v2044, %v2044
  %v2061 = vmul.f32 %v2045, %v2045
  %v2062 = vmul.f32 %v2046, %v2046
  %v2063 = vmul.f32 %v2047, %v2047
  %2064 = vadd.xlane.f32.xlu0 %v2048
  %v2065 = vpop.xlane.xlu0 %2064
  %2066 = vadd.xlane.f32.xlu0 %v2049
  %v2067 = vpop.xlane.xlu0 %2066
  %2068 = vadd.xlane.f32.xlu0 %v2050
  %v2069 = vpop.xlane.xlu0 %2068
  %2070 = vadd.xlane.f32.xlu0 %v2051
  %v2071 = vpop.xlane.xlu0 %2070
  %2072 = vadd.xlane.f32.xlu0 %v2052
  %v2073 = vpop.xlane.xlu0 %2072
  %2074 = vadd.xlane.f32.xlu0 %v2053
  %v2075 = vpop.xlane.xlu0 %2074
  %2076 = vadd.xlane.f32.xlu0 %v2054
  %v2077 = vpop.xlane.xlu0 %2076
  %2078 = vadd.xlane.f32.xlu0 %v2055
  %v2079 = vpop.xlane.xlu0 %2078
  %2080 = vadd.xlane.f32.xlu0 %v2056
  %v2081 = vpop.xlane.xlu0 %2080
  %2082 = vadd.xlane.f32.xlu0 %v2057
  %v2083 = vpop.xlane.xlu0 %2082
  %2084 = vadd.xlane.f32.xlu0 %v2058
  %v2085 = vpop.xlane.xlu0 %2084
  %2086 = vadd.xlane.f32.xlu0 %v2059
  %v2087 = vpop.xlane.xlu0 %2086
  %2088 = vadd.xlane.f32.xlu0 %v2060
  %v2089 = vpop.xlane.xlu0 %2088
  %2090 = vadd.xlane.f32.xlu0 %v2061
  %v2091 = vpop.xlane.xlu0 %2090
  %2092 = vadd.xlane.f32.xlu0 %v2062
  %v2093 = vpop.xlane.xlu0 %2092
  %2094 = vadd.xlane.f32.xlu0 %v2063
  %v2095 = vpop.xlane.xlu0 %2094
  %v2096 = vmul.f32 %v2065, %v519
  %v2097 = vmul.f32 %v2067, %v519
  %v2098 = vmul.f32 %v2069, %v519
  %v2099 = vmul.f32 %v2071, %v519
  %v2100 = vmul.f32 %v2073, %v519
  %v2101 = vmul.f32 %v2075, %v519
  %v2102 = vmul.f32 %v2077, %v519
  %v2103 = vmul.f32 %v2079, %v519
  %v2104 = vmul.f32 %v2081, %v519
  %v2105 = vmul.f32 %v2083, %v519
  %v2106 = vmul.f32 %v2085, %v519
  %v2107 = vmul.f32 %v2087, %v519
  %v2108 = vmul.f32 %v2089, %v519
  %v2109 = vmul.f32 %v2091, %v519
  %v2110 = vmul.f32 %v2093, %v519
  %v2111 = vmul.f32 %v2095, %v519
  %v2112 = vadd.f32 %v2096, 1e-05
  %v2113 = vadd.f32 %v2097, 1e-05
  %v2114 = vadd.f32 %v2098, 1e-05
  %v2115 = vadd.f32 %v2099, 1e-05
  %v2116 = vadd.f32 %v2100, 1e-05
  %v2117 = vadd.f32 %v2101, 1e-05
  %v2118 = vadd.f32 %v2102, 1e-05
  %v2119 = vadd.f32 %v2103, 1e-05
  %v2120 = vadd.f32 %v2104, 1e-05
  %v2121 = vadd.f32 %v2105, 1e-05
  %v2122 = vadd.f32 %v2106, 1e-05
  %v2123 = vadd.f32 %v2107, 1e-05
  %v2124 = vadd.f32 %v2108, 1e-05
  %v2125 = vadd.f32 %v2109, 1e-05
  %v2126 = vadd.f32 %v2110, 1e-05
  %v2127 = vadd.f32 %v2111, 1e-05
  %v2128 = vrsqrt.pop %v2112
  %v2129 = vrsqrt.pop %v2113
  %v2130 = vrsqrt.pop %v2114
  %v2131 = vrsqrt.pop %v2115
  %v2132 = vrsqrt.pop %v2116
  %v2133 = vrsqrt.pop %v2117
  %v2134 = vrsqrt.pop %v2118
  %v2135 = vrsqrt.pop %v2119
  %v2136 = vrsqrt.pop %v2120
  %v2137 = vrsqrt.pop %v2121
  %v2138 = vrsqrt.pop %v2122
  %v2139 = vrsqrt.pop %v2123
  %v2140 = vrsqrt.pop %v2124
  %v2141 = vrsqrt.pop %v2125
  %v2142 = vrsqrt.pop %v2126
  %v2143 = vrsqrt.pop %v2127
  %v2144 = vmul.f32 %v2032, %v2128
  %v2145 = vmul.f32 %v2033, %v2129
  %v2146 = vmul.f32 %v2034, %v2130
  %v2147 = vmul.f32 %v2035, %v2131
  %v2148 = vmul.f32 %v2036, %v2132
  %v2149 = vmul.f32 %v2037, %v2133
  %v2150 = vmul.f32 %v2038, %v2134
  %v2151 = vmul.f32 %v2039, %v2135
  %v2152 = vmul.f32 %v2040, %v2136
  %v2153 = vmul.f32 %v2041, %v2137
  %v2154 = vmul.f32 %v2042, %v2138
  %v2155 = vmul.f32 %v2043, %v2139
  %v2156 = vmul.f32 %v2044, %v2140
  %v2157 = vmul.f32 %v2045, %v2141
  %v2158 = vmul.f32 %v2046, %v2142
  %v2159 = vmul.f32 %v2047, %v2143
  %v2161 = vlaneseq
  %v2162 = vshrl.u32 %v2161, 7
  %v2163 = vsub.s32 0, %v2162
  %v2164 = vrot.slane %v1981, %v2163
  %v2166 = vmul.f32 %v2144, %v2164
  %v2167 = vmul.f32 %v2145, %v2164
  %v2168 = vmul.f32 %v2146, %v2164
  %v2169 = vmul.f32 %v2147, %v2164
  %v2170 = vmul.f32 %v2148, %v2164
  %v2171 = vmul.f32 %v2149, %v2164
  %v2172 = vmul.f32 %v2150, %v2164
  %v2173 = vmul.f32 %v2151, %v2164
  %v2174 = vmul.f32 %v2152, %v2164
  %v2175 = vmul.f32 %v2153, %v2164
  %v2176 = vmul.f32 %v2154, %v2164
  %v2177 = vmul.f32 %v2155, %v2164
  %v2178 = vmul.f32 %v2156, %v2164
  %v2179 = vmul.f32 %v2157, %v2164
  %v2180 = vmul.f32 %v2158, %v2164
  %v2181 = vmul.f32 %v2159, %v2164
  %v2183 = vlaneseq
  %v2184 = vshrl.u32 %v2183, 7
  %v2185 = vsub.s32 0, %v2184
  %v2186 = vrot.slane %v1983, %v2185
  %v2188 = vadd.f32 %v2166, %v2186
  %v2189 = vadd.f32 %v2167, %v2186
  %v2190 = vadd.f32 %v2168, %v2186
  %v2191 = vadd.f32 %v2169, %v2186
  %v2192 = vadd.f32 %v2170, %v2186
  %v2193 = vadd.f32 %v2171, %v2186
  %v2194 = vadd.f32 %v2172, %v2186
  %v2195 = vadd.f32 %v2173, %v2186
  %v2196 = vadd.f32 %v2174, %v2186
  %v2197 = vadd.f32 %v2175, %v2186
  %v2198 = vadd.f32 %v2176, %v2186
  %v2199 = vadd.f32 %v2177, %v2186
  %v2200 = vadd.f32 %v2178, %v2186
  %v2201 = vadd.f32 %v2179, %v2186
  %v2202 = vadd.f32 %v2180, %v2186
  %v2203 = vadd.f32 %v2181, %v2186
  %v2204 = vpack.c.bf16 %v2189, %v2188
  %v2205 = vpack.c.bf16 %v2191, %v2190
  %v2206 = vpack.c.bf16 %v2193, %v2192
  %v2207 = vpack.c.bf16 %v2195, %v2194
  %v2208 = vpack.c.bf16 %v2197, %v2196
  %v2209 = vpack.c.bf16 %v2199, %v2198
  %v2210 = vpack.c.bf16 %v2201, %v2200
  %v2211 = vpack.c.bf16 %v2203, %v2202
  %s2212 = scalar_lea.vmem %s7, 128
  %v2213 = vld [vmem:[%s2212] sm:$0xff]
  %v2214 = vld [vmem:[%s2212 + $0x8] sm:$0xff]
  %v2215 = vld [vmem:[%s2212 + $0x10] sm:$0xff]
  %v2216 = vld [vmem:[%s2212 + $0x18] sm:$0xff]
  %v2217 = vld [vmem:[%s2212 + $0x20] sm:$0xff]
  %v2218 = vld [vmem:[%s2212 + $0x28] sm:$0xff]
  %v2219 = vld [vmem:[%s2212 + $0x30] sm:$0xff]
  %v2220 = vld [vmem:[%s2212 + $0x38] sm:$0xff]
  %v2221 = vld [vmem:[%s2212 + $0x40] sm:$0xff]
  %v2222 = vld [vmem:[%s2212 + $0x48] sm:$0xff]
  %v2223 = vld [vmem:[%s2212 + $0x50] sm:$0xff]
  %v2224 = vld [vmem:[%s2212 + $0x58] sm:$0xff]
  %v2225 = vld [vmem:[%s2212 + $0x60] sm:$0xff]
  %v2226 = vld [vmem:[%s2212 + $0x68] sm:$0xff]
  %v2227 = vld [vmem:[%s2212 + $0x70] sm:$0xff]
  %v2228 = vld [vmem:[%s2212 + $0x78] sm:$0xff]
  %s2229 = scalar_lea.vmem %s8, 2
  %v2230 = vld [vmem:[%s2229] sm:$0x3]
  %v2232 = vlaneseq
  %v2233 = vshrl.u32 %v2232, 7
  %v2234 = vsub.s32 0, %v2233
  %v2235 = vrot.slane %v2230, %v2234
  %v2236 = vlaneseq
  %v2237 = vshrl.u32 %v2236, 7
  %v2238 = vsub.s32 1, %v2237
  %v2239 = vrot.slane %v2230, %v2238
  %v2258 = vunpack.c.l.b16 %v2213
  %v2259 = vunpack.c.h.b16 %v2213
  %v2260 = vunpack.c.l.b16 %v2214
  %v2261 = vunpack.c.h.b16 %v2214
  %v2262 = vunpack.c.l.b16 %v2215
  %v2263 = vunpack.c.h.b16 %v2215
  %v2264 = vunpack.c.l.b16 %v2216
  %v2265 = vunpack.c.h.b16 %v2216
  %v2266 = vunpack.c.l.b16 %v2217
  %v2267 = vunpack.c.h.b16 %v2217
  %v2268 = vunpack.c.l.b16 %v2218
  %v2269 = vunpack.c.h.b16 %v2218
  %v2270 = vunpack.c.l.b16 %v2219
  %v2271 = vunpack.c.h.b16 %v2219
  %v2272 = vunpack.c.l.b16 %v2220
  %v2273 = vunpack.c.h.b16 %v2220
  %v2274 = vunpack.c.l.b16 %v2221
  %v2275 = vunpack.c.h.b16 %v2221
  %v2276 = vunpack.c.l.b16 %v2222
  %v2277 = vunpack.c.h.b16 %v2222
  %v2278 = vunpack.c.l.b16 %v2223
  %v2279 = vunpack.c.h.b16 %v2223
  %v2280 = vunpack.c.l.b16 %v2224
  %v2281 = vunpack.c.h.b16 %v2224
  %v2282 = vunpack.c.l.b16 %v2225
  %v2283 = vunpack.c.h.b16 %v2225
  %v2284 = vunpack.c.l.b16 %v2226
  %v2285 = vunpack.c.h.b16 %v2226
  %v2286 = vunpack.c.l.b16 %v2227
  %v2287 = vunpack.c.h.b16 %v2227
  %v2288 = vunpack.c.l.b16 %v2228
  %v2289 = vunpack.c.h.b16 %v2228
  %v2290 = vpack.c.b16 %v2260, %v2258
  %v2291 = vpack.c.b16 %v2261, %v2259
  %v2292 = vpack.c.b16 %v2264, %v2262
  %v2293 = vpack.c.b16 %v2265, %v2263
  %v2294 = vpack.c.b16 %v2268, %v2266
  %v2295 = vpack.c.b16 %v2269, %v2267
  %v2296 = vpack.c.b16 %v2272, %v2270
  %v2297 = vpack.c.b16 %v2273, %v2271
  %v2298 = vpack.c.b16 %v2276, %v2274
  %v2299 = vpack.c.b16 %v2277, %v2275
  %v2300 = vpack.c.b16 %v2280, %v2278
  %v2301 = vpack.c.b16 %v2281, %v2279
  %v2302 = vpack.c.b16 %v2284, %v2282
  %v2303 = vpack.c.b16 %v2285, %v2283
  %v2304 = vpack.c.b16 %v2288, %v2286
  %v2305 = vpack.c.b16 %v2289, %v2287
  %2322 = vmatprep.subr.bf16.mxu0 %v2291
  %2323 = vmatpush1.bf16.msra.mxu0 %v2290
  %2324 = vmatprep.subr.bf16.mxu0 %v2293
  %2325 = vmatpush1.bf16.msra.mxu0 %v2292
  %2326 = vmatprep.subr.bf16.mxu0 %v2295
  %2327 = vmatpush1.bf16.msra.mxu0 %v2294
  %2328 = vmatprep.subr.bf16.mxu0 %v2297
  %2329 = vmatpush1.bf16.msra.mxu0 %v2296
  %2330 = vmatprep.subr.bf16.mxu0 %v2299
  %2331 = vmatpush1.bf16.msra.mxu0 %v2298
  %2332 = vmatprep.subr.bf16.mxu0 %v2301
  %2333 = vmatpush1.bf16.msra.mxu0 %v2300
  %2334 = vmatprep.subr.bf16.mxu0 %v2303
  %2335 = vmatpush1.bf16.msra.mxu0 %v2302
  %2336 = vmatprep.subr.bf16.mxu0 %v2305
  %2337 = vmatpush1.bf16.msra.mxu0 %v2304
  %2338 = vmatprep.subr.bf16.mxu0 0
  %2339 = vmatpush1.bf16.msra.mxu0 0
  %2340 = vmatprep.subr.bf16.mxu0 0
  %2341 = vmatpush1.bf16.msra.mxu0 0
  %2342 = vmatprep.subr.bf16.mxu0 0
  %2343 = vmatpush1.bf16.msra.mxu0 0
  %2344 = vmatprep.subr.bf16.mxu0 0
  %2345 = vmatpush1.bf16.msra.mxu0 0
  %2346 = vmatprep.subr.bf16.mxu0 0
  %2347 = vmatpush1.bf16.msra.mxu0 0
  %2348 = vmatprep.subr.bf16.mxu0 0
  %2349 = vmatpush1.bf16.msra.mxu0 0
  %2350 = vmatprep.subr.bf16.mxu0 0
  %2351 = vmatpush1.bf16.msra.mxu0 0
  %2352 = vmatprep.subr.bf16.mxu0 0
  %2353 = vmatpush1.bf16.msra.mxu0 0
  %2354 = vmatprep.mubr.bf16.mxu0 0
  %2355 = vmatmul.mubr.bf16.gmra.mrb[0].mxu0 %v2204
  %v2356 = vpop.f32.mrb[0].mxu0
  %v2357 = vadd.f32 %v2235, %v2356
  %v2358 = vpop.f32.mrb[0].mxu0
  %v2359 = vadd.f32 %v2239, %v2358
  %v2360 = vpop.f32.mrb[0].mxu0
  %v2361 = vadd.f32 %v2235, %v2360
  %v2362 = vpop.f32.mrb[0].mxu0
  %v2363 = vadd.f32 %v2239, %v2362
  %2364 = vmatprep.mubr.bf16.mxu0 0
  %2365 = vmatmul.mubr.bf16.gmra.mrb[0].mxu0 %v2205
  %v2366 = vpop.f32.mrb[0].mxu0
  %v2367 = vadd.f32 %v2235, %v2366
  %v2368 = vpop.f32.mrb[0].mxu0
  %v2369 = vadd.f32 %v2239, %v2368
  %v2370 = vpop.f32.mrb[0].mxu0
  %v2371 = vadd.f32 %v2235, %v2370
  %v2372 = vpop.f32.mrb[0].mxu0
  %v2373 = vadd.f32 %v2239, %v2372
  %2374 = vmatprep.mubr.bf16.mxu0 0
  %2375 = vmatmul.mubr.bf16.gmra.mrb[0].mxu0 %v2206
  %v2376 = vpop.f32.mrb[0].mxu0
  %v2377 = vadd.f32 %v2235, %v2376
  %v2378 = vpop.f32.mrb[0].mxu0
  %v2379 = vadd.f32 %v2239, %v2378
  %v2380 = vpop.f32.mrb[0].mxu0
  %v2381 = vadd.f32 %v2235, %v2380
  %v2382 = vpop.f32.mrb[0].mxu0
  %v2383 = vadd.f32 %v2239, %v2382
  %2384 = vmatprep.mubr.bf16.mxu0 0
  %2385 = vmatmul.mubr.bf16.gmra.mrb[0].mxu0 %v2207
  %v2386 = vpop.f32.mrb[0].mxu0
  %v2387 = vadd.f32 %v2235, %v2386
  %v2388 = vpop.f32.mrb[0].mxu0
  %v2389 = vadd.f32 %v2239, %v2388
  %v2390 = vpop.f32.mrb[0].mxu0
  %v2391 = vadd.f32 %v2235, %v2390
  %v2392 = vpop.f32.mrb[0].mxu0
  %v2393 = vadd.f32 %v2239, %v2392
  %2394 = vmatprep.mubr.bf16.mxu0 0
  %2395 = vmatmul.mubr.bf16.gmra.mrb[0].mxu0 %v2208
  %v2396 = vpop.f32.mrb[0].mxu0
  %v2397 = vadd.f32 %v2235, %v2396
  %v2398 = vpop.f32.mrb[0].mxu0
  %v2399 = vadd.f32 %v2239, %v2398
  %v2400 = vpop.f32.mrb[0].mxu0
  %v2401 = vadd.f32 %v2235, %v2400
  %v2402 = vpop.f32.mrb[0].mxu0
  %v2403 = vadd.f32 %v2239, %v2402
  %2404 = vmatprep.mubr.bf16.mxu0 0
  %2405 = vmatmul.mubr.bf16.gmra.mrb[0].mxu0 %v2209
  %v2406 = vpop.f32.mrb[0].mxu0
  %v2407 = vadd.f32 %v2235, %v2406
  %v2408 = vpop.f32.mrb[0].mxu0
  %v2409 = vadd.f32 %v2239, %v2408
  %v2410 = vpop.f32.mrb[0].mxu0
  %v2411 = vadd.f32 %v2235, %v2410
  %v2412 = vpop.f32.mrb[0].mxu0
  %v2413 = vadd.f32 %v2239, %v2412
  %2414 = vmatprep.mubr.bf16.mxu0 0
  %2415 = vmatmul.mubr.bf16.gmra.mrb[0].mxu0 %v2210
  %v2416 = vpop.f32.mrb[0].mxu0
  %v2417 = vadd.f32 %v2235, %v2416
  %v2418 = vpop.f32.mrb[0].mxu0
  %v2419 = vadd.f32 %v2239, %v2418
  %v2420 = vpop.f32.mrb[0].mxu0
  %v2421 = vadd.f32 %v2235, %v2420
  %v2422 = vpop.f32.mrb[0].mxu0
  %v2423 = vadd.f32 %v2239, %v2422
  %2424 = vmatprep.mubr.bf16.mxu0 0
  %2425 = vmatmul.mubr.bf16.gmra.mrb[0].mxu0 %v2211
  %v2426 = vpop.f32.mrb[0].mxu0
  %v2427 = vadd.f32 %v2235, %v2426
  %v2428 = vpop.f32.mrb[0].mxu0
  %v2429 = vadd.f32 %v2239, %v2428
  %v2430 = vpop.f32.mrb[0].mxu0
  %v2431 = vadd.f32 %v2235, %v2430
  %v2432 = vpop.f32.mrb[0].mxu0
  %v2433 = vadd.f32 %v2239, %v2432
  %2434 = vdwg.mxu0
  %v2435 = vmax.f32 %v2357, 0.0
  %v2436 = vmax.f32 %v2359, 0.0
  %v2437 = vmax.f32 %v2361, 0.0
  %v2438 = vmax.f32 %v2363, 0.0
  %v2439 = vmax.f32 %v2367, 0.0
  %v2440 = vmax.f32 %v2369, 0.0
  %v2441 = vmax.f32 %v2371, 0.0
  %v2442 = vmax.f32 %v2373, 0.0
  %v2443 = vmax.f32 %v2377, 0.0
  %v2444 = vmax.f32 %v2379, 0.0
  %v2445 = vmax.f32 %v2381, 0.0
  %v2446 = vmax.f32 %v2383, 0.0
  %v2447 = vmax.f32 %v2387, 0.0
  %v2448 = vmax.f32 %v2389, 0.0
  %v2449 = vmax.f32 %v2391, 0.0
  %v2450 = vmax.f32 %v2393, 0.0
  %v2451 = vmax.f32 %v2397, 0.0
  %v2452 = vmax.f32 %v2399, 0.0
  %v2453 = vmax.f32 %v2401, 0.0
  %v2454 = vmax.f32 %v2403, 0.0
  %v2455 = vmax.f32 %v2407, 0.0
  %v2456 = vmax.f32 %v2409, 0.0
  %v2457 = vmax.f32 %v2411, 0.0
  %v2458 = vmax.f32 %v2413, 0.0
  %v2459 = vmax.f32 %v2417, 0.0
  %v2460 = vmax.f32 %v2419, 0.0
  %v2461 = vmax.f32 %v2421, 0.0
  %v2462 = vmax.f32 %v2423, 0.0
  %v2463 = vmax.f32 %v2427, 0.0
  %v2464 = vmax.f32 %v2429, 0.0
  %v2465 = vmax.f32 %v2431, 0.0
  %v2466 = vmax.f32 %v2433, 0.0
  %v2467 = vpack.c.bf16 %v2437, %v2435
  %v2468 = vpack.c.bf16 %v2438, %v2436
  %v2469 = vpack.c.bf16 %v2441, %v2439
  %v2470 = vpack.c.bf16 %v2442, %v2440
  %v2471 = vpack.c.bf16 %v2445, %v2443
  %v2472 = vpack.c.bf16 %v2446, %v2444
  %v2473 = vpack.c.bf16 %v2449, %v2447
  %v2474 = vpack.c.bf16 %v2450, %v2448
  %v2475 = vpack.c.bf16 %v2453, %v2451
  %v2476 = vpack.c.bf16 %v2454, %v2452
  %v2477 = vpack.c.bf16 %v2457, %v2455
  %v2478 = vpack.c.bf16 %v2458, %v2456
  %v2479 = vpack.c.bf16 %v2461, %v2459
  %v2480 = vpack.c.bf16 %v2462, %v2460
  %v2481 = vpack.c.bf16 %v2465, %v2463
  %v2482 = vpack.c.bf16 %v2466, %v2464
  %s2483 = scalar_lea.vmem %s9, 128
  %v2484 = vld [vmem:[%s2483] sm:$0xf]
  %v2485 = vld [vmem:[%s2483 + $0x4] sm:$0xf]
  %v2486 = vld [vmem:[%s2483 + $0x8] sm:$0xf]
  %v2487 = vld [vmem:[%s2483 + $0xc] sm:$0xf]
  %v2488 = vld [vmem:[%s2483 + $0x10] sm:$0xf]
  %v2489 = vld [vmem:[%s2483 + $0x14] sm:$0xf]
  %v2490 = vld [vmem:[%s2483 + $0x18] sm:$0xf]
  %v2491 = vld [vmem:[%s2483 + $0x1c] sm:$0xf]
  %v2492 = vld [vmem:[%s2483 + $0x20] sm:$0xf]
  %v2493 = vld [vmem:[%s2483 + $0x24] sm:$0xf]
  %v2494 = vld [vmem:[%s2483 + $0x28] sm:$0xf]
  %v2495 = vld [vmem:[%s2483 + $0x2c] sm:$0xf]
  %v2496 = vld [vmem:[%s2483 + $0x30] sm:$0xf]
  %v2497 = vld [vmem:[%s2483 + $0x34] sm:$0xf]
  %v2498 = vld [vmem:[%s2483 + $0x38] sm:$0xf]
  %v2499 = vld [vmem:[%s2483 + $0x3c] sm:$0xf]
  %v2500 = vld [vmem:[%s2483 + $0x40] sm:$0xf]
  %v2501 = vld [vmem:[%s2483 + $0x44] sm:$0xf]
  %v2502 = vld [vmem:[%s2483 + $0x48] sm:$0xf]
  %v2503 = vld [vmem:[%s2483 + $0x4c] sm:$0xf]
  %v2504 = vld [vmem:[%s2483 + $0x50] sm:$0xf]
  %v2505 = vld [vmem:[%s2483 + $0x54] sm:$0xf]
  %v2506 = vld [vmem:[%s2483 + $0x58] sm:$0xf]
  %v2507 = vld [vmem:[%s2483 + $0x5c] sm:$0xf]
  %v2508 = vld [vmem:[%s2483 + $0x60] sm:$0xf]
  %v2509 = vld [vmem:[%s2483 + $0x64] sm:$0xf]
  %v2510 = vld [vmem:[%s2483 + $0x68] sm:$0xf]
  %v2511 = vld [vmem:[%s2483 + $0x6c] sm:$0xf]
  %v2512 = vld [vmem:[%s2483 + $0x70] sm:$0xf]
  %v2513 = vld [vmem:[%s2483 + $0x74] sm:$0xf]
  %v2514 = vld [vmem:[%s2483 + $0x78] sm:$0xf]
  %v2515 = vld [vmem:[%s2483 + $0x7c] sm:$0xf]
  %s2516 = scalar_lea.vmem %s10, 1
  %v2517 = vld [vmem:[%s2516] sm:$0x1]
  %v2519 = vlaneseq
  %v2520 = vshrl.u32 %v2519, 7
  %v2521 = vsub.s32 0, %v2520
  %v2522 = vrot.slane %v2517, %v2521
  %v2556 = vunpack.c.l.b16 %v2484
  %v2557 = vunpack.c.l.b16 %v2485
  %v2558 = vunpack.c.l.b16 %v2486
  %v2559 = vunpack.c.l.b16 %v2487
  %v2560 = vunpack.c.l.b16 %v2488
  %v2561 = vunpack.c.l.b16 %v2489
  %v2562 = vunpack.c.l.b16 %v2490
  %v2563 = vunpack.c.l.b16 %v2491
  %v2564 = vunpack.c.l.b16 %v2492
  %v2565 = vunpack.c.l.b16 %v2493
  %v2566 = vunpack.c.l.b16 %v2494
  %v2567 = vunpack.c.l.b16 %v2495
  %v2568 = vunpack.c.l.b16 %v2496
  %v2569 = vunpack.c.l.b16 %v2497
  %v2570 = vunpack.c.l.b16 %v2498
  %v2571 = vunpack.c.l.b16 %v2499
  %v2572 = vunpack.c.l.b16 %v2500
  %v2573 = vunpack.c.l.b16 %v2501
  %v2574 = vunpack.c.l.b16 %v2502
  %v2575 = vunpack.c.l.b16 %v2503
  %v2576 = vunpack.c.l.b16 %v2504
  %v2577 = vunpack.c.l.b16 %v2505
  %v2578 = vunpack.c.l.b16 %v2506
  %v2579 = vunpack.c.l.b16 %v2507
  %v2580 = vunpack.c.l.b16 %v2508
  %v2581 = vunpack.c.l.b16 %v2509
  %v2582 = vunpack.c.l.b16 %v2510
  %v2583 = vunpack.c.l.b16 %v2511
  %v2584 = vunpack.c.l.b16 %v2512
  %v2585 = vunpack.c.l.b16 %v2513
  %v2586 = vunpack.c.l.b16 %v2514
  %v2587 = vunpack.c.l.b16 %v2515
  %v2588 = vpack.c.b16 %v2557, %v2556
  %v2589 = vpack.c.b16 %v2559, %v2558
  %v2590 = vpack.c.b16 %v2561, %v2560
  %v2591 = vpack.c.b16 %v2563, %v2562
  %v2592 = vpack.c.b16 %v2565, %v2564
  %v2593 = vpack.c.b16 %v2567, %v2566
  %v2594 = vpack.c.b16 %v2569, %v2568
  %v2595 = vpack.c.b16 %v2571, %v2570
  %v2596 = vpack.c.b16 %v2573, %v2572
  %v2597 = vpack.c.b16 %v2575, %v2574
  %v2598 = vpack.c.b16 %v2577, %v2576
  %v2599 = vpack.c.b16 %v2579, %v2578
  %v2600 = vpack.c.b16 %v2581, %v2580
  %v2601 = vpack.c.b16 %v2583, %v2582
  %v2602 = vpack.c.b16 %v2585, %v2584
  %v2603 = vpack.c.b16 %v2587, %v2586
  %2620 = vmatprep.subr.bf16.mxu0 0
  %2621 = vmatpush1.bf16.msra.mxu0 %v2588
  %2622 = vmatprep.subr.bf16.mxu0 0
  %2623 = vmatpush1.bf16.msra.mxu0 %v2589
  %2624 = vmatprep.subr.bf16.mxu0 0
  %2625 = vmatpush1.bf16.msra.mxu0 %v2590
  %2626 = vmatprep.subr.bf16.mxu0 0
  %2627 = vmatpush1.bf16.msra.mxu0 %v2591
  %2628 = vmatprep.subr.bf16.mxu0 0
  %2629 = vmatpush1.bf16.msra.mxu0 %v2592
  %2630 = vmatprep.subr.bf16.mxu0 0
  %2631 = vmatpush1.bf16.msra.mxu0 %v2593
  %2632 = vmatprep.subr.bf16.mxu0 0
  %2633 = vmatpush1.bf16.msra.mxu0 %v2594
  %2634 = vmatprep.subr.bf16.mxu0 0
  %2635 = vmatpush1.bf16.msra.mxu0 %v2595
  %2636 = vmatprep.subr.bf16.mxu0 0
  %2637 = vmatpush1.bf16.msra.mxu0 %v2596
  %2638 = vmatprep.subr.bf16.mxu0 0
  %2639 = vmatpush1.bf16.msra.mxu0 %v2597
  %2640 = vmatprep.subr.bf16.mxu0 0
  %2641 = vmatpush1.bf16.msra.mxu0 %v2598
  %2642 = vmatprep.subr.bf16.mxu0 0
  %2643 = vmatpush1.bf16.msra.mxu0 %v2599
  %2644 = vmatprep.subr.bf16.mxu0 0
  %2645 = vmatpush1.bf16.msra.mxu0 %v2600
  %2646 = vmatprep.subr.bf16.mxu0 0
  %2647 = vmatpush1.bf16.msra.mxu0 %v2601
  %2648 = vmatprep.subr.bf16.mxu0 0
  %2649 = vmatpush1.bf16.msra.mxu0 %v2602
  %2650 = vmatprep.subr.bf16.mxu0 0
  %2651 = vmatpush1.bf16.msra.mxu0 %v2603
  %2652 = vmatprep.mubr.bf16.mxu0 %v2468
  %2653 = vmatmul.mubr.bf16.gmra.mrb[0].mxu0 %v2467
  %v2654 = vpop.f32.mrb[0].mxu0
  %v2655 = vadd.f32 %v2522, %v2654
  %v2656 = vpop.f32.mrb[0].mxu0
  %v2657 = vpop.f32.mrb[0].mxu0
  %v2658 = vadd.f32 %v2522, %v2657
  %v2659 = vpop.f32.mrb[0].mxu0
  %2660 = vmatprep.mubr.bf16.mxu0 %v2470
  %2661 = vmatmul.mubr.bf16.gmra.mrb[0].mxu0 %v2469
  %v2662 = vpop.f32.mrb[0].mxu0
  %v2663 = vadd.f32 %v2522, %v2662
  %v2664 = vpop.f32.mrb[0].mxu0
  %v2665 = vpop.f32.mrb[0].mxu0
  %v2666 = vadd.f32 %v2522, %v2665
  %v2667 = vpop.f32.mrb[0].mxu0
  %2668 = vmatprep.mubr.bf16.mxu0 %v2472
  %2669 = vmatmul.mubr.bf16.gmra.mrb[0].mxu0 %v2471
  %v2670 = vpop.f32.mrb[0].mxu0
  %v2671 = vadd.f32 %v2522, %v2670
  %v2672 = vpop.f32.mrb[0].mxu0
  %v2673 = vpop.f32.mrb[0].mxu0
  %v2674 = vadd.f32 %v2522, %v2673
  %v2675 = vpop.f32.mrb[0].mxu0
  %2676 = vmatprep.mubr.bf16.mxu0 %v2474
  %2677 = vmatmul.mubr.bf16.gmra.mrb[0].mxu0 %v2473
  %v2678 = vpop.f32.mrb[0].mxu0
  %v2679 = vadd.f32 %v2522, %v2678
  %v2680 = vpop.f32.mrb[0].mxu0
  %v2681 = vpop.f32.mrb[0].mxu0
  %v2682 = vadd.f32 %v2522, %v2681
  %v2683 = vpop.f32.mrb[0].mxu0
  %2684 = vmatprep.mubr.bf16.mxu0 %v2476
  %2685 = vmatmul.mubr.bf16.gmra.mrb[0].mxu0 %v2475
  %v2686 = vpop.f32.mrb[0].mxu0
  %v2687 = vadd.f32 %v2522, %v2686
  %v2688 = vpop.f32.mrb[0].mxu0
  %v2689 = vpop.f32.mrb[0].mxu0
  %v2690 = vadd.f32 %v2522, %v2689
  %v2691 = vpop.f32.mrb[0].mxu0
  %2692 = vmatprep.mubr.bf16.mxu0 %v2478
  %2693 = vmatmul.mubr.bf16.gmra.mrb[0].mxu0 %v2477
  %v2694 = vpop.f32.mrb[0].mxu0
  %v2695 = vadd.f32 %v2522, %v2694
  %v2696 = vpop.f32.mrb[0].mxu0
  %v2697 = vpop.f32.mrb[0].mxu0
  %v2698 = vadd.f32 %v2522, %v2697
  %v2699 = vpop.f32.mrb[0].mxu0
  %2700 = vmatprep.mubr.bf16.mxu0 %v2480
  %2701 = vmatmul.mubr.bf16.gmra.mrb[0].mxu0 %v2479
  %v2702 = vpop.f32.mrb[0].mxu0
  %v2703 = vadd.f32 %v2522, %v2702
  %v2704 = vpop.f32.mrb[0].mxu0
  %v2705 = vpop.f32.mrb[0].mxu0
  %v2706 = vadd.f32 %v2522, %v2705
  %v2707 = vpop.f32.mrb[0].mxu0
  %2708 = vmatprep.mubr.bf16.mxu0 %v2482
  %2709 = vmatmul.mubr.bf16.gmra.mrb[0].mxu0 %v2481
  %v2710 = vpop.f32.mrb[0].mxu0
  %v2711 = vadd.f32 %v2522, %v2710
  %v2712 = vpop.f32.mrb[0].mxu0
  %v2713 = vpop.f32.mrb[0].mxu0
  %v2714 = vadd.f32 %v2522, %v2713
  %v2715 = vpop.f32.mrb[0].mxu0
  %2716 = vdwg.mxu0
  %v2717 = vadd.f32 %v2188, %v2655
  %v2718 = vadd.f32 %v2189, %v2658
  %v2719 = vadd.f32 %v2190, %v2663
  %v2720 = vadd.f32 %v2191, %v2666
  %v2721 = vadd.f32 %v2192, %v2671
  %v2722 = vadd.f32 %v2193, %v2674
  %v2723 = vadd.f32 %v2194, %v2679
  %v2724 = vadd.f32 %v2195, %v2682
  %v2725 = vadd.f32 %v2196, %v2687
  %v2726 = vadd.f32 %v2197, %v2690
  %v2727 = vadd.f32 %v2198, %v2695
  %v2728 = vadd.f32 %v2199, %v2698
  %v2729 = vadd.f32 %v2200, %v2703
  %v2730 = vadd.f32 %v2201, %v2706
  %v2731 = vadd.f32 %v2202, %v2711
  %v2732 = vadd.f32 %v2203, %v2714
  %s2733 = scalar_lea.vmem %s11, 1
  %v2734 = vld [vmem:[%s2733] sm:$0x1]
  %s2735 = scalar_lea.vmem %s12, 1
  %v2736 = vld [vmem:[%s2735] sm:$0x1]
  %2737 = vadd.xlane.f32.xlu0 %v2717
  %v2738 = vpop.xlane.xlu0 %2737
  %2739 = vadd.xlane.f32.xlu0 %v2718
  %v2740 = vpop.xlane.xlu0 %2739
  %2741 = vadd.xlane.f32.xlu0 %v2719
  %v2742 = vpop.xlane.xlu0 %2741
  %2743 = vadd.xlane.f32.xlu0 %v2720
  %v2744 = vpop.xlane.xlu0 %2743
  %2745 = vadd.xlane.f32.xlu0 %v2721
  %v2746 = vpop.xlane.xlu0 %2745
  %2747 = vadd.xlane.f32.xlu0 %v2722
  %v2748 = vpop.xlane.xlu0 %2747
  %2749 = vadd.xlane.f32.xlu0 %v2723
  %v2750 = vpop.xlane.xlu0 %2749
  %2751 = vadd.xlane.f32.xlu0 %v2724
  %v2752 = vpop.xlane.xlu0 %2751
  %2753 = vadd.xlane.f32.xlu0 %v2725
  %v2754 = vpop.xlane.xlu0 %2753
  %2755 = vadd.xlane.f32.xlu0 %v2726
  %v2756 = vpop.xlane.xlu0 %2755
  %2757 = vadd.xlane.f32.xlu0 %v2727
  %v2758 = vpop.xlane.xlu0 %2757
  %2759 = vadd.xlane.f32.xlu0 %v2728
  %v2760 = vpop.xlane.xlu0 %2759
  %2761 = vadd.xlane.f32.xlu0 %v2729
  %v2762 = vpop.xlane.xlu0 %2761
  %2763 = vadd.xlane.f32.xlu0 %v2730
  %v2764 = vpop.xlane.xlu0 %2763
  %2765 = vadd.xlane.f32.xlu0 %v2731
  %v2766 = vpop.xlane.xlu0 %2765
  %2767 = vadd.xlane.f32.xlu0 %v2732
  %v2768 = vpop.xlane.xlu0 %2767
  %v2769 = vmul.f32 %v2738, %v519
  %v2770 = vmul.f32 %v2740, %v519
  %v2771 = vmul.f32 %v2742, %v519
  %v2772 = vmul.f32 %v2744, %v519
  %v2773 = vmul.f32 %v2746, %v519
  %v2774 = vmul.f32 %v2748, %v519
  %v2775 = vmul.f32 %v2750, %v519
  %v2776 = vmul.f32 %v2752, %v519
  %v2777 = vmul.f32 %v2754, %v519
  %v2778 = vmul.f32 %v2756, %v519
  %v2779 = vmul.f32 %v2758, %v519
  %v2780 = vmul.f32 %v2760, %v519
  %v2781 = vmul.f32 %v2762, %v519
  %v2782 = vmul.f32 %v2764, %v519
  %v2783 = vmul.f32 %v2766, %v519
  %v2784 = vmul.f32 %v2768, %v519
  %v2785 = vsub.f32 %v2717, %v2769
  %v2786 = vsub.f32 %v2718, %v2770
  %v2787 = vsub.f32 %v2719, %v2771
  %v2788 = vsub.f32 %v2720, %v2772
  %v2789 = vsub.f32 %v2721, %v2773
  %v2790 = vsub.f32 %v2722, %v2774
  %v2791 = vsub.f32 %v2723, %v2775
  %v2792 = vsub.f32 %v2724, %v2776
  %v2793 = vsub.f32 %v2725, %v2777
  %v2794 = vsub.f32 %v2726, %v2778
  %v2795 = vsub.f32 %v2727, %v2779
  %v2796 = vsub.f32 %v2728, %v2780
  %v2797 = vsub.f32 %v2729, %v2781
  %v2798 = vsub.f32 %v2730, %v2782
  %v2799 = vsub.f32 %v2731, %v2783
  %v2800 = vsub.f32 %v2732, %v2784
  %v2801 = vmul.f32 %v2785, %v2785
  %v2802 = vmul.f32 %v2786, %v2786
  %v2803 = vmul.f32 %v2787, %v2787
  %v2804 = vmul.f32 %v2788, %v2788
  %v2805 = vmul.f32 %v2789, %v2789
  %v2806 = vmul.f32 %v2790, %v2790
  %v2807 = vmul.f32 %v2791, %v2791
  %v2808 = vmul.f32 %v2792, %v2792
  %v2809 = vmul.f32 %v2793, %v2793
  %v2810 = vmul.f32 %v2794, %v2794
  %v2811 = vmul.f32 %v2795, %v2795
  %v2812 = vmul.f32 %v2796, %v2796
  %v2813 = vmul.f32 %v2797, %v2797
  %v2814 = vmul.f32 %v2798, %v2798
  %v2815 = vmul.f32 %v2799, %v2799
  %v2816 = vmul.f32 %v2800, %v2800
  %2817 = vadd.xlane.f32.xlu0 %v2801
  %v2818 = vpop.xlane.xlu0 %2817
  %2819 = vadd.xlane.f32.xlu0 %v2802
  %v2820 = vpop.xlane.xlu0 %2819
  %2821 = vadd.xlane.f32.xlu0 %v2803
  %v2822 = vpop.xlane.xlu0 %2821
  %2823 = vadd.xlane.f32.xlu0 %v2804
  %v2824 = vpop.xlane.xlu0 %2823
  %2825 = vadd.xlane.f32.xlu0 %v2805
  %v2826 = vpop.xlane.xlu0 %2825
  %2827 = vadd.xlane.f32.xlu0 %v2806
  %v2828 = vpop.xlane.xlu0 %2827
  %2829 = vadd.xlane.f32.xlu0 %v2807
  %v2830 = vpop.xlane.xlu0 %2829
  %2831 = vadd.xlane.f32.xlu0 %v2808
  %v2832 = vpop.xlane.xlu0 %2831
  %2833 = vadd.xlane.f32.xlu0 %v2809
  %v2834 = vpop.xlane.xlu0 %2833
  %2835 = vadd.xlane.f32.xlu0 %v2810
  %v2836 = vpop.xlane.xlu0 %2835
  %2837 = vadd.xlane.f32.xlu0 %v2811
  %v2838 = vpop.xlane.xlu0 %2837
  %2839 = vadd.xlane.f32.xlu0 %v2812
  %v2840 = vpop.xlane.xlu0 %2839
  %2841 = vadd.xlane.f32.xlu0 %v2813
  %v2842 = vpop.xlane.xlu0 %2841
  %2843 = vadd.xlane.f32.xlu0 %v2814
  %v2844 = vpop.xlane.xlu0 %2843
  %2845 = vadd.xlane.f32.xlu0 %v2815
  %v2846 = vpop.xlane.xlu0 %2845
  %2847 = vadd.xlane.f32.xlu0 %v2816
  %v2848 = vpop.xlane.xlu0 %2847
  %v2849 = vmul.f32 %v2818, %v519
  %v2850 = vmul.f32 %v2820, %v519
  %v2851 = vmul.f32 %v2822, %v519
  %v2852 = vmul.f32 %v2824, %v519
  %v2853 = vmul.f32 %v2826, %v519
  %v2854 = vmul.f32 %v2828, %v519
  %v2855 = vmul.f32 %v2830, %v519
  %v2856 = vmul.f32 %v2832, %v519
  %v2857 = vmul.f32 %v2834, %v519
  %v2858 = vmul.f32 %v2836, %v519
  %v2859 = vmul.f32 %v2838, %v519
  %v2860 = vmul.f32 %v2840, %v519
  %v2861 = vmul.f32 %v2842, %v519
  %v2862 = vmul.f32 %v2844, %v519
  %v2863 = vmul.f32 %v2846, %v519
  %v2864 = vmul.f32 %v2848, %v519
  %v2865 = vadd.f32 %v2849, 1e-05
  %v2866 = vadd.f32 %v2850, 1e-05
  %v2867 = vadd.f32 %v2851, 1e-05
  %v2868 = vadd.f32 %v2852, 1e-05
  %v2869 = vadd.f32 %v2853, 1e-05
  %v2870 = vadd.f32 %v2854, 1e-05
  %v2871 = vadd.f32 %v2855, 1e-05
  %v2872 = vadd.f32 %v2856, 1e-05
  %v2873 = vadd.f32 %v2857, 1e-05
  %v2874 = vadd.f32 %v2858, 1e-05
  %v2875 = vadd.f32 %v2859, 1e-05
  %v2876 = vadd.f32 %v2860, 1e-05
  %v2877 = vadd.f32 %v2861, 1e-05
  %v2878 = vadd.f32 %v2862, 1e-05
  %v2879 = vadd.f32 %v2863, 1e-05
  %v2880 = vadd.f32 %v2864, 1e-05
  %v2881 = vrsqrt.pop %v2865
  %v2882 = vrsqrt.pop %v2866
  %v2883 = vrsqrt.pop %v2867
  %v2884 = vrsqrt.pop %v2868
  %v2885 = vrsqrt.pop %v2869
  %v2886 = vrsqrt.pop %v2870
  %v2887 = vrsqrt.pop %v2871
  %v2888 = vrsqrt.pop %v2872
  %v2889 = vrsqrt.pop %v2873
  %v2890 = vrsqrt.pop %v2874
  %v2891 = vrsqrt.pop %v2875
  %v2892 = vrsqrt.pop %v2876
  %v2893 = vrsqrt.pop %v2877
  %v2894 = vrsqrt.pop %v2878
  %v2895 = vrsqrt.pop %v2879
  %v2896 = vrsqrt.pop %v2880
  %v2897 = vmul.f32 %v2785, %v2881
  %v2898 = vmul.f32 %v2786, %v2882
  %v2899 = vmul.f32 %v2787, %v2883
  %v2900 = vmul.f32 %v2788, %v2884
  %v2901 = vmul.f32 %v2789, %v2885
  %v2902 = vmul.f32 %v2790, %v2886
  %v2903 = vmul.f32 %v2791, %v2887
  %v2904 = vmul.f32 %v2792, %v2888
  %v2905 = vmul.f32 %v2793, %v2889
  %v2906 = vmul.f32 %v2794, %v2890
  %v2907 = vmul.f32 %v2795, %v2891
  %v2908 = vmul.f32 %v2796, %v2892
  %v2909 = vmul.f32 %v2797, %v2893
  %v2910 = vmul.f32 %v2798, %v2894
  %v2911 = vmul.f32 %v2799, %v2895
  %v2912 = vmul.f32 %v2800, %v2896
  %v2914 = vlaneseq
  %v2915 = vshrl.u32 %v2914, 7
  %v2916 = vsub.s32 0, %v2915
  %v2917 = vrot.slane %v2734, %v2916
  %v2919 = vmul.f32 %v2897, %v2917
  %v2920 = vmul.f32 %v2898, %v2917
  %v2921 = vmul.f32 %v2899, %v2917
  %v2922 = vmul.f32 %v2900, %v2917
  %v2923 = vmul.f32 %v2901, %v2917
  %v2924 = vmul.f32 %v2902, %v2917
  %v2925 = vmul.f32 %v2903, %v2917
  %v2926 = vmul.f32 %v2904, %v2917
  %v2927 = vmul.f32 %v2905, %v2917
  %v2928 = vmul.f32 %v2906, %v2917
  %v2929 = vmul.f32 %v2907, %v2917
  %v2930 = vmul.f32 %v2908, %v2917
  %v2931 = vmul.f32 %v2909, %v2917
  %v2932 = vmul.f32 %v2910, %v2917
  %v2933 = vmul.f32 %v2911, %v2917
  %v2934 = vmul.f32 %v2912, %v2917
  %v2936 = vlaneseq
  %v2937 = vshrl.u32 %v2936, 7
  %v2938 = vsub.s32 0, %v2937
  %v2939 = vrot.slane %v2736, %v2938
  %v2941 = vadd.f32 %v2919, %v2939
  %v2942 = vadd.f32 %v2920, %v2939
  %v2943 = vadd.f32 %v2921, %v2939
  %v2944 = vadd.f32 %v2922, %v2939
  %v2945 = vadd.f32 %v2923, %v2939
  %v2946 = vadd.f32 %v2924, %v2939
  %v2947 = vadd.f32 %v2925, %v2939
  %v2948 = vadd.f32 %v2926, %v2939
  %v2949 = vadd.f32 %v2927, %v2939
  %v2950 = vadd.f32 %v2928, %v2939
  %v2951 = vadd.f32 %v2929, %v2939
  %v2952 = vadd.f32 %v2930, %v2939
  %v2953 = vadd.f32 %v2931, %v2939
  %v2954 = vadd.f32 %v2932, %v2939
  %v2955 = vadd.f32 %v2933, %v2939
  %v2956 = vadd.f32 %v2934, %v2939
  %v2957 = vpack.c.bf16 %v2942, %v2941
  %v2958 = vpack.c.bf16 %v2944, %v2943
  %v2959 = vpack.c.bf16 %v2946, %v2945
  %v2960 = vpack.c.bf16 %v2948, %v2947
  %v2961 = vpack.c.bf16 %v2950, %v2949
  %v2962 = vpack.c.bf16 %v2952, %v2951
  %v2963 = vpack.c.bf16 %v2954, %v2953
  %v2964 = vpack.c.bf16 %v2956, %v2955
  %v2973 = vunpack.c.l.b16 %v2957
  %v2974 = vunpack.c.h.b16 %v2957
  %v2975 = vunpack.c.l.b16 %v2958
  %v2976 = vunpack.c.h.b16 %v2958
  %v2977 = vunpack.c.l.b16 %v2959
  %v2978 = vunpack.c.h.b16 %v2959
  %v2979 = vunpack.c.l.b16 %v2960
  %v2980 = vunpack.c.h.b16 %v2960
  %v2981 = vunpack.c.l.b16 %v2961
  %v2982 = vunpack.c.h.b16 %v2961
  %v2983 = vunpack.c.l.b16 %v2962
  %v2984 = vunpack.c.h.b16 %v2962
  %v2985 = vunpack.c.l.b16 %v2963
  %v2986 = vunpack.c.h.b16 %v2963
  %v2987 = vunpack.c.l.b16 %v2964
  %v2988 = vunpack.c.h.b16 %v2964
  %v2989 = vpack.c.b16 %v2973, %v2973
  %v2990 = vpack.c.b16 %v2974, %v2974
  %v2991 = vpack.c.b16 %v2975, %v2975
  %v2992 = vpack.c.b16 %v2976, %v2976
  %v2993 = vpack.c.b16 %v2977, %v2977
  %v2994 = vpack.c.b16 %v2978, %v2978
  %v2995 = vpack.c.b16 %v2979, %v2979
  %v2996 = vpack.c.b16 %v2980, %v2980
  %v2997 = vpack.c.b16 %v2981, %v2981
  %v2998 = vpack.c.b16 %v2982, %v2982
  %v2999 = vpack.c.b16 %v2983, %v2983
  %v3000 = vpack.c.b16 %v2984, %v2984
  %v3001 = vpack.c.b16 %v2985, %v2985
  %v3002 = vpack.c.b16 %v2986, %v2986
  %v3003 = vpack.c.b16 %v2987, %v2987
  %v3004 = vpack.c.b16 %v2988, %v2988
  %s3021 = scalar_lea.vmem %s13, 64
  %3022 = vst [vmem:[%s3021] sm:$0xf] %v2989
  %3023 = vst [vmem:[%s3021 + $0x4] sm:$0xf] %v2990
  %3024 = vst [vmem:[%s3021 + $0x8] sm:$0xf] %v2991
  %3025 = vst [vmem:[%s3021 + $0xc] sm:$0xf] %v2992
  %3026 = vst [vmem:[%s3021 + $0x10] sm:$0xf] %v2993
  %3027 = vst [vmem:[%s3021 + $0x14] sm:$0xf] %v2994
  %3028 = vst [vmem:[%s3021 + $0x18] sm:$0xf] %v2995
  %3029 = vst [vmem:[%s3021 + $0x1c] sm:$0xf] %v2996
  %3030 = vst [vmem:[%s3021 + $0x20] sm:$0xf] %v2997
  %3031 = vst [vmem:[%s3021 + $0x24] sm:$0xf] %v2998
  %3032 = vst [vmem:[%s3021 + $0x28] sm:$0xf] %v2999
  %3033 = vst [vmem:[%s3021 + $0x2c] sm:$0xf] %v3000
  %3034 = vst [vmem:[%s3021 + $0x30] sm:$0xf] %v3001
  %3035 = vst [vmem:[%s3021 + $0x34] sm:$0xf] %v3002
  %3036 = vst [vmem:[%s3021 + $0x38] sm:$0xf] %v3003
  %3037 = vst [vmem:[%s3021 + $0x3c] sm:$0xf] %v3004
  // Predicated region
  $region54: #{_lvar_val_forward.2} parent=0 // pred_check
    _
  $region55: #{_lvar_val_forward.2} parent=0 // pred_check_branch
    %3039 = sbr.rel (0) target = $region57
  $region56: #{_lvar_val_forward.2} parent=0 // pred_region
    _
  $region57: #{_lvar_val_forward.2} parent=0 // pred_fallthru
    _
  // Predicated region
  $region58: #{_lvar_val_forward.2} parent=0 // pred_check
    _
  $region59: #{_lvar_val_forward.2} parent=0 // pred_check_branch
    %3041 = sbr.rel (0) target = $region61
  $region60: #{_lvar_val_forward.2} parent=0 // pred_region
    _
  $region61: #{_lvar_val_forward.2} parent=0 // pred_fallthru
    _

</llo_original>
